<compile_context>
chip_gen: v7x
topology: tpu7x:2x2x1
jax: 0.10.0
libtpu: 0.0.40
codegen_flags: <defaults>
</compile_context>

<pallas_src>
import numpy as np
import jax
import jax.numpy as jnp
from jax.experimental import pallas as pl
from jax.experimental.pallas import tpu as pltpu

# ----- problem sizes (small, consistent with the module defaults) -----
N_NODES = 8
NUM_DIMS = 3
IN_NODE_NF = 1
IN_EDGE_NF = 2
HIDDEN_NF = 32
N_LAYERS = 4
CLASS_EMB_DIM = 16
FIELD_HIDDEN = 32
COORDS_WEIGHT = 1.0
N_EDGES = N_NODES * (N_NODES - 1)           # fully connected, no self loops
BATCH = 4                                   # independent graphs
NODE_F = IN_NODE_NF + 2 * NUM_DIMS + 1      # packed node lanes: h0 | x | vel | charge


def _silu(x):
    return x * jax.nn.sigmoid(x)


def _num_batch_blocks(batch):
    """2 batch blocks on dual-TensorCore chips (v7x) so the 'parallel' grid
    axis shards across cores; 1 block (grid=(1,)) on single-TC v5e/v6e where
    extra grid steps are pure per-step overhead."""
    try:
        kind = jax.devices()[0].device_kind.lower()
        blocks = 2 if ("v7" in kind or "7x" in kind) else 1
    except Exception:
        blocks = 1
    while blocks > 1 and batch % blocks:
        blocks -= 1
    return max(blocks, 1)


# =============================== fused Pallas kernel ==========================

def _fused_kernel(node_ref, lhs_ref, sdiff_ref, asum_ref, invc_ref,
                  emb_ref, f_wa_ref, f_wb_ref, f_b_ref,
                  w_h_ref, b_h_ref, w_rea_ref, w_mid_ref, b_mid_ref,
                  w_n2c2_ref, b_n2_ref, w_vf2_ref, b_vf2_ref,
                  x_out_ref):
    H = HIDDEN_NF
    D = NUM_DIMS

    def mm(a, b):
        # TODO(synk): bf16 operands (f32 accumulate) would cut MXU passes ~3x,
        # but needs the 1e-3 reference tolerance re-validated; kept f32 exact.
        return jnp.dot(a, b, preferred_element_type=jnp.float32)

    node = node_ref[0]                 # [Nb, 8] = [h0 | x | vel | charge]
    h0 = node[:, 0:1]
    x = node[:, 1:1 + D]
    v = node[:, 1 + D:1 + 2 * D]

    lhs = lhs_ref[0]                   # [Eb, 2*Nb+2] = [srow | scol | edge_attr]
    sdiff = sdiff_ref[...]             # [Eb, Nb]  (srow - scol)
    asum = asum_ref[...]               # [Nb, Eb]  segment-sum matrix
    inv_cnt = invc_ref[...]            # [Nb, 1]   1 / incoming-edge count

    # ----- FieldNetwork (charge-embedding linear folded into first layer) ----
    f_wa = f_wa_ref[...]               # [2D+1, H]: W_x | W_v | w_ch (rows)
    f_b = f_b_ref[...]                 # [1, 2H+D]
    z = _silu(mm(node[:, 1:NODE_F], f_wa) + f_b[:, 0:H])
    z = _silu(mm(z, f_wb_ref[:, 0:H]) + f_b[:, H:2 * H])
    pf = mm(z, f_wb_ref[:, H:H + D]) + f_b[:, 2 * H:2 * H + D]     # [Nb, D]

    # ----- node embedding (in_node_nf == 1 -> broadcast instead of K=1 matmul)
    h = h0 * emb_ref[0:1, :] + emb_ref[1:2, :]                     # [Nb, H]

    # ----- unrolled E_GCL_vel_field layers -----
    for l in range(N_LAYERS):
        # one fused h-projection, lane-aligned: [vw1|fw1 (0:64) | W_hi | W_hj | W_nh]
        hp = mm(h, w_h_ref[l]) + b_h_ref[l]                        # [Nb, 5H]
        gate_pre = hp[:, 0:2 * H]          # [h@vw1+vb1 | h@fw1+fb1]
        hp_i = hp[:, 2 * H:3 * H]          # h@W_hi + eb1
        hp_j = hp[:, 3 * H:4 * H]          # h@W_hj
        nh_pre = hp[:, 4 * H:5 * H]        # h@W_nh + nb1

        # edge geometry: single difference-incidence matmul
        cd = mm(sdiff, x)                                          # [Eb, D]
        radial = jnp.sum(cd * cd, axis=-1, keepdims=True)          # [Eb, 1]

        # edge MLP first layer: one fused matmul against [srow|scol|ea]
        wrea = w_rea_ref[l]                                        # [3, H]
        rhs = jnp.concatenate([hp_i, hp_j, wrea[1:3]], axis=0)     # [2Nb+2, H]
        m1 = _silu(mm(lhs, rhs) + radial * wrea[0:1])              # [Eb, H]

        wm = w_mid_ref[l]                  # [H, 3H]: ew2 | cw1 | W_na
        bm = b_mid_ref[l]                  # [1, 3H]: eb2 | cb1 | 0
        m = _silu(mm(m1, wm[:, 0:H]) + bm[:, 0:H])                 # edge message
        y = mm(m, wm[:, H:3 * H])                                  # [Eb, 2H]
        c = _silu(y[:, 0:H] + bm[:, H:2 * H])                      # coord hidden
        mna = y[:, H:2 * H]                                        # m @ W_na

        wn = w_n2c2_ref[l]                 # [H, H+1]: nw2 | cw2
        phi = mm(c, wn[:, H:H + 1])                                # [Eb, 1]

        # fused aggregation: node message sum + coord mean in one matmul
        agg = mm(asum, jnp.concatenate([mna, cd * phi], axis=1))   # [Nb, H+D]
        agg_h = agg[:, 0:H]
        agg_x = agg[:, H:H + D] * inv_cnt

        # fused velocity / field gates (block-diagonal second layer)
        coefs = mm(_silu(gate_pre), w_vf2_ref[l]) + b_vf2_ref[l]   # [Nb, 2]
        x = (x + COORDS_WEIGHT * agg_x
             + coefs[:, 0:1] * v + coefs[:, 1:2] * pf)

        # node model (recurrent=False by module default), concat-free
        n_hid = _silu(nh_pre + agg_h)
        h = mm(n_hid, wn[:, 0:H]) + b_n2_ref[l]

    x_out_ref[0] = x


# =============================== wrapper ======================================

def egnn_vel_aether_forward(h, x, vel, edge_attr, charges, srow, scol, packed,
                            num_batch_blocks=None):
    B, N, _ = h.shape
    E = edge_attr.shape[1]
    if num_batch_blocks is None:
        num_batch_blocks = _num_batch_blocks(B)
    b_blk = B // num_batch_blocks
    n_blk = b_blk * N
    e_blk = b_blk * E

    # block-diagonal incidence / aggregation matrices for one batch block
    eye = jnp.eye(b_blk, dtype=jnp.float32)
    srow_blk = jnp.kron(eye, srow)                       # [e_blk, n_blk]
    scol_blk = jnp.kron(eye, scol)                       # [e_blk, n_blk]
    sdiff = srow_blk - scol_blk                          # [e_blk, n_blk]
    asum = srow_blk.T                                    # [n_blk, e_blk]
    inv_cnt = 1.0 / jnp.maximum(jnp.sum(asum, axis=1, keepdims=True), 1.0)

    # coalesce per-graph node inputs into one packed tensor: [h0 | x | vel | ch]
    node = jnp.concatenate([h, x, vel, charges], axis=-1)            # [B, N, 8]
    node = node.reshape(num_batch_blocks, n_blk, NODE_F)

    # fused edge-input LHS: [srow | scol | edge_attr] per batch block
    srowcol = jnp.concatenate([srow_blk, scol_blk], axis=1)          # [e_blk, 2n_blk]
    ea = edge_attr.reshape(num_batch_blocks, e_blk, IN_EDGE_NF)
    lhs = jnp.concatenate(
        [jnp.broadcast_to(srowcol[None], (num_batch_blocks, e_blk, 2 * n_blk)), ea],
        axis=-1)                                          # [blocks, e_blk, 2n_blk+2]

    weights = (packed["emb_wb"], packed["f_wa"], packed["f_wb"], packed["f_b"],
               packed["w_h"], packed["b_h"], packed["w_rea"],
               packed["w_mid"], packed["b_mid"],
               packed["w_n2c2"], packed["b_n2"],
               packed["w_vf2"], packed["b_vf2"])

    def per_block(trailing):
        return pl.BlockSpec((1,) + trailing, lambda b: (b, 0, 0))

    def shared(shape):
        return pl.BlockSpec(tuple(shape), lambda b, _n=len(shape): (0,) * _n)

    in_specs = ([per_block((n_blk, NODE_F)),
                 per_block((e_blk, 2 * n_blk + IN_EDGE_NF)),
                 shared(sdiff.shape), shared(asum.shape), shared(inv_cnt.shape)]
                + [shared(w.shape) for w in weights])

    out = pl.pallas_call(
        _fused_kernel,
        out_shape=jax.ShapeDtypeStruct((num_batch_blocks, n_blk, NUM_DIMS),
                                       jnp.float32),
        grid=(num_batch_blocks,),
        in_specs=in_specs,
        out_specs=pl.BlockSpec((1, n_blk, NUM_DIMS), lambda b: (b, 0, 0)),
        compiler_params=pltpu.CompilerParams(
            dimension_semantics=("parallel",)),
    )(node, lhs, sdiff, asum, inv_cnt, *weights)

    return out.reshape(B, N, NUM_DIMS)


# =========================== parameter construction ===========================

def _linear(key, fan_in, fan_out, bias=True, gain=1.0):
    k1, k2 = jax.random.split(key)
    bound = gain * float(np.sqrt(6.0 / (fan_in + fan_out)))
    w = jax.random.uniform(k1, (fan_in, fan_out), jnp.float32, -bound, bound)
    if not bias:
        return (w,)
    bb = 1.0 / float(np.sqrt(fan_in))
    b = jax.random.uniform(k2, (1, fan_out), jnp.float32, -bb, bb)
    return (w, b)


def make_params(key):
    keys = jax.random.split(key, 64)
    ki = iter(keys)
    params = {}
    params["emb"] = _linear(next(ki), IN_NODE_NF, HIDDEN_NF)

    # FieldNetwork(num_dims=3, hidden=32, class_embedding_dim=16)
    f = []
    f += _linear(next(ki), 1, CLASS_EMB_DIM)                         # charge embedding
    f += _linear(next(ki), 2 * NUM_DIMS + CLASS_EMB_DIM, FIELD_HIDDEN)
    f += _linear(next(ki), FIELD_HIDDEN, FIELD_HIDDEN)
    f += _linear(next(ki), FIELD_HIDDEN, NUM_DIMS)
    params["field"] = tuple(f)

    layers = []
    edge_in = 2 * HIDDEN_NF + 1 + IN_EDGE_NF
    node_in = 2 * HIDDEN_NF
    for _ in range(N_LAYERS):
        lp = []
        lp += _linear(next(ki), edge_in, HIDDEN_NF)                  # edge_mlp L1
        lp += _linear(next(ki), HIDDEN_NF, HIDDEN_NF)                # edge_mlp L2
        lp += _linear(next(ki), node_in, HIDDEN_NF)                  # node_mlp L1
        lp += _linear(next(ki), HIDDEN_NF, HIDDEN_NF)                # node_mlp L2
        lp += _linear(next(ki), HIDDEN_NF, HIDDEN_NF)                # coord_mlp L1
        lp += _linear(next(ki), HIDDEN_NF, 1, bias=False, gain=0.001)  # coord_mlp L2
        lp += _linear(next(ki), HIDDEN_NF, HIDDEN_NF)                # coord_mlp_vel L1
        lp += _linear(next(ki), HIDDEN_NF, 1)                        # coord_mlp_vel L2
        lp += _linear(next(ki), HIDDEN_NF, HIDDEN_NF)                # coord_mlp_field L1
        lp += _linear(next(ki), HIDDEN_NF, 1)                        # coord_mlp_field L2
        layers.append(tuple(lp))
    params["gcl"] = layers
    return params


def pack_params(params):
    """Repack raw per-module weights into a few lane-dense stacked blobs."""
    H = HIDDEN_NF
    D = NUM_DIMS

    # embedding: [W ; b] -> [2, H]
    ew, eb = params["emb"]
    emb_wb = jnp.concatenate([ew, eb], axis=0)

    # field net: fold the charge-embedding linear into the first MLP layer
    wc, bc, w1, b1, w2, b2, w3, b3 = params["field"]
    W_x = w1[0:D]
    W_v = w1[D:2 * D]
    W_c = w1[2 * D:]
    w_ch = wc @ W_c                                   # [1, H]
    b1f = b1 + bc @ W_c                               # [1, H]
    f_wa = jnp.concatenate([W_x, W_v, w_ch], axis=0)  # [2D+1, H]
    f_wb = jnp.concatenate([w2, w3], axis=1)          # [H, H+D]
    f_b = jnp.concatenate([b1f, b2, b3], axis=1)      # [1, 2H+D]

    zeros_h = jnp.zeros((1, H), jnp.float32)
    zeros_c = jnp.zeros((H, 1), jnp.float32)
    w_h, b_h, w_rea, w_mid, b_mid = [], [], [], [], []
    w_n2c2, b_n2, w_vf2, b_vf2 = [], [], [], []
    for lp in params["gcl"]:
        (ew1, eb1, ew2, eb2, nw1, nb1, nw2, nb2,
         cw1, cb1, cw2, vw1, vb1, vw2, vb2, fw1, fb1, fw2, fb2) = lp
        # ew1 rows: 0:H -> h_i, H:2H -> h_j, 2H -> radial, 2H+1: -> edge_attr
        W_hi, W_hj = ew1[0:H], ew1[H:2 * H]
        w_r, W_ea = ew1[2 * H:2 * H + 1], ew1[2 * H + 1:]
        # nw1 rows: 0:H -> h, H:2H -> agg_sum
        W_nh, W_na = nw1[0:H], nw1[H:2 * H]

        # lane-aligned order: gates in lanes 0:64, hp_i/hp_j fill the rest of
        # the first 128-lane block, nh_pre starts at lane 128.
        w_h.append(jnp.concatenate([vw1, fw1, W_hi, W_hj, W_nh], axis=1))   # [H,5H]
        b_h.append(jnp.concatenate([vb1, fb1, eb1, zeros_h, nb1], axis=1))  # [1,5H]
        w_rea.append(jnp.concatenate([w_r, W_ea], axis=0))                  # [3,H]
        w_mid.append(jnp.concatenate([ew2, cw1, W_na], axis=1))             # [H,3H]
        b_mid.append(jnp.concatenate([eb2, cb1, zeros_h], axis=1))          # [1,3H]
        w_n2c2.append(jnp.concatenate([nw2, cw2], axis=1))                  # [H,H+1]
        b_n2.append(nb2)                                                    # [1,H]
        w_vf2.append(jnp.concatenate(
            [jnp.concatenate([vw2, zeros_c], axis=1),
             jnp.concatenate([zeros_c, fw2], axis=1)], axis=0))             # [2H,2]
        b_vf2.append(jnp.concatenate([vb2, fb2], axis=1))                   # [1,2]

    stk = lambda xs: jnp.stack(xs, axis=0)
    return dict(emb_wb=emb_wb, f_wa=f_wa, f_wb=f_wb, f_b=f_b,
                w_h=stk(w_h), b_h=stk(b_h), w_rea=stk(w_rea),
                w_mid=stk(w_mid), b_mid=stk(b_mid),
                w_n2c2=stk(w_n2c2), b_n2=stk(b_n2),
                w_vf2=stk(w_vf2), b_vf2=stk(b_vf2))


# ============================ pure-JAX reference ==============================

def ref_forward(h0, x0, vel, edge_attr, charges, rows, cols, params):
    def lin(x, w, b=None):
        y = x @ w
        return y if b is None else y + b

    wc, bc, w1, b1, w2, b2, w3, b3 = params["field"]
    inputs = jnp.concatenate([x0, vel], axis=-1)
    emb = lin(charges, wc, bc)
    z = jnp.concatenate([inputs, emb], axis=-1)
    z = _silu(lin(z, w1, b1))
    z = _silu(lin(z, w2, b2))
    pf = lin(z, w3, b3)

    h = lin(h0, *params["emb"])
    x = x0
    n = h0.shape[0]
    e = rows.shape[0]
    for lp in params["gcl"]:
        (ew1, eb1, ew2, eb2, nw1, nb1, nw2, nb2,
         cw1, cb1, cw2, vw1, vb1, vw2, vb2, fw1, fb1, fw2, fb2) = lp
        cd = x[rows] - x[cols]
        radial = jnp.sum(cd * cd, axis=-1, keepdims=True)
        e_in = jnp.concatenate([h[rows], h[cols], radial, edge_attr], axis=-1)
        m = _silu(lin(e_in, ew1, eb1))
        m = _silu(lin(m, ew2, eb2))
        phi = lin(_silu(lin(m, cw1, cb1)), cw2)
        trans = cd * phi
        num = jax.ops.segment_sum(trans, rows, num_segments=n)
        den = jax.ops.segment_sum(jnp.ones((e, 1), jnp.float32), rows, num_segments=n)
        agg_mean = num / jnp.maximum(den, 1.0)
        v_coef = lin(_silu(lin(h, vw1, vb1)), vw2, vb2)
        f_coef = lin(_silu(lin(h, fw1, fb1)), fw2, fb2)
        x = x + COORDS_WEIGHT * agg_mean + v_coef * vel + f_coef * pf
        agg_sum = jax.ops.segment_sum(m, rows, num_segments=n)
        nn_ = _silu(lin(jnp.concatenate([h, agg_sum], axis=-1), nw1, nb1))
        h = lin(nn_, nw2, nb2)
    return x


# ==================================== main ====================================

if __name__ == "__main__":
    key = jax.random.PRNGKey(0)
    kh, kx, kv, ke, kc, kp = jax.random.split(key, 6)

    h = jax.random.normal(kh, (BATCH, N_NODES, IN_NODE_NF), jnp.float32)
    x = jax.random.normal(kx, (BATCH, N_NODES, NUM_DIMS), jnp.float32)
    vel = jax.random.normal(kv, (BATCH, N_NODES, NUM_DIMS), jnp.float32)
    edge_attr = jax.random.normal(ke, (BATCH, N_EDGES, IN_EDGE_NF), jnp.float32)
    charges = jax.random.normal(kc, (BATCH, N_NODES, 1), jnp.float32)

    # fully connected graph (no self loops), like the N-body EGNN setup
    rows_np, cols_np = [], []
    for i in range(N_NODES):
        for j in range(N_NODES):
            if i != j:
                rows_np.append(i)
                cols_np.append(j)
    rows = jnp.asarray(rows_np, jnp.int32)
    cols = jnp.asarray(cols_np, jnp.int32)

    # one-hot incidence matrices for a single graph (block-diagonalized in the
    # wrapper across the batch block)
    srow = jax.nn.one_hot(rows, N_NODES, dtype=jnp.float32)       # [E, N]
    scol = jax.nn.one_hot(cols, N_NODES, dtype=jnp.float32)       # [E, N]

    params = make_params(kp)
    packed = pack_params(params)

    x_out = egnn_vel_aether_forward(h, x, vel, edge_attr, charges,
                                    srow, scol, packed)
    x_out = jax.block_until_ready(x_out)

    x_ref = jnp.stack([
        ref_forward(h[b], x[b], vel[b], edge_attr[b], charges[b],
                    rows, cols, params)
        for b in range(BATCH)])
    np.testing.assert_allclose(np.asarray(x_out), np.asarray(x_ref),
                               rtol=1e-3, atol=1e-3)
    print("KERNEL_OK")
</pallas_src>

<mosaic_0001>
module attributes {stable_mosaic.version = 11 : i64} {
  func.func @_fused_kernel(%arg0: i32, %arg1: memref<1x32x8xf32, #tpu.memory_space<vmem>>, %arg2: memref<1x224x66xf32, #tpu.memory_space<vmem>>, %arg3: memref<224x32xf32, #tpu.memory_space<vmem>>, %arg4: memref<32x224xf32, #tpu.memory_space<vmem>>, %arg5: memref<32x1xf32, #tpu.memory_space<vmem>>, %arg6: memref<2x32xf32, #tpu.memory_space<vmem>>, %arg7: memref<7x32xf32, #tpu.memory_space<vmem>>, %arg8: memref<32x35xf32, #tpu.memory_space<vmem>>, %arg9: memref<1x67xf32, #tpu.memory_space<vmem>>, %arg10: memref<4x32x160xf32, #tpu.memory_space<vmem>>, %arg11: memref<4x1x160xf32, #tpu.memory_space<vmem>>, %arg12: memref<4x3x32xf32, #tpu.memory_space<vmem>>, %arg13: memref<4x32x96xf32, #tpu.memory_space<vmem>>, %arg14: memref<4x1x96xf32, #tpu.memory_space<vmem>>, %arg15: memref<4x32x33xf32, #tpu.memory_space<vmem>>, %arg16: memref<4x1x32xf32, #tpu.memory_space<vmem>>, %arg17: memref<4x64x2xf32, #tpu.memory_space<vmem>>, %arg18: memref<4x1x2xf32, #tpu.memory_space<vmem>>, %arg19: memref<1x32x3xf32, #tpu.memory_space<vmem>>) attributes {dimension_semantics = [#tpu.dimension_semantics<parallel>], iteration_bounds = array<i64: 1>, scalar_prefetch = 0 : i64, scratch_operands = 0 : i64, tpu.core_type = #tpu.core_type<tc>, window_params = [{transform_indices = @transform_0, window_bounds = array<i64: 1, 32, 8>}, {transform_indices = @transform_1, window_bounds = array<i64: 1, 224, 66>}, {pipeline_mode = #tpu.pipeline_mode<synchronous>, transform_indices = @transform_2, window_bounds = array<i64: 224, 32>}, {pipeline_mode = #tpu.pipeline_mode<synchronous>, transform_indices = @transform_3, window_bounds = array<i64: 32, 224>}, {pipeline_mode = #tpu.pipeline_mode<synchronous>, transform_indices = @transform_4, window_bounds = array<i64: 32, 1>}, {pipeline_mode = #tpu.pipeline_mode<synchronous>, transform_indices = @transform_5, window_bounds = array<i64: 2, 32>}, {pipeline_mode = #tpu.pipeline_mode<synchronous>, transform_indices = @transform_6, window_bounds = array<i64: 7, 32>}, {pipeline_mode = #tpu.pipeline_mode<synchronous>, transform_indices = @transform_7, window_bounds = array<i64: 32, 35>}, {pipeline_mode = #tpu.pipeline_mode<synchronous>, transform_indices = @transform_8, window_bounds = array<i64: 1, 67>}, {pipeline_mode = #tpu.pipeline_mode<synchronous>, transform_indices = @transform_9, window_bounds = array<i64: 4, 32, 160>}, {pipeline_mode = #tpu.pipeline_mode<synchronous>, transform_indices = @transform_10, window_bounds = array<i64: 4, 1, 160>}, {pipeline_mode = #tpu.pipeline_mode<synchronous>, transform_indices = @transform_11, window_bounds = array<i64: 4, 3, 32>}, {pipeline_mode = #tpu.pipeline_mode<synchronous>, transform_indices = @transform_12, window_bounds = array<i64: 4, 32, 96>}, {pipeline_mode = #tpu.pipeline_mode<synchronous>, transform_indices = @transform_13, window_bounds = array<i64: 4, 1, 96>}, {pipeline_mode = #tpu.pipeline_mode<synchronous>, transform_indices = @transform_14, window_bounds = array<i64: 4, 32, 33>}, {pipeline_mode = #tpu.pipeline_mode<synchronous>, transform_indices = @transform_15, window_bounds = array<i64: 4, 1, 32>}, {pipeline_mode = #tpu.pipeline_mode<synchronous>, transform_indices = @transform_16, window_bounds = array<i64: 4, 64, 2>}, {pipeline_mode = #tpu.pipeline_mode<synchronous>, transform_indices = @transform_17, window_bounds = array<i64: 4, 1, 2>}, {transform_indices = @transform_18, window_bounds = array<i64: 1, 32, 3>}]} {
    %c0 = arith.constant 0 : index
    %c0_0 = arith.constant 0 : index
    %c0_1 = arith.constant 0 : index
    %0 = vector.load %arg1[%c0, %c0_0, %c0_1] : memref<1x32x8xf32, #tpu.memory_space<vmem>>, vector<1x32x8xf32>
    %1 = vector.shape_cast %0 : vector<1x32x8xf32> to vector<32x8xf32>
    %2 = vector.extract_strided_slice %1 {offsets = [0, 0], sizes = [32, 1], strides = [1, 1]} : vector<32x8xf32> to vector<32x1xf32>
    %3 = vector.extract_strided_slice %1 {offsets = [0, 1], sizes = [32, 3], strides = [1, 1]} : vector<32x8xf32> to vector<32x3xf32>
    %4 = vector.extract_strided_slice %1 {offsets = [0, 4], sizes = [32, 3], strides = [1, 1]} : vector<32x8xf32> to vector<32x3xf32>
    %c0_2 = arith.constant 0 : index
    %c0_3 = arith.constant 0 : index
    %c0_4 = arith.constant 0 : index
    %5 = vector.load %arg2[%c0_2, %c0_3, %c0_4] : memref<1x224x66xf32, #tpu.memory_space<vmem>>, vector<1x224x66xf32>
    %6 = vector.shape_cast %5 : vector<1x224x66xf32> to vector<224x66xf32>
    %c0_5 = arith.constant 0 : index
    %c0_6 = arith.constant 0 : index
    %7 = vector.load %arg3[%c0_5, %c0_6] : memref<224x32xf32, #tpu.memory_space<vmem>>, vector<224x32xf32>
    %c0_7 = arith.constant 0 : index
    %c0_8 = arith.constant 0 : index
    %8 = vector.load %arg4[%c0_7, %c0_8] : memref<32x224xf32, #tpu.memory_space<vmem>>, vector<32x224xf32>
    %c0_9 = arith.constant 0 : index
    %c0_10 = arith.constant 0 : index
    %9 = vector.load %arg5[%c0_9, %c0_10] : memref<32x1xf32, #tpu.memory_space<vmem>>, vector<32x1xf32>
    %c0_11 = arith.constant 0 : index
    %c0_12 = arith.constant 0 : index
    %10 = vector.load %arg7[%c0_11, %c0_12] : memref<7x32xf32, #tpu.memory_space<vmem>>, vector<7x32xf32>
    %c0_13 = arith.constant 0 : index
    %c0_14 = arith.constant 0 : index
    %11 = vector.load %arg9[%c0_13, %c0_14] : memref<1x67xf32, #tpu.memory_space<vmem>>, vector<1x67xf32>
    %12 = vector.extract_strided_slice %1 {offsets = [0, 1], sizes = [32, 7], strides = [1, 1]} : vector<32x8xf32> to vector<32x7xf32>
    %cst = arith.constant dense<0.000000e+00> : vector<32x32xf32>
    %13 = tpu.matmul %12, %10, %cst {dimension_numbers = #tpu.dot_dimension_numbers<[1], [0], [0], [1], [0, 0, 1, 1], [], []>} : vector<32x7xf32>, vector<7x32xf32>, vector<32x32xf32> -> vector<32x32xf32>
    %14 = vector.extract_strided_slice %11 {offsets = [0, 0], sizes = [1, 32], strides = [1, 1]} : vector<1x67xf32> to vector<1x32xf32>
    %15 = vector.broadcast %14 : vector<1x32xf32> to vector<32x32xf32>
    %16 = arith.addf %13, %15 : vector<32x32xf32>
    %17 = arith.negf %16 : vector<32x32xf32>
    %18 = math.exp %17 : vector<32x32xf32>
    %cst_15 = arith.constant 1.000000e+00 : f32
    %19 = vector.broadcast %cst_15 : f32 to vector<32x32xf32>
    %20 = arith.addf %19, %18 : vector<32x32xf32>
    %21 = arith.divf %19, %20 : vector<32x32xf32>
    %22 = arith.mulf %16, %21 : vector<32x32xf32>
    %c0_16 = arith.constant 0 : index
    %c0_17 = arith.constant 0 : index
    %23 = vector.load %arg8[%c0_16, %c0_17] : memref<32x35xf32, #tpu.memory_space<vmem>>, vector<32x32xf32>
    %cst_18 = arith.constant dense<0.000000e+00> : vector<32x32xf32>
    %24 = tpu.matmul %22, %23, %cst_18 {dimension_numbers = #tpu.dot_dimension_numbers<[1], [0], [0], [1], [0, 0, 1, 1], [], []>} : vector<32x32xf32>, vector<32x32xf32>, vector<32x32xf32> -> vector<32x32xf32>
    %25 = vector.extract_strided_slice %11 {offsets = [0, 32], sizes = [1, 32], strides = [1, 1]} : vector<1x67xf32> to vector<1x32xf32>
    %26 = vector.broadcast %25 : vector<1x32xf32> to vector<32x32xf32>
    %27 = arith.addf %24, %26 : vector<32x32xf32>
    %28 = arith.negf %27 : vector<32x32xf32>
    %29 = math.exp %28 : vector<32x32xf32>
    %cst_19 = arith.constant 1.000000e+00 : f32
    %30 = vector.broadcast %cst_19 : f32 to vector<32x32xf32>
    %31 = arith.addf %30, %29 : vector<32x32xf32>
    %32 = arith.divf %30, %31 : vector<32x32xf32>
    %33 = arith.mulf %27, %32 : vector<32x32xf32>
    %c0_20 = arith.constant 0 : index
    %c32 = arith.constant 32 : index
    %34 = vector.load %arg8[%c0_20, %c32] : memref<32x35xf32, #tpu.memory_space<vmem>>, vector<32x3xf32>
    %cst_21 = arith.constant dense<0.000000e+00> : vector<32x3xf32>
    %35 = tpu.matmul %33, %34, %cst_21 {dimension_numbers = #tpu.dot_dimension_numbers<[1], [0], [0], [1], [0, 0, 1, 1], [], []>} : vector<32x32xf32>, vector<32x3xf32>, vector<32x3xf32> -> vector<32x3xf32>
    %36 = vector.extract_strided_slice %11 {offsets = [0, 64], sizes = [1, 3], strides = [1, 1]} : vector<1x67xf32> to vector<1x3xf32>
    %37 = vector.broadcast %36 : vector<1x3xf32> to vector<32x3xf32>
    %38 = arith.addf %35, %37 : vector<32x3xf32>
    %c0_22 = arith.constant 0 : index
    %c0_23 = arith.constant 0 : index
    %39 = vector.load %arg6[%c0_22, %c0_23] : memref<2x32xf32, #tpu.memory_space<vmem>>, vector<1x32xf32>
    %40 = vector.broadcast %2 : vector<32x1xf32> to vector<32x32xf32>
    %41 = vector.broadcast %39 : vector<1x32xf32> to vector<32x32xf32>
    %42 = arith.mulf %40, %41 : vector<32x32xf32>
    %c1 = arith.constant 1 : index
    %c0_24 = arith.constant 0 : index
    %43 = vector.load %arg6[%c1, %c0_24] : memref<2x32xf32, #tpu.memory_space<vmem>>, vector<1x32xf32>
    %44 = vector.broadcast %43 : vector<1x32xf32> to vector<32x32xf32>
    %45 = arith.addf %42, %44 : vector<32x32xf32>
    %c0_25 = arith.constant 0 : index
    %c0_26 = arith.constant 0 : index
    %c0_27 = arith.constant 0 : index
    %46 = vector.load %arg10[%c0_25, %c0_26, %c0_27] : memref<4x32x160xf32, #tpu.memory_space<vmem>>, vector<1x32x160xf32>
    %47 = vector.shape_cast %46 : vector<1x32x160xf32> to vector<32x160xf32>
    %cst_28 = arith.constant dense<0.000000e+00> : vector<32x160xf32>
    %48 = tpu.matmul %45, %47, %cst_28 {dimension_numbers = #tpu.dot_dimension_numbers<[1], [0], [0], [1], [0, 0, 1, 1], [], []>} : vector<32x32xf32>, vector<32x160xf32>, vector<32x160xf32> -> vector<32x160xf32>
    %c0_29 = arith.constant 0 : index
    %c0_30 = arith.constant 0 : index
    %c0_31 = arith.constant 0 : index
    %49 = vector.load %arg11[%c0_29, %c0_30, %c0_31] : memref<4x1x160xf32, #tpu.memory_space<vmem>>, vector<1x1x160xf32>
    %50 = vector.shape_cast %49 : vector<1x1x160xf32> to vector<1x160xf32>
    %51 = vector.broadcast %50 : vector<1x160xf32> to vector<32x160xf32>
    %52 = arith.addf %48, %51 : vector<32x160xf32>
    %53 = vector.extract_strided_slice %52 {offsets = [0, 0], sizes = [32, 64], strides = [1, 1]} : vector<32x160xf32> to vector<32x64xf32>
    %54 = vector.extract_strided_slice %52 {offsets = [0, 64], sizes = [32, 32], strides = [1, 1]} : vector<32x160xf32> to vector<32x32xf32>
    %55 = vector.extract_strided_slice %52 {offsets = [0, 96], sizes = [32, 32], strides = [1, 1]} : vector<32x160xf32> to vector<32x32xf32>
    %56 = vector.extract_strided_slice %52 {offsets = [0, 128], sizes = [32, 32], strides = [1, 1]} : vector<32x160xf32> to vector<32x32xf32>
    %cst_32 = arith.constant dense<0.000000e+00> : vector<224x3xf32>
    %57 = tpu.matmul %7, %3, %cst_32 {dimension_numbers = #tpu.dot_dimension_numbers<[1], [0], [0], [1], [0, 0, 1, 1], [], []>} : vector<224x32xf32>, vector<32x3xf32>, vector<224x3xf32> -> vector<224x3xf32>
    %58 = arith.mulf %57, %57 : vector<224x3xf32>
    %cst_33 = arith.constant dense<0.000000e+00> : vector<224xf32>
    %59 = vector.multi_reduction <add>, %58, %cst_33 [1] : vector<224x3xf32> to vector<224xf32>
    %60 = vector.shape_cast %59 : vector<224xf32> to vector<224x1xf32>
    %c0_34 = arith.constant 0 : index
    %c0_35 = arith.constant 0 : index
    %c0_36 = arith.constant 0 : index
    %61 = vector.load %arg12[%c0_34, %c0_35, %c0_36] : memref<4x3x32xf32, #tpu.memory_space<vmem>>, vector<1x3x32xf32>
    %62 = vector.shape_cast %61 : vector<1x3x32xf32> to vector<3x32xf32>
    %63 = vector.extract_strided_slice %62 {offsets = [1, 0], sizes = [2, 32], strides = [1, 1]} : vector<3x32xf32> to vector<2x32xf32>
    %64 = tpu.concatenate %54, %55, %63 in 0 : vector<32x32xf32>, vector<32x32xf32>, vector<2x32xf32> -> vector<66x32xf32>
    %cst_37 = arith.constant dense<0.000000e+00> : vector<224x32xf32>
    %65 = tpu.matmul %6, %64, %cst_37 {dimension_numbers = #tpu.dot_dimension_numbers<[1], [0], [0], [1], [0, 0, 1, 1], [], []>} : vector<224x66xf32>, vector<66x32xf32>, vector<224x32xf32> -> vector<224x32xf32>
    %66 = vector.extract_strided_slice %62 {offsets = [0, 0], sizes = [1, 32], strides = [1, 1]} : vector<3x32xf32> to vector<1x32xf32>
    %67 = vector.broadcast %60 : vector<224x1xf32> to vector<224x32xf32>
    %68 = vector.broadcast %66 : vector<1x32xf32> to vector<224x32xf32>
    %69 = arith.mulf %67, %68 : vector<224x32xf32>
    %70 = arith.addf %65, %69 : vector<224x32xf32>
    %71 = arith.negf %70 : vector<224x32xf32>
    %72 = math.exp %71 : vector<224x32xf32>
    %cst_38 = arith.constant 1.000000e+00 : f32
    %73 = vector.broadcast %cst_38 : f32 to vector<224x32xf32>
    %74 = arith.addf %73, %72 : vector<224x32xf32>
    %75 = arith.divf %73, %74 : vector<224x32xf32>
    %76 = arith.mulf %70, %75 : vector<224x32xf32>
    %c0_39 = arith.constant 0 : index
    %c0_40 = arith.constant 0 : index
    %c0_41 = arith.constant 0 : index
    %77 = vector.load %arg13[%c0_39, %c0_40, %c0_41] : memref<4x32x96xf32, #tpu.memory_space<vmem>>, vector<1x32x96xf32>
    %78 = vector.shape_cast %77 : vector<1x32x96xf32> to vector<32x96xf32>
    %c0_42 = arith.constant 0 : index
    %c0_43 = arith.constant 0 : index
    %c0_44 = arith.constant 0 : index
    %79 = vector.load %arg14[%c0_42, %c0_43, %c0_44] : memref<4x1x96xf32, #tpu.memory_space<vmem>>, vector<1x1x96xf32>
    %80 = vector.shape_cast %79 : vector<1x1x96xf32> to vector<1x96xf32>
    %81 = vector.extract_strided_slice %78 {offsets = [0, 0], sizes = [32, 32], strides = [1, 1]} : vector<32x96xf32> to vector<32x32xf32>
    %cst_45 = arith.constant dense<0.000000e+00> : vector<224x32xf32>
    %82 = tpu.matmul %76, %81, %cst_45 {dimension_numbers = #tpu.dot_dimension_numbers<[1], [0], [0], [1], [0, 0, 1, 1], [], []>} : vector<224x32xf32>, vector<32x32xf32>, vector<224x32xf32> -> vector<224x32xf32>
    %83 = vector.extract_strided_slice %80 {offsets = [0, 0], sizes = [1, 32], strides = [1, 1]} : vector<1x96xf32> to vector<1x32xf32>
    %84 = vector.broadcast %83 : vector<1x32xf32> to vector<224x32xf32>
    %85 = arith.addf %82, %84 : vector<224x32xf32>
    %86 = arith.negf %85 : vector<224x32xf32>
    %87 = math.exp %86 : vector<224x32xf32>
    %cst_46 = arith.constant 1.000000e+00 : f32
    %88 = vector.broadcast %cst_46 : f32 to vector<224x32xf32>
    %89 = arith.addf %88, %87 : vector<224x32xf32>
    %90 = arith.divf %88, %89 : vector<224x32xf32>
    %91 = arith.mulf %85, %90 : vector<224x32xf32>
    %92 = vector.extract_strided_slice %78 {offsets = [0, 32], sizes = [32, 64], strides = [1, 1]} : vector<32x96xf32> to vector<32x64xf32>
    %cst_47 = arith.constant dense<0.000000e+00> : vector<224x64xf32>
    %93 = tpu.matmul %91, %92, %cst_47 {dimension_numbers = #tpu.dot_dimension_numbers<[1], [0], [0], [1], [0, 0, 1, 1], [], []>} : vector<224x32xf32>, vector<32x64xf32>, vector<224x64xf32> -> vector<224x64xf32>
    %94 = vector.extract_strided_slice %93 {offsets = [0, 0], sizes = [224, 32], strides = [1, 1]} : vector<224x64xf32> to vector<224x32xf32>
    %95 = vector.extract_strided_slice %80 {offsets = [0, 32], sizes = [1, 32], strides = [1, 1]} : vector<1x96xf32> to vector<1x32xf32>
    %96 = vector.broadcast %95 : vector<1x32xf32> to vector<224x32xf32>
    %97 = arith.addf %94, %96 : vector<224x32xf32>
    %98 = arith.negf %97 : vector<224x32xf32>
    %99 = math.exp %98 : vector<224x32xf32>
    %cst_48 = arith.constant 1.000000e+00 : f32
    %100 = vector.broadcast %cst_48 : f32 to vector<224x32xf32>
    %101 = arith.addf %100, %99 : vector<224x32xf32>
    %102 = arith.divf %100, %101 : vector<224x32xf32>
    %103 = arith.mulf %97, %102 : vector<224x32xf32>
    %104 = vector.extract_strided_slice %93 {offsets = [0, 32], sizes = [224, 32], strides = [1, 1]} : vector<224x64xf32> to vector<224x32xf32>
    %c0_49 = arith.constant 0 : index
    %c0_50 = arith.constant 0 : index
    %c0_51 = arith.constant 0 : index
    %105 = vector.load %arg15[%c0_49, %c0_50, %c0_51] : memref<4x32x33xf32, #tpu.memory_space<vmem>>, vector<1x32x33xf32>
    %106 = vector.shape_cast %105 : vector<1x32x33xf32> to vector<32x33xf32>
    %107 = vector.extract_strided_slice %106 {offsets = [0, 32], sizes = [32, 1], strides = [1, 1]} : vector<32x33xf32> to vector<32x1xf32>
    %cst_52 = arith.constant dense<0.000000e+00> : vector<224x1xf32>
    %108 = tpu.matmul %103, %107, %cst_52 {dimension_numbers = #tpu.dot_dimension_numbers<[1], [0], [0], [1], [0, 0, 1, 1], [], []>} : vector<224x32xf32>, vector<32x1xf32>, vector<224x1xf32> -> vector<224x1xf32>
    %109 = vector.broadcast %108 : vector<224x1xf32> to vector<224x3xf32>
    %110 = arith.mulf %57, %109 : vector<224x3xf32>
    %111 = tpu.concatenate %104, %110 in 1 : vector<224x32xf32>, vector<224x3xf32> -> vector<224x35xf32>
    %cst_53 = arith.constant dense<0.000000e+00> : vector<32x35xf32>
    %112 = tpu.matmul %8, %111, %cst_53 {dimension_numbers = #tpu.dot_dimension_numbers<[1], [0], [0], [1], [0, 0, 1, 1], [], []>} : vector<32x224xf32>, vector<224x35xf32>, vector<32x35xf32> -> vector<32x35xf32>
    %113 = vector.extract_strided_slice %112 {offsets = [0, 0], sizes = [32, 32], strides = [1, 1]} : vector<32x35xf32> to vector<32x32xf32>
    %114 = vector.extract_strided_slice %112 {offsets = [0, 32], sizes = [32, 3], strides = [1, 1]} : vector<32x35xf32> to vector<32x3xf32>
    %115 = vector.broadcast %9 : vector<32x1xf32> to vector<32x3xf32>
    %116 = arith.mulf %114, %115 : vector<32x3xf32>
    %117 = arith.negf %53 : vector<32x64xf32>
    %118 = math.exp %117 : vector<32x64xf32>
    %cst_54 = arith.constant 1.000000e+00 : f32
    %119 = vector.broadcast %cst_54 : f32 to vector<32x64xf32>
    %120 = arith.addf %119, %118 : vector<32x64xf32>
    %121 = arith.divf %119, %120 : vector<32x64xf32>
    %122 = arith.mulf %53, %121 : vector<32x64xf32>
    %c0_55 = arith.constant 0 : index
    %c0_56 = arith.constant 0 : index
    %c0_57 = arith.constant 0 : index
    %123 = vector.load %arg17[%c0_55, %c0_56, %c0_57] : memref<4x64x2xf32, #tpu.memory_space<vmem>>, vector<1x64x2xf32>
    %124 = vector.shape_cast %123 : vector<1x64x2xf32> to vector<64x2xf32>
    %cst_58 = arith.constant dense<0.000000e+00> : vector<32x2xf32>
    %125 = tpu.matmul %122, %124, %cst_58 {dimension_numbers = #tpu.dot_dimension_numbers<[1], [0], [0], [1], [0, 0, 1, 1], [], []>} : vector<32x64xf32>, vector<64x2xf32>, vector<32x2xf32> -> vector<32x2xf32>
    %c0_59 = arith.constant 0 : index
    %c0_60 = arith.constant 0 : index
    %c0_61 = arith.constant 0 : index
    %126 = vector.load %arg18[%c0_59, %c0_60, %c0_61] : memref<4x1x2xf32, #tpu.memory_space<vmem>>, vector<1x1x2xf32>
    %127 = vector.shape_cast %126 : vector<1x1x2xf32> to vector<1x2xf32>
    %128 = vector.broadcast %127 : vector<1x2xf32> to vector<32x2xf32>
    %129 = arith.addf %125, %128 : vector<32x2xf32>
    %cst_62 = arith.constant 1.000000e+00 : f32
    %130 = vector.broadcast %cst_62 : f32 to vector<32x3xf32>
    %131 = arith.mulf %130, %116 : vector<32x3xf32>
    %132 = arith.addf %3, %131 : vector<32x3xf32>
    %133 = vector.extract_strided_slice %129 {offsets = [0, 0], sizes = [32, 1], strides = [1, 1]} : vector<32x2xf32> to vector<32x1xf32>
    %134 = vector.broadcast %133 : vector<32x1xf32> to vector<32x3xf32>
    %135 = arith.mulf %134, %4 : vector<32x3xf32>
    %136 = arith.addf %132, %135 : vector<32x3xf32>
    %137 = vector.extract_strided_slice %129 {offsets = [0, 1], sizes = [32, 1], strides = [1, 1]} : vector<32x2xf32> to vector<32x1xf32>
    %138 = vector.broadcast %137 : vector<32x1xf32> to vector<32x3xf32>
    %139 = arith.mulf %138, %38 : vector<32x3xf32>
    %140 = arith.addf %136, %139 : vector<32x3xf32>
    %141 = arith.addf %56, %113 : vector<32x32xf32>
    %142 = arith.negf %141 : vector<32x32xf32>
    %143 = math.exp %142 : vector<32x32xf32>
    %cst_63 = arith.constant 1.000000e+00 : f32
    %144 = vector.broadcast %cst_63 : f32 to vector<32x32xf32>
    %145 = arith.addf %144, %143 : vector<32x32xf32>
    %146 = arith.divf %144, %145 : vector<32x32xf32>
    %147 = arith.mulf %141, %146 : vector<32x32xf32>
    %148 = vector.extract_strided_slice %106 {offsets = [0, 0], sizes = [32, 32], strides = [1, 1]} : vector<32x33xf32> to vector<32x32xf32>
    %cst_64 = arith.constant dense<0.000000e+00> : vector<32x32xf32>
    %149 = tpu.matmul %147, %148, %cst_64 {dimension_numbers = #tpu.dot_dimension_numbers<[1], [0], [0], [1], [0, 0, 1, 1], [], []>} : vector<32x32xf32>, vector<32x32xf32>, vector<32x32xf32> -> vector<32x32xf32>
    %c0_65 = arith.constant 0 : index
    %c0_66 = arith.constant 0 : index
    %c0_67 = arith.constant 0 : index
    %150 = vector.load %arg16[%c0_65, %c0_66, %c0_67] : memref<4x1x32xf32, #tpu.memory_space<vmem>>, vector<1x1x32xf32>
    %151 = vector.shape_cast %150 : vector<1x1x32xf32> to vector<1x32xf32>
    %152 = vector.broadcast %151 : vector<1x32xf32> to vector<32x32xf32>
    %153 = arith.addf %149, %152 : vector<32x32xf32>
    %c1_68 = arith.constant 1 : index
    %c0_69 = arith.constant 0 : index
    %c0_70 = arith.constant 0 : index
    %154 = vector.load %arg10[%c1_68, %c0_69, %c0_70] : memref<4x32x160xf32, #tpu.memory_space<vmem>>, vector<1x32x160xf32>
    %155 = vector.shape_cast %154 : vector<1x32x160xf32> to vector<32x160xf32>
    %cst_71 = arith.constant dense<0.000000e+00> : vector<32x160xf32>
    %156 = tpu.matmul %153, %155, %cst_71 {dimension_numbers = #tpu.dot_dimension_numbers<[1], [0], [0], [1], [0, 0, 1, 1], [], []>} : vector<32x32xf32>, vector<32x160xf32>, vector<32x160xf32> -> vector<32x160xf32>
    %c1_72 = arith.constant 1 : index
    %c0_73 = arith.constant 0 : index
    %c0_74 = arith.constant 0 : index
    %157 = vector.load %arg11[%c1_72, %c0_73, %c0_74] : memref<4x1x160xf32, #tpu.memory_space<vmem>>, vector<1x1x160xf32>
    %158 = vector.shape_cast %157 : vector<1x1x160xf32> to vector<1x160xf32>
    %159 = vector.broadcast %158 : vector<1x160xf32> to vector<32x160xf32>
    %160 = arith.addf %156, %159 : vector<32x160xf32>
    %161 = vector.extract_strided_slice %160 {offsets = [0, 0], sizes = [32, 64], strides = [1, 1]} : vector<32x160xf32> to vector<32x64xf32>
    %162 = vector.extract_strided_slice %160 {offsets = [0, 64], sizes = [32, 32], strides = [1, 1]} : vector<32x160xf32> to vector<32x32xf32>
    %163 = vector.extract_strided_slice %160 {offsets = [0, 96], sizes = [32, 32], strides = [1, 1]} : vector<32x160xf32> to vector<32x32xf32>
    %164 = vector.extract_strided_slice %160 {offsets = [0, 128], sizes = [32, 32], strides = [1, 1]} : vector<32x160xf32> to vector<32x32xf32>
    %cst_75 = arith.constant dense<0.000000e+00> : vector<224x3xf32>
    %165 = tpu.matmul %7, %140, %cst_75 {dimension_numbers = #tpu.dot_dimension_numbers<[1], [0], [0], [1], [0, 0, 1, 1], [], []>} : vector<224x32xf32>, vector<32x3xf32>, vector<224x3xf32> -> vector<224x3xf32>
    %166 = arith.mulf %165, %165 : vector<224x3xf32>
    %cst_76 = arith.constant dense<0.000000e+00> : vector<224xf32>
    %167 = vector.multi_reduction <add>, %166, %cst_76 [1] : vector<224x3xf32> to vector<224xf32>
    %168 = vector.shape_cast %167 : vector<224xf32> to vector<224x1xf32>
    %c1_77 = arith.constant 1 : index
    %c0_78 = arith.constant 0 : index
    %c0_79 = arith.constant 0 : index
    %169 = vector.load %arg12[%c1_77, %c0_78, %c0_79] : memref<4x3x32xf32, #tpu.memory_space<vmem>>, vector<1x3x32xf32>
    %170 = vector.shape_cast %169 : vector<1x3x32xf32> to vector<3x32xf32>
    %171 = vector.extract_strided_slice %170 {offsets = [1, 0], sizes = [2, 32], strides = [1, 1]} : vector<3x32xf32> to vector<2x32xf32>
    %172 = tpu.concatenate %162, %163, %171 in 0 : vector<32x32xf32>, vector<32x32xf32>, vector<2x32xf32> -> vector<66x32xf32>
    %cst_80 = arith.constant dense<0.000000e+00> : vector<224x32xf32>
    %173 = tpu.matmul %6, %172, %cst_80 {dimension_numbers = #tpu.dot_dimension_numbers<[1], [0], [0], [1], [0, 0, 1, 1], [], []>} : vector<224x66xf32>, vector<66x32xf32>, vector<224x32xf32> -> vector<224x32xf32>
    %174 = vector.extract_strided_slice %170 {offsets = [0, 0], sizes = [1, 32], strides = [1, 1]} : vector<3x32xf32> to vector<1x32xf32>
    %175 = vector.broadcast %168 : vector<224x1xf32> to vector<224x32xf32>
    %176 = vector.broadcast %174 : vector<1x32xf32> to vector<224x32xf32>
    %177 = arith.mulf %175, %176 : vector<224x32xf32>
    %178 = arith.addf %173, %177 : vector<224x32xf32>
    %179 = arith.negf %178 : vector<224x32xf32>
    %180 = math.exp %179 : vector<224x32xf32>
    %cst_81 = arith.constant 1.000000e+00 : f32
    %181 = vector.broadcast %cst_81 : f32 to vector<224x32xf32>
    %182 = arith.addf %181, %180 : vector<224x32xf32>
    %183 = arith.divf %181, %182 : vector<224x32xf32>
    %184 = arith.mulf %178, %183 : vector<224x32xf32>
    %c1_82 = arith.constant 1 : index
    %c0_83 = arith.constant 0 : index
    %c0_84 = arith.constant 0 : index
    %185 = vector.load %arg13[%c1_82, %c0_83, %c0_84] : memref<4x32x96xf32, #tpu.memory_space<vmem>>, vector<1x32x96xf32>
    %186 = vector.shape_cast %185 : vector<1x32x96xf32> to vector<32x96xf32>
    %c1_85 = arith.constant 1 : index
    %c0_86 = arith.constant 0 : index
    %c0_87 = arith.constant 0 : index
    %187 = vector.load %arg14[%c1_85, %c0_86, %c0_87] : memref<4x1x96xf32, #tpu.memory_space<vmem>>, vector<1x1x96xf32>
    %188 = vector.shape_cast %187 : vector<1x1x96xf32> to vector<1x96xf32>
    %189 = vector.extract_strided_slice %186 {offsets = [0, 0], sizes = [32, 32], strides = [1, 1]} : vector<32x96xf32> to vector<32x32xf32>
    %cst_88 = arith.constant dense<0.000000e+00> : vector<224x32xf32>
    %190 = tpu.matmul %184, %189, %cst_88 {dimension_numbers = #tpu.dot_dimension_numbers<[1], [0], [0], [1], [0, 0, 1, 1], [], []>} : vector<224x32xf32>, vector<32x32xf32>, vector<224x32xf32> -> vector<224x32xf32>
    %191 = vector.extract_strided_slice %188 {offsets = [0, 0], sizes = [1, 32], strides = [1, 1]} : vector<1x96xf32> to vector<1x32xf32>
    %192 = vector.broadcast %191 : vector<1x32xf32> to vector<224x32xf32>
    %193 = arith.addf %190, %192 : vector<224x32xf32>
    %194 = arith.negf %193 : vector<224x32xf32>
    %195 = math.exp %194 : vector<224x32xf32>
    %cst_89 = arith.constant 1.000000e+00 : f32
    %196 = vector.broadcast %cst_89 : f32 to vector<224x32xf32>
    %197 = arith.addf %196, %195 : vector<224x32xf32>
    %198 = arith.divf %196, %197 : vector<224x32xf32>
    %199 = arith.mulf %193, %198 : vector<224x32xf32>
    %200 = vector.extract_strided_slice %186 {offsets = [0, 32], sizes = [32, 64], strides = [1, 1]} : vector<32x96xf32> to vector<32x64xf32>
    %cst_90 = arith.constant dense<0.000000e+00> : vector<224x64xf32>
    %201 = tpu.matmul %199, %200, %cst_90 {dimension_numbers = #tpu.dot_dimension_numbers<[1], [0], [0], [1], [0, 0, 1, 1], [], []>} : vector<224x32xf32>, vector<32x64xf32>, vector<224x64xf32> -> vector<224x64xf32>
    %202 = vector.extract_strided_slice %201 {offsets = [0, 0], sizes = [224, 32], strides = [1, 1]} : vector<224x64xf32> to vector<224x32xf32>
    %203 = vector.extract_strided_slice %188 {offsets = [0, 32], sizes = [1, 32], strides = [1, 1]} : vector<1x96xf32> to vector<1x32xf32>
    %204 = vector.broadcast %203 : vector<1x32xf32> to vector<224x32xf32>
    %205 = arith.addf %202, %204 : vector<224x32xf32>
    %206 = arith.negf %205 : vector<224x32xf32>
    %207 = math.exp %206 : vector<224x32xf32>
    %cst_91 = arith.constant 1.000000e+00 : f32
    %208 = vector.broadcast %cst_91 : f32 to vector<224x32xf32>
    %209 = arith.addf %208, %207 : vector<224x32xf32>
    %210 = arith.divf %208, %209 : vector<224x32xf32>
    %211 = arith.mulf %205, %210 : vector<224x32xf32>
    %212 = vector.extract_strided_slice %201 {offsets = [0, 32], sizes = [224, 32], strides = [1, 1]} : vector<224x64xf32> to vector<224x32xf32>
    %c1_92 = arith.constant 1 : index
    %c0_93 = arith.constant 0 : index
    %c0_94 = arith.constant 0 : index
    %213 = vector.load %arg15[%c1_92, %c0_93, %c0_94] : memref<4x32x33xf32, #tpu.memory_space<vmem>>, vector<1x32x33xf32>
    %214 = vector.shape_cast %213 : vector<1x32x33xf32> to vector<32x33xf32>
    %215 = vector.extract_strided_slice %214 {offsets = [0, 32], sizes = [32, 1], strides = [1, 1]} : vector<32x33xf32> to vector<32x1xf32>
    %cst_95 = arith.constant dense<0.000000e+00> : vector<224x1xf32>
    %216 = tpu.matmul %211, %215, %cst_95 {dimension_numbers = #tpu.dot_dimension_numbers<[1], [0], [0], [1], [0, 0, 1, 1], [], []>} : vector<224x32xf32>, vector<32x1xf32>, vector<224x1xf32> -> vector<224x1xf32>
    %217 = vector.broadcast %216 : vector<224x1xf32> to vector<224x3xf32>
    %218 = arith.mulf %165, %217 : vector<224x3xf32>
    %219 = tpu.concatenate %212, %218 in 1 : vector<224x32xf32>, vector<224x3xf32> -> vector<224x35xf32>
    %cst_96 = arith.constant dense<0.000000e+00> : vector<32x35xf32>
    %220 = tpu.matmul %8, %219, %cst_96 {dimension_numbers = #tpu.dot_dimension_numbers<[1], [0], [0], [1], [0, 0, 1, 1], [], []>} : vector<32x224xf32>, vector<224x35xf32>, vector<32x35xf32> -> vector<32x35xf32>
    %221 = vector.extract_strided_slice %220 {offsets = [0, 0], sizes = [32, 32], strides = [1, 1]} : vector<32x35xf32> to vector<32x32xf32>
    %222 = vector.extract_strided_slice %220 {offsets = [0, 32], sizes = [32, 3], strides = [1, 1]} : vector<32x35xf32> to vector<32x3xf32>
    %223 = vector.broadcast %9 : vector<32x1xf32> to vector<32x3xf32>
    %224 = arith.mulf %222, %223 : vector<32x3xf32>
    %225 = arith.negf %161 : vector<32x64xf32>
    %226 = math.exp %225 : vector<32x64xf32>
    %cst_97 = arith.constant 1.000000e+00 : f32
    %227 = vector.broadcast %cst_97 : f32 to vector<32x64xf32>
    %228 = arith.addf %227, %226 : vector<32x64xf32>
    %229 = arith.divf %227, %228 : vector<32x64xf32>
    %230 = arith.mulf %161, %229 : vector<32x64xf32>
    %c1_98 = arith.constant 1 : index
    %c0_99 = arith.constant 0 : index
    %c0_100 = arith.constant 0 : index
    %231 = vector.load %arg17[%c1_98, %c0_99, %c0_100] : memref<4x64x2xf32, #tpu.memory_space<vmem>>, vector<1x64x2xf32>
    %232 = vector.shape_cast %231 : vector<1x64x2xf32> to vector<64x2xf32>
    %cst_101 = arith.constant dense<0.000000e+00> : vector<32x2xf32>
    %233 = tpu.matmul %230, %232, %cst_101 {dimension_numbers = #tpu.dot_dimension_numbers<[1], [0], [0], [1], [0, 0, 1, 1], [], []>} : vector<32x64xf32>, vector<64x2xf32>, vector<32x2xf32> -> vector<32x2xf32>
    %c1_102 = arith.constant 1 : index
    %c0_103 = arith.constant 0 : index
    %c0_104 = arith.constant 0 : index
    %234 = vector.load %arg18[%c1_102, %c0_103, %c0_104] : memref<4x1x2xf32, #tpu.memory_space<vmem>>, vector<1x1x2xf32>
    %235 = vector.shape_cast %234 : vector<1x1x2xf32> to vector<1x2xf32>
    %236 = vector.broadcast %235 : vector<1x2xf32> to vector<32x2xf32>
    %237 = arith.addf %233, %236 : vector<32x2xf32>
    %cst_105 = arith.constant 1.000000e+00 : f32
    %238 = vector.broadcast %cst_105 : f32 to vector<32x3xf32>
    %239 = arith.mulf %238, %224 : vector<32x3xf32>
    %240 = arith.addf %140, %239 : vector<32x3xf32>
    %241 = vector.extract_strided_slice %237 {offsets = [0, 0], sizes = [32, 1], strides = [1, 1]} : vector<32x2xf32> to vector<32x1xf32>
    %242 = vector.broadcast %241 : vector<32x1xf32> to vector<32x3xf32>
    %243 = arith.mulf %242, %4 : vector<32x3xf32>
    %244 = arith.addf %240, %243 : vector<32x3xf32>
    %245 = vector.extract_strided_slice %237 {offsets = [0, 1], sizes = [32, 1], strides = [1, 1]} : vector<32x2xf32> to vector<32x1xf32>
    %246 = vector.broadcast %245 : vector<32x1xf32> to vector<32x3xf32>
    %247 = arith.mulf %246, %38 : vector<32x3xf32>
    %248 = arith.addf %244, %247 : vector<32x3xf32>
    %249 = arith.addf %164, %221 : vector<32x32xf32>
    %250 = arith.negf %249 : vector<32x32xf32>
    %251 = math.exp %250 : vector<32x32xf32>
    %cst_106 = arith.constant 1.000000e+00 : f32
    %252 = vector.broadcast %cst_106 : f32 to vector<32x32xf32>
    %253 = arith.addf %252, %251 : vector<32x32xf32>
    %254 = arith.divf %252, %253 : vector<32x32xf32>
    %255 = arith.mulf %249, %254 : vector<32x32xf32>
    %256 = vector.extract_strided_slice %214 {offsets = [0, 0], sizes = [32, 32], strides = [1, 1]} : vector<32x33xf32> to vector<32x32xf32>
    %cst_107 = arith.constant dense<0.000000e+00> : vector<32x32xf32>
    %257 = tpu.matmul %255, %256, %cst_107 {dimension_numbers = #tpu.dot_dimension_numbers<[1], [0], [0], [1], [0, 0, 1, 1], [], []>} : vector<32x32xf32>, vector<32x32xf32>, vector<32x32xf32> -> vector<32x32xf32>
    %c1_108 = arith.constant 1 : index
    %c0_109 = arith.constant 0 : index
    %c0_110 = arith.constant 0 : index
    %258 = vector.load %arg16[%c1_108, %c0_109, %c0_110] : memref<4x1x32xf32, #tpu.memory_space<vmem>>, vector<1x1x32xf32>
    %259 = vector.shape_cast %258 : vector<1x1x32xf32> to vector<1x32xf32>
    %260 = vector.broadcast %259 : vector<1x32xf32> to vector<32x32xf32>
    %261 = arith.addf %257, %260 : vector<32x32xf32>
    %c2 = arith.constant 2 : index
    %c0_111 = arith.constant 0 : index
    %c0_112 = arith.constant 0 : index
    %262 = vector.load %arg10[%c2, %c0_111, %c0_112] : memref<4x32x160xf32, #tpu.memory_space<vmem>>, vector<1x32x160xf32>
    %263 = vector.shape_cast %262 : vector<1x32x160xf32> to vector<32x160xf32>
    %cst_113 = arith.constant dense<0.000000e+00> : vector<32x160xf32>
    %264 = tpu.matmul %261, %263, %cst_113 {dimension_numbers = #tpu.dot_dimension_numbers<[1], [0], [0], [1], [0, 0, 1, 1], [], []>} : vector<32x32xf32>, vector<32x160xf32>, vector<32x160xf32> -> vector<32x160xf32>
    %c2_114 = arith.constant 2 : index
    %c0_115 = arith.constant 0 : index
    %c0_116 = arith.constant 0 : index
    %265 = vector.load %arg11[%c2_114, %c0_115, %c0_116] : memref<4x1x160xf32, #tpu.memory_space<vmem>>, vector<1x1x160xf32>
    %266 = vector.shape_cast %265 : vector<1x1x160xf32> to vector<1x160xf32>
    %267 = vector.broadcast %266 : vector<1x160xf32> to vector<32x160xf32>
    %268 = arith.addf %264, %267 : vector<32x160xf32>
    %269 = vector.extract_strided_slice %268 {offsets = [0, 0], sizes = [32, 64], strides = [1, 1]} : vector<32x160xf32> to vector<32x64xf32>
    %270 = vector.extract_strided_slice %268 {offsets = [0, 64], sizes = [32, 32], strides = [1, 1]} : vector<32x160xf32> to vector<32x32xf32>
    %271 = vector.extract_strided_slice %268 {offsets = [0, 96], sizes = [32, 32], strides = [1, 1]} : vector<32x160xf32> to vector<32x32xf32>
    %272 = vector.extract_strided_slice %268 {offsets = [0, 128], sizes = [32, 32], strides = [1, 1]} : vector<32x160xf32> to vector<32x32xf32>
    %cst_117 = arith.constant dense<0.000000e+00> : vector<224x3xf32>
    %273 = tpu.matmul %7, %248, %cst_117 {dimension_numbers = #tpu.dot_dimension_numbers<[1], [0], [0], [1], [0, 0, 1, 1], [], []>} : vector<224x32xf32>, vector<32x3xf32>, vector<224x3xf32> -> vector<224x3xf32>
    %274 = arith.mulf %273, %273 : vector<224x3xf32>
    %cst_118 = arith.constant dense<0.000000e+00> : vector<224xf32>
    %275 = vector.multi_reduction <add>, %274, %cst_118 [1] : vector<224x3xf32> to vector<224xf32>
    %276 = vector.shape_cast %275 : vector<224xf32> to vector<224x1xf32>
    %c2_119 = arith.constant 2 : index
    %c0_120 = arith.constant 0 : index
    %c0_121 = arith.constant 0 : index
    %277 = vector.load %arg12[%c2_119, %c0_120, %c0_121] : memref<4x3x32xf32, #tpu.memory_space<vmem>>, vector<1x3x32xf32>
    %278 = vector.shape_cast %277 : vector<1x3x32xf32> to vector<3x32xf32>
    %279 = vector.extract_strided_slice %278 {offsets = [1, 0], sizes = [2, 32], strides = [1, 1]} : vector<3x32xf32> to vector<2x32xf32>
    %280 = tpu.concatenate %270, %271, %279 in 0 : vector<32x32xf32>, vector<32x32xf32>, vector<2x32xf32> -> vector<66x32xf32>
    %cst_122 = arith.constant dense<0.000000e+00> : vector<224x32xf32>
    %281 = tpu.matmul %6, %280, %cst_122 {dimension_numbers = #tpu.dot_dimension_numbers<[1], [0], [0], [1], [0, 0, 1, 1], [], []>} : vector<224x66xf32>, vector<66x32xf32>, vector<224x32xf32> -> vector<224x32xf32>
    %282 = vector.extract_strided_slice %278 {offsets = [0, 0], sizes = [1, 32], strides = [1, 1]} : vector<3x32xf32> to vector<1x32xf32>
    %283 = vector.broadcast %276 : vector<224x1xf32> to vector<224x32xf32>
    %284 = vector.broadcast %282 : vector<1x32xf32> to vector<224x32xf32>
    %285 = arith.mulf %283, %284 : vector<224x32xf32>
    %286 = arith.addf %281, %285 : vector<224x32xf32>
    %287 = arith.negf %286 : vector<224x32xf32>
    %288 = math.exp %287 : vector<224x32xf32>
    %cst_123 = arith.constant 1.000000e+00 : f32
    %289 = vector.broadcast %cst_123 : f32 to vector<224x32xf32>
    %290 = arith.addf %289, %288 : vector<224x32xf32>
    %291 = arith.divf %289, %290 : vector<224x32xf32>
    %292 = arith.mulf %286, %291 : vector<224x32xf32>
    %c2_124 = arith.constant 2 : index
    %c0_125 = arith.constant 0 : index
    %c0_126 = arith.constant 0 : index
    %293 = vector.load %arg13[%c2_124, %c0_125, %c0_126] : memref<4x32x96xf32, #tpu.memory_space<vmem>>, vector<1x32x96xf32>
    %294 = vector.shape_cast %293 : vector<1x32x96xf32> to vector<32x96xf32>
    %c2_127 = arith.constant 2 : index
    %c0_128 = arith.constant 0 : index
    %c0_129 = arith.constant 0 : index
    %295 = vector.load %arg14[%c2_127, %c0_128, %c0_129] : memref<4x1x96xf32, #tpu.memory_space<vmem>>, vector<1x1x96xf32>
    %296 = vector.shape_cast %295 : vector<1x1x96xf32> to vector<1x96xf32>
    %297 = vector.extract_strided_slice %294 {offsets = [0, 0], sizes = [32, 32], strides = [1, 1]} : vector<32x96xf32> to vector<32x32xf32>
    %cst_130 = arith.constant dense<0.000000e+00> : vector<224x32xf32>
    %298 = tpu.matmul %292, %297, %cst_130 {dimension_numbers = #tpu.dot_dimension_numbers<[1], [0], [0], [1], [0, 0, 1, 1], [], []>} : vector<224x32xf32>, vector<32x32xf32>, vector<224x32xf32> -> vector<224x32xf32>
    %299 = vector.extract_strided_slice %296 {offsets = [0, 0], sizes = [1, 32], strides = [1, 1]} : vector<1x96xf32> to vector<1x32xf32>
    %300 = vector.broadcast %299 : vector<1x32xf32> to vector<224x32xf32>
    %301 = arith.addf %298, %300 : vector<224x32xf32>
    %302 = arith.negf %301 : vector<224x32xf32>
    %303 = math.exp %302 : vector<224x32xf32>
    %cst_131 = arith.constant 1.000000e+00 : f32
    %304 = vector.broadcast %cst_131 : f32 to vector<224x32xf32>
    %305 = arith.addf %304, %303 : vector<224x32xf32>
    %306 = arith.divf %304, %305 : vector<224x32xf32>
    %307 = arith.mulf %301, %306 : vector<224x32xf32>
    %308 = vector.extract_strided_slice %294 {offsets = [0, 32], sizes = [32, 64], strides = [1, 1]} : vector<32x96xf32> to vector<32x64xf32>
    %cst_132 = arith.constant dense<0.000000e+00> : vector<224x64xf32>
    %309 = tpu.matmul %307, %308, %cst_132 {dimension_numbers = #tpu.dot_dimension_numbers<[1], [0], [0], [1], [0, 0, 1, 1], [], []>} : vector<224x32xf32>, vector<32x64xf32>, vector<224x64xf32> -> vector<224x64xf32>
    %310 = vector.extract_strided_slice %309 {offsets = [0, 0], sizes = [224, 32], strides = [1, 1]} : vector<224x64xf32> to vector<224x32xf32>
    %311 = vector.extract_strided_slice %296 {offsets = [0, 32], sizes = [1, 32], strides = [1, 1]} : vector<1x96xf32> to vector<1x32xf32>
    %312 = vector.broadcast %311 : vector<1x32xf32> to vector<224x32xf32>
    %313 = arith.addf %310, %312 : vector<224x32xf32>
    %314 = arith.negf %313 : vector<224x32xf32>
    %315 = math.exp %314 : vector<224x32xf32>
    %cst_133 = arith.constant 1.000000e+00 : f32
    %316 = vector.broadcast %cst_133 : f32 to vector<224x32xf32>
    %317 = arith.addf %316, %315 : vector<224x32xf32>
    %318 = arith.divf %316, %317 : vector<224x32xf32>
    %319 = arith.mulf %313, %318 : vector<224x32xf32>
    %320 = vector.extract_strided_slice %309 {offsets = [0, 32], sizes = [224, 32], strides = [1, 1]} : vector<224x64xf32> to vector<224x32xf32>
    %c2_134 = arith.constant 2 : index
    %c0_135 = arith.constant 0 : index
    %c0_136 = arith.constant 0 : index
    %321 = vector.load %arg15[%c2_134, %c0_135, %c0_136] : memref<4x32x33xf32, #tpu.memory_space<vmem>>, vector<1x32x33xf32>
    %322 = vector.shape_cast %321 : vector<1x32x33xf32> to vector<32x33xf32>
    %323 = vector.extract_strided_slice %322 {offsets = [0, 32], sizes = [32, 1], strides = [1, 1]} : vector<32x33xf32> to vector<32x1xf32>
    %cst_137 = arith.constant dense<0.000000e+00> : vector<224x1xf32>
    %324 = tpu.matmul %319, %323, %cst_137 {dimension_numbers = #tpu.dot_dimension_numbers<[1], [0], [0], [1], [0, 0, 1, 1], [], []>} : vector<224x32xf32>, vector<32x1xf32>, vector<224x1xf32> -> vector<224x1xf32>
    %325 = vector.broadcast %324 : vector<224x1xf32> to vector<224x3xf32>
    %326 = arith.mulf %273, %325 : vector<224x3xf32>
    %327 = tpu.concatenate %320, %326 in 1 : vector<224x32xf32>, vector<224x3xf32> -> vector<224x35xf32>
    %cst_138 = arith.constant dense<0.000000e+00> : vector<32x35xf32>
    %328 = tpu.matmul %8, %327, %cst_138 {dimension_numbers = #tpu.dot_dimension_numbers<[1], [0], [0], [1], [0, 0, 1, 1], [], []>} : vector<32x224xf32>, vector<224x35xf32>, vector<32x35xf32> -> vector<32x35xf32>
    %329 = vector.extract_strided_slice %328 {offsets = [0, 0], sizes = [32, 32], strides = [1, 1]} : vector<32x35xf32> to vector<32x32xf32>
    %330 = vector.extract_strided_slice %328 {offsets = [0, 32], sizes = [32, 3], strides = [1, 1]} : vector<32x35xf32> to vector<32x3xf32>
    %331 = vector.broadcast %9 : vector<32x1xf32> to vector<32x3xf32>
    %332 = arith.mulf %330, %331 : vector<32x3xf32>
    %333 = arith.negf %269 : vector<32x64xf32>
    %334 = math.exp %333 : vector<32x64xf32>
    %cst_139 = arith.constant 1.000000e+00 : f32
    %335 = vector.broadcast %cst_139 : f32 to vector<32x64xf32>
    %336 = arith.addf %335, %334 : vector<32x64xf32>
    %337 = arith.divf %335, %336 : vector<32x64xf32>
    %338 = arith.mulf %269, %337 : vector<32x64xf32>
    %c2_140 = arith.constant 2 : index
    %c0_141 = arith.constant 0 : index
    %c0_142 = arith.constant 0 : index
    %339 = vector.load %arg17[%c2_140, %c0_141, %c0_142] : memref<4x64x2xf32, #tpu.memory_space<vmem>>, vector<1x64x2xf32>
    %340 = vector.shape_cast %339 : vector<1x64x2xf32> to vector<64x2xf32>
    %cst_143 = arith.constant dense<0.000000e+00> : vector<32x2xf32>
    %341 = tpu.matmul %338, %340, %cst_143 {dimension_numbers = #tpu.dot_dimension_numbers<[1], [0], [0], [1], [0, 0, 1, 1], [], []>} : vector<32x64xf32>, vector<64x2xf32>, vector<32x2xf32> -> vector<32x2xf32>
    %c2_144 = arith.constant 2 : index
    %c0_145 = arith.constant 0 : index
    %c0_146 = arith.constant 0 : index
    %342 = vector.load %arg18[%c2_144, %c0_145, %c0_146] : memref<4x1x2xf32, #tpu.memory_space<vmem>>, vector<1x1x2xf32>
    %343 = vector.shape_cast %342 : vector<1x1x2xf32> to vector<1x2xf32>
    %344 = vector.broadcast %343 : vector<1x2xf32> to vector<32x2xf32>
    %345 = arith.addf %341, %344 : vector<32x2xf32>
    %cst_147 = arith.constant 1.000000e+00 : f32
    %346 = vector.broadcast %cst_147 : f32 to vector<32x3xf32>
    %347 = arith.mulf %346, %332 : vector<32x3xf32>
    %348 = arith.addf %248, %347 : vector<32x3xf32>
    %349 = vector.extract_strided_slice %345 {offsets = [0, 0], sizes = [32, 1], strides = [1, 1]} : vector<32x2xf32> to vector<32x1xf32>
    %350 = vector.broadcast %349 : vector<32x1xf32> to vector<32x3xf32>
    %351 = arith.mulf %350, %4 : vector<32x3xf32>
    %352 = arith.addf %348, %351 : vector<32x3xf32>
    %353 = vector.extract_strided_slice %345 {offsets = [0, 1], sizes = [32, 1], strides = [1, 1]} : vector<32x2xf32> to vector<32x1xf32>
    %354 = vector.broadcast %353 : vector<32x1xf32> to vector<32x3xf32>
    %355 = arith.mulf %354, %38 : vector<32x3xf32>
    %356 = arith.addf %352, %355 : vector<32x3xf32>
    %357 = arith.addf %272, %329 : vector<32x32xf32>
    %358 = arith.negf %357 : vector<32x32xf32>
    %359 = math.exp %358 : vector<32x32xf32>
    %cst_148 = arith.constant 1.000000e+00 : f32
    %360 = vector.broadcast %cst_148 : f32 to vector<32x32xf32>
    %361 = arith.addf %360, %359 : vector<32x32xf32>
    %362 = arith.divf %360, %361 : vector<32x32xf32>
    %363 = arith.mulf %357, %362 : vector<32x32xf32>
    %364 = vector.extract_strided_slice %322 {offsets = [0, 0], sizes = [32, 32], strides = [1, 1]} : vector<32x33xf32> to vector<32x32xf32>
    %cst_149 = arith.constant dense<0.000000e+00> : vector<32x32xf32>
    %365 = tpu.matmul %363, %364, %cst_149 {dimension_numbers = #tpu.dot_dimension_numbers<[1], [0], [0], [1], [0, 0, 1, 1], [], []>} : vector<32x32xf32>, vector<32x32xf32>, vector<32x32xf32> -> vector<32x32xf32>
    %c2_150 = arith.constant 2 : index
    %c0_151 = arith.constant 0 : index
    %c0_152 = arith.constant 0 : index
    %366 = vector.load %arg16[%c2_150, %c0_151, %c0_152] : memref<4x1x32xf32, #tpu.memory_space<vmem>>, vector<1x1x32xf32>
    %367 = vector.shape_cast %366 : vector<1x1x32xf32> to vector<1x32xf32>
    %368 = vector.broadcast %367 : vector<1x32xf32> to vector<32x32xf32>
    %369 = arith.addf %365, %368 : vector<32x32xf32>
    %c3 = arith.constant 3 : index
    %c0_153 = arith.constant 0 : index
    %c0_154 = arith.constant 0 : index
    %370 = vector.load %arg10[%c3, %c0_153, %c0_154] : memref<4x32x160xf32, #tpu.memory_space<vmem>>, vector<1x32x160xf32>
    %371 = vector.shape_cast %370 : vector<1x32x160xf32> to vector<32x160xf32>
    %cst_155 = arith.constant dense<0.000000e+00> : vector<32x160xf32>
    %372 = tpu.matmul %369, %371, %cst_155 {dimension_numbers = #tpu.dot_dimension_numbers<[1], [0], [0], [1], [0, 0, 1, 1], [], []>} : vector<32x32xf32>, vector<32x160xf32>, vector<32x160xf32> -> vector<32x160xf32>
    %c3_156 = arith.constant 3 : index
    %c0_157 = arith.constant 0 : index
    %c0_158 = arith.constant 0 : index
    %373 = vector.load %arg11[%c3_156, %c0_157, %c0_158] : memref<4x1x160xf32, #tpu.memory_space<vmem>>, vector<1x1x160xf32>
    %374 = vector.shape_cast %373 : vector<1x1x160xf32> to vector<1x160xf32>
    %375 = vector.broadcast %374 : vector<1x160xf32> to vector<32x160xf32>
    %376 = arith.addf %372, %375 : vector<32x160xf32>
    %377 = vector.extract_strided_slice %376 {offsets = [0, 0], sizes = [32, 64], strides = [1, 1]} : vector<32x160xf32> to vector<32x64xf32>
    %378 = vector.extract_strided_slice %376 {offsets = [0, 64], sizes = [32, 32], strides = [1, 1]} : vector<32x160xf32> to vector<32x32xf32>
    %379 = vector.extract_strided_slice %376 {offsets = [0, 96], sizes = [32, 32], strides = [1, 1]} : vector<32x160xf32> to vector<32x32xf32>
    %cst_159 = arith.constant dense<0.000000e+00> : vector<224x3xf32>
    %380 = tpu.matmul %7, %356, %cst_159 {dimension_numbers = #tpu.dot_dimension_numbers<[1], [0], [0], [1], [0, 0, 1, 1], [], []>} : vector<224x32xf32>, vector<32x3xf32>, vector<224x3xf32> -> vector<224x3xf32>
    %381 = arith.mulf %380, %380 : vector<224x3xf32>
    %cst_160 = arith.constant dense<0.000000e+00> : vector<224xf32>
    %382 = vector.multi_reduction <add>, %381, %cst_160 [1] : vector<224x3xf32> to vector<224xf32>
    %383 = vector.shape_cast %382 : vector<224xf32> to vector<224x1xf32>
    %c3_161 = arith.constant 3 : index
    %c0_162 = arith.constant 0 : index
    %c0_163 = arith.constant 0 : index
    %384 = vector.load %arg12[%c3_161, %c0_162, %c0_163] : memref<4x3x32xf32, #tpu.memory_space<vmem>>, vector<1x3x32xf32>
    %385 = vector.shape_cast %384 : vector<1x3x32xf32> to vector<3x32xf32>
    %386 = vector.extract_strided_slice %385 {offsets = [1, 0], sizes = [2, 32], strides = [1, 1]} : vector<3x32xf32> to vector<2x32xf32>
    %387 = tpu.concatenate %378, %379, %386 in 0 : vector<32x32xf32>, vector<32x32xf32>, vector<2x32xf32> -> vector<66x32xf32>
    %cst_164 = arith.constant dense<0.000000e+00> : vector<224x32xf32>
    %388 = tpu.matmul %6, %387, %cst_164 {dimension_numbers = #tpu.dot_dimension_numbers<[1], [0], [0], [1], [0, 0, 1, 1], [], []>} : vector<224x66xf32>, vector<66x32xf32>, vector<224x32xf32> -> vector<224x32xf32>
    %389 = vector.extract_strided_slice %385 {offsets = [0, 0], sizes = [1, 32], strides = [1, 1]} : vector<3x32xf32> to vector<1x32xf32>
    %390 = vector.broadcast %383 : vector<224x1xf32> to vector<224x32xf32>
    %391 = vector.broadcast %389 : vector<1x32xf32> to vector<224x32xf32>
    %392 = arith.mulf %390, %391 : vector<224x32xf32>
    %393 = arith.addf %388, %392 : vector<224x32xf32>
    %394 = arith.negf %393 : vector<224x32xf32>
    %395 = math.exp %394 : vector<224x32xf32>
    %cst_165 = arith.constant 1.000000e+00 : f32
    %396 = vector.broadcast %cst_165 : f32 to vector<224x32xf32>
    %397 = arith.addf %396, %395 : vector<224x32xf32>
    %398 = arith.divf %396, %397 : vector<224x32xf32>
    %399 = arith.mulf %393, %398 : vector<224x32xf32>
    %c3_166 = arith.constant 3 : index
    %c0_167 = arith.constant 0 : index
    %c0_168 = arith.constant 0 : index
    %400 = vector.load %arg13[%c3_166, %c0_167, %c0_168] : memref<4x32x96xf32, #tpu.memory_space<vmem>>, vector<1x32x96xf32>
    %401 = vector.shape_cast %400 : vector<1x32x96xf32> to vector<32x96xf32>
    %c3_169 = arith.constant 3 : index
    %c0_170 = arith.constant 0 : index
    %c0_171 = arith.constant 0 : index
    %402 = vector.load %arg14[%c3_169, %c0_170, %c0_171] : memref<4x1x96xf32, #tpu.memory_space<vmem>>, vector<1x1x96xf32>
    %403 = vector.shape_cast %402 : vector<1x1x96xf32> to vector<1x96xf32>
    %404 = vector.extract_strided_slice %401 {offsets = [0, 0], sizes = [32, 32], strides = [1, 1]} : vector<32x96xf32> to vector<32x32xf32>
    %cst_172 = arith.constant dense<0.000000e+00> : vector<224x32xf32>
    %405 = tpu.matmul %399, %404, %cst_172 {dimension_numbers = #tpu.dot_dimension_numbers<[1], [0], [0], [1], [0, 0, 1, 1], [], []>} : vector<224x32xf32>, vector<32x32xf32>, vector<224x32xf32> -> vector<224x32xf32>
    %406 = vector.extract_strided_slice %403 {offsets = [0, 0], sizes = [1, 32], strides = [1, 1]} : vector<1x96xf32> to vector<1x32xf32>
    %407 = vector.broadcast %406 : vector<1x32xf32> to vector<224x32xf32>
    %408 = arith.addf %405, %407 : vector<224x32xf32>
    %409 = arith.negf %408 : vector<224x32xf32>
    %410 = math.exp %409 : vector<224x32xf32>
    %cst_173 = arith.constant 1.000000e+00 : f32
    %411 = vector.broadcast %cst_173 : f32 to vector<224x32xf32>
    %412 = arith.addf %411, %410 : vector<224x32xf32>
    %413 = arith.divf %411, %412 : vector<224x32xf32>
    %414 = arith.mulf %408, %413 : vector<224x32xf32>
    %415 = vector.extract_strided_slice %401 {offsets = [0, 32], sizes = [32, 64], strides = [1, 1]} : vector<32x96xf32> to vector<32x64xf32>
    %cst_174 = arith.constant dense<0.000000e+00> : vector<224x64xf32>
    %416 = tpu.matmul %414, %415, %cst_174 {dimension_numbers = #tpu.dot_dimension_numbers<[1], [0], [0], [1], [0, 0, 1, 1], [], []>} : vector<224x32xf32>, vector<32x64xf32>, vector<224x64xf32> -> vector<224x64xf32>
    %417 = vector.extract_strided_slice %416 {offsets = [0, 0], sizes = [224, 32], strides = [1, 1]} : vector<224x64xf32> to vector<224x32xf32>
    %418 = vector.extract_strided_slice %403 {offsets = [0, 32], sizes = [1, 32], strides = [1, 1]} : vector<1x96xf32> to vector<1x32xf32>
    %419 = vector.broadcast %418 : vector<1x32xf32> to vector<224x32xf32>
    %420 = arith.addf %417, %419 : vector<224x32xf32>
    %421 = arith.negf %420 : vector<224x32xf32>
    %422 = math.exp %421 : vector<224x32xf32>
    %cst_175 = arith.constant 1.000000e+00 : f32
    %423 = vector.broadcast %cst_175 : f32 to vector<224x32xf32>
    %424 = arith.addf %423, %422 : vector<224x32xf32>
    %425 = arith.divf %423, %424 : vector<224x32xf32>
    %426 = arith.mulf %420, %425 : vector<224x32xf32>
    %427 = vector.extract_strided_slice %416 {offsets = [0, 32], sizes = [224, 32], strides = [1, 1]} : vector<224x64xf32> to vector<224x32xf32>
    %c3_176 = arith.constant 3 : index
    %c0_177 = arith.constant 0 : index
    %c0_178 = arith.constant 0 : index
    %428 = vector.load %arg15[%c3_176, %c0_177, %c0_178] : memref<4x32x33xf32, #tpu.memory_space<vmem>>, vector<1x32x33xf32>
    %429 = vector.shape_cast %428 : vector<1x32x33xf32> to vector<32x33xf32>
    %430 = vector.extract_strided_slice %429 {offsets = [0, 32], sizes = [32, 1], strides = [1, 1]} : vector<32x33xf32> to vector<32x1xf32>
    %cst_179 = arith.constant dense<0.000000e+00> : vector<224x1xf32>
    %431 = tpu.matmul %426, %430, %cst_179 {dimension_numbers = #tpu.dot_dimension_numbers<[1], [0], [0], [1], [0, 0, 1, 1], [], []>} : vector<224x32xf32>, vector<32x1xf32>, vector<224x1xf32> -> vector<224x1xf32>
    %432 = vector.broadcast %431 : vector<224x1xf32> to vector<224x3xf32>
    %433 = arith.mulf %380, %432 : vector<224x3xf32>
    %434 = tpu.concatenate %427, %433 in 1 : vector<224x32xf32>, vector<224x3xf32> -> vector<224x35xf32>
    %cst_180 = arith.constant dense<0.000000e+00> : vector<32x35xf32>
    %435 = tpu.matmul %8, %434, %cst_180 {dimension_numbers = #tpu.dot_dimension_numbers<[1], [0], [0], [1], [0, 0, 1, 1], [], []>} : vector<32x224xf32>, vector<224x35xf32>, vector<32x35xf32> -> vector<32x35xf32>
    %436 = vector.extract_strided_slice %435 {offsets = [0, 32], sizes = [32, 3], strides = [1, 1]} : vector<32x35xf32> to vector<32x3xf32>
    %437 = vector.broadcast %9 : vector<32x1xf32> to vector<32x3xf32>
    %438 = arith.mulf %436, %437 : vector<32x3xf32>
    %439 = arith.negf %377 : vector<32x64xf32>
    %440 = math.exp %439 : vector<32x64xf32>
    %cst_181 = arith.constant 1.000000e+00 : f32
    %441 = vector.broadcast %cst_181 : f32 to vector<32x64xf32>
    %442 = arith.addf %441, %440 : vector<32x64xf32>
    %443 = arith.divf %441, %442 : vector<32x64xf32>
    %444 = arith.mulf %377, %443 : vector<32x64xf32>
    %c3_182 = arith.constant 3 : index
    %c0_183 = arith.constant 0 : index
    %c0_184 = arith.constant 0 : index
    %445 = vector.load %arg17[%c3_182, %c0_183, %c0_184] : memref<4x64x2xf32, #tpu.memory_space<vmem>>, vector<1x64x2xf32>
    %446 = vector.shape_cast %445 : vector<1x64x2xf32> to vector<64x2xf32>
    %cst_185 = arith.constant dense<0.000000e+00> : vector<32x2xf32>
    %447 = tpu.matmul %444, %446, %cst_185 {dimension_numbers = #tpu.dot_dimension_numbers<[1], [0], [0], [1], [0, 0, 1, 1], [], []>} : vector<32x64xf32>, vector<64x2xf32>, vector<32x2xf32> -> vector<32x2xf32>
    %c3_186 = arith.constant 3 : index
    %c0_187 = arith.constant 0 : index
    %c0_188 = arith.constant 0 : index
    %448 = vector.load %arg18[%c3_186, %c0_187, %c0_188] : memref<4x1x2xf32, #tpu.memory_space<vmem>>, vector<1x1x2xf32>
    %449 = vector.shape_cast %448 : vector<1x1x2xf32> to vector<1x2xf32>
    %450 = vector.broadcast %449 : vector<1x2xf32> to vector<32x2xf32>
    %451 = arith.addf %447, %450 : vector<32x2xf32>
    %cst_189 = arith.constant 1.000000e+00 : f32
    %452 = vector.broadcast %cst_189 : f32 to vector<32x3xf32>
    %453 = arith.mulf %452, %438 : vector<32x3xf32>
    %454 = arith.addf %356, %453 : vector<32x3xf32>
    %455 = vector.extract_strided_slice %451 {offsets = [0, 0], sizes = [32, 1], strides = [1, 1]} : vector<32x2xf32> to vector<32x1xf32>
    %456 = vector.broadcast %455 : vector<32x1xf32> to vector<32x3xf32>
    %457 = arith.mulf %456, %4 : vector<32x3xf32>
    %458 = arith.addf %454, %457 : vector<32x3xf32>
    %459 = vector.extract_strided_slice %451 {offsets = [0, 1], sizes = [32, 1], strides = [1, 1]} : vector<32x2xf32> to vector<32x1xf32>
    %460 = vector.broadcast %459 : vector<32x1xf32> to vector<32x3xf32>
    %461 = arith.mulf %460, %38 : vector<32x3xf32>
    %462 = arith.addf %458, %461 : vector<32x3xf32>
    %c0_190 = arith.constant 0 : index
    %c0_191 = arith.constant 0 : index
    %c0_192 = arith.constant 0 : index
    %463 = vector.load %arg19[%c0_190, %c0_191, %c0_192] : memref<1x32x3xf32, #tpu.memory_space<vmem>>, vector<1x32x3xf32>
    %464 = vector.shape_cast %463 : vector<1x32x3xf32> to vector<32x3xf32>
    %465 = vector.shape_cast %462 : vector<32x3xf32> to vector<1x32x3xf32>
    tpu.vector_store %arg19[%c0_190, %c0_191, %c0_192], %465 {strides = array<i32>} : memref<1x32x3xf32, #tpu.memory_space<vmem>>, vector<1x32x3xf32>,
    return
  }
  func.func @transform_0(%arg0: i32) -> (i32, i32, i32) {
    %c0_i32 = arith.constant 0 : i32
    %c0_i32_0 = arith.constant 0 : i32
    %c0_i32_1 = arith.constant 0 : i32
    return %arg0, %c0_i32, %c0_i32_0 : i32, i32, i32
  }
  func.func @transform_1(%arg0: i32) -> (i32, i32, i32) {
    %c0_i32 = arith.constant 0 : i32
    %c0_i32_0 = arith.constant 0 : i32
    %c0_i32_1 = arith.constant 0 : i32
    return %arg0, %c0_i32, %c0_i32_0 : i32, i32, i32
  }
  func.func @transform_2(%arg0: i32) -> (i32, i32) {
    %c0_i32 = arith.constant 0 : i32
    %c0_i32_0 = arith.constant 0 : i32
    %c0_i32_1 = arith.constant 0 : i32
    return %c0_i32, %c0_i32_0 : i32, i32
  }
  func.func @transform_3(%arg0: i32) -> (i32, i32) {
    %c0_i32 = arith.constant 0 : i32
    %c0_i32_0 = arith.constant 0 : i32
    %c0_i32_1 = arith.constant 0 : i32
    return %c0_i32, %c0_i32_0 : i32, i32
  }
  func.func @transform_4(%arg0: i32) -> (i32, i32) {
    %c0_i32 = arith.constant 0 : i32
    %c0_i32_0 = arith.constant 0 : i32
    %c0_i32_1 = arith.constant 0 : i32
    return %c0_i32, %c0_i32_0 : i32, i32
  }
  func.func @transform_5(%arg0: i32) -> (i32, i32) {
    %c0_i32 = arith.constant 0 : i32
    %c0_i32_0 = arith.constant 0 : i32
    %c0_i32_1 = arith.constant 0 : i32
    return %c0_i32, %c0_i32_0 : i32, i32
  }
  func.func @transform_6(%arg0: i32) -> (i32, i32) {
    %c0_i32 = arith.constant 0 : i32
    %c0_i32_0 = arith.constant 0 : i32
    %c0_i32_1 = arith.constant 0 : i32
    return %c0_i32, %c0_i32_0 : i32, i32
  }
  func.func @transform_7(%arg0: i32) -> (i32, i32) {
    %c0_i32 = arith.constant 0 : i32
    %c0_i32_0 = arith.constant 0 : i32
    %c0_i32_1 = arith.constant 0 : i32
    return %c0_i32, %c0_i32_0 : i32, i32
  }
  func.func @transform_8(%arg0: i32) -> (i32, i32) {
    %c0_i32 = arith.constant 0 : i32
    %c0_i32_0 = arith.constant 0 : i32
    %c0_i32_1 = arith.constant 0 : i32
    return %c0_i32, %c0_i32_0 : i32, i32
  }
  func.func @transform_9(%arg0: i32) -> (i32, i32, i32) {
    %c0_i32 = arith.constant 0 : i32
    %c0_i32_0 = arith.constant 0 : i32
    %c0_i32_1 = arith.constant 0 : i32
    %c0_i32_2 = arith.constant 0 : i32
    return %c0_i32, %c0_i32_0, %c0_i32_1 : i32, i32, i32
  }
  func.func @transform_10(%arg0: i32) -> (i32, i32, i32) {
    %c0_i32 = arith.constant 0 : i32
    %c0_i32_0 = arith.constant 0 : i32
    %c0_i32_1 = arith.constant 0 : i32
    %c0_i32_2 = arith.constant 0 : i32
    return %c0_i32, %c0_i32_0, %c0_i32_1 : i32, i32, i32
  }
  func.func @transform_11(%arg0: i32) -> (i32, i32, i32) {
    %c0_i32 = arith.constant 0 : i32
    %c0_i32_0 = arith.constant 0 : i32
    %c0_i32_1 = arith.constant 0 : i32
    %c0_i32_2 = arith.constant 0 : i32
    return %c0_i32, %c0_i32_0, %c0_i32_1 : i32, i32, i32
  }
  func.func @transform_12(%arg0: i32) -> (i32, i32, i32) {
    %c0_i32 = arith.constant 0 : i32
    %c0_i32_0 = arith.constant 0 : i32
    %c0_i32_1 = arith.constant 0 : i32
    %c0_i32_2 = arith.constant 0 : i32
    return %c0_i32, %c0_i32_0, %c0_i32_1 : i32, i32, i32
  }
  func.func @transform_13(%arg0: i32) -> (i32, i32, i32) {
    %c0_i32 = arith.constant 0 : i32
    %c0_i32_0 = arith.constant 0 : i32
    %c0_i32_1 = arith.constant 0 : i32
    %c0_i32_2 = arith.constant 0 : i32
    return %c0_i32, %c0_i32_0, %c0_i32_1 : i32, i32, i32
  }
  func.func @transform_14(%arg0: i32) -> (i32, i32, i32) {
    %c0_i32 = arith.constant 0 : i32
    %c0_i32_0 = arith.constant 0 : i32
    %c0_i32_1 = arith.constant 0 : i32
    %c0_i32_2 = arith.constant 0 : i32
    return %c0_i32, %c0_i32_0, %c0_i32_1 : i32, i32, i32
  }
  func.func @transform_15(%arg0: i32) -> (i32, i32, i32) {
    %c0_i32 = arith.constant 0 : i32
    %c0_i32_0 = arith.constant 0 : i32
    %c0_i32_1 = arith.constant 0 : i32
    %c0_i32_2 = arith.constant 0 : i32
    return %c0_i32, %c0_i32_0, %c0_i32_1 : i32, i32, i32
  }
  func.func @transform_16(%arg0: i32) -> (i32, i32, i32) {
    %c0_i32 = arith.constant 0 : i32
    %c0_i32_0 = arith.constant 0 : i32
    %c0_i32_1 = arith.constant 0 : i32
    %c0_i32_2 = arith.constant 0 : i32
    return %c0_i32, %c0_i32_0, %c0_i32_1 : i32, i32, i32
  }
  func.func @transform_17(%arg0: i32) -> (i32, i32, i32) {
    %c0_i32 = arith.constant 0 : i32
    %c0_i32_0 = arith.constant 0 : i32
    %c0_i32_1 = arith.constant 0 : i32
    %c0_i32_2 = arith.constant 0 : i32
    return %c0_i32, %c0_i32_0, %c0_i32_1 : i32, i32, i32
  }
  func.func @transform_18(%arg0: i32) -> (i32, i32, i32) {
    %c0_i32 = arith.constant 0 : i32
    %c0_i32_0 = arith.constant 0 : i32
    %c0_i32_1 = arith.constant 0 : i32
    return %arg0, %c0_i32, %c0_i32_0 : i32, i32, i32
  }
}

</mosaic_0001>

<llo_original>
// kernel: tpu_custom_call.1
$region0: #{tpu_custom_call.1}
  #allocation0 [shape = 'u32[]', space=smem, size = 0x4, offset = 0x4, fixed_abs, tag = 'smem constant byte address 0x4 - core index']
  #allocation1 [shape = 'u32[144,128]{1,0:T(1,128)}', space=vmem, size = 0x12000, scoped, tag = 'internal scratch']
  %s0 = inlined_call_operand.vmem [shape: f32[1,32,8], index: 0, kind: input, shape index: {}]
  %s1 = inlined_call_operand.vmem [shape: f32[1,224,66], index: 1, kind: input, shape index: {}]
  %s2 = inlined_call_operand.vmem [shape: f32[224,32], index: 2, kind: input, shape index: {}]
  %s3 = inlined_call_operand.vmem [shape: f32[32,224], index: 3, kind: input, shape index: {}]
  %s4 = inlined_call_operand.vmem [shape: f32[32,1], index: 4, kind: input, shape index: {}]
  %s5 = inlined_call_operand.vmem [shape: f32[2,32], index: 5, kind: input, shape index: {}]
  %s6 = inlined_call_operand.vmem [shape: f32[7,32], index: 6, kind: input, shape index: {}]
  %s7 = inlined_call_operand.vmem [shape: f32[32,35], index: 7, kind: input, shape index: {}]
  %s8 = inlined_call_operand.vmem [shape: f32[1,67], index: 8, kind: input, shape index: {}]
  %s9 = inlined_call_operand.vmem [shape: f32[4,32,160], index: 9, kind: input, shape index: {}]
  %s10 = inlined_call_operand.vmem [shape: f32[4,1,160], index: 10, kind: input, shape index: {}]
  %s11 = inlined_call_operand.vmem [shape: f32[4,3,32], index: 11, kind: input, shape index: {}]
  %s12 = inlined_call_operand.vmem [shape: f32[4,32,96], index: 12, kind: input, shape index: {}]
  %s13 = inlined_call_operand.vmem [shape: f32[4,1,96], index: 13, kind: input, shape index: {}]
  %s14 = inlined_call_operand.vmem [shape: f32[4,32,33], index: 14, kind: input, shape index: {}]
  %s15 = inlined_call_operand.vmem [shape: f32[4,1,32], index: 15, kind: input, shape index: {}]
  %s16 = inlined_call_operand.vmem [shape: f32[4,64,2], index: 16, kind: input, shape index: {}]
  %s17 = inlined_call_operand.vmem [shape: f32[4,1,2], index: 17, kind: input, shape index: {}]
  %s18 = inlined_call_operand.vmem [shape: f32[1,32,3], index: 18, kind: output, shape index: {}]
  %s19 = sld [smem:[#allocation0]]
  $region82: #{tpu_custom_call.1} parent=0
    _
  %s21 = ssub.s32 1, %s19
  %s22 = scalar_select 0, %s21, %s19
  // Predicated region
  $region2: #{tpu_custom_call.1} parent=0 // pred_check
    _
  $region3: #{tpu_custom_call.1} parent=0 // pred_check_branch
    %24 = sbr.rel (0) target = $region5
  $region4: #{tpu_custom_call.1} parent=0 // pred_region
    _
  $region5: #{tpu_custom_call.1} parent=0 // pred_fallthru
    _
  // Predicated region
  $region6: #{tpu_custom_call.1} parent=0 // pred_check
    _
  $region7: #{tpu_custom_call.1} parent=0 // pred_check_branch
    %26 = sbr.rel (0) target = $region9
  $region8: #{tpu_custom_call.1} parent=0 // pred_region
    _
  $region9: #{tpu_custom_call.1} parent=0 // pred_fallthru
    _
  // Predicated region
  $region10: #{tpu_custom_call.1} parent=0 // pred_check
    _
  $region11: #{tpu_custom_call.1} parent=0 // pred_check_branch
    %28 = sbr.rel (0) target = $region13
  $region12: #{tpu_custom_call.1} parent=0 // pred_region
    _
  $region13: #{tpu_custom_call.1} parent=0 // pred_fallthru
    _
  // Predicated region
  $region14: #{tpu_custom_call.1} parent=0 // pred_check
    _
  $region15: #{tpu_custom_call.1} parent=0 // pred_check_branch
    %30 = sbr.rel (0) target = $region17
  $region16: #{tpu_custom_call.1} parent=0 // pred_region
    _
  $region17: #{tpu_custom_call.1} parent=0 // pred_fallthru
    _
  // Predicated region
  $region18: #{tpu_custom_call.1} parent=0 // pred_check
    _
  $region19: #{tpu_custom_call.1} parent=0 // pred_check_branch
    %32 = sbr.rel (0) target = $region21
  $region20: #{tpu_custom_call.1} parent=0 // pred_region
    _
  $region21: #{tpu_custom_call.1} parent=0 // pred_fallthru
    _
  // Predicated region
  $region22: #{tpu_custom_call.1} parent=0 // pred_check
    _
  $region23: #{tpu_custom_call.1} parent=0 // pred_check_branch
    %34 = sbr.rel (0) target = $region25
  $region24: #{tpu_custom_call.1} parent=0 // pred_region
    _
  $region25: #{tpu_custom_call.1} parent=0 // pred_fallthru
    _
  // Predicated region
  $region26: #{tpu_custom_call.1} parent=0 // pred_check
    _
  $region27: #{tpu_custom_call.1} parent=0 // pred_check_branch
    %36 = sbr.rel (0) target = $region29
  $region28: #{tpu_custom_call.1} parent=0 // pred_region
    _
  $region29: #{tpu_custom_call.1} parent=0 // pred_fallthru
    _
  // Predicated region
  $region30: #{tpu_custom_call.1} parent=0 // pred_check
    _
  $region31: #{tpu_custom_call.1} parent=0 // pred_check_branch
    %38 = sbr.rel (0) target = $region33
  $region32: #{tpu_custom_call.1} parent=0 // pred_region
    _
  $region33: #{tpu_custom_call.1} parent=0 // pred_fallthru
    _
  // Predicated region
  $region34: #{tpu_custom_call.1} parent=0 // pred_check
    _
  $region35: #{tpu_custom_call.1} parent=0 // pred_check_branch
    %40 = sbr.rel (0) target = $region37
  $region36: #{tpu_custom_call.1} parent=0 // pred_region
    _
  $region37: #{tpu_custom_call.1} parent=0 // pred_fallthru
    _
  // Predicated region
  $region38: #{tpu_custom_call.1} parent=0 // pred_check
    _
  $region39: #{tpu_custom_call.1} parent=0 // pred_check_branch
    %42 = sbr.rel (0) target = $region41
  $region40: #{tpu_custom_call.1} parent=0 // pred_region
    _
  $region41: #{tpu_custom_call.1} parent=0 // pred_fallthru
    _
  // Predicated region
  $region42: #{tpu_custom_call.1} parent=0 // pred_check
    _
  $region43: #{tpu_custom_call.1} parent=0 // pred_check_branch
    %44 = sbr.rel (0) target = $region45
  $region44: #{tpu_custom_call.1} parent=0 // pred_region
    _
  $region45: #{tpu_custom_call.1} parent=0 // pred_fallthru
    _
  // Predicated region
  $region46: #{tpu_custom_call.1} parent=0 // pred_check
    _
  $region47: #{tpu_custom_call.1} parent=0 // pred_check_branch
    %46 = sbr.rel (0) target = $region49
  $region48: #{tpu_custom_call.1} parent=0 // pred_region
    _
  $region49: #{tpu_custom_call.1} parent=0 // pred_fallthru
    _
  // Predicated region
  $region50: #{tpu_custom_call.1} parent=0 // pred_check
    _
  $region51: #{tpu_custom_call.1} parent=0 // pred_check_branch
    %48 = sbr.rel (0) target = $region53
  $region52: #{tpu_custom_call.1} parent=0 // pred_region
    _
  $region53: #{tpu_custom_call.1} parent=0 // pred_fallthru
    _
  // Predicated region
  $region54: #{tpu_custom_call.1} parent=0 // pred_check
    _
  $region55: #{tpu_custom_call.1} parent=0 // pred_check_branch
    %50 = sbr.rel (0) target = $region57
  $region56: #{tpu_custom_call.1} parent=0 // pred_region
    _
  $region57: #{tpu_custom_call.1} parent=0 // pred_fallthru
    _
  // Predicated region
  $region58: #{tpu_custom_call.1} parent=0 // pred_check
    _
  $region59: #{tpu_custom_call.1} parent=0 // pred_check_branch
    %52 = sbr.rel (0) target = $region61
  $region60: #{tpu_custom_call.1} parent=0 // pred_region
    _
  $region61: #{tpu_custom_call.1} parent=0 // pred_fallthru
    _
  // Predicated region
  $region62: #{tpu_custom_call.1} parent=0 // pred_check
    _
  $region63: #{tpu_custom_call.1} parent=0 // pred_check_branch
    %54 = sbr.rel (0) target = $region65
  $region64: #{tpu_custom_call.1} parent=0 // pred_region
    _
  $region65: #{tpu_custom_call.1} parent=0 // pred_fallthru
    _
  // Predicated region
  $region66: #{tpu_custom_call.1} parent=0 // pred_check
    _
  $region67: #{tpu_custom_call.1} parent=0 // pred_check_branch
    %56 = sbr.rel (0) target = $region69
  $region68: #{tpu_custom_call.1} parent=0 // pred_region
    _
  $region69: #{tpu_custom_call.1} parent=0 // pred_fallthru
    _
  // Predicated region
  $region70: #{tpu_custom_call.1} parent=0 // pred_check
    _
  $region71: #{tpu_custom_call.1} parent=0 // pred_check_branch
    %58 = sbr.rel (0) target = $region73
  $region72: #{tpu_custom_call.1} parent=0 // pred_region
    _
  $region73: #{tpu_custom_call.1} parent=0 // pred_fallthru
    _
  %v59 = vld [vmem:[%s0] sm:$0xff]
  %v60 = vld [vmem:[%s0 + $0x8] sm:$0xff]
  %v61 = vld [vmem:[%s0 + $0x10] sm:$0xff]
  %v62 = vld [vmem:[%s0 + $0x18] sm:$0xff]
  %v63 = vld [vmem:[%s1] sm:$0xff]
  %v64 = vld [vmem:[%s1 + $0x8] sm:$0xff]
  %v65 = vld [vmem:[%s1 + $0x10] sm:$0xff]
  %v66 = vld [vmem:[%s1 + $0x18] sm:$0xff]
  %v67 = vld [vmem:[%s1 + $0x20] sm:$0xff]
  %v68 = vld [vmem:[%s1 + $0x28] sm:$0xff]
  %v69 = vld [vmem:[%s1 + $0x30] sm:$0xff]
  %v70 = vld [vmem:[%s1 + $0x38] sm:$0xff]
  %v71 = vld [vmem:[%s1 + $0x40] sm:$0xff]
  %v72 = vld [vmem:[%s1 + $0x48] sm:$0xff]
  %v73 = vld [vmem:[%s1 + $0x50] sm:$0xff]
  %v74 = vld [vmem:[%s1 + $0x58] sm:$0xff]
  %v75 = vld [vmem:[%s1 + $0x60] sm:$0xff]
  %v76 = vld [vmem:[%s1 + $0x68] sm:$0xff]
  %v77 = vld [vmem:[%s1 + $0x70] sm:$0xff]
  %v78 = vld [vmem:[%s1 + $0x78] sm:$0xff]
  %v79 = vld [vmem:[%s1 + $0x80] sm:$0xff]
  %v80 = vld [vmem:[%s1 + $0x88] sm:$0xff]
  %v81 = vld [vmem:[%s1 + $0x90] sm:$0xff]
  %v82 = vld [vmem:[%s1 + $0x98] sm:$0xff]
  %v83 = vld [vmem:[%s1 + $0xa0] sm:$0xff]
  %v84 = vld [vmem:[%s1 + $0xa8] sm:$0xff]
  %v85 = vld [vmem:[%s1 + $0xb0] sm:$0xff]
  %v86 = vld [vmem:[%s1 + $0xb8] sm:$0xff]
  %v87 = vld [vmem:[%s1 + $0xc0] sm:$0xff]
  %v88 = vld [vmem:[%s1 + $0xc8] sm:$0xff]
  %v89 = vld [vmem:[%s1 + $0xd0] sm:$0xff]
  %v90 = vld [vmem:[%s1 + $0xd8] sm:$0xff]
  %v91 = vld [vmem:[%s2] sm:$0xff]
  %v92 = vld [vmem:[%s2 + $0x8] sm:$0xff]
  %v93 = vld [vmem:[%s2 + $0x10] sm:$0xff]
  %v94 = vld [vmem:[%s2 + $0x18] sm:$0xff]
  %v95 = vld [vmem:[%s2 + $0x20] sm:$0xff]
  %v96 = vld [vmem:[%s2 + $0x28] sm:$0xff]
  %v97 = vld [vmem:[%s2 + $0x30] sm:$0xff]
  %v98 = vld [vmem:[%s2 + $0x38] sm:$0xff]
  %v99 = vld [vmem:[%s2 + $0x40] sm:$0xff]
  %v100 = vld [vmem:[%s2 + $0x48] sm:$0xff]
  %v101 = vld [vmem:[%s2 + $0x50] sm:$0xff]
  %v102 = vld [vmem:[%s2 + $0x58] sm:$0xff]
  %v103 = vld [vmem:[%s2 + $0x60] sm:$0xff]
  %v104 = vld [vmem:[%s2 + $0x68] sm:$0xff]
  %v105 = vld [vmem:[%s2 + $0x70] sm:$0xff]
  %v106 = vld [vmem:[%s2 + $0x78] sm:$0xff]
  %v107 = vld [vmem:[%s2 + $0x80] sm:$0xff]
  %v108 = vld [vmem:[%s2 + $0x88] sm:$0xff]
  %v109 = vld [vmem:[%s2 + $0x90] sm:$0xff]
  %v110 = vld [vmem:[%s2 + $0x98] sm:$0xff]
  %v111 = vld [vmem:[%s2 + $0xa0] sm:$0xff]
  %v112 = vld [vmem:[%s2 + $0xa8] sm:$0xff]
  %v113 = vld [vmem:[%s2 + $0xb0] sm:$0xff]
  %v114 = vld [vmem:[%s2 + $0xb8] sm:$0xff]
  %v115 = vld [vmem:[%s2 + $0xc0] sm:$0xff]
  %v116 = vld [vmem:[%s2 + $0xc8] sm:$0xff]
  %v117 = vld [vmem:[%s2 + $0xd0] sm:$0xff]
  %v118 = vld [vmem:[%s2 + $0xd8] sm:$0xff]
  %v119 = vld [vmem:[%s3] sm:$0xff]
  %v120 = vld [vmem:[%s3 + $0x8] sm:$0xff]
  %v121 = vld [vmem:[%s3 + $0x10] sm:$0xff]
  %v122 = vld [vmem:[%s3 + $0x18] sm:$0xff]
  %v123 = vld [vmem:[%s3 + $0x20] sm:$0xff]
  %v124 = vld [vmem:[%s3 + $0x28] sm:$0xff]
  %v125 = vld [vmem:[%s3 + $0x30] sm:$0xff]
  %v126 = vld [vmem:[%s3 + $0x38] sm:$0xff]
  %v127 = vld [vmem:[%s4] sm:$0xff]
  %v128 = vld [vmem:[%s4 + $0x8] sm:$0xff]
  %v129 = vld [vmem:[%s4 + $0x10] sm:$0xff]
  %v130 = vld [vmem:[%s4 + $0x18] sm:$0xff]
  %v131 = vld [vmem:[%s6] sm:$0x7f]
  %v132 = vld [vmem:[%s8] sm:$0x1]
  %v134 = vlaneseq
  %v135 = vshrl.u32 %v134, 7
  %v136 = vsub.s32 0, %v135
  %v137 = vrot.slane %v132, %v136
  %143 = vrot.lane.b32.xlu0 %v59, 127
  %v144 = vpop.permute.xlu0 %143
  %145 = vrot.lane.b32.xlu0 %v60, 127
  %v146 = vpop.permute.xlu0 %145
  %147 = vrot.lane.b32.xlu0 %v61, 127
  %v148 = vpop.permute.xlu0 %147
  %149 = vrot.lane.b32.xlu0 %v62, 127
  %v150 = vpop.permute.xlu0 %149
  %vm151 = vcmask 56320
  %v152 = vsel %vm151, %v144, 0
  %v154 = vsel %vm151, %v146, 0
  %v156 = vsel %vm151, %v148, 0
  %v158 = vsel %vm151, %v150, 0
  %vm160 = vcmask 1046528
  %v162 = vsel %vm160, %v131, 0
  %164 = vmatprep.subr.mxu0 0.0
  %165 = vmatpush1.msra.mxu0 %v162
  %166 = vmatprep.subr.mxu0 0.0
  %167 = vmatpush1.msra.mxu0 0.0
  %168 = vmatprep.subr.mxu0 0.0
  %169 = vmatpush1.msra.mxu0 0.0
  %170 = vmatprep.subr.mxu0 0.0
  %171 = vmatpush1.msra.mxu0 0.0
  %172 = vmatprep.subr.mxu0 0.0
  %173 = vmatpush1.msra.mxu0 0.0
  %174 = vmatprep.subr.mxu0 0.0
  %175 = vmatpush1.msra.mxu0 0.0
  %176 = vmatprep.subr.mxu0 0.0
  %177 = vmatpush1.msra.mxu0 0.0
  %178 = vmatprep.subr.mxu0 0.0
  %179 = vmatpush1.msra.mxu0 0.0
  %180 = vmatprep.subr.mxu0 0.0
  %181 = vmatpush1.msra.mxu0 0.0
  %182 = vmatprep.subr.mxu0 0.0
  %183 = vmatpush1.msra.mxu0 0.0
  %184 = vmatprep.subr.mxu0 0.0
  %185 = vmatpush1.msra.mxu0 0.0
  %186 = vmatprep.subr.mxu0 0.0
  %187 = vmatpush1.msra.mxu0 0.0
  %188 = vmatprep.subr.mxu0 0.0
  %189 = vmatpush1.msra.mxu0 0.0
  %190 = vmatprep.subr.mxu0 0.0
  %191 = vmatpush1.msra.mxu0 0.0
  %192 = vmatprep.subr.mxu0 0.0
  %193 = vmatpush1.msra.mxu0 0.0
  %194 = vmatprep.subr.mxu0 0.0
  %195 = vmatpush1.msra.mxu0 0.0
  %196 = vmatprep.subr.mxu0 0.0
  %197 = vmatpush1.msra.mxu0 0.0
  %198 = vmatprep.subr.mxu0 0.0
  %199 = vmatpush1.msra.mxu0 0.0
  %200 = vmatprep.subr.mxu0 0.0
  %201 = vmatpush1.msra.mxu0 0.0
  %202 = vmatprep.subr.mxu0 0.0
  %203 = vmatpush1.msra.mxu0 0.0
  %204 = vmatprep.subr.mxu0 0.0
  %205 = vmatpush1.msra.mxu0 0.0
  %206 = vmatprep.subr.mxu0 0.0
  %207 = vmatpush1.msra.mxu0 0.0
  %208 = vmatprep.subr.mxu0 0.0
  %209 = vmatpush1.msra.mxu0 0.0
  %210 = vmatprep.subr.mxu0 0.0
  %211 = vmatpush1.msra.mxu0 0.0
  %212 = vmatprep.subr.mxu0 0.0
  %213 = vmatpush1.msra.mxu0 0.0
  %214 = vmatprep.subr.mxu0 0.0
  %215 = vmatpush1.msra.mxu0 0.0
  %216 = vmatprep.subr.mxu0 0.0
  %217 = vmatpush1.msra.mxu0 0.0
  %218 = vmatprep.subr.mxu0 0.0
  %219 = vmatpush1.msra.mxu0 0.0
  %220 = vmatprep.subr.mxu0 0.0
  %221 = vmatpush1.msra.mxu0 0.0
  %222 = vmatprep.subr.mxu0 0.0
  %223 = vmatpush1.msra.mxu0 0.0
  %224 = vmatprep.subr.mxu0 0.0
  %225 = vmatpush1.msra.mxu0 0.0
  %226 = vmatprep.subr.mxu0 0.0
  %227 = vmatpush1.msra.mxu0 0.0
  %228 = vmatprep.mubr.f32.mxu0 0.0
  %229 = vmatmul.mubr.f32.gmra.mrb[0].mxu0 %v152
  %v230 = vpop.f32.mrb[0].mxu0
  %v231 = vadd.f32 %v137, %v230
  %v232 = vpop.f32.mrb[0].mxu0
  %233 = vmatprep.mubr.f32.mxu0 0.0
  %234 = vmatmul.mubr.f32.gmra.mrb[0].mxu0 %v154
  %v235 = vpop.f32.mrb[0].mxu0
  %v236 = vadd.f32 %v137, %v235
  %v237 = vpop.f32.mrb[0].mxu0
  %238 = vmatprep.mubr.f32.mxu0 0.0
  %239 = vmatmul.mubr.f32.gmra.mrb[0].mxu0 %v156
  %v240 = vpop.f32.mrb[0].mxu0
  %v241 = vadd.f32 %v137, %v240
  %v242 = vpop.f32.mrb[0].mxu0
  %243 = vmatprep.mubr.f32.mxu0 0.0
  %244 = vmatmul.mubr.f32.gmra.mrb[0].mxu0 %v158
  %v245 = vpop.f32.mrb[0].mxu0
  %v246 = vadd.f32 %v137, %v245
  %v247 = vpop.f32.mrb[0].mxu0
  %248 = vdwg.mxu0
  %v249 = vxor.u32 %v231, 2147483648
  %v250 = vxor.u32 %v236, 2147483648
  %v251 = vxor.u32 %v241, 2147483648
  %v252 = vxor.u32 %v246, 2147483648
  %v253 = vmul.f32 %v249, 1.442695
  %v254 = vpow.pop %v253
  %v255 = vmul.f32 %v250, 1.442695
  %v256 = vpow.pop %v255
  %v257 = vmul.f32 %v251, 1.442695
  %v258 = vpow.pop %v257
  %v259 = vmul.f32 %v252, 1.442695
  %v260 = vpow.pop %v259
  %v261 = vadd.f32 %v254, 1.0
  %v262 = vadd.f32 %v256, 1.0
  %v263 = vadd.f32 %v258, 1.0
  %v264 = vadd.f32 %v260, 1.0
  %v265 = vrcp.pop %v261
  %v266 = vmul.f32 1.0, %v265
  %v267 = vrcp.pop %v262
  %v268 = vmul.f32 1.0, %v267
  %v269 = vrcp.pop %v263
  %v270 = vmul.f32 1.0, %v269
  %v271 = vrcp.pop %v264
  %v272 = vmul.f32 1.0, %v271
  %v273 = vmul.f32 %v231, %v266
  %v274 = vmul.f32 %v236, %v268
  %v275 = vmul.f32 %v241, %v270
  %v276 = vmul.f32 %v246, %v272
  %v277 = vld [vmem:[%s7] sm:$0xff]
  %v278 = vld [vmem:[%s7 + $0x8] sm:$0xff]
  %v279 = vld [vmem:[%s7 + $0x10] sm:$0xff]
  %v280 = vld [vmem:[%s7 + $0x18] sm:$0xff]
  %281 = vrot.lane.b32.xlu0 %v137, 96
  %v282 = vpop.permute.xlu0 %281
  %vm284 = vcmask 261120
  %v286 = vsel %vm284, %v273, 0
  %v289 = vsel %vm284, %v274, 0
  %v292 = vsel %vm284, %v275, 0
  %v295 = vsel %vm284, %v276, 0
  %297 = vmatprep.subr.mxu0 0.0
  %298 = vmatpush1.msra.mxu0 %v277
  %299 = vmatprep.subr.mxu0 0.0
  %300 = vmatpush1.msra.mxu0 %v278
  %301 = vmatprep.subr.mxu0 0.0
  %302 = vmatpush1.msra.mxu0 %v279
  %303 = vmatprep.subr.mxu0 0.0
  %304 = vmatpush1.msra.mxu0 %v280
  %305 = vmatprep.subr.mxu0 0.0
  %306 = vmatpush1.msra.mxu0 0.0
  %307 = vmatprep.subr.mxu0 0.0
  %308 = vmatpush1.msra.mxu0 0.0
  %309 = vmatprep.subr.mxu0 0.0
  %310 = vmatpush1.msra.mxu0 0.0
  %311 = vmatprep.subr.mxu0 0.0
  %312 = vmatpush1.msra.mxu0 0.0
  %313 = vmatprep.subr.mxu0 0.0
  %314 = vmatpush1.msra.mxu0 0.0
  %315 = vmatprep.subr.mxu0 0.0
  %316 = vmatpush1.msra.mxu0 0.0
  %317 = vmatprep.subr.mxu0 0.0
  %318 = vmatpush1.msra.mxu0 0.0
  %319 = vmatprep.subr.mxu0 0.0
  %320 = vmatpush1.msra.mxu0 0.0
  %321 = vmatprep.subr.mxu0 0.0
  %322 = vmatpush1.msra.mxu0 0.0
  %323 = vmatprep.subr.mxu0 0.0
  %324 = vmatpush1.msra.mxu0 0.0
  %325 = vmatprep.subr.mxu0 0.0
  %326 = vmatpush1.msra.mxu0 0.0
  %327 = vmatprep.subr.mxu0 0.0
  %328 = vmatpush1.msra.mxu0 0.0
  %329 = vmatprep.subr.mxu0 0.0
  %330 = vmatpush1.msra.mxu0 0.0
  %331 = vmatprep.subr.mxu0 0.0
  %332 = vmatpush1.msra.mxu0 0.0
  %333 = vmatprep.subr.mxu0 0.0
  %334 = vmatpush1.msra.mxu0 0.0
  %335 = vmatprep.subr.mxu0 0.0
  %336 = vmatpush1.msra.mxu0 0.0
  %337 = vmatprep.subr.mxu0 0.0
  %338 = vmatpush1.msra.mxu0 0.0
  %339 = vmatprep.subr.mxu0 0.0
  %340 = vmatpush1.msra.mxu0 0.0
  %341 = vmatprep.subr.mxu0 0.0
  %342 = vmatpush1.msra.mxu0 0.0
  %343 = vmatprep.subr.mxu0 0.0
  %344 = vmatpush1.msra.mxu0 0.0
  %345 = vmatprep.subr.mxu0 0.0
  %346 = vmatpush1.msra.mxu0 0.0
  %347 = vmatprep.subr.mxu0 0.0
  %348 = vmatpush1.msra.mxu0 0.0
  %349 = vmatprep.subr.mxu0 0.0
  %350 = vmatpush1.msra.mxu0 0.0
  %351 = vmatprep.subr.mxu0 0.0
  %352 = vmatpush1.msra.mxu0 0.0
  %353 = vmatprep.subr.mxu0 0.0
  %354 = vmatpush1.msra.mxu0 0.0
  %355 = vmatprep.subr.mxu0 0.0
  %356 = vmatpush1.msra.mxu0 0.0
  %357 = vmatprep.subr.mxu0 0.0
  %358 = vmatpush1.msra.mxu0 0.0
  %359 = vmatprep.subr.mxu0 0.0
  %360 = vmatpush1.msra.mxu0 0.0
  %361 = vmatprep.mubr.f32.mxu0 0.0
  %362 = vmatmul.mubr.f32.gmra.mrb[0].mxu0 %v286
  %v363 = vpop.f32.mrb[0].mxu0
  %v364 = vadd.f32 %v282, %v363
  %v365 = vpop.f32.mrb[0].mxu0
  %366 = vmatprep.mubr.f32.mxu0 0.0
  %367 = vmatmul.mubr.f32.gmra.mrb[0].mxu0 %v289
  %v368 = vpop.f32.mrb[0].mxu0
  %v369 = vadd.f32 %v282, %v368
  %v370 = vpop.f32.mrb[0].mxu0
  %371 = vmatprep.mubr.f32.mxu0 0.0
  %372 = vmatmul.mubr.f32.gmra.mrb[0].mxu0 %v292
  %v373 = vpop.f32.mrb[0].mxu0
  %v374 = vadd.f32 %v282, %v373
  %v375 = vpop.f32.mrb[0].mxu0
  %376 = vmatprep.mubr.f32.mxu0 0.0
  %377 = vmatmul.mubr.f32.gmra.mrb[0].mxu0 %v295
  %v378 = vpop.f32.mrb[0].mxu0
  %v379 = vadd.f32 %v282, %v378
  %v380 = vpop.f32.mrb[0].mxu0
  %381 = vdwg.mxu0
  %v382 = vxor.u32 %v364, 2147483648
  %v383 = vxor.u32 %v369, 2147483648
  %v384 = vxor.u32 %v374, 2147483648
  %v385 = vxor.u32 %v379, 2147483648
  %v386 = vmul.f32 %v382, 1.442695
  %v387 = vpow.pop %v386
  %v388 = vmul.f32 %v383, 1.442695
  %v389 = vpow.pop %v388
  %v390 = vmul.f32 %v384, 1.442695
  %v391 = vpow.pop %v390
  %v392 = vmul.f32 %v385, 1.442695
  %v393 = vpow.pop %v392
  %v394 = vadd.f32 %v387, 1.0
  %v395 = vadd.f32 %v389, 1.0
  %v396 = vadd.f32 %v391, 1.0
  %v397 = vadd.f32 %v393, 1.0
  %v398 = vrcp.pop %v394
  %v399 = vmul.f32 1.0, %v398
  %v400 = vrcp.pop %v395
  %v401 = vmul.f32 1.0, %v400
  %v402 = vrcp.pop %v396
  %v403 = vmul.f32 1.0, %v402
  %v404 = vrcp.pop %v397
  %v405 = vmul.f32 1.0, %v404
  %v406 = vmul.f32 %v364, %v399
  %v407 = vmul.f32 %v369, %v401
  %v408 = vmul.f32 %v374, %v403
  %v409 = vmul.f32 %v379, %v405
  %414 = vrot.lane.b32.xlu0 %v277, 96
  %v415 = vpop.permute.xlu0 %414
  %416 = vrot.lane.b32.xlu0 %v278, 96
  %v417 = vpop.permute.xlu0 %416
  %418 = vrot.lane.b32.xlu0 %v279, 96
  %v419 = vpop.permute.xlu0 %418
  %420 = vrot.lane.b32.xlu0 %v280, 96
  %v421 = vpop.permute.xlu0 %420
  %426 = vrot.lane.b32.xlu0 %v137, 64
  %v427 = vpop.permute.xlu0 %426
  %v430 = vsel %vm284, %v406, 0
  %v433 = vsel %vm284, %v407, 0
  %v436 = vsel %vm284, %v408, 0
  %v439 = vsel %vm284, %v409, 0
  %441 = vmatprep.subr.mxu0 0.0
  %442 = vmatpush1.msra.mxu0 %v415
  %443 = vmatprep.subr.mxu0 0.0
  %444 = vmatpush1.msra.mxu0 %v417
  %445 = vmatprep.subr.mxu0 0.0
  %446 = vmatpush1.msra.mxu0 %v419
  %447 = vmatprep.subr.mxu0 0.0
  %448 = vmatpush1.msra.mxu0 %v421
  %449 = vmatprep.subr.mxu0 0.0
  %450 = vmatpush1.msra.mxu0 0.0
  %451 = vmatprep.subr.mxu0 0.0
  %452 = vmatpush1.msra.mxu0 0.0
  %453 = vmatprep.subr.mxu0 0.0
  %454 = vmatpush1.msra.mxu0 0.0
  %455 = vmatprep.subr.mxu0 0.0
  %456 = vmatpush1.msra.mxu0 0.0
  %457 = vmatprep.subr.mxu0 0.0
  %458 = vmatpush1.msra.mxu0 0.0
  %459 = vmatprep.subr.mxu0 0.0
  %460 = vmatpush1.msra.mxu0 0.0
  %461 = vmatprep.subr.mxu0 0.0
  %462 = vmatpush1.msra.mxu0 0.0
  %463 = vmatprep.subr.mxu0 0.0
  %464 = vmatpush1.msra.mxu0 0.0
  %465 = vmatprep.subr.mxu0 0.0
  %466 = vmatpush1.msra.mxu0 0.0
  %467 = vmatprep.subr.mxu0 0.0
  %468 = vmatpush1.msra.mxu0 0.0
  %469 = vmatprep.subr.mxu0 0.0
  %470 = vmatpush1.msra.mxu0 0.0
  %471 = vmatprep.subr.mxu0 0.0
  %472 = vmatpush1.msra.mxu0 0.0
  %473 = vmatprep.subr.mxu0 0.0
  %474 = vmatpush1.msra.mxu0 0.0
  %475 = vmatprep.subr.mxu0 0.0
  %476 = vmatpush1.msra.mxu0 0.0
  %477 = vmatprep.subr.mxu0 0.0
  %478 = vmatpush1.msra.mxu0 0.0
  %479 = vmatprep.subr.mxu0 0.0
  %480 = vmatpush1.msra.mxu0 0.0
  %481 = vmatprep.subr.mxu0 0.0
  %482 = vmatpush1.msra.mxu0 0.0
  %483 = vmatprep.subr.mxu0 0.0
  %484 = vmatpush1.msra.mxu0 0.0
  %485 = vmatprep.subr.mxu0 0.0
  %486 = vmatpush1.msra.mxu0 0.0
  %487 = vmatprep.subr.mxu0 0.0
  %488 = vmatpush1.msra.mxu0 0.0
  %489 = vmatprep.subr.mxu0 0.0
  %490 = vmatpush1.msra.mxu0 0.0
  %491 = vmatprep.subr.mxu0 0.0
  %492 = vmatpush1.msra.mxu0 0.0
  %493 = vmatprep.subr.mxu0 0.0
  %494 = vmatpush1.msra.mxu0 0.0
  %495 = vmatprep.subr.mxu0 0.0
  %496 = vmatpush1.msra.mxu0 0.0
  %497 = vmatprep.subr.mxu0 0.0
  %498 = vmatpush1.msra.mxu0 0.0
  %499 = vmatprep.subr.mxu0 0.0
  %500 = vmatpush1.msra.mxu0 0.0
  %501 = vmatprep.subr.mxu0 0.0
  %502 = vmatpush1.msra.mxu0 0.0
  %503 = vmatprep.subr.mxu0 0.0
  %504 = vmatpush1.msra.mxu0 0.0
  %505 = vmatprep.mubr.f32.mxu0 0.0
  %506 = vmatmul.mubr.f32.gmra.mrb[0].mxu0 %v430
  %v507 = vpop.f32.mrb[0].mxu0
  %v508 = vadd.f32 %v427, %v507
  %v509 = vpop.f32.mrb[0].mxu0
  %510 = vmatprep.mubr.f32.mxu0 0.0
  %511 = vmatmul.mubr.f32.gmra.mrb[0].mxu0 %v433
  %v512 = vpop.f32.mrb[0].mxu0
  %v513 = vadd.f32 %v427, %v512
  %v514 = vpop.f32.mrb[0].mxu0
  %515 = vmatprep.mubr.f32.mxu0 0.0
  %516 = vmatmul.mubr.f32.gmra.mrb[0].mxu0 %v436
  %v517 = vpop.f32.mrb[0].mxu0
  %v518 = vadd.f32 %v427, %v517
  %v519 = vpop.f32.mrb[0].mxu0
  %520 = vmatprep.mubr.f32.mxu0 0.0
  %521 = vmatmul.mubr.f32.gmra.mrb[0].mxu0 %v439
  %v522 = vpop.f32.mrb[0].mxu0
  %v523 = vadd.f32 %v427, %v522
  %v524 = vpop.f32.mrb[0].mxu0
  %525 = vdwg.mxu0
  %v526 = vld [vmem:[%s5] sm:$0x1]
  %527 = vset.pattern.permute.xlu0 0
  %528 = vperm.xlu0 %527, %v59
  %v529 = vpop.permute.xlu0 %528
  %531 = vset.pattern.permute.xlu0 0
  %532 = vperm.xlu0 %531, %v60
  %v533 = vpop.permute.xlu0 %532
  %535 = vset.pattern.permute.xlu0 0
  %536 = vperm.xlu0 %535, %v61
  %v537 = vpop.permute.xlu0 %536
  %539 = vset.pattern.permute.xlu0 0
  %540 = vperm.xlu0 %539, %v62
  %v541 = vpop.permute.xlu0 %540
  %v543 = vlaneseq
  %v544 = vshrl.u32 %v543, 7
  %v545 = vsub.s32 0, %v544
  %v546 = vrot.slane %v526, %v545
  %v547 = vmul.f32 %v529, %v546
  %v548 = vmul.f32 %v533, %v546
  %v549 = vmul.f32 %v537, %v546
  %v550 = vmul.f32 %v541, %v546
  %v551 = vld [vmem:[%s5 + $0x1] sm:$0x1]
  %v552 = vlaneseq
  %v553 = vshrl.u32 %v552, 7
  %v554 = vsub.s32 0, %v553
  %v555 = vrot.slane %v551, %v554
  %v556 = vadd.f32 %v547, %v555
  %v557 = vadd.f32 %v548, %v555
  %v558 = vadd.f32 %v549, %v555
  %v559 = vadd.f32 %v550, %v555
  %v560 = vld [vmem:[%s9] sm:$0xff]
  %v561 = vld [vmem:[%s9 + $0x8] sm:$0xff]
  %v562 = vld [vmem:[%s9 + $0x10] sm:$0xff]
  %v563 = vld [vmem:[%s9 + $0x18] sm:$0xff]
  %v564 = vld [vmem:[%s9 + $0x20] sm:$0xff]
  %v565 = vld [vmem:[%s9 + $0x28] sm:$0xff]
  %v566 = vld [vmem:[%s9 + $0x30] sm:$0xff]
  %v567 = vld [vmem:[%s9 + $0x38] sm:$0xff]
  %v568 = vld [vmem:[%s10] sm:$0x3]
  %v570 = vlaneseq
  %v571 = vshrl.u32 %v570, 7
  %v572 = vsub.s32 0, %v571
  %v573 = vrot.slane %v568, %v572
  %v574 = vlaneseq
  %v575 = vshrl.u32 %v574, 7
  %v576 = vsub.s32 1, %v575
  %v577 = vrot.slane %v568, %v576
  %v581 = vsel %vm284, %v556, 0
  %v584 = vsel %vm284, %v557, 0
  %v587 = vsel %vm284, %v558, 0
  %v590 = vsel %vm284, %v559, 0
  %592 = vmatprep.subr.mxu0 %v561
  %593 = vmatpush1.msra.mxu0 %v560
  %594 = vmatprep.subr.mxu0 %v563
  %595 = vmatpush1.msra.mxu0 %v562
  %596 = vmatprep.subr.mxu0 %v565
  %597 = vmatpush1.msra.mxu0 %v564
  %598 = vmatprep.subr.mxu0 %v567
  %599 = vmatpush1.msra.mxu0 %v566
  %600 = vmatprep.subr.mxu0 0.0
  %601 = vmatpush1.msra.mxu0 0.0
  %602 = vmatprep.subr.mxu0 0.0
  %603 = vmatpush1.msra.mxu0 0.0
  %604 = vmatprep.subr.mxu0 0.0
  %605 = vmatpush1.msra.mxu0 0.0
  %606 = vmatprep.subr.mxu0 0.0
  %607 = vmatpush1.msra.mxu0 0.0
  %608 = vmatprep.subr.mxu0 0.0
  %609 = vmatpush1.msra.mxu0 0.0
  %610 = vmatprep.subr.mxu0 0.0
  %611 = vmatpush1.msra.mxu0 0.0
  %612 = vmatprep.subr.mxu0 0.0
  %613 = vmatpush1.msra.mxu0 0.0
  %614 = vmatprep.subr.mxu0 0.0
  %615 = vmatpush1.msra.mxu0 0.0
  %616 = vmatprep.subr.mxu0 0.0
  %617 = vmatpush1.msra.mxu0 0.0
  %618 = vmatprep.subr.mxu0 0.0
  %619 = vmatpush1.msra.mxu0 0.0
  %620 = vmatprep.subr.mxu0 0.0
  %621 = vmatpush1.msra.mxu0 0.0
  %622 = vmatprep.subr.mxu0 0.0
  %623 = vmatpush1.msra.mxu0 0.0
  %624 = vmatprep.subr.mxu0 0.0
  %625 = vmatpush1.msra.mxu0 0.0
  %626 = vmatprep.subr.mxu0 0.0
  %627 = vmatpush1.msra.mxu0 0.0
  %628 = vmatprep.subr.mxu0 0.0
  %629 = vmatpush1.msra.mxu0 0.0
  %630 = vmatprep.subr.mxu0 0.0
  %631 = vmatpush1.msra.mxu0 0.0
  %632 = vmatprep.subr.mxu0 0.0
  %633 = vmatpush1.msra.mxu0 0.0
  %634 = vmatprep.subr.mxu0 0.0
  %635 = vmatpush1.msra.mxu0 0.0
  %636 = vmatprep.subr.mxu0 0.0
  %637 = vmatpush1.msra.mxu0 0.0
  %638 = vmatprep.subr.mxu0 0.0
  %639 = vmatpush1.msra.mxu0 0.0
  %640 = vmatprep.subr.mxu0 0.0
  %641 = vmatpush1.msra.mxu0 0.0
  %642 = vmatprep.subr.mxu0 0.0
  %643 = vmatpush1.msra.mxu0 0.0
  %644 = vmatprep.subr.mxu0 0.0
  %645 = vmatpush1.msra.mxu0 0.0
  %646 = vmatprep.subr.mxu0 0.0
  %647 = vmatpush1.msra.mxu0 0.0
  %648 = vmatprep.subr.mxu0 0.0
  %649 = vmatpush1.msra.mxu0 0.0
  %650 = vmatprep.subr.mxu0 0.0
  %651 = vmatpush1.msra.mxu0 0.0
  %652 = vmatprep.subr.mxu0 0.0
  %653 = vmatpush1.msra.mxu0 0.0
  %654 = vmatprep.subr.mxu0 0.0
  %655 = vmatpush1.msra.mxu0 0.0
  %656 = vmatprep.mubr.f32.mxu0 0.0
  %657 = vmatmul.mubr.f32.gmra.mrb[0].mxu0 %v581
  %v658 = vpop.f32.mrb[0].mxu0
  %v659 = vadd.f32 %v573, %v658
  %v660 = vpop.f32.mrb[0].mxu0
  %v661 = vadd.f32 %v577, %v660
  %662 = vmatprep.mubr.f32.mxu0 0.0
  %663 = vmatmul.mubr.f32.gmra.mrb[0].mxu0 %v584
  %v664 = vpop.f32.mrb[0].mxu0
  %v665 = vadd.f32 %v573, %v664
  %v666 = vpop.f32.mrb[0].mxu0
  %v667 = vadd.f32 %v577, %v666
  %668 = vmatprep.mubr.f32.mxu0 0.0
  %669 = vmatmul.mubr.f32.gmra.mrb[0].mxu0 %v587
  %v670 = vpop.f32.mrb[0].mxu0
  %v671 = vadd.f32 %v573, %v670
  %v672 = vpop.f32.mrb[0].mxu0
  %v673 = vadd.f32 %v577, %v672
  %674 = vmatprep.mubr.f32.mxu0 0.0
  %675 = vmatmul.mubr.f32.gmra.mrb[0].mxu0 %v590
  %v676 = vpop.f32.mrb[0].mxu0
  %v677 = vadd.f32 %v573, %v676
  %v678 = vpop.f32.mrb[0].mxu0
  %v679 = vadd.f32 %v577, %v678
  %680 = vdwg.mxu0
  %v686 = vsel %vm284, %v91, 0
  %v689 = vsel %vm284, %v92, 0
  %v692 = vsel %vm284, %v93, 0
  %v695 = vsel %vm284, %v94, 0
  %v698 = vsel %vm284, %v95, 0
  %v701 = vsel %vm284, %v96, 0
  %v704 = vsel %vm284, %v97, 0
  %v707 = vsel %vm284, %v98, 0
  %v710 = vsel %vm284, %v99, 0
  %v713 = vsel %vm284, %v100, 0
  %v716 = vsel %vm284, %v101, 0
  %v719 = vsel %vm284, %v102, 0
  %v722 = vsel %vm284, %v103, 0
  %v725 = vsel %vm284, %v104, 0
  %v728 = vsel %vm284, %v105, 0
  %v731 = vsel %vm284, %v106, 0
  %v734 = vsel %vm284, %v107, 0
  %v737 = vsel %vm284, %v108, 0
  %v740 = vsel %vm284, %v109, 0
  %v743 = vsel %vm284, %v110, 0
  %v746 = vsel %vm284, %v111, 0
  %v749 = vsel %vm284, %v112, 0
  %v752 = vsel %vm284, %v113, 0
  %v755 = vsel %vm284, %v114, 0
  %v758 = vsel %vm284, %v115, 0
  %v761 = vsel %vm284, %v116, 0
  %v764 = vsel %vm284, %v117, 0
  %v767 = vsel %vm284, %v118, 0
  %769 = vmatprep.subr.mxu0 0.0
  %770 = vmatpush1.msra.mxu0 %v144
  %771 = vmatprep.subr.mxu0 0.0
  %772 = vmatpush1.msra.mxu0 %v146
  %773 = vmatprep.subr.mxu0 0.0
  %774 = vmatpush1.msra.mxu0 %v148
  %775 = vmatprep.subr.mxu0 0.0
  %776 = vmatpush1.msra.mxu0 %v150
  %777 = vmatprep.subr.mxu0 0.0
  %778 = vmatpush1.msra.mxu0 0.0
  %779 = vmatprep.subr.mxu0 0.0
  %780 = vmatpush1.msra.mxu0 0.0
  %781 = vmatprep.subr.mxu0 0.0
  %782 = vmatpush1.msra.mxu0 0.0
  %783 = vmatprep.subr.mxu0 0.0
  %784 = vmatpush1.msra.mxu0 0.0
  %785 = vmatprep.subr.mxu0 0.0
  %786 = vmatpush1.msra.mxu0 0.0
  %787 = vmatprep.subr.mxu0 0.0
  %788 = vmatpush1.msra.mxu0 0.0
  %789 = vmatprep.subr.mxu0 0.0
  %790 = vmatpush1.msra.mxu0 0.0
  %791 = vmatprep.subr.mxu0 0.0
  %792 = vmatpush1.msra.mxu0 0.0
  %793 = vmatprep.subr.mxu0 0.0
  %794 = vmatpush1.msra.mxu0 0.0
  %795 = vmatprep.subr.mxu0 0.0
  %796 = vmatpush1.msra.mxu0 0.0
  %797 = vmatprep.subr.mxu0 0.0
  %798 = vmatpush1.msra.mxu0 0.0
  %799 = vmatprep.subr.mxu0 0.0
  %800 = vmatpush1.msra.mxu0 0.0
  %801 = vmatprep.subr.mxu0 0.0
  %802 = vmatpush1.msra.mxu0 0.0
  %803 = vmatprep.subr.mxu0 0.0
  %804 = vmatpush1.msra.mxu0 0.0
  %805 = vmatprep.subr.mxu0 0.0
  %806 = vmatpush1.msra.mxu0 0.0
  %807 = vmatprep.subr.mxu0 0.0
  %808 = vmatpush1.msra.mxu0 0.0
  %809 = vmatprep.subr.mxu0 0.0
  %810 = vmatpush1.msra.mxu0 0.0
  %811 = vmatprep.subr.mxu0 0.0
  %812 = vmatpush1.msra.mxu0 0.0
  %813 = vmatprep.subr.mxu0 0.0
  %814 = vmatpush1.msra.mxu0 0.0
  %815 = vmatprep.subr.mxu0 0.0
  %816 = vmatpush1.msra.mxu0 0.0
  %817 = vmatprep.subr.mxu0 0.0
  %818 = vmatpush1.msra.mxu0 0.0
  %819 = vmatprep.subr.mxu0 0.0
  %820 = vmatpush1.msra.mxu0 0.0
  %821 = vmatprep.subr.mxu0 0.0
  %822 = vmatpush1.msra.mxu0 0.0
  %823 = vmatprep.subr.mxu0 0.0
  %824 = vmatpush1.msra.mxu0 0.0
  %825 = vmatprep.subr.mxu0 0.0
  %826 = vmatpush1.msra.mxu0 0.0
  %827 = vmatprep.subr.mxu0 0.0
  %828 = vmatpush1.msra.mxu0 0.0
  %829 = vmatprep.subr.mxu0 0.0
  %830 = vmatpush1.msra.mxu0 0.0
  %831 = vmatprep.subr.mxu0 0.0
  %832 = vmatpush1.msra.mxu0 0.0
  %833 = vmatprep.mubr.f32.mxu0 0.0
  %834 = vmatmul.mubr.f32.gmra.mrb[0].mxu0 %v686
  %v835 = vpop.f32.mrb[0].mxu0
  %v836 = vadd.f32 0.0, %v835
  %v837 = vpop.f32.mrb[0].mxu0
  %838 = vmatprep.mubr.f32.mxu0 0.0
  %839 = vmatmul.mubr.f32.gmra.mrb[0].mxu0 %v689
  %v840 = vpop.f32.mrb[0].mxu0
  %v841 = vadd.f32 0.0, %v840
  %v842 = vpop.f32.mrb[0].mxu0
  %843 = vmatprep.mubr.f32.mxu0 0.0
  %844 = vmatmul.mubr.f32.gmra.mrb[0].mxu0 %v692
  %v845 = vpop.f32.mrb[0].mxu0
  %v846 = vadd.f32 0.0, %v845
  %v847 = vpop.f32.mrb[0].mxu0
  %848 = vmatprep.mubr.f32.mxu0 0.0
  %849 = vmatmul.mubr.f32.gmra.mrb[0].mxu0 %v695
  %v850 = vpop.f32.mrb[0].mxu0
  %v851 = vadd.f32 0.0, %v850
  %v852 = vpop.f32.mrb[0].mxu0
  %853 = vmatprep.mubr.f32.mxu0 0.0
  %854 = vmatmul.mubr.f32.gmra.mrb[0].mxu0 %v698
  %v855 = vpop.f32.mrb[0].mxu0
  %v856 = vadd.f32 0.0, %v855
  %v857 = vpop.f32.mrb[0].mxu0
  %858 = vmatprep.mubr.f32.mxu0 0.0
  %859 = vmatmul.mubr.f32.gmra.mrb[0].mxu0 %v701
  %v860 = vpop.f32.mrb[0].mxu0
  %v861 = vadd.f32 0.0, %v860
  %v862 = vpop.f32.mrb[0].mxu0
  %863 = vmatprep.mubr.f32.mxu0 0.0
  %864 = vmatmul.mubr.f32.gmra.mrb[0].mxu0 %v704
  %v865 = vpop.f32.mrb[0].mxu0
  %v866 = vadd.f32 0.0, %v865
  %v867 = vpop.f32.mrb[0].mxu0
  %868 = vmatprep.mubr.f32.mxu0 0.0
  %869 = vmatmul.mubr.f32.gmra.mrb[0].mxu0 %v707
  %v870 = vpop.f32.mrb[0].mxu0
  %v871 = vadd.f32 0.0, %v870
  %v872 = vpop.f32.mrb[0].mxu0
  %873 = vmatprep.mubr.f32.mxu0 0.0
  %874 = vmatmul.mubr.f32.gmra.mrb[0].mxu0 %v710
  %v875 = vpop.f32.mrb[0].mxu0
  %v876 = vadd.f32 0.0, %v875
  %v877 = vpop.f32.mrb[0].mxu0
  %878 = vmatprep.mubr.f32.mxu0 0.0
  %879 = vmatmul.mubr.f32.gmra.mrb[0].mxu0 %v713
  %v880 = vpop.f32.mrb[0].mxu0
  %v881 = vadd.f32 0.0, %v880
  %v882 = vpop.f32.mrb[0].mxu0
  %883 = vmatprep.mubr.f32.mxu0 0.0
  %884 = vmatmul.mubr.f32.gmra.mrb[0].mxu0 %v716
  %v885 = vpop.f32.mrb[0].mxu0
  %v886 = vadd.f32 0.0, %v885
  %v887 = vpop.f32.mrb[0].mxu0
  %888 = vmatprep.mubr.f32.mxu0 0.0
  %889 = vmatmul.mubr.f32.gmra.mrb[0].mxu0 %v719
  %v890 = vpop.f32.mrb[0].mxu0
  %v891 = vadd.f32 0.0, %v890
  %v892 = vpop.f32.mrb[0].mxu0
  %893 = vmatprep.mubr.f32.mxu0 0.0
  %894 = vmatmul.mubr.f32.gmra.mrb[0].mxu0 %v722
  %v895 = vpop.f32.mrb[0].mxu0
  %v896 = vadd.f32 0.0, %v895
  %v897 = vpop.f32.mrb[0].mxu0
  %898 = vmatprep.mubr.f32.mxu0 0.0
  %899 = vmatmul.mubr.f32.gmra.mrb[0].mxu0 %v725
  %v900 = vpop.f32.mrb[0].mxu0
  %v901 = vadd.f32 0.0, %v900
  %v902 = vpop.f32.mrb[0].mxu0
  %903 = vmatprep.mubr.f32.mxu0 0.0
  %904 = vmatmul.mubr.f32.gmra.mrb[0].mxu0 %v728
  %v905 = vpop.f32.mrb[0].mxu0
  %v906 = vadd.f32 0.0, %v905
  %v907 = vpop.f32.mrb[0].mxu0
  %908 = vmatprep.mubr.f32.mxu0 0.0
  %909 = vmatmul.mubr.f32.gmra.mrb[0].mxu0 %v731
  %v910 = vpop.f32.mrb[0].mxu0
  %v911 = vadd.f32 0.0, %v910
  %v912 = vpop.f32.mrb[0].mxu0
  %913 = vmatprep.mubr.f32.mxu0 0.0
  %914 = vmatmul.mubr.f32.gmra.mrb[0].mxu0 %v734
  %v915 = vpop.f32.mrb[0].mxu0
  %v916 = vadd.f32 0.0, %v915
  %v917 = vpop.f32.mrb[0].mxu0
  %918 = vmatprep.mubr.f32.mxu0 0.0
  %919 = vmatmul.mubr.f32.gmra.mrb[0].mxu0 %v737
  %v920 = vpop.f32.mrb[0].mxu0
  %v921 = vadd.f32 0.0, %v920
  %v922 = vpop.f32.mrb[0].mxu0
  %923 = vmatprep.mubr.f32.mxu0 0.0
  %924 = vmatmul.mubr.f32.gmra.mrb[0].mxu0 %v740
  %v925 = vpop.f32.mrb[0].mxu0
  %v926 = vadd.f32 0.0, %v925
  %v927 = vpop.f32.mrb[0].mxu0
  %928 = vmatprep.mubr.f32.mxu0 0.0
  %929 = vmatmul.mubr.f32.gmra.mrb[0].mxu0 %v743
  %v930 = vpop.f32.mrb[0].mxu0
  %v931 = vadd.f32 0.0, %v930
  %v932 = vpop.f32.mrb[0].mxu0
  %933 = vmatprep.mubr.f32.mxu0 0.0
  %934 = vmatmul.mubr.f32.gmra.mrb[0].mxu0 %v746
  %v935 = vpop.f32.mrb[0].mxu0
  %v936 = vadd.f32 0.0, %v935
  %v937 = vpop.f32.mrb[0].mxu0
  %938 = vmatprep.mubr.f32.mxu0 0.0
  %939 = vmatmul.mubr.f32.gmra.mrb[0].mxu0 %v749
  %v940 = vpop.f32.mrb[0].mxu0
  %v941 = vadd.f32 0.0, %v940
  %v942 = vpop.f32.mrb[0].mxu0
  %943 = vmatprep.mubr.f32.mxu0 0.0
  %944 = vmatmul.mubr.f32.gmra.mrb[0].mxu0 %v752
  %v945 = vpop.f32.mrb[0].mxu0
  %v946 = vadd.f32 0.0, %v945
  %v947 = vpop.f32.mrb[0].mxu0
  %948 = vmatprep.mubr.f32.mxu0 0.0
  %949 = vmatmul.mubr.f32.gmra.mrb[0].mxu0 %v755
  %v950 = vpop.f32.mrb[0].mxu0
  %v951 = vadd.f32 0.0, %v950
  %v952 = vpop.f32.mrb[0].mxu0
  %953 = vmatprep.mubr.f32.mxu0 0.0
  %954 = vmatmul.mubr.f32.gmra.mrb[0].mxu0 %v758
  %v955 = vpop.f32.mrb[0].mxu0
  %v956 = vadd.f32 0.0, %v955
  %v957 = vpop.f32.mrb[0].mxu0
  %958 = vmatprep.mubr.f32.mxu0 0.0
  %959 = vmatmul.mubr.f32.gmra.mrb[0].mxu0 %v761
  %v960 = vpop.f32.mrb[0].mxu0
  %v961 = vadd.f32 0.0, %v960
  %v962 = vpop.f32.mrb[0].mxu0
  %963 = vmatprep.mubr.f32.mxu0 0.0
  %964 = vmatmul.mubr.f32.gmra.mrb[0].mxu0 %v764
  %v965 = vpop.f32.mrb[0].mxu0
  %v966 = vadd.f32 0.0, %v965
  %v967 = vpop.f32.mrb[0].mxu0
  %968 = vmatprep.mubr.f32.mxu0 0.0
  %969 = vmatmul.mubr.f32.gmra.mrb[0].mxu0 %v767
  %v970 = vpop.f32.mrb[0].mxu0
  %v971 = vadd.f32 0.0, %v970
  %v972 = vpop.f32.mrb[0].mxu0
  %973 = vdwg.mxu0
  %v974 = vmul.f32 %v836, %v836
  %v975 = vmul.f32 %v841, %v841
  %v976 = vmul.f32 %v846, %v846
  %v977 = vmul.f32 %v851, %v851
  %v978 = vmul.f32 %v856, %v856
  %v979 = vmul.f32 %v861, %v861
  %v980 = vmul.f32 %v866, %v866
  %v981 = vmul.f32 %v871, %v871
  %v982 = vmul.f32 %v876, %v876
  %v983 = vmul.f32 %v881, %v881
  %v984 = vmul.f32 %v886, %v886
  %v985 = vmul.f32 %v891, %v891
  %v986 = vmul.f32 %v896, %v896
  %v987 = vmul.f32 %v901, %v901
  %v988 = vmul.f32 %v906, %v906
  %v989 = vmul.f32 %v911, %v911
  %v990 = vmul.f32 %v916, %v916
  %v991 = vmul.f32 %v921, %v921
  %v992 = vmul.f32 %v926, %v926
  %v993 = vmul.f32 %v931, %v931
  %v994 = vmul.f32 %v936, %v936
  %v995 = vmul.f32 %v941, %v941
  %v996 = vmul.f32 %v946, %v946
  %v997 = vmul.f32 %v951, %v951
  %v998 = vmul.f32 %v956, %v956
  %v999 = vmul.f32 %v961, %v961
  %v1000 = vmul.f32 %v966, %v966
  %v1001 = vmul.f32 %v971, %v971
  %vm1002 = vcmask 23552
  %v1003 = vsel %vm1002, %v974, 0.0
  %1004 = vadd.xlane.f32.xlu0 %v1003
  %v1005 = vpop.xlane.xlu0 %1004
  %v1006 = vsel %vm1002, %v975, 0.0
  %1007 = vadd.xlane.f32.xlu0 %v1006
  %v1008 = vpop.xlane.xlu0 %1007
  %v1009 = vsel %vm1002, %v976, 0.0
  %1010 = vadd.xlane.f32.xlu0 %v1009
  %v1011 = vpop.xlane.xlu0 %1010
  %v1012 = vsel %vm1002, %v977, 0.0
  %1013 = vadd.xlane.f32.xlu0 %v1012
  %v1014 = vpop.xlane.xlu0 %1013
  %v1015 = vsel %vm1002, %v978, 0.0
  %1016 = vadd.xlane.f32.xlu0 %v1015
  %v1017 = vpop.xlane.xlu0 %1016
  %v1018 = vsel %vm1002, %v979, 0.0
  %1019 = vadd.xlane.f32.xlu0 %v1018
  %v1020 = vpop.xlane.xlu0 %1019
  %v1021 = vsel %vm1002, %v980, 0.0
  %1022 = vadd.xlane.f32.xlu0 %v1021
  %v1023 = vpop.xlane.xlu0 %1022
  %v1024 = vsel %vm1002, %v981, 0.0
  %1025 = vadd.xlane.f32.xlu0 %v1024
  %v1026 = vpop.xlane.xlu0 %1025
  %v1027 = vsel %vm1002, %v982, 0.0
  %1028 = vadd.xlane.f32.xlu0 %v1027
  %v1029 = vpop.xlane.xlu0 %1028
  %v1030 = vsel %vm1002, %v983, 0.0
  %1031 = vadd.xlane.f32.xlu0 %v1030
  %v1032 = vpop.xlane.xlu0 %1031
  %v1033 = vsel %vm1002, %v984, 0.0
  %1034 = vadd.xlane.f32.xlu0 %v1033
  %v1035 = vpop.xlane.xlu0 %1034
  %v1036 = vsel %vm1002, %v985, 0.0
  %1037 = vadd.xlane.f32.xlu0 %v1036
  %v1038 = vpop.xlane.xlu0 %1037
  %v1039 = vsel %vm1002, %v986, 0.0
  %1040 = vadd.xlane.f32.xlu0 %v1039
  %v1041 = vpop.xlane.xlu0 %1040
  %v1042 = vsel %vm1002, %v987, 0.0
  %1043 = vadd.xlane.f32.xlu0 %v1042
  %v1044 = vpop.xlane.xlu0 %1043
  %v1045 = vsel %vm1002, %v988, 0.0
  %1046 = vadd.xlane.f32.xlu0 %v1045
  %v1047 = vpop.xlane.xlu0 %1046
  %v1048 = vsel %vm1002, %v989, 0.0
  %1049 = vadd.xlane.f32.xlu0 %v1048
  %v1050 = vpop.xlane.xlu0 %1049
  %v1051 = vsel %vm1002, %v990, 0.0
  %1052 = vadd.xlane.f32.xlu0 %v1051
  %v1053 = vpop.xlane.xlu0 %1052
  %v1054 = vsel %vm1002, %v991, 0.0
  %1055 = vadd.xlane.f32.xlu0 %v1054
  %v1056 = vpop.xlane.xlu0 %1055
  %v1057 = vsel %vm1002, %v992, 0.0
  %1058 = vadd.xlane.f32.xlu0 %v1057
  %v1059 = vpop.xlane.xlu0 %1058
  %v1060 = vsel %vm1002, %v993, 0.0
  %1061 = vadd.xlane.f32.xlu0 %v1060
  %v1062 = vpop.xlane.xlu0 %1061
  %v1063 = vsel %vm1002, %v994, 0.0
  %1064 = vadd.xlane.f32.xlu0 %v1063
  %v1065 = vpop.xlane.xlu0 %1064
  %v1066 = vsel %vm1002, %v995, 0.0
  %1067 = vadd.xlane.f32.xlu0 %v1066
  %v1068 = vpop.xlane.xlu0 %1067
  %v1069 = vsel %vm1002, %v996, 0.0
  %1070 = vadd.xlane.f32.xlu0 %v1069
  %v1071 = vpop.xlane.xlu0 %1070
  %v1072 = vsel %vm1002, %v997, 0.0
  %1073 = vadd.xlane.f32.xlu0 %v1072
  %v1074 = vpop.xlane.xlu0 %1073
  %v1075 = vsel %vm1002, %v998, 0.0
  %1076 = vadd.xlane.f32.xlu0 %v1075
  %v1077 = vpop.xlane.xlu0 %1076
  %v1078 = vsel %vm1002, %v999, 0.0
  %1079 = vadd.xlane.f32.xlu0 %v1078
  %v1080 = vpop.xlane.xlu0 %1079
  %v1081 = vsel %vm1002, %v1000, 0.0
  %1082 = vadd.xlane.f32.xlu0 %v1081
  %v1083 = vpop.xlane.xlu0 %1082
  %v1084 = vsel %vm1002, %v1001, 0.0
  %1085 = vadd.xlane.f32.xlu0 %v1084
  %v1086 = vpop.xlane.xlu0 %1085
  %v1087 = vld [vmem:[%s11] sm:$0x7]
  %1092 = vrot.lane.b32.xlu0 %v659, 96
  %v1093 = vpop.permute.xlu0 %1092
  %1094 = vrot.lane.b32.xlu0 %v665, 96
  %v1095 = vpop.permute.xlu0 %1094
  %1096 = vrot.lane.b32.xlu0 %v671, 96
  %v1097 = vpop.permute.xlu0 %1096
  %1098 = vrot.lane.b32.xlu0 %v677, 96
  %v1099 = vpop.permute.xlu0 %1098
  %v1101 = vrot.slane %v1087, 1
  %1102 = vrot.lane.b32.xlu0 %v1101, 64
  %v1103 = vpop.permute.xlu0 %1102
  %v1104 = vlaneseq
  %v1105 = vshrl.u32 %v1104, 7
  %v1106 = vsub.s32 0, %v1105
  %v1107 = vrot.slane %v1087, %v1106
  %v1108 = vmul.f32 %v1005, %v1107
  %v1109 = vmul.f32 %v1008, %v1107
  %v1110 = vmul.f32 %v1011, %v1107
  %v1111 = vmul.f32 %v1014, %v1107
  %v1112 = vmul.f32 %v1017, %v1107
  %v1113 = vmul.f32 %v1020, %v1107
  %v1114 = vmul.f32 %v1023, %v1107
  %v1115 = vmul.f32 %v1026, %v1107
  %v1116 = vmul.f32 %v1029, %v1107
  %v1117 = vmul.f32 %v1032, %v1107
  %v1118 = vmul.f32 %v1035, %v1107
  %v1119 = vmul.f32 %v1038, %v1107
  %v1120 = vmul.f32 %v1041, %v1107
  %v1121 = vmul.f32 %v1044, %v1107
  %v1122 = vmul.f32 %v1047, %v1107
  %v1123 = vmul.f32 %v1050, %v1107
  %v1124 = vmul.f32 %v1053, %v1107
  %v1125 = vmul.f32 %v1056, %v1107
  %v1126 = vmul.f32 %v1059, %v1107
  %v1127 = vmul.f32 %v1062, %v1107
  %v1128 = vmul.f32 %v1065, %v1107
  %v1129 = vmul.f32 %v1068, %v1107
  %v1130 = vmul.f32 %v1071, %v1107
  %v1131 = vmul.f32 %v1074, %v1107
  %v1132 = vmul.f32 %v1077, %v1107
  %v1133 = vmul.f32 %v1080, %v1107
  %v1134 = vmul.f32 %v1083, %v1107
  %v1135 = vmul.f32 %v1086, %v1107
  %1136 = vrot.lane.b32.xlu0 %v659, 64
  %v1137 = vpop.permute.xlu0 %1136
  %1138 = vrot.lane.b32.xlu0 %v665, 64
  %v1139 = vpop.permute.xlu0 %1138
  %1140 = vrot.lane.b32.xlu0 %v671, 64
  %v1141 = vpop.permute.xlu0 %1140
  %1142 = vrot.lane.b32.xlu0 %v677, 64
  %v1143 = vpop.permute.xlu0 %1142
  %1144 = vrot.lane.b32.xlu0 %v1093, 64
  %v1145 = vpop.permute.xlu0 %1144
  %1146 = vrot.lane.b32.xlu0 %v1095, 64
  %v1147 = vpop.permute.xlu0 %1146
  %1148 = vrot.lane.b32.xlu0 %v1097, 64
  %v1149 = vpop.permute.xlu0 %1148
  %1150 = vrot.lane.b32.xlu0 %v1099, 64
  %v1151 = vpop.permute.xlu0 %1150
  %1152 = vrot.lane.b32.xlu0 %v1103, 64
  %v1153 = vpop.permute.xlu0 %1152
  %vm1162 = vcmask 539648
  %v1164 = vsel %vm1162, %v63, 0
  %v1167 = vsel %vm1162, %v64, 0
  %v1170 = vsel %vm1162, %v65, 0
  %v1173 = vsel %vm1162, %v66, 0
  %v1176 = vsel %vm1162, %v67, 0
  %v1179 = vsel %vm1162, %v68, 0
  %v1182 = vsel %vm1162, %v69, 0
  %v1185 = vsel %vm1162, %v70, 0
  %v1188 = vsel %vm1162, %v71, 0
  %v1191 = vsel %vm1162, %v72, 0
  %v1194 = vsel %vm1162, %v73, 0
  %v1197 = vsel %vm1162, %v74, 0
  %v1200 = vsel %vm1162, %v75, 0
  %v1203 = vsel %vm1162, %v76, 0
  %v1206 = vsel %vm1162, %v77, 0
  %v1209 = vsel %vm1162, %v78, 0
  %v1212 = vsel %vm1162, %v79, 0
  %v1215 = vsel %vm1162, %v80, 0
  %v1218 = vsel %vm1162, %v81, 0
  %v1221 = vsel %vm1162, %v82, 0
  %v1224 = vsel %vm1162, %v83, 0
  %v1227 = vsel %vm1162, %v84, 0
  %v1230 = vsel %vm1162, %v85, 0
  %v1233 = vsel %vm1162, %v86, 0
  %v1236 = vsel %vm1162, %v87, 0
  %v1239 = vsel %vm1162, %v88, 0
  %v1242 = vsel %vm1162, %v89, 0
  %v1245 = vsel %vm1162, %v90, 0
  %vm1247 = vcmask 1041408
  %v1248 = vsel %vm1247, %v1153, 0
  %1250 = vmatprep.subr.mxu0 0.0
  %1251 = vmatpush1.msra.mxu0 %v1137
  %1252 = vmatprep.subr.mxu0 0.0
  %1253 = vmatpush1.msra.mxu0 %v1139
  %1254 = vmatprep.subr.mxu0 0.0
  %1255 = vmatpush1.msra.mxu0 %v1141
  %1256 = vmatprep.subr.mxu0 0.0
  %1257 = vmatpush1.msra.mxu0 %v1143
  %1258 = vmatprep.subr.mxu0 0.0
  %1259 = vmatpush1.msra.mxu0 %v1145
  %1260 = vmatprep.subr.mxu0 0.0
  %1261 = vmatpush1.msra.mxu0 %v1147
  %1262 = vmatprep.subr.mxu0 0.0
  %1263 = vmatpush1.msra.mxu0 %v1149
  %1264 = vmatprep.subr.mxu0 0.0
  %1265 = vmatpush1.msra.mxu0 %v1151
  %1266 = vmatprep.subr.mxu0 0.0
  %1267 = vmatpush1.msra.mxu0 %v1248
  %1268 = vmatprep.subr.mxu0 0.0
  %1269 = vmatpush1.msra.mxu0 0.0
  %1270 = vmatprep.subr.mxu0 0.0
  %1271 = vmatpush1.msra.mxu0 0.0
  %1272 = vmatprep.subr.mxu0 0.0
  %1273 = vmatpush1.msra.mxu0 0.0
  %1274 = vmatprep.subr.mxu0 0.0
  %1275 = vmatpush1.msra.mxu0 0.0
  %1276 = vmatprep.subr.mxu0 0.0
  %1277 = vmatpush1.msra.mxu0 0.0
  %1278 = vmatprep.subr.mxu0 0.0
  %1279 = vmatpush1.msra.mxu0 0.0
  %1280 = vmatprep.subr.mxu0 0.0
  %1281 = vmatpush1.msra.mxu0 0.0
  %1282 = vmatprep.subr.mxu0 0.0
  %1283 = vmatpush1.msra.mxu0 0.0
  %1284 = vmatprep.subr.mxu0 0.0
  %1285 = vmatpush1.msra.mxu0 0.0
  %1286 = vmatprep.subr.mxu0 0.0
  %1287 = vmatpush1.msra.mxu0 0.0
  %1288 = vmatprep.subr.mxu0 0.0
  %1289 = vmatpush1.msra.mxu0 0.0
  %1290 = vmatprep.subr.mxu0 0.0
  %1291 = vmatpush1.msra.mxu0 0.0
  %1292 = vmatprep.subr.mxu0 0.0
  %1293 = vmatpush1.msra.mxu0 0.0
  %1294 = vmatprep.subr.mxu0 0.0
  %1295 = vmatpush1.msra.mxu0 0.0
  %1296 = vmatprep.subr.mxu0 0.0
  %1297 = vmatpush1.msra.mxu0 0.0
  %1298 = vmatprep.subr.mxu0 0.0
  %1299 = vmatpush1.msra.mxu0 0.0
  %1300 = vmatprep.subr.mxu0 0.0
  %1301 = vmatpush1.msra.mxu0 0.0
  %1302 = vmatprep.subr.mxu0 0.0
  %1303 = vmatpush1.msra.mxu0 0.0
  %1304 = vmatprep.subr.mxu0 0.0
  %1305 = vmatpush1.msra.mxu0 0.0
  %1306 = vmatprep.subr.mxu0 0.0
  %1307 = vmatpush1.msra.mxu0 0.0
  %1308 = vmatprep.subr.mxu0 0.0
  %1309 = vmatpush1.msra.mxu0 0.0
  %1310 = vmatprep.subr.mxu0 0.0
  %1311 = vmatpush1.msra.mxu0 0.0
  %1312 = vmatprep.subr.mxu0 0.0
  %1313 = vmatpush1.msra.mxu0 0.0
  %1314 = vmatprep.mubr.f32.mxu0 0.0
  %1315 = vmatmul.mubr.f32.gmra.mrb[0].mxu0 %v1164
  %v1316 = vpop.f32.mrb[0].mxu0
  %v1317 = vadd.f32 %v1108, %v1316
  %v1318 = vpop.f32.mrb[0].mxu0
  %1319 = vmatprep.mubr.f32.mxu0 0.0
  %1320 = vmatmul.mubr.f32.gmra.mrb[0].mxu0 %v1167
  %v1321 = vpop.f32.mrb[0].mxu0
  %v1322 = vadd.f32 %v1109, %v1321
  %v1323 = vpop.f32.mrb[0].mxu0
  %1324 = vmatprep.mubr.f32.mxu0 0.0
  %1325 = vmatmul.mubr.f32.gmra.mrb[0].mxu0 %v1170
  %v1326 = vpop.f32.mrb[0].mxu0
  %v1327 = vadd.f32 %v1110, %v1326
  %v1328 = vpop.f32.mrb[0].mxu0
  %1329 = vmatprep.mubr.f32.mxu0 0.0
  %1330 = vmatmul.mubr.f32.gmra.mrb[0].mxu0 %v1173
  %v1331 = vpop.f32.mrb[0].mxu0
  %v1332 = vadd.f32 %v1111, %v1331
  %v1333 = vpop.f32.mrb[0].mxu0
  %1334 = vmatprep.mubr.f32.mxu0 0.0
  %1335 = vmatmul.mubr.f32.gmra.mrb[0].mxu0 %v1176
  %v1336 = vpop.f32.mrb[0].mxu0
  %v1337 = vadd.f32 %v1112, %v1336
  %v1338 = vpop.f32.mrb[0].mxu0
  %1339 = vmatprep.mubr.f32.mxu0 0.0
  %1340 = vmatmul.mubr.f32.gmra.mrb[0].mxu0 %v1179
  %v1341 = vpop.f32.mrb[0].mxu0
  %v1342 = vadd.f32 %v1113, %v1341
  %v1343 = vpop.f32.mrb[0].mxu0
  %1344 = vmatprep.mubr.f32.mxu0 0.0
  %1345 = vmatmul.mubr.f32.gmra.mrb[0].mxu0 %v1182
  %v1346 = vpop.f32.mrb[0].mxu0
  %v1347 = vadd.f32 %v1114, %v1346
  %v1348 = vpop.f32.mrb[0].mxu0
  %1349 = vmatprep.mubr.f32.mxu0 0.0
  %1350 = vmatmul.mubr.f32.gmra.mrb[0].mxu0 %v1185
  %v1351 = vpop.f32.mrb[0].mxu0
  %v1352 = vadd.f32 %v1115, %v1351
  %v1353 = vpop.f32.mrb[0].mxu0
  %1354 = vmatprep.mubr.f32.mxu0 0.0
  %1355 = vmatmul.mubr.f32.gmra.mrb[0].mxu0 %v1188
  %v1356 = vpop.f32.mrb[0].mxu0
  %v1357 = vadd.f32 %v1116, %v1356
  %v1358 = vpop.f32.mrb[0].mxu0
  %1359 = vmatprep.mubr.f32.mxu0 0.0
  %1360 = vmatmul.mubr.f32.gmra.mrb[0].mxu0 %v1191
  %v1361 = vpop.f32.mrb[0].mxu0
  %v1362 = vadd.f32 %v1117, %v1361
  %v1363 = vpop.f32.mrb[0].mxu0
  %1364 = vmatprep.mubr.f32.mxu0 0.0
  %1365 = vmatmul.mubr.f32.gmra.mrb[0].mxu0 %v1194
  %v1366 = vpop.f32.mrb[0].mxu0
  %v1367 = vadd.f32 %v1118, %v1366
  %v1368 = vpop.f32.mrb[0].mxu0
  %1369 = vmatprep.mubr.f32.mxu0 0.0
  %1370 = vmatmul.mubr.f32.gmra.mrb[0].mxu0 %v1197
  %v1371 = vpop.f32.mrb[0].mxu0
  %v1372 = vadd.f32 %v1119, %v1371
  %v1373 = vpop.f32.mrb[0].mxu0
  %1374 = vmatprep.mubr.f32.mxu0 0.0
  %1375 = vmatmul.mubr.f32.gmra.mrb[0].mxu0 %v1200
  %v1376 = vpop.f32.mrb[0].mxu0
  %v1377 = vadd.f32 %v1120, %v1376
  %v1378 = vpop.f32.mrb[0].mxu0
  %1379 = vmatprep.mubr.f32.mxu0 0.0
  %1380 = vmatmul.mubr.f32.gmra.mrb[0].mxu0 %v1203
  %v1381 = vpop.f32.mrb[0].mxu0
  %v1382 = vadd.f32 %v1121, %v1381
  %v1383 = vpop.f32.mrb[0].mxu0
  %1384 = vmatprep.mubr.f32.mxu0 0.0
  %1385 = vmatmul.mubr.f32.gmra.mrb[0].mxu0 %v1206
  %v1386 = vpop.f32.mrb[0].mxu0
  %v1387 = vadd.f32 %v1122, %v1386
  %v1388 = vpop.f32.mrb[0].mxu0
  %1389 = vmatprep.mubr.f32.mxu0 0.0
  %1390 = vmatmul.mubr.f32.gmra.mrb[0].mxu0 %v1209
  %v1391 = vpop.f32.mrb[0].mxu0
  %v1392 = vadd.f32 %v1123, %v1391
  %v1393 = vpop.f32.mrb[0].mxu0
  %1394 = vmatprep.mubr.f32.mxu0 0.0
  %1395 = vmatmul.mubr.f32.gmra.mrb[0].mxu0 %v1212
  %v1396 = vpop.f32.mrb[0].mxu0
  %v1397 = vadd.f32 %v1124, %v1396
  %v1398 = vpop.f32.mrb[0].mxu0
  %1399 = vmatprep.mubr.f32.mxu0 0.0
  %1400 = vmatmul.mubr.f32.gmra.mrb[0].mxu0 %v1215
  %v1401 = vpop.f32.mrb[0].mxu0
  %v1402 = vadd.f32 %v1125, %v1401
  %v1403 = vpop.f32.mrb[0].mxu0
  %1404 = vmatprep.mubr.f32.mxu0 0.0
  %1405 = vmatmul.mubr.f32.gmra.mrb[0].mxu0 %v1218
  %v1406 = vpop.f32.mrb[0].mxu0
  %v1407 = vadd.f32 %v1126, %v1406
  %v1408 = vpop.f32.mrb[0].mxu0
  %1409 = vmatprep.mubr.f32.mxu0 0.0
  %1410 = vmatmul.mubr.f32.gmra.mrb[0].mxu0 %v1221
  %v1411 = vpop.f32.mrb[0].mxu0
  %v1412 = vadd.f32 %v1127, %v1411
  %v1413 = vpop.f32.mrb[0].mxu0
  %1414 = vmatprep.mubr.f32.mxu0 0.0
  %1415 = vmatmul.mubr.f32.gmra.mrb[0].mxu0 %v1224
  %v1416 = vpop.f32.mrb[0].mxu0
  %v1417 = vadd.f32 %v1128, %v1416
  %v1418 = vpop.f32.mrb[0].mxu0
  %1419 = vmatprep.mubr.f32.mxu0 0.0
  %1420 = vmatmul.mubr.f32.gmra.mrb[0].mxu0 %v1227
  %v1421 = vpop.f32.mrb[0].mxu0
  %v1422 = vadd.f32 %v1129, %v1421
  %v1423 = vpop.f32.mrb[0].mxu0
  %1424 = vmatprep.mubr.f32.mxu0 0.0
  %1425 = vmatmul.mubr.f32.gmra.mrb[0].mxu0 %v1230
  %v1426 = vpop.f32.mrb[0].mxu0
  %v1427 = vadd.f32 %v1130, %v1426
  %v1428 = vpop.f32.mrb[0].mxu0
  %1429 = vmatprep.mubr.f32.mxu0 0.0
  %1430 = vmatmul.mubr.f32.gmra.mrb[0].mxu0 %v1233
  %v1431 = vpop.f32.mrb[0].mxu0
  %v1432 = vadd.f32 %v1131, %v1431
  %v1433 = vpop.f32.mrb[0].mxu0
  %1434 = vmatprep.mubr.f32.mxu0 0.0
  %1435 = vmatmul.mubr.f32.gmra.mrb[0].mxu0 %v1236
  %v1436 = vpop.f32.mrb[0].mxu0
  %v1437 = vadd.f32 %v1132, %v1436
  %v1438 = vpop.f32.mrb[0].mxu0
  %1439 = vmatprep.mubr.f32.mxu0 0.0
  %1440 = vmatmul.mubr.f32.gmra.mrb[0].mxu0 %v1239
  %v1441 = vpop.f32.mrb[0].mxu0
  %v1442 = vadd.f32 %v1133, %v1441
  %v1443 = vpop.f32.mrb[0].mxu0
  %1444 = vmatprep.mubr.f32.mxu0 0.0
  %1445 = vmatmul.mubr.f32.gmra.mrb[0].mxu0 %v1242
  %v1446 = vpop.f32.mrb[0].mxu0
  %v1447 = vadd.f32 %v1134, %v1446
  %v1448 = vpop.f32.mrb[0].mxu0
  %1449 = vmatprep.mubr.f32.mxu0 0.0
  %1450 = vmatmul.mubr.f32.gmra.mrb[0].mxu0 %v1245
  %v1451 = vpop.f32.mrb[0].mxu0
  %v1452 = vadd.f32 %v1135, %v1451
  %v1453 = vpop.f32.mrb[0].mxu0
  %1454 = vdwg.mxu0
  %v1455 = vxor.u32 %v1317, 2147483648
  %v1456 = vxor.u32 %v1322, 2147483648
  %v1457 = vxor.u32 %v1327, 2147483648
  %v1458 = vxor.u32 %v1332, 2147483648
  %v1459 = vxor.u32 %v1337, 2147483648
  %v1460 = vxor.u32 %v1342, 2147483648
  %v1461 = vxor.u32 %v1347, 2147483648
  %v1462 = vxor.u32 %v1352, 2147483648
  %v1463 = vxor.u32 %v1357, 2147483648
  %v1464 = vxor.u32 %v1362, 2147483648
  %v1465 = vxor.u32 %v1367, 2147483648
  %v1466 = vxor.u32 %v1372, 2147483648
  %v1467 = vxor.u32 %v1377, 2147483648
  %v1468 = vxor.u32 %v1382, 2147483648
  %v1469 = vxor.u32 %v1387, 2147483648
  %v1470 = vxor.u32 %v1392, 2147483648
  %v1471 = vxor.u32 %v1397, 2147483648
  %v1472 = vxor.u32 %v1402, 2147483648
  %v1473 = vxor.u32 %v1407, 2147483648
  %v1474 = vxor.u32 %v1412, 2147483648
  %v1475 = vxor.u32 %v1417, 2147483648
  %v1476 = vxor.u32 %v1422, 2147483648
  %v1477 = vxor.u32 %v1427, 2147483648
  %v1478 = vxor.u32 %v1432, 2147483648
  %v1479 = vxor.u32 %v1437, 2147483648
  %v1480 = vxor.u32 %v1442, 2147483648
  %v1481 = vxor.u32 %v1447, 2147483648
  %v1482 = vxor.u32 %v1452, 2147483648
  %v1483 = vmul.f32 %v1455, 1.442695
  %v1484 = vpow.pop %v1483
  %v1485 = vmul.f32 %v1456, 1.442695
  %v1486 = vpow.pop %v1485
  %v1487 = vmul.f32 %v1457, 1.442695
  %v1488 = vpow.pop %v1487
  %v1489 = vmul.f32 %v1458, 1.442695
  %v1490 = vpow.pop %v1489
  %v1491 = vmul.f32 %v1459, 1.442695
  %v1492 = vpow.pop %v1491
  %v1493 = vmul.f32 %v1460, 1.442695
  %v1494 = vpow.pop %v1493
  %v1495 = vmul.f32 %v1461, 1.442695
  %v1496 = vpow.pop %v1495
  %v1497 = vmul.f32 %v1462, 1.442695
  %v1498 = vpow.pop %v1497
  %v1499 = vmul.f32 %v1463, 1.442695
  %v1500 = vpow.pop %v1499
  %v1501 = vmul.f32 %v1464, 1.442695
  %v1502 = vpow.pop %v1501
  %v1503 = vmul.f32 %v1465, 1.442695
  %v1504 = vpow.pop %v1503
  %v1505 = vmul.f32 %v1466, 1.442695
  %v1506 = vpow.pop %v1505
  %v1507 = vmul.f32 %v1467, 1.442695
  %v1508 = vpow.pop %v1507
  %v1509 = vmul.f32 %v1468, 1.442695
  %v1510 = vpow.pop %v1509
  %v1511 = vmul.f32 %v1469, 1.442695
  %v1512 = vpow.pop %v1511
  %v1513 = vmul.f32 %v1470, 1.442695
  %v1514 = vpow.pop %v1513
  %v1515 = vmul.f32 %v1471, 1.442695
  %v1516 = vpow.pop %v1515
  %v1517 = vmul.f32 %v1472, 1.442695
  %v1518 = vpow.pop %v1517
  %v1519 = vmul.f32 %v1473, 1.442695
  %v1520 = vpow.pop %v1519
  %v1521 = vmul.f32 %v1474, 1.442695
  %v1522 = vpow.pop %v1521
  %v1523 = vmul.f32 %v1475, 1.442695
  %v1524 = vpow.pop %v1523
  %v1525 = vmul.f32 %v1476, 1.442695
  %v1526 = vpow.pop %v1525
  %v1527 = vmul.f32 %v1477, 1.442695
  %v1528 = vpow.pop %v1527
  %v1529 = vmul.f32 %v1478, 1.442695
  %v1530 = vpow.pop %v1529
  %v1531 = vmul.f32 %v1479, 1.442695
  %v1532 = vpow.pop %v1531
  %v1533 = vmul.f32 %v1480, 1.442695
  %v1534 = vpow.pop %v1533
  %v1535 = vmul.f32 %v1481, 1.442695
  %v1536 = vpow.pop %v1535
  %v1537 = vmul.f32 %v1482, 1.442695
  %v1538 = vpow.pop %v1537
  %v1539 = vadd.f32 %v1484, 1.0
  %v1540 = vadd.f32 %v1486, 1.0
  %v1541 = vadd.f32 %v1488, 1.0
  %v1542 = vadd.f32 %v1490, 1.0
  %v1543 = vadd.f32 %v1492, 1.0
  %v1544 = vadd.f32 %v1494, 1.0
  %v1545 = vadd.f32 %v1496, 1.0
  %v1546 = vadd.f32 %v1498, 1.0
  %v1547 = vadd.f32 %v1500, 1.0
  %v1548 = vadd.f32 %v1502, 1.0
  %v1549 = vadd.f32 %v1504, 1.0
  %v1550 = vadd.f32 %v1506, 1.0
  %v1551 = vadd.f32 %v1508, 1.0
  %v1552 = vadd.f32 %v1510, 1.0
  %v1553 = vadd.f32 %v1512, 1.0
  %v1554 = vadd.f32 %v1514, 1.0
  %v1555 = vadd.f32 %v1516, 1.0
  %v1556 = vadd.f32 %v1518, 1.0
  %v1557 = vadd.f32 %v1520, 1.0
  %v1558 = vadd.f32 %v1522, 1.0
  %v1559 = vadd.f32 %v1524, 1.0
  %v1560 = vadd.f32 %v1526, 1.0
  %v1561 = vadd.f32 %v1528, 1.0
  %v1562 = vadd.f32 %v1530, 1.0
  %v1563 = vadd.f32 %v1532, 1.0
  %v1564 = vadd.f32 %v1534, 1.0
  %v1565 = vadd.f32 %v1536, 1.0
  %v1566 = vadd.f32 %v1538, 1.0
  %v1567 = vrcp.pop %v1539
  %v1568 = vmul.f32 1.0, %v1567
  %v1569 = vrcp.pop %v1540
  %v1570 = vmul.f32 1.0, %v1569
  %v1571 = vrcp.pop %v1541
  %v1572 = vmul.f32 1.0, %v1571
  %v1573 = vrcp.pop %v1542
  %v1574 = vmul.f32 1.0, %v1573
  %v1575 = vrcp.pop %v1543
  %v1576 = vmul.f32 1.0, %v1575
  %v1577 = vrcp.pop %v1544
  %v1578 = vmul.f32 1.0, %v1577
  %v1579 = vrcp.pop %v1545
  %v1580 = vmul.f32 1.0, %v1579
  %v1581 = vrcp.pop %v1546
  %v1582 = vmul.f32 1.0, %v1581
  %v1583 = vrcp.pop %v1547
  %v1584 = vmul.f32 1.0, %v1583
  %v1585 = vrcp.pop %v1548
  %v1586 = vmul.f32 1.0, %v1585
  %v1587 = vrcp.pop %v1549
  %v1588 = vmul.f32 1.0, %v1587
  %v1589 = vrcp.pop %v1550
  %v1590 = vmul.f32 1.0, %v1589
  %v1591 = vrcp.pop %v1551
  %v1592 = vmul.f32 1.0, %v1591
  %v1593 = vrcp.pop %v1552
  %v1594 = vmul.f32 1.0, %v1593
  %v1595 = vrcp.pop %v1553
  %v1596 = vmul.f32 1.0, %v1595
  %v1597 = vrcp.pop %v1554
  %v1598 = vmul.f32 1.0, %v1597
  %v1599 = vrcp.pop %v1555
  %v1600 = vmul.f32 1.0, %v1599
  %v1601 = vrcp.pop %v1556
  %v1602 = vmul.f32 1.0, %v1601
  %v1603 = vrcp.pop %v1557
  %v1604 = vmul.f32 1.0, %v1603
  %v1605 = vrcp.pop %v1558
  %v1606 = vmul.f32 1.0, %v1605
  %v1607 = vrcp.pop %v1559
  %v1608 = vmul.f32 1.0, %v1607
  %v1609 = vrcp.pop %v1560
  %v1610 = vmul.f32 1.0, %v1609
  %v1611 = vrcp.pop %v1561
  %v1612 = vmul.f32 1.0, %v1611
  %v1613 = vrcp.pop %v1562
  %v1614 = vmul.f32 1.0, %v1613
  %v1615 = vrcp.pop %v1563
  %v1616 = vmul.f32 1.0, %v1615
  %v1617 = vrcp.pop %v1564
  %v1618 = vmul.f32 1.0, %v1617
  %v1619 = vrcp.pop %v1565
  %v1620 = vmul.f32 1.0, %v1619
  %v1621 = vrcp.pop %v1566
  %v1622 = vmul.f32 1.0, %v1621
  %v1623 = vmul.f32 %v1317, %v1568
  %v1624 = vmul.f32 %v1322, %v1570
  %v1625 = vmul.f32 %v1327, %v1572
  %v1626 = vmul.f32 %v1332, %v1574
  %v1627 = vmul.f32 %v1337, %v1576
  %v1628 = vmul.f32 %v1342, %v1578
  %v1629 = vmul.f32 %v1347, %v1580
  %v1630 = vmul.f32 %v1352, %v1582
  %v1631 = vmul.f32 %v1357, %v1584
  %v1632 = vmul.f32 %v1362, %v1586
  %v1633 = vmul.f32 %v1367, %v1588
  %v1634 = vmul.f32 %v1372, %v1590
  %v1635 = vmul.f32 %v1377, %v1592
  %v1636 = vmul.f32 %v1382, %v1594
  %v1637 = vmul.f32 %v1387, %v1596
  %v1638 = vmul.f32 %v1392, %v1598
  %v1639 = vmul.f32 %v1397, %v1600
  %v1640 = vmul.f32 %v1402, %v1602
  %v1641 = vmul.f32 %v1407, %v1604
  %v1642 = vmul.f32 %v1412, %v1606
  %v1643 = vmul.f32 %v1417, %v1608
  %v1644 = vmul.f32 %v1422, %v1610
  %v1645 = vmul.f32 %v1427, %v1612
  %v1646 = vmul.f32 %v1432, %v1614
  %v1647 = vmul.f32 %v1437, %v1616
  %v1648 = vmul.f32 %v1442, %v1618
  %v1649 = vmul.f32 %v1447, %v1620
  %v1650 = vmul.f32 %v1452, %v1622
  %v1651 = vld [vmem:[%s12] sm:$0xff]
  %v1652 = vld [vmem:[%s12 + $0x8] sm:$0xff]
  %v1653 = vld [vmem:[%s12 + $0x10] sm:$0xff]
  %v1654 = vld [vmem:[%s12 + $0x18] sm:$0xff]
  %v1655 = vld [vmem:[%s13] sm:$0x1]
  %v1657 = vlaneseq
  %v1658 = vshrl.u32 %v1657, 7
  %v1659 = vsub.s32 0, %v1658
  %v1660 = vrot.slane %v1655, %v1659
  %v1663 = vsel %vm284, %v1623, 0
  %v1666 = vsel %vm284, %v1624, 0
  %v1669 = vsel %vm284, %v1625, 0
  %v1672 = vsel %vm284, %v1626, 0
  %v1675 = vsel %vm284, %v1627, 0
  %v1678 = vsel %vm284, %v1628, 0
  %v1681 = vsel %vm284, %v1629, 0
  %v1684 = vsel %vm284, %v1630, 0
  %v1687 = vsel %vm284, %v1631, 0
  %v1690 = vsel %vm284, %v1632, 0
  %v1693 = vsel %vm284, %v1633, 0
  %v1696 = vsel %vm284, %v1634, 0
  %v1699 = vsel %vm284, %v1635, 0
  %v1702 = vsel %vm284, %v1636, 0
  %v1705 = vsel %vm284, %v1637, 0
  %v1708 = vsel %vm284, %v1638, 0
  %v1711 = vsel %vm284, %v1639, 0
  %v1714 = vsel %vm284, %v1640, 0
  %v1717 = vsel %vm284, %v1641, 0
  %v1720 = vsel %vm284, %v1642, 0
  %v1723 = vsel %vm284, %v1643, 0
  %v1726 = vsel %vm284, %v1644, 0
  %v1729 = vsel %vm284, %v1645, 0
  %v1732 = vsel %vm284, %v1646, 0
  %v1735 = vsel %vm284, %v1647, 0
  %v1738 = vsel %vm284, %v1648, 0
  %v1741 = vsel %vm284, %v1649, 0
  %v1744 = vsel %vm284, %v1650, 0
  %1746 = vmatprep.subr.mxu0 0.0
  %1747 = vmatpush1.msra.mxu0 %v1651
  %1748 = vmatprep.subr.mxu0 0.0
  %1749 = vmatpush1.msra.mxu0 %v1652
  %1750 = vmatprep.subr.mxu0 0.0
  %1751 = vmatpush1.msra.mxu0 %v1653
  %1752 = vmatprep.subr.mxu0 0.0
  %1753 = vmatpush1.msra.mxu0 %v1654
  %1754 = vmatprep.subr.mxu0 0.0
  %1755 = vmatpush1.msra.mxu0 0.0
  %1756 = vmatprep.subr.mxu0 0.0
  %1757 = vmatpush1.msra.mxu0 0.0
  %1758 = vmatprep.subr.mxu0 0.0
  %1759 = vmatpush1.msra.mxu0 0.0
  %1760 = vmatprep.subr.mxu0 0.0
  %1761 = vmatpush1.msra.mxu0 0.0
  %1762 = vmatprep.subr.mxu0 0.0
  %1763 = vmatpush1.msra.mxu0 0.0
  %1764 = vmatprep.subr.mxu0 0.0
  %1765 = vmatpush1.msra.mxu0 0.0
  %1766 = vmatprep.subr.mxu0 0.0
  %1767 = vmatpush1.msra.mxu0 0.0
  %1768 = vmatprep.subr.mxu0 0.0
  %1769 = vmatpush1.msra.mxu0 0.0
  %1770 = vmatprep.subr.mxu0 0.0
  %1771 = vmatpush1.msra.mxu0 0.0
  %1772 = vmatprep.subr.mxu0 0.0
  %1773 = vmatpush1.msra.mxu0 0.0
  %1774 = vmatprep.subr.mxu0 0.0
  %1775 = vmatpush1.msra.mxu0 0.0
  %1776 = vmatprep.subr.mxu0 0.0
  %1777 = vmatpush1.msra.mxu0 0.0
  %1778 = vmatprep.subr.mxu0 0.0
  %1779 = vmatpush1.msra.mxu0 0.0
  %1780 = vmatprep.subr.mxu0 0.0
  %1781 = vmatpush1.msra.mxu0 0.0
  %1782 = vmatprep.subr.mxu0 0.0
  %1783 = vmatpush1.msra.mxu0 0.0
  %1784 = vmatprep.subr.mxu0 0.0
  %1785 = vmatpush1.msra.mxu0 0.0
  %1786 = vmatprep.subr.mxu0 0.0
  %1787 = vmatpush1.msra.mxu0 0.0
  %1788 = vmatprep.subr.mxu0 0.0
  %1789 = vmatpush1.msra.mxu0 0.0
  %1790 = vmatprep.subr.mxu0 0.0
  %1791 = vmatpush1.msra.mxu0 0.0
  %1792 = vmatprep.subr.mxu0 0.0
  %1793 = vmatpush1.msra.mxu0 0.0
  %1794 = vmatprep.subr.mxu0 0.0
  %1795 = vmatpush1.msra.mxu0 0.0
  %1796 = vmatprep.subr.mxu0 0.0
  %1797 = vmatpush1.msra.mxu0 0.0
  %1798 = vmatprep.subr.mxu0 0.0
  %1799 = vmatpush1.msra.mxu0 0.0
  %1800 = vmatprep.subr.mxu0 0.0
  %1801 = vmatpush1.msra.mxu0 0.0
  %1802 = vmatprep.subr.mxu0 0.0
  %1803 = vmatpush1.msra.mxu0 0.0
  %1804 = vmatprep.subr.mxu0 0.0
  %1805 = vmatpush1.msra.mxu0 0.0
  %1806 = vmatprep.subr.mxu0 0.0
  %1807 = vmatpush1.msra.mxu0 0.0
  %1808 = vmatprep.subr.mxu0 0.0
  %1809 = vmatpush1.msra.mxu0 0.0
  %1810 = vmatprep.mubr.f32.mxu0 0.0
  %1811 = vmatmul.mubr.f32.gmra.mrb[0].mxu0 %v1663
  %v1812 = vpop.f32.mrb[0].mxu0
  %v1813 = vadd.f32 %v1660, %v1812
  %v1814 = vpop.f32.mrb[0].mxu0
  %1815 = vmatprep.mubr.f32.mxu0 0.0
  %1816 = vmatmul.mubr.f32.gmra.mrb[0].mxu0 %v1666
  %v1817 = vpop.f32.mrb[0].mxu0
  %v1818 = vadd.f32 %v1660, %v1817
  %v1819 = vpop.f32.mrb[0].mxu0
  %1820 = vmatprep.mubr.f32.mxu0 0.0
  %1821 = vmatmul.mubr.f32.gmra.mrb[0].mxu0 %v1669
  %v1822 = vpop.f32.mrb[0].mxu0
  %v1823 = vadd.f32 %v1660, %v1822
  %v1824 = vpop.f32.mrb[0].mxu0
  %1825 = vmatprep.mubr.f32.mxu0 0.0
  %1826 = vmatmul.mubr.f32.gmra.mrb[0].mxu0 %v1672
  %v1827 = vpop.f32.mrb[0].mxu0
  %v1828 = vadd.f32 %v1660, %v1827
  %v1829 = vpop.f32.mrb[0].mxu0
  %1830 = vmatprep.mubr.f32.mxu0 0.0
  %1831 = vmatmul.mubr.f32.gmra.mrb[0].mxu0 %v1675
  %v1832 = vpop.f32.mrb[0].mxu0
  %v1833 = vadd.f32 %v1660, %v1832
  %v1834 = vpop.f32.mrb[0].mxu0
  %1835 = vmatprep.mubr.f32.mxu0 0.0
  %1836 = vmatmul.mubr.f32.gmra.mrb[0].mxu0 %v1678
  %v1837 = vpop.f32.mrb[0].mxu0
  %v1838 = vadd.f32 %v1660, %v1837
  %v1839 = vpop.f32.mrb[0].mxu0
  %1840 = vmatprep.mubr.f32.mxu0 0.0
  %1841 = vmatmul.mubr.f32.gmra.mrb[0].mxu0 %v1681
  %v1842 = vpop.f32.mrb[0].mxu0
  %v1843 = vadd.f32 %v1660, %v1842
  %v1844 = vpop.f32.mrb[0].mxu0
  %1845 = vmatprep.mubr.f32.mxu0 0.0
  %1846 = vmatmul.mubr.f32.gmra.mrb[0].mxu0 %v1684
  %v1847 = vpop.f32.mrb[0].mxu0
  %v1848 = vadd.f32 %v1660, %v1847
  %v1849 = vpop.f32.mrb[0].mxu0
  %1850 = vmatprep.mubr.f32.mxu0 0.0
  %1851 = vmatmul.mubr.f32.gmra.mrb[0].mxu0 %v1687
  %v1852 = vpop.f32.mrb[0].mxu0
  %v1853 = vadd.f32 %v1660, %v1852
  %v1854 = vpop.f32.mrb[0].mxu0
  %1855 = vmatprep.mubr.f32.mxu0 0.0
  %1856 = vmatmul.mubr.f32.gmra.mrb[0].mxu0 %v1690
  %v1857 = vpop.f32.mrb[0].mxu0
  %v1858 = vadd.f32 %v1660, %v1857
  %v1859 = vpop.f32.mrb[0].mxu0
  %1860 = vmatprep.mubr.f32.mxu0 0.0
  %1861 = vmatmul.mubr.f32.gmra.mrb[0].mxu0 %v1693
  %v1862 = vpop.f32.mrb[0].mxu0
  %v1863 = vadd.f32 %v1660, %v1862
  %v1864 = vpop.f32.mrb[0].mxu0
  %1865 = vmatprep.mubr.f32.mxu0 0.0
  %1866 = vmatmul.mubr.f32.gmra.mrb[0].mxu0 %v1696
  %v1867 = vpop.f32.mrb[0].mxu0
  %v1868 = vadd.f32 %v1660, %v1867
  %v1869 = vpop.f32.mrb[0].mxu0
  %1870 = vmatprep.mubr.f32.mxu0 0.0
  %1871 = vmatmul.mubr.f32.gmra.mrb[0].mxu0 %v1699
  %v1872 = vpop.f32.mrb[0].mxu0
  %v1873 = vadd.f32 %v1660, %v1872
  %v1874 = vpop.f32.mrb[0].mxu0
  %1875 = vmatprep.mubr.f32.mxu0 0.0
  %1876 = vmatmul.mubr.f32.gmra.mrb[0].mxu0 %v1702
  %v1877 = vpop.f32.mrb[0].mxu0
  %v1878 = vadd.f32 %v1660, %v1877
  %v1879 = vpop.f32.mrb[0].mxu0
  %1880 = vmatprep.mubr.f32.mxu0 0.0
  %1881 = vmatmul.mubr.f32.gmra.mrb[0].mxu0 %v1705
  %v1882 = vpop.f32.mrb[0].mxu0
  %v1883 = vadd.f32 %v1660, %v1882
  %v1884 = vpop.f32.mrb[0].mxu0
  %1885 = vmatprep.mubr.f32.mxu0 0.0
  %1886 = vmatmul.mubr.f32.gmra.mrb[0].mxu0 %v1708
  %v1887 = vpop.f32.mrb[0].mxu0
  %v1888 = vadd.f32 %v1660, %v1887
  %v1889 = vpop.f32.mrb[0].mxu0
  %1890 = vmatprep.mubr.f32.mxu0 0.0
  %1891 = vmatmul.mubr.f32.gmra.mrb[0].mxu0 %v1711
  %v1892 = vpop.f32.mrb[0].mxu0
  %v1893 = vadd.f32 %v1660, %v1892
  %v1894 = vpop.f32.mrb[0].mxu0
  %1895 = vmatprep.mubr.f32.mxu0 0.0
  %1896 = vmatmul.mubr.f32.gmra.mrb[0].mxu0 %v1714
  %v1897 = vpop.f32.mrb[0].mxu0
  %v1898 = vadd.f32 %v1660, %v1897
  %v1899 = vpop.f32.mrb[0].mxu0
  %1900 = vmatprep.mubr.f32.mxu0 0.0
  %1901 = vmatmul.mubr.f32.gmra.mrb[0].mxu0 %v1717
  %v1902 = vpop.f32.mrb[0].mxu0
  %v1903 = vadd.f32 %v1660, %v1902
  %v1904 = vpop.f32.mrb[0].mxu0
  %1905 = vmatprep.mubr.f32.mxu0 0.0
  %1906 = vmatmul.mubr.f32.gmra.mrb[0].mxu0 %v1720
  %v1907 = vpop.f32.mrb[0].mxu0
  %v1908 = vadd.f32 %v1660, %v1907
  %v1909 = vpop.f32.mrb[0].mxu0
  %1910 = vmatprep.mubr.f32.mxu0 0.0
  %1911 = vmatmul.mubr.f32.gmra.mrb[0].mxu0 %v1723
  %v1912 = vpop.f32.mrb[0].mxu0
  %v1913 = vadd.f32 %v1660, %v1912
  %v1914 = vpop.f32.mrb[0].mxu0
  %1915 = vmatprep.mubr.f32.mxu0 0.0
  %1916 = vmatmul.mubr.f32.gmra.mrb[0].mxu0 %v1726
  %v1917 = vpop.f32.mrb[0].mxu0
  %v1918 = vadd.f32 %v1660, %v1917
  %v1919 = vpop.f32.mrb[0].mxu0
  %1920 = vmatprep.mubr.f32.mxu0 0.0
  %1921 = vmatmul.mubr.f32.gmra.mrb[0].mxu0 %v1729
  %v1922 = vpop.f32.mrb[0].mxu0
  %v1923 = vadd.f32 %v1660, %v1922
  %v1924 = vpop.f32.mrb[0].mxu0
  %1925 = vmatprep.mubr.f32.mxu0 0.0
  %1926 = vmatmul.mubr.f32.gmra.mrb[0].mxu0 %v1732
  %v1927 = vpop.f32.mrb[0].mxu0
  %v1928 = vadd.f32 %v1660, %v1927
  %v1929 = vpop.f32.mrb[0].mxu0
  %1930 = vmatprep.mubr.f32.mxu0 0.0
  %1931 = vmatmul.mubr.f32.gmra.mrb[0].mxu0 %v1735
  %v1932 = vpop.f32.mrb[0].mxu0
  %v1933 = vadd.f32 %v1660, %v1932
  %v1934 = vpop.f32.mrb[0].mxu0
  %1935 = vmatprep.mubr.f32.mxu0 0.0
  %1936 = vmatmul.mubr.f32.gmra.mrb[0].mxu0 %v1738
  %v1937 = vpop.f32.mrb[0].mxu0
  %v1938 = vadd.f32 %v1660, %v1937
  %v1939 = vpop.f32.mrb[0].mxu0
  %1940 = vmatprep.mubr.f32.mxu0 0.0
  %1941 = vmatmul.mubr.f32.gmra.mrb[0].mxu0 %v1741
  %v1942 = vpop.f32.mrb[0].mxu0
  %v1943 = vadd.f32 %v1660, %v1942
  %v1944 = vpop.f32.mrb[0].mxu0
  %1945 = vmatprep.mubr.f32.mxu0 0.0
  %1946 = vmatmul.mubr.f32.gmra.mrb[0].mxu0 %v1744
  %v1947 = vpop.f32.mrb[0].mxu0
  %v1948 = vadd.f32 %v1660, %v1947
  %v1949 = vpop.f32.mrb[0].mxu0
  %1950 = vdwg.mxu0
  %v1951 = vxor.u32 %v1813, 2147483648
  %v1952 = vxor.u32 %v1818, 2147483648
  %v1953 = vxor.u32 %v1823, 2147483648
  %v1954 = vxor.u32 %v1828, 2147483648
  %v1955 = vxor.u32 %v1833, 2147483648
  %v1956 = vxor.u32 %v1838, 2147483648
  %v1957 = vxor.u32 %v1843, 2147483648
  %v1958 = vxor.u32 %v1848, 2147483648
  %v1959 = vxor.u32 %v1853, 2147483648
  %v1960 = vxor.u32 %v1858, 2147483648
  %v1961 = vxor.u32 %v1863, 2147483648
  %v1962 = vxor.u32 %v1868, 2147483648
  %v1963 = vxor.u32 %v1873, 2147483648
  %v1964 = vxor.u32 %v1878, 2147483648
  %v1965 = vxor.u32 %v1883, 2147483648
  %v1966 = vxor.u32 %v1888, 2147483648
  %v1967 = vxor.u32 %v1893, 2147483648
  %v1968 = vxor.u32 %v1898, 2147483648
  %v1969 = vxor.u32 %v1903, 2147483648
  %v1970 = vxor.u32 %v1908, 2147483648
  %v1971 = vxor.u32 %v1913, 2147483648
  %v1972 = vxor.u32 %v1918, 2147483648
  %v1973 = vxor.u32 %v1923, 2147483648
  %v1974 = vxor.u32 %v1928, 2147483648
  %v1975 = vxor.u32 %v1933, 2147483648
  %v1976 = vxor.u32 %v1938, 2147483648
  %v1977 = vxor.u32 %v1943, 2147483648
  %v1978 = vxor.u32 %v1948, 2147483648
  %v1979 = vmul.f32 %v1951, 1.442695
  %v1980 = vpow.pop %v1979
  %v1981 = vmul.f32 %v1952, 1.442695
  %v1982 = vpow.pop %v1981
  %v1983 = vmul.f32 %v1953, 1.442695
  %v1984 = vpow.pop %v1983
  %v1985 = vmul.f32 %v1954, 1.442695
  %v1986 = vpow.pop %v1985
  %v1987 = vmul.f32 %v1955, 1.442695
  %v1988 = vpow.pop %v1987
  %v1989 = vmul.f32 %v1956, 1.442695
  %v1990 = vpow.pop %v1989
  %v1991 = vmul.f32 %v1957, 1.442695
  %v1992 = vpow.pop %v1991
  %v1993 = vmul.f32 %v1958, 1.442695
  %v1994 = vpow.pop %v1993
  %v1995 = vmul.f32 %v1959, 1.442695
  %v1996 = vpow.pop %v1995
  %v1997 = vmul.f32 %v1960, 1.442695
  %v1998 = vpow.pop %v1997
  %v1999 = vmul.f32 %v1961, 1.442695
  %v2000 = vpow.pop %v1999
  %v2001 = vmul.f32 %v1962, 1.442695
  %v2002 = vpow.pop %v2001
  %v2003 = vmul.f32 %v1963, 1.442695
  %v2004 = vpow.pop %v2003
  %v2005 = vmul.f32 %v1964, 1.442695
  %v2006 = vpow.pop %v2005
  %v2007 = vmul.f32 %v1965, 1.442695
  %v2008 = vpow.pop %v2007
  %v2009 = vmul.f32 %v1966, 1.442695
  %v2010 = vpow.pop %v2009
  %v2011 = vmul.f32 %v1967, 1.442695
  %v2012 = vpow.pop %v2011
  %v2013 = vmul.f32 %v1968, 1.442695
  %v2014 = vpow.pop %v2013
  %v2015 = vmul.f32 %v1969, 1.442695
  %v2016 = vpow.pop %v2015
  %v2017 = vmul.f32 %v1970, 1.442695
  %v2018 = vpow.pop %v2017
  %v2019 = vmul.f32 %v1971, 1.442695
  %v2020 = vpow.pop %v2019
  %v2021 = vmul.f32 %v1972, 1.442695
  %v2022 = vpow.pop %v2021
  %v2023 = vmul.f32 %v1973, 1.442695
  %v2024 = vpow.pop %v2023
  %v2025 = vmul.f32 %v1974, 1.442695
  %v2026 = vpow.pop %v2025
  %v2027 = vmul.f32 %v1975, 1.442695
  %v2028 = vpow.pop %v2027
  %v2029 = vmul.f32 %v1976, 1.442695
  %v2030 = vpow.pop %v2029
  %v2031 = vmul.f32 %v1977, 1.442695
  %v2032 = vpow.pop %v2031
  %v2033 = vmul.f32 %v1978, 1.442695
  %v2034 = vpow.pop %v2033
  %v2035 = vadd.f32 %v1980, 1.0
  %v2036 = vadd.f32 %v1982, 1.0
  %v2037 = vadd.f32 %v1984, 1.0
  %v2038 = vadd.f32 %v1986, 1.0
  %v2039 = vadd.f32 %v1988, 1.0
  %v2040 = vadd.f32 %v1990, 1.0
  %v2041 = vadd.f32 %v1992, 1.0
  %v2042 = vadd.f32 %v1994, 1.0
  %v2043 = vadd.f32 %v1996, 1.0
  %v2044 = vadd.f32 %v1998, 1.0
  %v2045 = vadd.f32 %v2000, 1.0
  %v2046 = vadd.f32 %v2002, 1.0
  %v2047 = vadd.f32 %v2004, 1.0
  %v2048 = vadd.f32 %v2006, 1.0
  %v2049 = vadd.f32 %v2008, 1.0
  %v2050 = vadd.f32 %v2010, 1.0
  %v2051 = vadd.f32 %v2012, 1.0
  %v2052 = vadd.f32 %v2014, 1.0
  %v2053 = vadd.f32 %v2016, 1.0
  %v2054 = vadd.f32 %v2018, 1.0
  %v2055 = vadd.f32 %v2020, 1.0
  %v2056 = vadd.f32 %v2022, 1.0
  %v2057 = vadd.f32 %v2024, 1.0
  %v2058 = vadd.f32 %v2026, 1.0
  %v2059 = vadd.f32 %v2028, 1.0
  %v2060 = vadd.f32 %v2030, 1.0
  %v2061 = vadd.f32 %v2032, 1.0
  %v2062 = vadd.f32 %v2034, 1.0
  %v2063 = vrcp.pop %v2035
  %v2064 = vmul.f32 1.0, %v2063
  %v2065 = vrcp.pop %v2036
  %v2066 = vmul.f32 1.0, %v2065
  %v2067 = vrcp.pop %v2037
  %v2068 = vmul.f32 1.0, %v2067
  %v2069 = vrcp.pop %v2038
  %v2070 = vmul.f32 1.0, %v2069
  %v2071 = vrcp.pop %v2039
  %v2072 = vmul.f32 1.0, %v2071
  %v2073 = vrcp.pop %v2040
  %v2074 = vmul.f32 1.0, %v2073
  %v2075 = vrcp.pop %v2041
  %v2076 = vmul.f32 1.0, %v2075
  %v2077 = vrcp.pop %v2042
  %v2078 = vmul.f32 1.0, %v2077
  %v2079 = vrcp.pop %v2043
  %v2080 = vmul.f32 1.0, %v2079
  %v2081 = vrcp.pop %v2044
  %v2082 = vmul.f32 1.0, %v2081
  %v2083 = vrcp.pop %v2045
  %v2084 = vmul.f32 1.0, %v2083
  %v2085 = vrcp.pop %v2046
  %v2086 = vmul.f32 1.0, %v2085
  %v2087 = vrcp.pop %v2047
  %v2088 = vmul.f32 1.0, %v2087
  %v2089 = vrcp.pop %v2048
  %v2090 = vmul.f32 1.0, %v2089
  %v2091 = vrcp.pop %v2049
  %v2092 = vmul.f32 1.0, %v2091
  %v2093 = vrcp.pop %v2050
  %v2094 = vmul.f32 1.0, %v2093
  %v2095 = vrcp.pop %v2051
  %v2096 = vmul.f32 1.0, %v2095
  %v2097 = vrcp.pop %v2052
  %v2098 = vmul.f32 1.0, %v2097
  %v2099 = vrcp.pop %v2053
  %v2100 = vmul.f32 1.0, %v2099
  %v2101 = vrcp.pop %v2054
  %v2102 = vmul.f32 1.0, %v2101
  %v2103 = vrcp.pop %v2055
  %v2104 = vmul.f32 1.0, %v2103
  %v2105 = vrcp.pop %v2056
  %v2106 = vmul.f32 1.0, %v2105
  %v2107 = vrcp.pop %v2057
  %v2108 = vmul.f32 1.0, %v2107
  %v2109 = vrcp.pop %v2058
  %v2110 = vmul.f32 1.0, %v2109
  %v2111 = vrcp.pop %v2059
  %v2112 = vmul.f32 1.0, %v2111
  %v2113 = vrcp.pop %v2060
  %v2114 = vmul.f32 1.0, %v2113
  %v2115 = vrcp.pop %v2061
  %v2116 = vmul.f32 1.0, %v2115
  %v2117 = vrcp.pop %v2062
  %v2118 = vmul.f32 1.0, %v2117
  %v2119 = vmul.f32 %v1813, %v2064
  %v2120 = vmul.f32 %v1818, %v2066
  %v2121 = vmul.f32 %v1823, %v2068
  %v2122 = vmul.f32 %v1828, %v2070
  %v2123 = vmul.f32 %v1833, %v2072
  %v2124 = vmul.f32 %v1838, %v2074
  %v2125 = vmul.f32 %v1843, %v2076
  %v2126 = vmul.f32 %v1848, %v2078
  %v2127 = vmul.f32 %v1853, %v2080
  %v2128 = vmul.f32 %v1858, %v2082
  %v2129 = vmul.f32 %v1863, %v2084
  %v2130 = vmul.f32 %v1868, %v2086
  %v2131 = vmul.f32 %v1873, %v2088
  %v2132 = vmul.f32 %v1878, %v2090
  %v2133 = vmul.f32 %v1883, %v2092
  %v2134 = vmul.f32 %v1888, %v2094
  %v2135 = vmul.f32 %v1893, %v2096
  %v2136 = vmul.f32 %v1898, %v2098
  %v2137 = vmul.f32 %v1903, %v2100
  %v2138 = vmul.f32 %v1908, %v2102
  %v2139 = vmul.f32 %v1913, %v2104
  %v2140 = vmul.f32 %v1918, %v2106
  %v2141 = vmul.f32 %v1923, %v2108
  %v2142 = vmul.f32 %v1928, %v2110
  %v2143 = vmul.f32 %v1933, %v2112
  %v2144 = vmul.f32 %v1938, %v2114
  %v2145 = vmul.f32 %v1943, %v2116
  %v2146 = vmul.f32 %v1948, %v2118
  %2151 = vrot.lane.b32.xlu0 %v1651, 96
  %v2152 = vpop.permute.xlu0 %2151
  %2153 = vrot.lane.b32.xlu0 %v1652, 96
  %v2154 = vpop.permute.xlu0 %2153
  %2155 = vrot.lane.b32.xlu0 %v1653, 96
  %v2156 = vpop.permute.xlu0 %2155
  %2157 = vrot.lane.b32.xlu0 %v1654, 96
  %v2158 = vpop.permute.xlu0 %2157
  %v2164 = vsel %vm284, %v2119, 0
  %v2167 = vsel %vm284, %v2120, 0
  %v2170 = vsel %vm284, %v2121, 0
  %v2173 = vsel %vm284, %v2122, 0
  %v2176 = vsel %vm284, %v2123, 0
  %v2179 = vsel %vm284, %v2124, 0
  %v2182 = vsel %vm284, %v2125, 0
  %v2185 = vsel %vm284, %v2126, 0
  %v2188 = vsel %vm284, %v2127, 0
  %v2191 = vsel %vm284, %v2128, 0
  %v2194 = vsel %vm284, %v2129, 0
  %v2197 = vsel %vm284, %v2130, 0
  %v2200 = vsel %vm284, %v2131, 0
  %v2203 = vsel %vm284, %v2132, 0
  %v2206 = vsel %vm284, %v2133, 0
  %v2209 = vsel %vm284, %v2134, 0
  %v2212 = vsel %vm284, %v2135, 0
  %v2215 = vsel %vm284, %v2136, 0
  %v2218 = vsel %vm284, %v2137, 0
  %v2221 = vsel %vm284, %v2138, 0
  %v2224 = vsel %vm284, %v2139, 0
  %v2227 = vsel %vm284, %v2140, 0
  %v2230 = vsel %vm284, %v2141, 0
  %v2233 = vsel %vm284, %v2142, 0
  %v2236 = vsel %vm284, %v2143, 0
  %v2239 = vsel %vm284, %v2144, 0
  %v2242 = vsel %vm284, %v2145, 0
  %v2245 = vsel %vm284, %v2146, 0
  %2247 = vmatprep.subr.mxu0 0.0
  %2248 = vmatpush1.msra.mxu0 %v2152
  %2249 = vmatprep.subr.mxu0 0.0
  %2250 = vmatpush1.msra.mxu0 %v2154
  %2251 = vmatprep.subr.mxu0 0.0
  %2252 = vmatpush1.msra.mxu0 %v2156
  %2253 = vmatprep.subr.mxu0 0.0
  %2254 = vmatpush1.msra.mxu0 %v2158
  %2255 = vmatprep.subr.mxu0 0.0
  %2256 = vmatpush1.msra.mxu0 0.0
  %2257 = vmatprep.subr.mxu0 0.0
  %2258 = vmatpush1.msra.mxu0 0.0
  %2259 = vmatprep.subr.mxu0 0.0
  %2260 = vmatpush1.msra.mxu0 0.0
  %2261 = vmatprep.subr.mxu0 0.0
  %2262 = vmatpush1.msra.mxu0 0.0
  %2263 = vmatprep.subr.mxu0 0.0
  %2264 = vmatpush1.msra.mxu0 0.0
  %2265 = vmatprep.subr.mxu0 0.0
  %2266 = vmatpush1.msra.mxu0 0.0
  %2267 = vmatprep.subr.mxu0 0.0
  %2268 = vmatpush1.msra.mxu0 0.0
  %2269 = vmatprep.subr.mxu0 0.0
  %2270 = vmatpush1.msra.mxu0 0.0
  %2271 = vmatprep.subr.mxu0 0.0
  %2272 = vmatpush1.msra.mxu0 0.0
  %2273 = vmatprep.subr.mxu0 0.0
  %2274 = vmatpush1.msra.mxu0 0.0
  %2275 = vmatprep.subr.mxu0 0.0
  %2276 = vmatpush1.msra.mxu0 0.0
  %2277 = vmatprep.subr.mxu0 0.0
  %2278 = vmatpush1.msra.mxu0 0.0
  %2279 = vmatprep.subr.mxu0 0.0
  %2280 = vmatpush1.msra.mxu0 0.0
  %2281 = vmatprep.subr.mxu0 0.0
  %2282 = vmatpush1.msra.mxu0 0.0
  %2283 = vmatprep.subr.mxu0 0.0
  %2284 = vmatpush1.msra.mxu0 0.0
  %2285 = vmatprep.subr.mxu0 0.0
  %2286 = vmatpush1.msra.mxu0 0.0
  %2287 = vmatprep.subr.mxu0 0.0
  %2288 = vmatpush1.msra.mxu0 0.0
  %2289 = vmatprep.subr.mxu0 0.0
  %2290 = vmatpush1.msra.mxu0 0.0
  %2291 = vmatprep.subr.mxu0 0.0
  %2292 = vmatpush1.msra.mxu0 0.0
  %2293 = vmatprep.subr.mxu0 0.0
  %2294 = vmatpush1.msra.mxu0 0.0
  %2295 = vmatprep.subr.mxu0 0.0
  %2296 = vmatpush1.msra.mxu0 0.0
  %2297 = vmatprep.subr.mxu0 0.0
  %2298 = vmatpush1.msra.mxu0 0.0
  %2299 = vmatprep.subr.mxu0 0.0
  %2300 = vmatpush1.msra.mxu0 0.0
  %2301 = vmatprep.subr.mxu0 0.0
  %2302 = vmatpush1.msra.mxu0 0.0
  %2303 = vmatprep.subr.mxu0 0.0
  %2304 = vmatpush1.msra.mxu0 0.0
  %2305 = vmatprep.subr.mxu0 0.0
  %2306 = vmatpush1.msra.mxu0 0.0
  %2307 = vmatprep.subr.mxu0 0.0
  %2308 = vmatpush1.msra.mxu0 0.0
  %2309 = vmatprep.subr.mxu0 0.0
  %2310 = vmatpush1.msra.mxu0 0.0
  %2311 = vmatprep.mubr.f32.mxu0 0.0
  %2312 = vmatmul.mubr.f32.gmra.mrb[0].mxu0 %v2164
  %v2313 = vpop.f32.mrb[0].mxu0
  %v2314 = vadd.f32 0.0, %v2313
  %v2315 = vpop.f32.mrb[0].mxu0
  %2316 = vmatprep.mubr.f32.mxu0 0.0
  %2317 = vmatmul.mubr.f32.gmra.mrb[0].mxu0 %v2167
  %v2318 = vpop.f32.mrb[0].mxu0
  %v2319 = vadd.f32 0.0, %v2318
  %v2320 = vpop.f32.mrb[0].mxu0
  %2321 = vmatprep.mubr.f32.mxu0 0.0
  %2322 = vmatmul.mubr.f32.gmra.mrb[0].mxu0 %v2170
  %v2323 = vpop.f32.mrb[0].mxu0
  %v2324 = vadd.f32 0.0, %v2323
  %v2325 = vpop.f32.mrb[0].mxu0
  %2326 = vmatprep.mubr.f32.mxu0 0.0
  %2327 = vmatmul.mubr.f32.gmra.mrb[0].mxu0 %v2173
  %v2328 = vpop.f32.mrb[0].mxu0
  %v2329 = vadd.f32 0.0, %v2328
  %v2330 = vpop.f32.mrb[0].mxu0
  %2331 = vmatprep.mubr.f32.mxu0 0.0
  %2332 = vmatmul.mubr.f32.gmra.mrb[0].mxu0 %v2176
  %v2333 = vpop.f32.mrb[0].mxu0
  %v2334 = vadd.f32 0.0, %v2333
  %v2335 = vpop.f32.mrb[0].mxu0
  %2336 = vmatprep.mubr.f32.mxu0 0.0
  %2337 = vmatmul.mubr.f32.gmra.mrb[0].mxu0 %v2179
  %v2338 = vpop.f32.mrb[0].mxu0
  %v2339 = vadd.f32 0.0, %v2338
  %v2340 = vpop.f32.mrb[0].mxu0
  %2341 = vmatprep.mubr.f32.mxu0 0.0
  %2342 = vmatmul.mubr.f32.gmra.mrb[0].mxu0 %v2182
  %v2343 = vpop.f32.mrb[0].mxu0
  %v2344 = vadd.f32 0.0, %v2343
  %v2345 = vpop.f32.mrb[0].mxu0
  %2346 = vmatprep.mubr.f32.mxu0 0.0
  %2347 = vmatmul.mubr.f32.gmra.mrb[0].mxu0 %v2185
  %v2348 = vpop.f32.mrb[0].mxu0
  %v2349 = vadd.f32 0.0, %v2348
  %v2350 = vpop.f32.mrb[0].mxu0
  %2351 = vmatprep.mubr.f32.mxu0 0.0
  %2352 = vmatmul.mubr.f32.gmra.mrb[0].mxu0 %v2188
  %v2353 = vpop.f32.mrb[0].mxu0
  %v2354 = vadd.f32 0.0, %v2353
  %v2355 = vpop.f32.mrb[0].mxu0
  %2356 = vmatprep.mubr.f32.mxu0 0.0
  %2357 = vmatmul.mubr.f32.gmra.mrb[0].mxu0 %v2191
  %v2358 = vpop.f32.mrb[0].mxu0
  %v2359 = vadd.f32 0.0, %v2358
  %v2360 = vpop.f32.mrb[0].mxu0
  %2361 = vmatprep.mubr.f32.mxu0 0.0
  %2362 = vmatmul.mubr.f32.gmra.mrb[0].mxu0 %v2194
  %v2363 = vpop.f32.mrb[0].mxu0
  %v2364 = vadd.f32 0.0, %v2363
  %v2365 = vpop.f32.mrb[0].mxu0
  %2366 = vmatprep.mubr.f32.mxu0 0.0
  %2367 = vmatmul.mubr.f32.gmra.mrb[0].mxu0 %v2197
  %v2368 = vpop.f32.mrb[0].mxu0
  %v2369 = vadd.f32 0.0, %v2368
  %v2370 = vpop.f32.mrb[0].mxu0
  %2371 = vmatprep.mubr.f32.mxu0 0.0
  %2372 = vmatmul.mubr.f32.gmra.mrb[0].mxu0 %v2200
  %v2373 = vpop.f32.mrb[0].mxu0
  %v2374 = vadd.f32 0.0, %v2373
  %v2375 = vpop.f32.mrb[0].mxu0
  %2376 = vmatprep.mubr.f32.mxu0 0.0
  %2377 = vmatmul.mubr.f32.gmra.mrb[0].mxu0 %v2203
  %v2378 = vpop.f32.mrb[0].mxu0
  %v2379 = vadd.f32 0.0, %v2378
  %v2380 = vpop.f32.mrb[0].mxu0
  %2381 = vmatprep.mubr.f32.mxu0 0.0
  %2382 = vmatmul.mubr.f32.gmra.mrb[0].mxu0 %v2206
  %v2383 = vpop.f32.mrb[0].mxu0
  %v2384 = vadd.f32 0.0, %v2383
  %v2385 = vpop.f32.mrb[0].mxu0
  %2386 = vmatprep.mubr.f32.mxu0 0.0
  %2387 = vmatmul.mubr.f32.gmra.mrb[0].mxu0 %v2209
  %v2388 = vpop.f32.mrb[0].mxu0
  %v2389 = vadd.f32 0.0, %v2388
  %v2390 = vpop.f32.mrb[0].mxu0
  %2391 = vmatprep.mubr.f32.mxu0 0.0
  %2392 = vmatmul.mubr.f32.gmra.mrb[0].mxu0 %v2212
  %v2393 = vpop.f32.mrb[0].mxu0
  %v2394 = vadd.f32 0.0, %v2393
  %v2395 = vpop.f32.mrb[0].mxu0
  %2396 = vmatprep.mubr.f32.mxu0 0.0
  %2397 = vmatmul.mubr.f32.gmra.mrb[0].mxu0 %v2215
  %v2398 = vpop.f32.mrb[0].mxu0
  %v2399 = vadd.f32 0.0, %v2398
  %v2400 = vpop.f32.mrb[0].mxu0
  %2401 = vmatprep.mubr.f32.mxu0 0.0
  %2402 = vmatmul.mubr.f32.gmra.mrb[0].mxu0 %v2218
  %v2403 = vpop.f32.mrb[0].mxu0
  %v2404 = vadd.f32 0.0, %v2403
  %v2405 = vpop.f32.mrb[0].mxu0
  %2406 = vmatprep.mubr.f32.mxu0 0.0
  %2407 = vmatmul.mubr.f32.gmra.mrb[0].mxu0 %v2221
  %v2408 = vpop.f32.mrb[0].mxu0
  %v2409 = vadd.f32 0.0, %v2408
  %v2410 = vpop.f32.mrb[0].mxu0
  %2411 = vmatprep.mubr.f32.mxu0 0.0
  %2412 = vmatmul.mubr.f32.gmra.mrb[0].mxu0 %v2224
  %v2413 = vpop.f32.mrb[0].mxu0
  %v2414 = vadd.f32 0.0, %v2413
  %v2415 = vpop.f32.mrb[0].mxu0
  %2416 = vmatprep.mubr.f32.mxu0 0.0
  %2417 = vmatmul.mubr.f32.gmra.mrb[0].mxu0 %v2227
  %v2418 = vpop.f32.mrb[0].mxu0
  %v2419 = vadd.f32 0.0, %v2418
  %v2420 = vpop.f32.mrb[0].mxu0
  %2421 = vmatprep.mubr.f32.mxu0 0.0
  %2422 = vmatmul.mubr.f32.gmra.mrb[0].mxu0 %v2230
  %v2423 = vpop.f32.mrb[0].mxu0
  %v2424 = vadd.f32 0.0, %v2423
  %v2425 = vpop.f32.mrb[0].mxu0
  %2426 = vmatprep.mubr.f32.mxu0 0.0
  %2427 = vmatmul.mubr.f32.gmra.mrb[0].mxu0 %v2233
  %v2428 = vpop.f32.mrb[0].mxu0
  %v2429 = vadd.f32 0.0, %v2428
  %v2430 = vpop.f32.mrb[0].mxu0
  %2431 = vmatprep.mubr.f32.mxu0 0.0
  %2432 = vmatmul.mubr.f32.gmra.mrb[0].mxu0 %v2236
  %v2433 = vpop.f32.mrb[0].mxu0
  %v2434 = vadd.f32 0.0, %v2433
  %v2435 = vpop.f32.mrb[0].mxu0
  %2436 = vmatprep.mubr.f32.mxu0 0.0
  %2437 = vmatmul.mubr.f32.gmra.mrb[0].mxu0 %v2239
  %v2438 = vpop.f32.mrb[0].mxu0
  %v2439 = vadd.f32 0.0, %v2438
  %v2440 = vpop.f32.mrb[0].mxu0
  %2441 = vmatprep.mubr.f32.mxu0 0.0
  %2442 = vmatmul.mubr.f32.gmra.mrb[0].mxu0 %v2242
  %v2443 = vpop.f32.mrb[0].mxu0
  %v2444 = vadd.f32 0.0, %v2443
  %v2445 = vpop.f32.mrb[0].mxu0
  %2446 = vmatprep.mubr.f32.mxu0 0.0
  %2447 = vmatmul.mubr.f32.gmra.mrb[0].mxu0 %v2245
  %v2448 = vpop.f32.mrb[0].mxu0
  %v2449 = vadd.f32 0.0, %v2448
  %v2450 = vpop.f32.mrb[0].mxu0
  %2451 = vdwg.mxu0
  %2452 = vrot.lane.b32.xlu0 %v1660, 96
  %v2453 = vpop.permute.xlu0 %2452
  %v2455 = vadd.f32 %v2314, %v2453
  %v2456 = vadd.f32 %v2319, %v2453
  %v2457 = vadd.f32 %v2324, %v2453
  %v2458 = vadd.f32 %v2329, %v2453
  %v2459 = vadd.f32 %v2334, %v2453
  %v2460 = vadd.f32 %v2339, %v2453
  %v2461 = vadd.f32 %v2344, %v2453
  %v2462 = vadd.f32 %v2349, %v2453
  %v2463 = vadd.f32 %v2354, %v2453
  %v2464 = vadd.f32 %v2359, %v2453
  %v2465 = vadd.f32 %v2364, %v2453
  %v2466 = vadd.f32 %v2369, %v2453
  %v2467 = vadd.f32 %v2374, %v2453
  %v2468 = vadd.f32 %v2379, %v2453
  %v2469 = vadd.f32 %v2384, %v2453
  %v2470 = vadd.f32 %v2389, %v2453
  %v2471 = vadd.f32 %v2394, %v2453
  %v2472 = vadd.f32 %v2399, %v2453
  %v2473 = vadd.f32 %v2404, %v2453
  %v2474 = vadd.f32 %v2409, %v2453
  %v2475 = vadd.f32 %v2414, %v2453
  %v2476 = vadd.f32 %v2419, %v2453
  %v2477 = vadd.f32 %v2424, %v2453
  %v2478 = vadd.f32 %v2429, %v2453
  %v2479 = vadd.f32 %v2434, %v2453
  %v2480 = vadd.f32 %v2439, %v2453
  %v2481 = vadd.f32 %v2444, %v2453
  %v2482 = vadd.f32 %v2449, %v2453
  %v2483 = vxor.u32 %v2455, 2147483648
  %v2484 = vxor.u32 %v2456, 2147483648
  %v2485 = vxor.u32 %v2457, 2147483648
  %v2486 = vxor.u32 %v2458, 2147483648
  %v2487 = vxor.u32 %v2459, 2147483648
  %v2488 = vxor.u32 %v2460, 2147483648
  %v2489 = vxor.u32 %v2461, 2147483648
  %v2490 = vxor.u32 %v2462, 2147483648
  %v2491 = vxor.u32 %v2463, 2147483648
  %v2492 = vxor.u32 %v2464, 2147483648
  %v2493 = vxor.u32 %v2465, 2147483648
  %v2494 = vxor.u32 %v2466, 2147483648
  %v2495 = vxor.u32 %v2467, 2147483648
  %v2496 = vxor.u32 %v2468, 2147483648
  %v2497 = vxor.u32 %v2469, 2147483648
  %v2498 = vxor.u32 %v2470, 2147483648
  %v2499 = vxor.u32 %v2471, 2147483648
  %v2500 = vxor.u32 %v2472, 2147483648
  %v2501 = vxor.u32 %v2473, 2147483648
  %v2502 = vxor.u32 %v2474, 2147483648
  %v2503 = vxor.u32 %v2475, 2147483648
  %v2504 = vxor.u32 %v2476, 2147483648
  %v2505 = vxor.u32 %v2477, 2147483648
  %v2506 = vxor.u32 %v2478, 2147483648
  %v2507 = vxor.u32 %v2479, 2147483648
  %v2508 = vxor.u32 %v2480, 2147483648
  %v2509 = vxor.u32 %v2481, 2147483648
  %v2510 = vxor.u32 %v2482, 2147483648
  %v2511 = vmul.f32 %v2483, 1.442695
  %v2512 = vpow.pop %v2511
  %v2513 = vmul.f32 %v2484, 1.442695
  %v2514 = vpow.pop %v2513
  %v2515 = vmul.f32 %v2485, 1.442695
  %v2516 = vpow.pop %v2515
  %v2517 = vmul.f32 %v2486, 1.442695
  %v2518 = vpow.pop %v2517
  %v2519 = vmul.f32 %v2487, 1.442695
  %v2520 = vpow.pop %v2519
  %v2521 = vmul.f32 %v2488, 1.442695
  %v2522 = vpow.pop %v2521
  %v2523 = vmul.f32 %v2489, 1.442695
  %v2524 = vpow.pop %v2523
  %v2525 = vmul.f32 %v2490, 1.442695
  %v2526 = vpow.pop %v2525
  %v2527 = vmul.f32 %v2491, 1.442695
  %v2528 = vpow.pop %v2527
  %v2529 = vmul.f32 %v2492, 1.442695
  %v2530 = vpow.pop %v2529
  %v2531 = vmul.f32 %v2493, 1.442695
  %v2532 = vpow.pop %v2531
  %v2533 = vmul.f32 %v2494, 1.442695
  %v2534 = vpow.pop %v2533
  %v2535 = vmul.f32 %v2495, 1.442695
  %v2536 = vpow.pop %v2535
  %v2537 = vmul.f32 %v2496, 1.442695
  %v2538 = vpow.pop %v2537
  %v2539 = vmul.f32 %v2497, 1.442695
  %v2540 = vpow.pop %v2539
  %v2541 = vmul.f32 %v2498, 1.442695
  %v2542 = vpow.pop %v2541
  %v2543 = vmul.f32 %v2499, 1.442695
  %v2544 = vpow.pop %v2543
  %v2545 = vmul.f32 %v2500, 1.442695
  %v2546 = vpow.pop %v2545
  %v2547 = vmul.f32 %v2501, 1.442695
  %v2548 = vpow.pop %v2547
  %v2549 = vmul.f32 %v2502, 1.442695
  %v2550 = vpow.pop %v2549
  %v2551 = vmul.f32 %v2503, 1.442695
  %v2552 = vpow.pop %v2551
  %v2553 = vmul.f32 %v2504, 1.442695
  %v2554 = vpow.pop %v2553
  %v2555 = vmul.f32 %v2505, 1.442695
  %v2556 = vpow.pop %v2555
  %v2557 = vmul.f32 %v2506, 1.442695
  %v2558 = vpow.pop %v2557
  %v2559 = vmul.f32 %v2507, 1.442695
  %v2560 = vpow.pop %v2559
  %v2561 = vmul.f32 %v2508, 1.442695
  %v2562 = vpow.pop %v2561
  %v2563 = vmul.f32 %v2509, 1.442695
  %v2564 = vpow.pop %v2563
  %v2565 = vmul.f32 %v2510, 1.442695
  %v2566 = vpow.pop %v2565
  %v2567 = vadd.f32 %v2512, 1.0
  %v2568 = vadd.f32 %v2514, 1.0
  %v2569 = vadd.f32 %v2516, 1.0
  %v2570 = vadd.f32 %v2518, 1.0
  %v2571 = vadd.f32 %v2520, 1.0
  %v2572 = vadd.f32 %v2522, 1.0
  %v2573 = vadd.f32 %v2524, 1.0
  %v2574 = vadd.f32 %v2526, 1.0
  %v2575 = vadd.f32 %v2528, 1.0
  %v2576 = vadd.f32 %v2530, 1.0
  %v2577 = vadd.f32 %v2532, 1.0
  %v2578 = vadd.f32 %v2534, 1.0
  %v2579 = vadd.f32 %v2536, 1.0
  %v2580 = vadd.f32 %v2538, 1.0
  %v2581 = vadd.f32 %v2540, 1.0
  %v2582 = vadd.f32 %v2542, 1.0
  %v2583 = vadd.f32 %v2544, 1.0
  %v2584 = vadd.f32 %v2546, 1.0
  %v2585 = vadd.f32 %v2548, 1.0
  %v2586 = vadd.f32 %v2550, 1.0
  %v2587 = vadd.f32 %v2552, 1.0
  %v2588 = vadd.f32 %v2554, 1.0
  %v2589 = vadd.f32 %v2556, 1.0
  %v2590 = vadd.f32 %v2558, 1.0
  %v2591 = vadd.f32 %v2560, 1.0
  %v2592 = vadd.f32 %v2562, 1.0
  %v2593 = vadd.f32 %v2564, 1.0
  %v2594 = vadd.f32 %v2566, 1.0
  %v2595 = vrcp.pop %v2567
  %v2596 = vmul.f32 1.0, %v2595
  %v2597 = vrcp.pop %v2568
  %v2598 = vmul.f32 1.0, %v2597
  %v2599 = vrcp.pop %v2569
  %v2600 = vmul.f32 1.0, %v2599
  %v2601 = vrcp.pop %v2570
  %v2602 = vmul.f32 1.0, %v2601
  %v2603 = vrcp.pop %v2571
  %v2604 = vmul.f32 1.0, %v2603
  %v2605 = vrcp.pop %v2572
  %v2606 = vmul.f32 1.0, %v2605
  %v2607 = vrcp.pop %v2573
  %v2608 = vmul.f32 1.0, %v2607
  %v2609 = vrcp.pop %v2574
  %v2610 = vmul.f32 1.0, %v2609
  %v2611 = vrcp.pop %v2575
  %v2612 = vmul.f32 1.0, %v2611
  %v2613 = vrcp.pop %v2576
  %v2614 = vmul.f32 1.0, %v2613
  %v2615 = vrcp.pop %v2577
  %v2616 = vmul.f32 1.0, %v2615
  %v2617 = vrcp.pop %v2578
  %v2618 = vmul.f32 1.0, %v2617
  %v2619 = vrcp.pop %v2579
  %v2620 = vmul.f32 1.0, %v2619
  %v2621 = vrcp.pop %v2580
  %v2622 = vmul.f32 1.0, %v2621
  %v2623 = vrcp.pop %v2581
  %v2624 = vmul.f32 1.0, %v2623
  %v2625 = vrcp.pop %v2582
  %v2626 = vmul.f32 1.0, %v2625
  %v2627 = vrcp.pop %v2583
  %v2628 = vmul.f32 1.0, %v2627
  %v2629 = vrcp.pop %v2584
  %v2630 = vmul.f32 1.0, %v2629
  %v2631 = vrcp.pop %v2585
  %v2632 = vmul.f32 1.0, %v2631
  %v2633 = vrcp.pop %v2586
  %v2634 = vmul.f32 1.0, %v2633
  %v2635 = vrcp.pop %v2587
  %v2636 = vmul.f32 1.0, %v2635
  %v2637 = vrcp.pop %v2588
  %v2638 = vmul.f32 1.0, %v2637
  %v2639 = vrcp.pop %v2589
  %v2640 = vmul.f32 1.0, %v2639
  %v2641 = vrcp.pop %v2590
  %v2642 = vmul.f32 1.0, %v2641
  %v2643 = vrcp.pop %v2591
  %v2644 = vmul.f32 1.0, %v2643
  %v2645 = vrcp.pop %v2592
  %v2646 = vmul.f32 1.0, %v2645
  %v2647 = vrcp.pop %v2593
  %v2648 = vmul.f32 1.0, %v2647
  %v2649 = vrcp.pop %v2594
  %v2650 = vmul.f32 1.0, %v2649
  %v2651 = vmul.f32 %v2455, %v2596
  %v2652 = vmul.f32 %v2456, %v2598
  %v2653 = vmul.f32 %v2457, %v2600
  %v2654 = vmul.f32 %v2458, %v2602
  %v2655 = vmul.f32 %v2459, %v2604
  %v2656 = vmul.f32 %v2460, %v2606
  %v2657 = vmul.f32 %v2461, %v2608
  %v2658 = vmul.f32 %v2462, %v2610
  %v2659 = vmul.f32 %v2463, %v2612
  %v2660 = vmul.f32 %v2464, %v2614
  %v2661 = vmul.f32 %v2465, %v2616
  %v2662 = vmul.f32 %v2466, %v2618
  %v2663 = vmul.f32 %v2467, %v2620
  %v2664 = vmul.f32 %v2468, %v2622
  %v2665 = vmul.f32 %v2469, %v2624
  %v2666 = vmul.f32 %v2470, %v2626
  %v2667 = vmul.f32 %v2471, %v2628
  %v2668 = vmul.f32 %v2472, %v2630
  %v2669 = vmul.f32 %v2473, %v2632
  %v2670 = vmul.f32 %v2474, %v2634
  %v2671 = vmul.f32 %v2475, %v2636
  %v2672 = vmul.f32 %v2476, %v2638
  %v2673 = vmul.f32 %v2477, %v2640
  %v2674 = vmul.f32 %v2478, %v2642
  %v2675 = vmul.f32 %v2479, %v2644
  %v2676 = vmul.f32 %v2480, %v2646
  %v2677 = vmul.f32 %v2481, %v2648
  %v2678 = vmul.f32 %v2482, %v2650
  %v2679 = vld [vmem:[%s14] sm:$0xff]
  %v2680 = vld [vmem:[%s14 + $0x8] sm:$0xff]
  %v2681 = vld [vmem:[%s14 + $0x10] sm:$0xff]
  %v2682 = vld [vmem:[%s14 + $0x18] sm:$0xff]
  %2687 = vrot.lane.b32.xlu0 %v2679, 96
  %v2688 = vpop.permute.xlu0 %2687
  %2689 = vrot.lane.b32.xlu0 %v2680, 96
  %v2690 = vpop.permute.xlu0 %2689
  %2691 = vrot.lane.b32.xlu0 %v2681, 96
  %v2692 = vpop.permute.xlu0 %2691
  %2693 = vrot.lane.b32.xlu0 %v2682, 96
  %v2694 = vpop.permute.xlu0 %2693
  %v2700 = vsel %vm284, %v2651, 0
  %v2703 = vsel %vm284, %v2652, 0
  %v2706 = vsel %vm284, %v2653, 0
  %v2709 = vsel %vm284, %v2654, 0
  %v2712 = vsel %vm284, %v2655, 0
  %v2715 = vsel %vm284, %v2656, 0
  %v2718 = vsel %vm284, %v2657, 0
  %v2721 = vsel %vm284, %v2658, 0
  %v2724 = vsel %vm284, %v2659, 0
  %v2727 = vsel %vm284, %v2660, 0
  %v2730 = vsel %vm284, %v2661, 0
  %v2733 = vsel %vm284, %v2662, 0
  %v2736 = vsel %vm284, %v2663, 0
  %v2739 = vsel %vm284, %v2664, 0
  %v2742 = vsel %vm284, %v2665, 0
  %v2745 = vsel %vm284, %v2666, 0
  %v2748 = vsel %vm284, %v2667, 0
  %v2751 = vsel %vm284, %v2668, 0
  %v2754 = vsel %vm284, %v2669, 0
  %v2757 = vsel %vm284, %v2670, 0
  %v2760 = vsel %vm284, %v2671, 0
  %v2763 = vsel %vm284, %v2672, 0
  %v2766 = vsel %vm284, %v2673, 0
  %v2769 = vsel %vm284, %v2674, 0
  %v2772 = vsel %vm284, %v2675, 0
  %v2775 = vsel %vm284, %v2676, 0
  %v2778 = vsel %vm284, %v2677, 0
  %v2781 = vsel %vm284, %v2678, 0
  %2783 = vmatprep.subr.mxu0 0.0
  %2784 = vmatpush1.msra.mxu0 %v2688
  %2785 = vmatprep.subr.mxu0 0.0
  %2786 = vmatpush1.msra.mxu0 %v2690
  %2787 = vmatprep.subr.mxu0 0.0
  %2788 = vmatpush1.msra.mxu0 %v2692
  %2789 = vmatprep.subr.mxu0 0.0
  %2790 = vmatpush1.msra.mxu0 %v2694
  %2791 = vmatprep.subr.mxu0 0.0
  %2792 = vmatpush1.msra.mxu0 0.0
  %2793 = vmatprep.subr.mxu0 0.0
  %2794 = vmatpush1.msra.mxu0 0.0
  %2795 = vmatprep.subr.mxu0 0.0
  %2796 = vmatpush1.msra.mxu0 0.0
  %2797 = vmatprep.subr.mxu0 0.0
  %2798 = vmatpush1.msra.mxu0 0.0
  %2799 = vmatprep.subr.mxu0 0.0
  %2800 = vmatpush1.msra.mxu0 0.0
  %2801 = vmatprep.subr.mxu0 0.0
  %2802 = vmatpush1.msra.mxu0 0.0
  %2803 = vmatprep.subr.mxu0 0.0
  %2804 = vmatpush1.msra.mxu0 0.0
  %2805 = vmatprep.subr.mxu0 0.0
  %2806 = vmatpush1.msra.mxu0 0.0
  %2807 = vmatprep.subr.mxu0 0.0
  %2808 = vmatpush1.msra.mxu0 0.0
  %2809 = vmatprep.subr.mxu0 0.0
  %2810 = vmatpush1.msra.mxu0 0.0
  %2811 = vmatprep.subr.mxu0 0.0
  %2812 = vmatpush1.msra.mxu0 0.0
  %2813 = vmatprep.subr.mxu0 0.0
  %2814 = vmatpush1.msra.mxu0 0.0
  %2815 = vmatprep.subr.mxu0 0.0
  %2816 = vmatpush1.msra.mxu0 0.0
  %2817 = vmatprep.subr.mxu0 0.0
  %2818 = vmatpush1.msra.mxu0 0.0
  %2819 = vmatprep.subr.mxu0 0.0
  %2820 = vmatpush1.msra.mxu0 0.0
  %2821 = vmatprep.subr.mxu0 0.0
  %2822 = vmatpush1.msra.mxu0 0.0
  %2823 = vmatprep.subr.mxu0 0.0
  %2824 = vmatpush1.msra.mxu0 0.0
  %2825 = vmatprep.subr.mxu0 0.0
  %2826 = vmatpush1.msra.mxu0 0.0
  %2827 = vmatprep.subr.mxu0 0.0
  %2828 = vmatpush1.msra.mxu0 0.0
  %2829 = vmatprep.subr.mxu0 0.0
  %2830 = vmatpush1.msra.mxu0 0.0
  %2831 = vmatprep.subr.mxu0 0.0
  %2832 = vmatpush1.msra.mxu0 0.0
  %2833 = vmatprep.subr.mxu0 0.0
  %2834 = vmatpush1.msra.mxu0 0.0
  %2835 = vmatprep.subr.mxu0 0.0
  %2836 = vmatpush1.msra.mxu0 0.0
  %2837 = vmatprep.subr.mxu0 0.0
  %2838 = vmatpush1.msra.mxu0 0.0
  %2839 = vmatprep.subr.mxu0 0.0
  %2840 = vmatpush1.msra.mxu0 0.0
  %2841 = vmatprep.subr.mxu0 0.0
  %2842 = vmatpush1.msra.mxu0 0.0
  %2843 = vmatprep.subr.mxu0 0.0
  %2844 = vmatpush1.msra.mxu0 0.0
  %2845 = vmatprep.subr.mxu0 0.0
  %2846 = vmatpush1.msra.mxu0 0.0
  %2847 = vmatprep.mubr.f32.mxu0 0.0
  %2848 = vmatmul.mubr.f32.gmra.mrb[0].mxu0 %v2700
  %v2849 = vpop.f32.mrb[0].mxu0
  %v2850 = vadd.f32 0.0, %v2849
  %v2851 = vpop.f32.mrb[0].mxu0
  %2852 = vmatprep.mubr.f32.mxu0 0.0
  %2853 = vmatmul.mubr.f32.gmra.mrb[0].mxu0 %v2703
  %v2854 = vpop.f32.mrb[0].mxu0
  %v2855 = vadd.f32 0.0, %v2854
  %v2856 = vpop.f32.mrb[0].mxu0
  %2857 = vmatprep.mubr.f32.mxu0 0.0
  %2858 = vmatmul.mubr.f32.gmra.mrb[0].mxu0 %v2706
  %v2859 = vpop.f32.mrb[0].mxu0
  %v2860 = vadd.f32 0.0, %v2859
  %v2861 = vpop.f32.mrb[0].mxu0
  %2862 = vmatprep.mubr.f32.mxu0 0.0
  %2863 = vmatmul.mubr.f32.gmra.mrb[0].mxu0 %v2709
  %v2864 = vpop.f32.mrb[0].mxu0
  %v2865 = vadd.f32 0.0, %v2864
  %v2866 = vpop.f32.mrb[0].mxu0
  %2867 = vmatprep.mubr.f32.mxu0 0.0
  %2868 = vmatmul.mubr.f32.gmra.mrb[0].mxu0 %v2712
  %v2869 = vpop.f32.mrb[0].mxu0
  %v2870 = vadd.f32 0.0, %v2869
  %v2871 = vpop.f32.mrb[0].mxu0
  %2872 = vmatprep.mubr.f32.mxu0 0.0
  %2873 = vmatmul.mubr.f32.gmra.mrb[0].mxu0 %v2715
  %v2874 = vpop.f32.mrb[0].mxu0
  %v2875 = vadd.f32 0.0, %v2874
  %v2876 = vpop.f32.mrb[0].mxu0
  %2877 = vmatprep.mubr.f32.mxu0 0.0
  %2878 = vmatmul.mubr.f32.gmra.mrb[0].mxu0 %v2718
  %v2879 = vpop.f32.mrb[0].mxu0
  %v2880 = vadd.f32 0.0, %v2879
  %v2881 = vpop.f32.mrb[0].mxu0
  %2882 = vmatprep.mubr.f32.mxu0 0.0
  %2883 = vmatmul.mubr.f32.gmra.mrb[0].mxu0 %v2721
  %v2884 = vpop.f32.mrb[0].mxu0
  %v2885 = vadd.f32 0.0, %v2884
  %v2886 = vpop.f32.mrb[0].mxu0
  %2887 = vmatprep.mubr.f32.mxu0 0.0
  %2888 = vmatmul.mubr.f32.gmra.mrb[0].mxu0 %v2724
  %v2889 = vpop.f32.mrb[0].mxu0
  %v2890 = vadd.f32 0.0, %v2889
  %v2891 = vpop.f32.mrb[0].mxu0
  %2892 = vmatprep.mubr.f32.mxu0 0.0
  %2893 = vmatmul.mubr.f32.gmra.mrb[0].mxu0 %v2727
  %v2894 = vpop.f32.mrb[0].mxu0
  %v2895 = vadd.f32 0.0, %v2894
  %v2896 = vpop.f32.mrb[0].mxu0
  %2897 = vmatprep.mubr.f32.mxu0 0.0
  %2898 = vmatmul.mubr.f32.gmra.mrb[0].mxu0 %v2730
  %v2899 = vpop.f32.mrb[0].mxu0
  %v2900 = vadd.f32 0.0, %v2899
  %v2901 = vpop.f32.mrb[0].mxu0
  %2902 = vmatprep.mubr.f32.mxu0 0.0
  %2903 = vmatmul.mubr.f32.gmra.mrb[0].mxu0 %v2733
  %v2904 = vpop.f32.mrb[0].mxu0
  %v2905 = vadd.f32 0.0, %v2904
  %v2906 = vpop.f32.mrb[0].mxu0
  %2907 = vmatprep.mubr.f32.mxu0 0.0
  %2908 = vmatmul.mubr.f32.gmra.mrb[0].mxu0 %v2736
  %v2909 = vpop.f32.mrb[0].mxu0
  %v2910 = vadd.f32 0.0, %v2909
  %v2911 = vpop.f32.mrb[0].mxu0
  %2912 = vmatprep.mubr.f32.mxu0 0.0
  %2913 = vmatmul.mubr.f32.gmra.mrb[0].mxu0 %v2739
  %v2914 = vpop.f32.mrb[0].mxu0
  %v2915 = vadd.f32 0.0, %v2914
  %v2916 = vpop.f32.mrb[0].mxu0
  %2917 = vmatprep.mubr.f32.mxu0 0.0
  %2918 = vmatmul.mubr.f32.gmra.mrb[0].mxu0 %v2742
  %v2919 = vpop.f32.mrb[0].mxu0
  %v2920 = vadd.f32 0.0, %v2919
  %v2921 = vpop.f32.mrb[0].mxu0
  %2922 = vmatprep.mubr.f32.mxu0 0.0
  %2923 = vmatmul.mubr.f32.gmra.mrb[0].mxu0 %v2745
  %v2924 = vpop.f32.mrb[0].mxu0
  %v2925 = vadd.f32 0.0, %v2924
  %v2926 = vpop.f32.mrb[0].mxu0
  %2927 = vmatprep.mubr.f32.mxu0 0.0
  %2928 = vmatmul.mubr.f32.gmra.mrb[0].mxu0 %v2748
  %v2929 = vpop.f32.mrb[0].mxu0
  %v2930 = vadd.f32 0.0, %v2929
  %v2931 = vpop.f32.mrb[0].mxu0
  %2932 = vmatprep.mubr.f32.mxu0 0.0
  %2933 = vmatmul.mubr.f32.gmra.mrb[0].mxu0 %v2751
  %v2934 = vpop.f32.mrb[0].mxu0
  %v2935 = vadd.f32 0.0, %v2934
  %v2936 = vpop.f32.mrb[0].mxu0
  %2937 = vmatprep.mubr.f32.mxu0 0.0
  %2938 = vmatmul.mubr.f32.gmra.mrb[0].mxu0 %v2754
  %v2939 = vpop.f32.mrb[0].mxu0
  %v2940 = vadd.f32 0.0, %v2939
  %v2941 = vpop.f32.mrb[0].mxu0
  %2942 = vmatprep.mubr.f32.mxu0 0.0
  %2943 = vmatmul.mubr.f32.gmra.mrb[0].mxu0 %v2757
  %v2944 = vpop.f32.mrb[0].mxu0
  %v2945 = vadd.f32 0.0, %v2944
  %v2946 = vpop.f32.mrb[0].mxu0
  %2947 = vmatprep.mubr.f32.mxu0 0.0
  %2948 = vmatmul.mubr.f32.gmra.mrb[0].mxu0 %v2760
  %v2949 = vpop.f32.mrb[0].mxu0
  %v2950 = vadd.f32 0.0, %v2949
  %v2951 = vpop.f32.mrb[0].mxu0
  %2952 = vmatprep.mubr.f32.mxu0 0.0
  %2953 = vmatmul.mubr.f32.gmra.mrb[0].mxu0 %v2763
  %v2954 = vpop.f32.mrb[0].mxu0
  %v2955 = vadd.f32 0.0, %v2954
  %v2956 = vpop.f32.mrb[0].mxu0
  %2957 = vmatprep.mubr.f32.mxu0 0.0
  %2958 = vmatmul.mubr.f32.gmra.mrb[0].mxu0 %v2766
  %v2959 = vpop.f32.mrb[0].mxu0
  %v2960 = vadd.f32 0.0, %v2959
  %v2961 = vpop.f32.mrb[0].mxu0
  %2962 = vmatprep.mubr.f32.mxu0 0.0
  %2963 = vmatmul.mubr.f32.gmra.mrb[0].mxu0 %v2769
  %v2964 = vpop.f32.mrb[0].mxu0
  %v2965 = vadd.f32 0.0, %v2964
  %v2966 = vpop.f32.mrb[0].mxu0
  %2967 = vmatprep.mubr.f32.mxu0 0.0
  %2968 = vmatmul.mubr.f32.gmra.mrb[0].mxu0 %v2772
  %v2969 = vpop.f32.mrb[0].mxu0
  %v2970 = vadd.f32 0.0, %v2969
  %v2971 = vpop.f32.mrb[0].mxu0
  %2972 = vmatprep.mubr.f32.mxu0 0.0
  %2973 = vmatmul.mubr.f32.gmra.mrb[0].mxu0 %v2775
  %v2974 = vpop.f32.mrb[0].mxu0
  %v2975 = vadd.f32 0.0, %v2974
  %v2976 = vpop.f32.mrb[0].mxu0
  %2977 = vmatprep.mubr.f32.mxu0 0.0
  %2978 = vmatmul.mubr.f32.gmra.mrb[0].mxu0 %v2778
  %v2979 = vpop.f32.mrb[0].mxu0
  %v2980 = vadd.f32 0.0, %v2979
  %v2981 = vpop.f32.mrb[0].mxu0
  %2982 = vmatprep.mubr.f32.mxu0 0.0
  %2983 = vmatmul.mubr.f32.gmra.mrb[0].mxu0 %v2781
  %v2984 = vpop.f32.mrb[0].mxu0
  %v2985 = vadd.f32 0.0, %v2984
  %v2986 = vpop.f32.mrb[0].mxu0
  %2987 = vdwg.mxu0
  %2989 = vset.pattern.permute.xlu0 0
  %2990 = vperm.xlu0 %2989, %v2850
  %v2991 = vpop.permute.xlu0 %2990
  %2994 = vset.pattern.permute.xlu0 0
  %2995 = vperm.xlu0 %2994, %v2855
  %v2996 = vpop.permute.xlu0 %2995
  %2999 = vset.pattern.permute.xlu0 0
  %3000 = vperm.xlu0 %2999, %v2860
  %v3001 = vpop.permute.xlu0 %3000
  %3004 = vset.pattern.permute.xlu0 0
  %3005 = vperm.xlu0 %3004, %v2865
  %v3006 = vpop.permute.xlu0 %3005
  %3009 = vset.pattern.permute.xlu0 0
  %3010 = vperm.xlu0 %3009, %v2870
  %v3011 = vpop.permute.xlu0 %3010
  %3014 = vset.pattern.permute.xlu0 0
  %3015 = vperm.xlu0 %3014, %v2875
  %v3016 = vpop.permute.xlu0 %3015
  %3019 = vset.pattern.permute.xlu0 0
  %3020 = vperm.xlu0 %3019, %v2880
  %v3021 = vpop.permute.xlu0 %3020
  %3024 = vset.pattern.permute.xlu0 0
  %3025 = vperm.xlu0 %3024, %v2885
  %v3026 = vpop.permute.xlu0 %3025
  %3029 = vset.pattern.permute.xlu0 0
  %3030 = vperm.xlu0 %3029, %v2890
  %v3031 = vpop.permute.xlu0 %3030
  %3034 = vset.pattern.permute.xlu0 0
  %3035 = vperm.xlu0 %3034, %v2895
  %v3036 = vpop.permute.xlu0 %3035
  %3039 = vset.pattern.permute.xlu0 0
  %3040 = vperm.xlu0 %3039, %v2900
  %v3041 = vpop.permute.xlu0 %3040
  %3044 = vset.pattern.permute.xlu0 0
  %3045 = vperm.xlu0 %3044, %v2905
  %v3046 = vpop.permute.xlu0 %3045
  %3049 = vset.pattern.permute.xlu0 0
  %3050 = vperm.xlu0 %3049, %v2910
  %v3051 = vpop.permute.xlu0 %3050
  %3054 = vset.pattern.permute.xlu0 0
  %3055 = vperm.xlu0 %3054, %v2915
  %v3056 = vpop.permute.xlu0 %3055
  %3059 = vset.pattern.permute.xlu0 0
  %3060 = vperm.xlu0 %3059, %v2920
  %v3061 = vpop.permute.xlu0 %3060
  %3064 = vset.pattern.permute.xlu0 0
  %3065 = vperm.xlu0 %3064, %v2925
  %v3066 = vpop.permute.xlu0 %3065
  %3069 = vset.pattern.permute.xlu0 0
  %3070 = vperm.xlu0 %3069, %v2930
  %v3071 = vpop.permute.xlu0 %3070
  %3074 = vset.pattern.permute.xlu0 0
  %3075 = vperm.xlu0 %3074, %v2935
  %v3076 = vpop.permute.xlu0 %3075
  %3079 = vset.pattern.permute.xlu0 0
  %3080 = vperm.xlu0 %3079, %v2940
  %v3081 = vpop.permute.xlu0 %3080
  %3084 = vset.pattern.permute.xlu0 0
  %3085 = vperm.xlu0 %3084, %v2945
  %v3086 = vpop.permute.xlu0 %3085
  %3089 = vset.pattern.permute.xlu0 0
  %3090 = vperm.xlu0 %3089, %v2950
  %v3091 = vpop.permute.xlu0 %3090
  %3094 = vset.pattern.permute.xlu0 0
  %3095 = vperm.xlu0 %3094, %v2955
  %v3096 = vpop.permute.xlu0 %3095
  %3099 = vset.pattern.permute.xlu0 0
  %3100 = vperm.xlu0 %3099, %v2960
  %v3101 = vpop.permute.xlu0 %3100
  %3104 = vset.pattern.permute.xlu0 0
  %3105 = vperm.xlu0 %3104, %v2965
  %v3106 = vpop.permute.xlu0 %3105
  %3109 = vset.pattern.permute.xlu0 0
  %3110 = vperm.xlu0 %3109, %v2970
  %v3111 = vpop.permute.xlu0 %3110
  %3114 = vset.pattern.permute.xlu0 0
  %3115 = vperm.xlu0 %3114, %v2975
  %v3116 = vpop.permute.xlu0 %3115
  %3119 = vset.pattern.permute.xlu0 0
  %3120 = vperm.xlu0 %3119, %v2980
  %v3121 = vpop.permute.xlu0 %3120
  %3124 = vset.pattern.permute.xlu0 0
  %3125 = vperm.xlu0 %3124, %v2985
  %v3126 = vpop.permute.xlu0 %3125
  %v3128 = vmul.f32 %v836, %v2991
  %v3129 = vmul.f32 %v841, %v2996
  %v3130 = vmul.f32 %v846, %v3001
  %v3131 = vmul.f32 %v851, %v3006
  %v3132 = vmul.f32 %v856, %v3011
  %v3133 = vmul.f32 %v861, %v3016
  %v3134 = vmul.f32 %v866, %v3021
  %v3135 = vmul.f32 %v871, %v3026
  %v3136 = vmul.f32 %v876, %v3031
  %v3137 = vmul.f32 %v881, %v3036
  %v3138 = vmul.f32 %v886, %v3041
  %v3139 = vmul.f32 %v891, %v3046
  %v3140 = vmul.f32 %v896, %v3051
  %v3141 = vmul.f32 %v901, %v3056
  %v3142 = vmul.f32 %v906, %v3061
  %v3143 = vmul.f32 %v911, %v3066
  %v3144 = vmul.f32 %v916, %v3071
  %v3145 = vmul.f32 %v921, %v3076
  %v3146 = vmul.f32 %v926, %v3081
  %v3147 = vmul.f32 %v931, %v3086
  %v3148 = vmul.f32 %v936, %v3091
  %v3149 = vmul.f32 %v941, %v3096
  %v3150 = vmul.f32 %v946, %v3101
  %v3151 = vmul.f32 %v951, %v3106
  %v3152 = vmul.f32 %v956, %v3111
  %v3153 = vmul.f32 %v961, %v3116
  %v3154 = vmul.f32 %v966, %v3121
  %v3155 = vmul.f32 %v971, %v3126
  %3184 = vrot.lane.b32.xlu0 %v2314, 96
  %v3185 = vpop.permute.xlu0 %3184
  %3186 = vrot.lane.b32.xlu0 %v2319, 96
  %v3187 = vpop.permute.xlu0 %3186
  %3188 = vrot.lane.b32.xlu0 %v2324, 96
  %v3189 = vpop.permute.xlu0 %3188
  %3190 = vrot.lane.b32.xlu0 %v2329, 96
  %v3191 = vpop.permute.xlu0 %3190
  %3192 = vrot.lane.b32.xlu0 %v2334, 96
  %v3193 = vpop.permute.xlu0 %3192
  %3194 = vrot.lane.b32.xlu0 %v2339, 96
  %v3195 = vpop.permute.xlu0 %3194
  %3196 = vrot.lane.b32.xlu0 %v2344, 96
  %v3197 = vpop.permute.xlu0 %3196
  %3198 = vrot.lane.b32.xlu0 %v2349, 96
  %v3199 = vpop.permute.xlu0 %3198
  %3200 = vrot.lane.b32.xlu0 %v2354, 96
  %v3201 = vpop.permute.xlu0 %3200
  %3202 = vrot.lane.b32.xlu0 %v2359, 96
  %v3203 = vpop.permute.xlu0 %3202
  %3204 = vrot.lane.b32.xlu0 %v2364, 96
  %v3205 = vpop.permute.xlu0 %3204
  %3206 = vrot.lane.b32.xlu0 %v2369, 96
  %v3207 = vpop.permute.xlu0 %3206
  %3208 = vrot.lane.b32.xlu0 %v2374, 96
  %v3209 = vpop.permute.xlu0 %3208
  %3210 = vrot.lane.b32.xlu0 %v2379, 96
  %v3211 = vpop.permute.xlu0 %3210
  %3212 = vrot.lane.b32.xlu0 %v2384, 96
  %v3213 = vpop.permute.xlu0 %3212
  %3214 = vrot.lane.b32.xlu0 %v2389, 96
  %v3215 = vpop.permute.xlu0 %3214
  %3216 = vrot.lane.b32.xlu0 %v2394, 96
  %v3217 = vpop.permute.xlu0 %3216
  %3218 = vrot.lane.b32.xlu0 %v2399, 96
  %v3219 = vpop.permute.xlu0 %3218
  %3220 = vrot.lane.b32.xlu0 %v2404, 96
  %v3221 = vpop.permute.xlu0 %3220
  %3222 = vrot.lane.b32.xlu0 %v2409, 96
  %v3223 = vpop.permute.xlu0 %3222
  %3224 = vrot.lane.b32.xlu0 %v2414, 96
  %v3225 = vpop.permute.xlu0 %3224
  %3226 = vrot.lane.b32.xlu0 %v2419, 96
  %v3227 = vpop.permute.xlu0 %3226
  %3228 = vrot.lane.b32.xlu0 %v2424, 96
  %v3229 = vpop.permute.xlu0 %3228
  %3230 = vrot.lane.b32.xlu0 %v2429, 96
  %v3231 = vpop.permute.xlu0 %3230
  %3232 = vrot.lane.b32.xlu0 %v2434, 96
  %v3233 = vpop.permute.xlu0 %3232
  %3234 = vrot.lane.b32.xlu0 %v2439, 96
  %v3235 = vpop.permute.xlu0 %3234
  %3236 = vrot.lane.b32.xlu0 %v2444, 96
  %v3237 = vpop.permute.xlu0 %3236
  %3238 = vrot.lane.b32.xlu0 %v2449, 96
  %v3239 = vpop.permute.xlu0 %3238
  %3296 = vrot.lane.b32.xlu0 %v3128, 32
  %v3297 = vpop.permute.xlu0 %3296
  %3298 = vrot.lane.b32.xlu0 %v3129, 32
  %v3299 = vpop.permute.xlu0 %3298
  %3300 = vrot.lane.b32.xlu0 %v3130, 32
  %v3301 = vpop.permute.xlu0 %3300
  %3302 = vrot.lane.b32.xlu0 %v3131, 32
  %v3303 = vpop.permute.xlu0 %3302
  %3304 = vrot.lane.b32.xlu0 %v3132, 32
  %v3305 = vpop.permute.xlu0 %3304
  %3306 = vrot.lane.b32.xlu0 %v3133, 32
  %v3307 = vpop.permute.xlu0 %3306
  %3308 = vrot.lane.b32.xlu0 %v3134, 32
  %v3309 = vpop.permute.xlu0 %3308
  %3310 = vrot.lane.b32.xlu0 %v3135, 32
  %v3311 = vpop.permute.xlu0 %3310
  %3312 = vrot.lane.b32.xlu0 %v3136, 32
  %v3313 = vpop.permute.xlu0 %3312
  %3314 = vrot.lane.b32.xlu0 %v3137, 32
  %v3315 = vpop.permute.xlu0 %3314
  %3316 = vrot.lane.b32.xlu0 %v3138, 32
  %v3317 = vpop.permute.xlu0 %3316
  %3318 = vrot.lane.b32.xlu0 %v3139, 32
  %v3319 = vpop.permute.xlu0 %3318
  %3320 = vrot.lane.b32.xlu0 %v3140, 32
  %v3321 = vpop.permute.xlu0 %3320
  %3322 = vrot.lane.b32.xlu0 %v3141, 32
  %v3323 = vpop.permute.xlu0 %3322
  %3324 = vrot.lane.b32.xlu0 %v3142, 32
  %v3325 = vpop.permute.xlu0 %3324
  %3326 = vrot.lane.b32.xlu0 %v3143, 32
  %v3327 = vpop.permute.xlu0 %3326
  %3328 = vrot.lane.b32.xlu0 %v3144, 32
  %v3329 = vpop.permute.xlu0 %3328
  %3330 = vrot.lane.b32.xlu0 %v3145, 32
  %v3331 = vpop.permute.xlu0 %3330
  %3332 = vrot.lane.b32.xlu0 %v3146, 32
  %v3333 = vpop.permute.xlu0 %3332
  %3334 = vrot.lane.b32.xlu0 %v3147, 32
  %v3335 = vpop.permute.xlu0 %3334
  %3336 = vrot.lane.b32.xlu0 %v3148, 32
  %v3337 = vpop.permute.xlu0 %3336
  %3338 = vrot.lane.b32.xlu0 %v3149, 32
  %v3339 = vpop.permute.xlu0 %3338
  %3340 = vrot.lane.b32.xlu0 %v3150, 32
  %v3341 = vpop.permute.xlu0 %3340
  %3342 = vrot.lane.b32.xlu0 %v3151, 32
  %v3343 = vpop.permute.xlu0 %3342
  %3344 = vrot.lane.b32.xlu0 %v3152, 32
  %v3345 = vpop.permute.xlu0 %3344
  %3346 = vrot.lane.b32.xlu0 %v3153, 32
  %v3347 = vpop.permute.xlu0 %3346
  %3348 = vrot.lane.b32.xlu0 %v3154, 32
  %v3349 = vpop.permute.xlu0 %3348
  %3350 = vrot.lane.b32.xlu0 %v3155, 32
  %v3351 = vpop.permute.xlu0 %3350
  %v3380 = vsel %vm284, %v3185, %v3297
  %v3381 = vsel %vm284, %v3187, %v3299
  %v3382 = vsel %vm284, %v3189, %v3301
  %v3383 = vsel %vm284, %v3191, %v3303
  %v3384 = vsel %vm284, %v3193, %v3305
  %v3385 = vsel %vm284, %v3195, %v3307
  %v3386 = vsel %vm284, %v3197, %v3309
  %v3387 = vsel %vm284, %v3199, %v3311
  %v3388 = vsel %vm284, %v3201, %v3313
  %v3389 = vsel %vm284, %v3203, %v3315
  %v3390 = vsel %vm284, %v3205, %v3317
  %v3391 = vsel %vm284, %v3207, %v3319
  %v3392 = vsel %vm284, %v3209, %v3321
  %v3393 = vsel %vm284, %v3211, %v3323
  %v3394 = vsel %vm284, %v3213, %v3325
  %v3395 = vsel %vm284, %v3215, %v3327
  %v3396 = vsel %vm284, %v3217, %v3329
  %v3397 = vsel %vm284, %v3219, %v3331
  %v3398 = vsel %vm284, %v3221, %v3333
  %v3399 = vsel %vm284, %v3223, %v3335
  %v3400 = vsel %vm284, %v3225, %v3337
  %v3401 = vsel %vm284, %v3227, %v3339
  %v3402 = vsel %vm284, %v3229, %v3341
  %v3403 = vsel %vm284, %v3231, %v3343
  %v3404 = vsel %vm284, %v3233, %v3345
  %v3405 = vsel %vm284, %v3235, %v3347
  %v3406 = vsel %vm284, %v3237, %v3349
  %v3407 = vsel %vm284, %v3239, %v3351
  %vm3408 = vcmask 785408
  %v3410 = vsel %vm3408, %v120, 0
  %v3413 = vsel %vm3408, %v122, 0
  %v3416 = vsel %vm3408, %v124, 0
  %v3419 = vsel %vm3408, %v126, 0
  %3421 = vmatprep.subr.mxu0 0.0
  %3422 = vmatpush1.msra.mxu0 %v3380
  %3423 = vmatprep.subr.mxu0 0.0
  %3424 = vmatpush1.msra.mxu0 %v3381
  %3425 = vmatprep.subr.mxu0 0.0
  %3426 = vmatpush1.msra.mxu0 %v3382
  %3427 = vmatprep.subr.mxu0 0.0
  %3428 = vmatpush1.msra.mxu0 %v3383
  %3429 = vmatprep.subr.mxu0 0.0
  %3430 = vmatpush1.msra.mxu0 %v3384
  %3431 = vmatprep.subr.mxu0 0.0
  %3432 = vmatpush1.msra.mxu0 %v3385
  %3433 = vmatprep.subr.mxu0 0.0
  %3434 = vmatpush1.msra.mxu0 %v3386
  %3435 = vmatprep.subr.mxu0 0.0
  %3436 = vmatpush1.msra.mxu0 %v3387
  %3437 = vmatprep.subr.mxu0 0.0
  %3438 = vmatpush1.msra.mxu0 %v3388
  %3439 = vmatprep.subr.mxu0 0.0
  %3440 = vmatpush1.msra.mxu0 %v3389
  %3441 = vmatprep.subr.mxu0 0.0
  %3442 = vmatpush1.msra.mxu0 %v3390
  %3443 = vmatprep.subr.mxu0 0.0
  %3444 = vmatpush1.msra.mxu0 %v3391
  %3445 = vmatprep.subr.mxu0 0.0
  %3446 = vmatpush1.msra.mxu0 %v3392
  %3447 = vmatprep.subr.mxu0 0.0
  %3448 = vmatpush1.msra.mxu0 %v3393
  %3449 = vmatprep.subr.mxu0 0.0
  %3450 = vmatpush1.msra.mxu0 %v3394
  %3451 = vmatprep.subr.mxu0 0.0
  %3452 = vmatpush1.msra.mxu0 %v3395
  %3453 = vmatprep.subr.mxu0 0.0
  %3454 = vmatpush1.msra.mxu0 %v3396
  %3455 = vmatprep.subr.mxu0 0.0
  %3456 = vmatpush1.msra.mxu0 %v3397
  %3457 = vmatprep.subr.mxu0 0.0
  %3458 = vmatpush1.msra.mxu0 %v3398
  %3459 = vmatprep.subr.mxu0 0.0
  %3460 = vmatpush1.msra.mxu0 %v3399
  %3461 = vmatprep.subr.mxu0 0.0
  %3462 = vmatpush1.msra.mxu0 %v3400
  %3463 = vmatprep.subr.mxu0 0.0
  %3464 = vmatpush1.msra.mxu0 %v3401
  %3465 = vmatprep.subr.mxu0 0.0
  %3466 = vmatpush1.msra.mxu0 %v3402
  %3467 = vmatprep.subr.mxu0 0.0
  %3468 = vmatpush1.msra.mxu0 %v3403
  %3469 = vmatprep.subr.mxu0 0.0
  %3470 = vmatpush1.msra.mxu0 %v3404
  %3471 = vmatprep.subr.mxu0 0.0
  %3472 = vmatpush1.msra.mxu0 %v3405
  %3473 = vmatprep.subr.mxu0 0.0
  %3474 = vmatpush1.msra.mxu0 %v3406
  %3475 = vmatprep.subr.mxu0 0.0
  %3476 = vmatpush1.msra.mxu0 %v3407
  %3477 = vmatprep.subr.mxu0 0.0
  %3478 = vmatpush1.msra.mxu0 0.0
  %3479 = vmatprep.subr.mxu0 0.0
  %3480 = vmatpush1.msra.mxu0 0.0
  %3481 = vmatprep.subr.mxu0 0.0
  %3482 = vmatpush1.msra.mxu0 0.0
  %3483 = vmatprep.subr.mxu0 0.0
  %3484 = vmatpush1.msra.mxu0 0.0
  %3485 = vmatprep.mubr.f32.mxu0 %v3410
  %3486 = vmatmul.mubr.f32.gmra.mrb[0].mxu0 %v119
  %v3487 = vpop.f32.mrb[0].mxu0
  %v3488 = vadd.f32 0.0, %v3487
  %v3489 = vpop.f32.mrb[0].mxu0
  %3490 = vmatprep.mubr.f32.mxu0 %v3413
  %3491 = vmatmul.mubr.f32.gmra.mrb[0].mxu0 %v121
  %v3492 = vpop.f32.mrb[0].mxu0
  %v3493 = vadd.f32 0.0, %v3492
  %v3494 = vpop.f32.mrb[0].mxu0
  %3495 = vmatprep.mubr.f32.mxu0 %v3416
  %3496 = vmatmul.mubr.f32.gmra.mrb[0].mxu0 %v123
  %v3497 = vpop.f32.mrb[0].mxu0
  %v3498 = vadd.f32 0.0, %v3497
  %v3499 = vpop.f32.mrb[0].mxu0
  %3500 = vmatprep.mubr.f32.mxu0 %v3419
  %3501 = vmatmul.mubr.f32.gmra.mrb[0].mxu0 %v125
  %v3502 = vpop.f32.mrb[0].mxu0
  %v3503 = vadd.f32 0.0, %v3502
  %v3504 = vpop.f32.mrb[0].mxu0
  %3505 = vdwg.mxu0
  %3507 = vset.pattern.permute.xlu0 0
  %3508 = vperm.xlu0 %3507, %v127
  %v3509 = vpop.permute.xlu0 %3508
  %3512 = vset.pattern.permute.xlu0 0
  %3513 = vperm.xlu0 %3512, %v128
  %v3514 = vpop.permute.xlu0 %3513
  %3517 = vset.pattern.permute.xlu0 0
  %3518 = vperm.xlu0 %3517, %v129
  %v3519 = vpop.permute.xlu0 %3518
  %3522 = vset.pattern.permute.xlu0 0
  %3523 = vperm.xlu0 %3522, %v130
  %v3524 = vpop.permute.xlu0 %3523
  %v3526 = vmul.f32 %v3488, %v3509
  %v3527 = vmul.f32 %v3493, %v3514
  %v3528 = vmul.f32 %v3498, %v3519
  %v3529 = vmul.f32 %v3503, %v3524
  %v3530 = vxor.u32 %v659, 2147483648
  %v3531 = vxor.u32 %v665, 2147483648
  %v3532 = vxor.u32 %v671, 2147483648
  %v3533 = vxor.u32 %v677, 2147483648
  %v3534 = vmul.f32 %v3530, 1.442695
  %v3535 = vpow.pop %v3534
  %v3536 = vmul.f32 %v3531, 1.442695
  %v3537 = vpow.pop %v3536
  %v3538 = vmul.f32 %v3532, 1.442695
  %v3539 = vpow.pop %v3538
  %v3540 = vmul.f32 %v3533, 1.442695
  %v3541 = vpow.pop %v3540
  %v3542 = vadd.f32 %v3535, 1.0
  %v3543 = vadd.f32 %v3537, 1.0
  %v3544 = vadd.f32 %v3539, 1.0
  %v3545 = vadd.f32 %v3541, 1.0
  %v3546 = vrcp.pop %v3542
  %v3547 = vmul.f32 1.0, %v3546
  %v3548 = vrcp.pop %v3543
  %v3549 = vmul.f32 1.0, %v3548
  %v3550 = vrcp.pop %v3544
  %v3551 = vmul.f32 1.0, %v3550
  %v3552 = vrcp.pop %v3545
  %v3553 = vmul.f32 1.0, %v3552
  %v3554 = vmul.f32 %v659, %v3547
  %v3555 = vmul.f32 %v665, %v3549
  %v3556 = vmul.f32 %v671, %v3551
  %v3557 = vmul.f32 %v677, %v3553
  %v3558 = vld [vmem:[%s16] sm:$0xff]
  %v3559 = vld [vmem:[%s16 + $0x8] sm:$0xff]
  %v3560 = vld [vmem:[%s16 + $0x10] sm:$0xff]
  %v3561 = vld [vmem:[%s16 + $0x18] sm:$0xff]
  %v3562 = vld [vmem:[%s16 + $0x20] sm:$0xff]
  %v3563 = vld [vmem:[%s16 + $0x28] sm:$0xff]
  %v3564 = vld [vmem:[%s16 + $0x30] sm:$0xff]
  %v3565 = vld [vmem:[%s16 + $0x38] sm:$0xff]
  %v3566 = vld [vmem:[%s17] sm:$0x1]
  %v3568 = vlaneseq
  %v3569 = vshrl.u32 %v3568, 7
  %v3570 = vsub.s32 0, %v3569
  %v3571 = vrot.slane %v3566, %v3570
  %vm3573 = vcmask 523264
  %v3575 = vsel %vm3573, %v3554, 0
  %v3578 = vsel %vm3573, %v3555, 0
  %v3581 = vsel %vm3573, %v3556, 0
  %v3584 = vsel %vm3573, %v3557, 0
  %3586 = vmatprep.subr.mxu0 0.0
  %3587 = vmatpush1.msra.mxu0 %v3558
  %3588 = vmatprep.subr.mxu0 0.0
  %3589 = vmatpush1.msra.mxu0 %v3559
  %3590 = vmatprep.subr.mxu0 0.0
  %3591 = vmatpush1.msra.mxu0 %v3560
  %3592 = vmatprep.subr.mxu0 0.0
  %3593 = vmatpush1.msra.mxu0 %v3561
  %3594 = vmatprep.subr.mxu0 0.0
  %3595 = vmatpush1.msra.mxu0 %v3562
  %3596 = vmatprep.subr.mxu0 0.0
  %3597 = vmatpush1.msra.mxu0 %v3563
  %3598 = vmatprep.subr.mxu0 0.0
  %3599 = vmatpush1.msra.mxu0 %v3564
  %3600 = vmatprep.subr.mxu0 0.0
  %3601 = vmatpush1.msra.mxu0 %v3565
  %3602 = vmatprep.subr.mxu0 0.0
  %3603 = vmatpush1.msra.mxu0 0.0
  %3604 = vmatprep.subr.mxu0 0.0
  %3605 = vmatpush1.msra.mxu0 0.0
  %3606 = vmatprep.subr.mxu0 0.0
  %3607 = vmatpush1.msra.mxu0 0.0
  %3608 = vmatprep.subr.mxu0 0.0
  %3609 = vmatpush1.msra.mxu0 0.0
  %3610 = vmatprep.subr.mxu0 0.0
  %3611 = vmatpush1.msra.mxu0 0.0
  %3612 = vmatprep.subr.mxu0 0.0
  %3613 = vmatpush1.msra.mxu0 0.0
  %3614 = vmatprep.subr.mxu0 0.0
  %3615 = vmatpush1.msra.mxu0 0.0
  %3616 = vmatprep.subr.mxu0 0.0
  %3617 = vmatpush1.msra.mxu0 0.0
  %3618 = vmatprep.subr.mxu0 0.0
  %3619 = vmatpush1.msra.mxu0 0.0
  %3620 = vmatprep.subr.mxu0 0.0
  %3621 = vmatpush1.msra.mxu0 0.0
  %3622 = vmatprep.subr.mxu0 0.0
  %3623 = vmatpush1.msra.mxu0 0.0
  %3624 = vmatprep.subr.mxu0 0.0
  %3625 = vmatpush1.msra.mxu0 0.0
  %3626 = vmatprep.subr.mxu0 0.0
  %3627 = vmatpush1.msra.mxu0 0.0
  %3628 = vmatprep.subr.mxu0 0.0
  %3629 = vmatpush1.msra.mxu0 0.0
  %3630 = vmatprep.subr.mxu0 0.0
  %3631 = vmatpush1.msra.mxu0 0.0
  %3632 = vmatprep.subr.mxu0 0.0
  %3633 = vmatpush1.msra.mxu0 0.0
  %3634 = vmatprep.subr.mxu0 0.0
  %3635 = vmatpush1.msra.mxu0 0.0
  %3636 = vmatprep.subr.mxu0 0.0
  %3637 = vmatpush1.msra.mxu0 0.0
  %3638 = vmatprep.subr.mxu0 0.0
  %3639 = vmatpush1.msra.mxu0 0.0
  %3640 = vmatprep.subr.mxu0 0.0
  %3641 = vmatpush1.msra.mxu0 0.0
  %3642 = vmatprep.subr.mxu0 0.0
  %3643 = vmatpush1.msra.mxu0 0.0
  %3644 = vmatprep.subr.mxu0 0.0
  %3645 = vmatpush1.msra.mxu0 0.0
  %3646 = vmatprep.subr.mxu0 0.0
  %3647 = vmatpush1.msra.mxu0 0.0
  %3648 = vmatprep.subr.mxu0 0.0
  %3649 = vmatpush1.msra.mxu0 0.0
  %3650 = vmatprep.mubr.f32.mxu0 0.0
  %3651 = vmatmul.mubr.f32.gmra.mrb[0].mxu0 %v3575
  %v3652 = vpop.f32.mrb[0].mxu0
  %v3653 = vadd.f32 %v3571, %v3652
  %v3654 = vpop.f32.mrb[0].mxu0
  %3655 = vmatprep.mubr.f32.mxu0 0.0
  %3656 = vmatmul.mubr.f32.gmra.mrb[0].mxu0 %v3578
  %v3657 = vpop.f32.mrb[0].mxu0
  %v3658 = vadd.f32 %v3571, %v3657
  %v3659 = vpop.f32.mrb[0].mxu0
  %3660 = vmatprep.mubr.f32.mxu0 0.0
  %3661 = vmatmul.mubr.f32.gmra.mrb[0].mxu0 %v3581
  %v3662 = vpop.f32.mrb[0].mxu0
  %v3663 = vadd.f32 %v3571, %v3662
  %v3664 = vpop.f32.mrb[0].mxu0
  %3665 = vmatprep.mubr.f32.mxu0 0.0
  %3666 = vmatmul.mubr.f32.gmra.mrb[0].mxu0 %v3584
  %v3667 = vpop.f32.mrb[0].mxu0
  %v3668 = vadd.f32 %v3571, %v3667
  %v3669 = vpop.f32.mrb[0].mxu0
  %3670 = vdwg.mxu0
  %3675 = vrot.lane.b32.xlu0 %v3526, 97
  %v3676 = vpop.permute.xlu0 %3675
  %3677 = vrot.lane.b32.xlu0 %v3527, 97
  %v3678 = vpop.permute.xlu0 %3677
  %3679 = vrot.lane.b32.xlu0 %v3528, 97
  %v3680 = vpop.permute.xlu0 %3679
  %3681 = vrot.lane.b32.xlu0 %v3529, 97
  %v3682 = vpop.permute.xlu0 %3681
  %v3687 = vadd.f32 %v59, %v3676
  %v3688 = vadd.f32 %v60, %v3678
  %v3689 = vadd.f32 %v61, %v3680
  %v3690 = vadd.f32 %v62, %v3682
  %3692 = vset.pattern.permute.xlu0 0
  %3693 = vperm.xlu0 %3692, %v3653
  %v3694 = vpop.permute.xlu0 %3693
  %3697 = vset.pattern.permute.xlu0 0
  %3698 = vperm.xlu0 %3697, %v3658
  %v3699 = vpop.permute.xlu0 %3698
  %3702 = vset.pattern.permute.xlu0 0
  %3703 = vperm.xlu0 %3702, %v3663
  %v3704 = vpop.permute.xlu0 %3703
  %3707 = vset.pattern.permute.xlu0 0
  %3708 = vperm.xlu0 %3707, %v3668
  %v3709 = vpop.permute.xlu0 %3708
  %v3711 = vmul.f32 %v3694, %v59
  %v3712 = vmul.f32 %v3699, %v60
  %v3713 = vmul.f32 %v3704, %v61
  %v3714 = vmul.f32 %v3709, %v62
  %3719 = vrot.lane.b32.xlu0 %v3711, 125
  %v3720 = vpop.permute.xlu0 %3719
  %3721 = vrot.lane.b32.xlu0 %v3712, 125
  %v3722 = vpop.permute.xlu0 %3721
  %3723 = vrot.lane.b32.xlu0 %v3713, 125
  %v3724 = vpop.permute.xlu0 %3723
  %3725 = vrot.lane.b32.xlu0 %v3714, 125
  %v3726 = vpop.permute.xlu0 %3725
  %v3731 = vadd.f32 %v3687, %v3720
  %v3732 = vadd.f32 %v3688, %v3722
  %v3733 = vadd.f32 %v3689, %v3724
  %v3734 = vadd.f32 %v3690, %v3726
  %3735 = vset.pattern.permute.xlu0 1
  %3736 = vperm.xlu0 %3735, %v3653
  %v3737 = vpop.permute.xlu0 %3736
  %3739 = vset.pattern.permute.xlu0 1
  %3740 = vperm.xlu0 %3739, %v3658
  %v3741 = vpop.permute.xlu0 %3740
  %3743 = vset.pattern.permute.xlu0 1
  %3744 = vperm.xlu0 %3743, %v3663
  %v3745 = vpop.permute.xlu0 %3744
  %3747 = vset.pattern.permute.xlu0 1
  %3748 = vperm.xlu0 %3747, %v3668
  %v3749 = vpop.permute.xlu0 %3748
  %v3751 = vmul.f32 %v3737, %v508
  %v3752 = vmul.f32 %v3741, %v513
  %v3753 = vmul.f32 %v3745, %v518
  %v3754 = vmul.f32 %v3749, %v523
  %3759 = vrot.lane.b32.xlu0 %v3751, 1
  %v3760 = vpop.permute.xlu0 %3759
  %3761 = vrot.lane.b32.xlu0 %v3752, 1
  %v3762 = vpop.permute.xlu0 %3761
  %3763 = vrot.lane.b32.xlu0 %v3753, 1
  %v3764 = vpop.permute.xlu0 %3763
  %3765 = vrot.lane.b32.xlu0 %v3754, 1
  %v3766 = vpop.permute.xlu0 %3765
  %v3771 = vadd.f32 %v3731, %v3760
  %v3772 = vadd.f32 %v3732, %v3762
  %v3773 = vadd.f32 %v3733, %v3764
  %v3774 = vadd.f32 %v3734, %v3766
  %v3775 = vadd.f32 %v661, %v3488
  %v3776 = vadd.f32 %v667, %v3493
  %v3777 = vadd.f32 %v673, %v3498
  %v3778 = vadd.f32 %v679, %v3503
  %v3779 = vxor.u32 %v3775, 2147483648
  %v3780 = vxor.u32 %v3776, 2147483648
  %v3781 = vxor.u32 %v3777, 2147483648
  %v3782 = vxor.u32 %v3778, 2147483648
  %v3783 = vmul.f32 %v3779, 1.442695
  %v3784 = vpow.pop %v3783
  %v3785 = vmul.f32 %v3780, 1.442695
  %v3786 = vpow.pop %v3785
  %v3787 = vmul.f32 %v3781, 1.442695
  %v3788 = vpow.pop %v3787
  %v3789 = vmul.f32 %v3782, 1.442695
  %v3790 = vpow.pop %v3789
  %v3791 = vadd.f32 %v3784, 1.0
  %v3792 = vadd.f32 %v3786, 1.0
  %v3793 = vadd.f32 %v3788, 1.0
  %v3794 = vadd.f32 %v3790, 1.0
  %v3795 = vrcp.pop %v3791
  %v3796 = vmul.f32 1.0, %v3795
  %v3797 = vrcp.pop %v3792
  %v3798 = vmul.f32 1.0, %v3797
  %v3799 = vrcp.pop %v3793
  %v3800 = vmul.f32 1.0, %v3799
  %v3801 = vrcp.pop %v3794
  %v3802 = vmul.f32 1.0, %v3801
  %v3803 = vmul.f32 %v3775, %v3796
  %v3804 = vmul.f32 %v3776, %v3798
  %v3805 = vmul.f32 %v3777, %v3800
  %v3806 = vmul.f32 %v3778, %v3802
  %v3807 = vld [vmem:[%s15] sm:$0x1]
  %v3809 = vlaneseq
  %v3810 = vshrl.u32 %v3809, 7
  %v3811 = vsub.s32 0, %v3810
  %v3812 = vrot.slane %v3807, %v3811
  %v3815 = vsel %vm284, %v3803, 0
  %v3818 = vsel %vm284, %v3804, 0
  %v3821 = vsel %vm284, %v3805, 0
  %v3824 = vsel %vm284, %v3806, 0
  %3826 = vmatprep.subr.mxu0 0.0
  %3827 = vmatpush1.msra.mxu0 %v2679
  %3828 = vmatprep.subr.mxu0 0.0
  %3829 = vmatpush1.msra.mxu0 %v2680
  %3830 = vmatprep.subr.mxu0 0.0
  %3831 = vmatpush1.msra.mxu0 %v2681
  %3832 = vmatprep.subr.mxu0 0.0
  %3833 = vmatpush1.msra.mxu0 %v2682
  %3834 = vmatprep.subr.mxu0 0.0
  %3835 = vmatpush1.msra.mxu0 0.0
  %3836 = vmatprep.subr.mxu0 0.0
  %3837 = vmatpush1.msra.mxu0 0.0
  %3838 = vmatprep.subr.mxu0 0.0
  %3839 = vmatpush1.msra.mxu0 0.0
  %3840 = vmatprep.subr.mxu0 0.0
  %3841 = vmatpush1.msra.mxu0 0.0
  %3842 = vmatprep.subr.mxu0 0.0
  %3843 = vmatpush1.msra.mxu0 0.0
  %3844 = vmatprep.subr.mxu0 0.0
  %3845 = vmatpush1.msra.mxu0 0.0
  %3846 = vmatprep.subr.mxu0 0.0
  %3847 = vmatpush1.msra.mxu0 0.0
  %3848 = vmatprep.subr.mxu0 0.0
  %3849 = vmatpush1.msra.mxu0 0.0
  %3850 = vmatprep.subr.mxu0 0.0
  %3851 = vmatpush1.msra.mxu0 0.0
  %3852 = vmatprep.subr.mxu0 0.0
  %3853 = vmatpush1.msra.mxu0 0.0
  %3854 = vmatprep.subr.mxu0 0.0
  %3855 = vmatpush1.msra.mxu0 0.0
  %3856 = vmatprep.subr.mxu0 0.0
  %3857 = vmatpush1.msra.mxu0 0.0
  %3858 = vmatprep.subr.mxu0 0.0
  %3859 = vmatpush1.msra.mxu0 0.0
  %3860 = vmatprep.subr.mxu0 0.0
  %3861 = vmatpush1.msra.mxu0 0.0
  %3862 = vmatprep.subr.mxu0 0.0
  %3863 = vmatpush1.msra.mxu0 0.0
  %3864 = vmatprep.subr.mxu0 0.0
  %3865 = vmatpush1.msra.mxu0 0.0
  %3866 = vmatprep.subr.mxu0 0.0
  %3867 = vmatpush1.msra.mxu0 0.0
  %3868 = vmatprep.subr.mxu0 0.0
  %3869 = vmatpush1.msra.mxu0 0.0
  %3870 = vmatprep.subr.mxu0 0.0
  %3871 = vmatpush1.msra.mxu0 0.0
  %3872 = vmatprep.subr.mxu0 0.0
  %3873 = vmatpush1.msra.mxu0 0.0
  %3874 = vmatprep.subr.mxu0 0.0
  %3875 = vmatpush1.msra.mxu0 0.0
  %3876 = vmatprep.subr.mxu0 0.0
  %3877 = vmatpush1.msra.mxu0 0.0
  %3878 = vmatprep.subr.mxu0 0.0
  %3879 = vmatpush1.msra.mxu0 0.0
  %3880 = vmatprep.subr.mxu0 0.0
  %3881 = vmatpush1.msra.mxu0 0.0
  %3882 = vmatprep.subr.mxu0 0.0
  %3883 = vmatpush1.msra.mxu0 0.0
  %3884 = vmatprep.subr.mxu0 0.0
  %3885 = vmatpush1.msra.mxu0 0.0
  %3886 = vmatprep.subr.mxu0 0.0
  %3887 = vmatpush1.msra.mxu0 0.0
  %3888 = vmatprep.subr.mxu0 0.0
  %3889 = vmatpush1.msra.mxu0 0.0
  %3890 = vmatprep.mubr.f32.mxu0 0.0
  %3891 = vmatmul.mubr.f32.gmra.mrb[0].mxu0 %v3815
  %v3892 = vpop.f32.mrb[0].mxu0
  %v3893 = vadd.f32 %v3812, %v3892
  %v3894 = vpop.f32.mrb[0].mxu0
  %3895 = vmatprep.mubr.f32.mxu0 0.0
  %3896 = vmatmul.mubr.f32.gmra.mrb[0].mxu0 %v3818
  %v3897 = vpop.f32.mrb[0].mxu0
  %v3898 = vadd.f32 %v3812, %v3897
  %v3899 = vpop.f32.mrb[0].mxu0
  %3900 = vmatprep.mubr.f32.mxu0 0.0
  %3901 = vmatmul.mubr.f32.gmra.mrb[0].mxu0 %v3821
  %v3902 = vpop.f32.mrb[0].mxu0
  %v3903 = vadd.f32 %v3812, %v3902
  %v3904 = vpop.f32.mrb[0].mxu0
  %3905 = vmatprep.mubr.f32.mxu0 0.0
  %3906 = vmatmul.mubr.f32.gmra.mrb[0].mxu0 %v3824
  %v3907 = vpop.f32.mrb[0].mxu0
  %v3908 = vadd.f32 %v3812, %v3907
  %v3909 = vpop.f32.mrb[0].mxu0
  %3910 = vdwg.mxu0
  %s3911 = scalar_lea.vmem %s9, 64
  %v3912 = vld [vmem:[%s3911] sm:$0xff]
  %v3913 = vld [vmem:[%s3911 + $0x8] sm:$0xff]
  %v3914 = vld [vmem:[%s3911 + $0x10] sm:$0xff]
  %v3915 = vld [vmem:[%s3911 + $0x18] sm:$0xff]
  %v3916 = vld [vmem:[%s3911 + $0x20] sm:$0xff]
  %v3917 = vld [vmem:[%s3911 + $0x28] sm:$0xff]
  %v3918 = vld [vmem:[%s3911 + $0x30] sm:$0xff]
  %v3919 = vld [vmem:[%s3911 + $0x38] sm:$0xff]
  %s3920 = scalar_lea.vmem %s10, 2
  %v3921 = vld [vmem:[%s3920] sm:$0x3]
  %v3923 = vlaneseq
  %v3924 = vshrl.u32 %v3923, 7
  %v3925 = vsub.s32 0, %v3924
  %v3926 = vrot.slane %v3921, %v3925
  %v3927 = vlaneseq
  %v3928 = vshrl.u32 %v3927, 7
  %v3929 = vsub.s32 1, %v3928
  %v3930 = vrot.slane %v3921, %v3929
  %v3934 = vsel %vm284, %v3893, 0
  %v3937 = vsel %vm284, %v3898, 0
  %v3940 = vsel %vm284, %v3903, 0
  %v3943 = vsel %vm284, %v3908, 0
  %3945 = vmatprep.subr.mxu0 %v3913
  %3946 = vmatpush1.msra.mxu0 %v3912
  %3947 = vmatprep.subr.mxu0 %v3915
  %3948 = vmatpush1.msra.mxu0 %v3914
  %3949 = vmatprep.subr.mxu0 %v3917
  %3950 = vmatpush1.msra.mxu0 %v3916
  %3951 = vmatprep.subr.mxu0 %v3919
  %3952 = vmatpush1.msra.mxu0 %v3918
  %3953 = vmatprep.subr.mxu0 0.0
  %3954 = vmatpush1.msra.mxu0 0.0
  %3955 = vmatprep.subr.mxu0 0.0
  %3956 = vmatpush1.msra.mxu0 0.0
  %3957 = vmatprep.subr.mxu0 0.0
  %3958 = vmatpush1.msra.mxu0 0.0
  %3959 = vmatprep.subr.mxu0 0.0
  %3960 = vmatpush1.msra.mxu0 0.0
  %3961 = vmatprep.subr.mxu0 0.0
  %3962 = vmatpush1.msra.mxu0 0.0
  %3963 = vmatprep.subr.mxu0 0.0
  %3964 = vmatpush1.msra.mxu0 0.0
  %3965 = vmatprep.subr.mxu0 0.0
  %3966 = vmatpush1.msra.mxu0 0.0
  %3967 = vmatprep.subr.mxu0 0.0
  %3968 = vmatpush1.msra.mxu0 0.0
  %3969 = vmatprep.subr.mxu0 0.0
  %3970 = vmatpush1.msra.mxu0 0.0
  %3971 = vmatprep.subr.mxu0 0.0
  %3972 = vmatpush1.msra.mxu0 0.0
  %3973 = vmatprep.subr.mxu0 0.0
  %3974 = vmatpush1.msra.mxu0 0.0
  %3975 = vmatprep.subr.mxu0 0.0
  %3976 = vmatpush1.msra.mxu0 0.0
  %3977 = vmatprep.subr.mxu0 0.0
  %3978 = vmatpush1.msra.mxu0 0.0
  %3979 = vmatprep.subr.mxu0 0.0
  %3980 = vmatpush1.msra.mxu0 0.0
  %3981 = vmatprep.subr.mxu0 0.0
  %3982 = vmatpush1.msra.mxu0 0.0
  %3983 = vmatprep.subr.mxu0 0.0
  %3984 = vmatpush1.msra.mxu0 0.0
  %3985 = vmatprep.subr.mxu0 0.0
  %3986 = vmatpush1.msra.mxu0 0.0
  %3987 = vmatprep.subr.mxu0 0.0
  %3988 = vmatpush1.msra.mxu0 0.0
  %3989 = vmatprep.subr.mxu0 0.0
  %3990 = vmatpush1.msra.mxu0 0.0
  %3991 = vmatprep.subr.mxu0 0.0
  %3992 = vmatpush1.msra.mxu0 0.0
  %3993 = vmatprep.subr.mxu0 0.0
  %3994 = vmatpush1.msra.mxu0 0.0
  %3995 = vmatprep.subr.mxu0 0.0
  %3996 = vmatpush1.msra.mxu0 0.0
  %3997 = vmatprep.subr.mxu0 0.0
  %3998 = vmatpush1.msra.mxu0 0.0
  %3999 = vmatprep.subr.mxu0 0.0
  %4000 = vmatpush1.msra.mxu0 0.0
  %4001 = vmatprep.subr.mxu0 0.0
  %4002 = vmatpush1.msra.mxu0 0.0
  %4003 = vmatprep.subr.mxu0 0.0
  %4004 = vmatpush1.msra.mxu0 0.0
  %4005 = vmatprep.subr.mxu0 0.0
  %4006 = vmatpush1.msra.mxu0 0.0
  %4007 = vmatprep.subr.mxu0 0.0
  %4008 = vmatpush1.msra.mxu0 0.0
  %4009 = vmatprep.mubr.f32.mxu0 0.0
  %4010 = vmatmul.mubr.f32.gmra.mrb[0].mxu0 %v3934
  %v4011 = vpop.f32.mrb[0].mxu0
  %v4012 = vadd.f32 %v3926, %v4011
  %v4013 = vpop.f32.mrb[0].mxu0
  %v4014 = vadd.f32 %v3930, %v4013
  %4015 = vmatprep.mubr.f32.mxu0 0.0
  %4016 = vmatmul.mubr.f32.gmra.mrb[0].mxu0 %v3937
  %v4017 = vpop.f32.mrb[0].mxu0
  %v4018 = vadd.f32 %v3926, %v4017
  %v4019 = vpop.f32.mrb[0].mxu0
  %v4020 = vadd.f32 %v3930, %v4019
  %4021 = vmatprep.mubr.f32.mxu0 0.0
  %4022 = vmatmul.mubr.f32.gmra.mrb[0].mxu0 %v3940
  %v4023 = vpop.f32.mrb[0].mxu0
  %v4024 = vadd.f32 %v3926, %v4023
  %v4025 = vpop.f32.mrb[0].mxu0
  %v4026 = vadd.f32 %v3930, %v4025
  %4027 = vmatprep.mubr.f32.mxu0 0.0
  %4028 = vmatmul.mubr.f32.gmra.mrb[0].mxu0 %v3943
  %v4029 = vpop.f32.mrb[0].mxu0
  %v4030 = vadd.f32 %v3926, %v4029
  %v4031 = vpop.f32.mrb[0].mxu0
  %v4032 = vadd.f32 %v3930, %v4031
  %4033 = vdwg.mxu0
  %4038 = vrot.lane.b32.xlu0 %v3771, 127
  %v4039 = vpop.permute.xlu0 %4038
  %4040 = vrot.lane.b32.xlu0 %v3772, 127
  %v4041 = vpop.permute.xlu0 %4040
  %4042 = vrot.lane.b32.xlu0 %v3773, 127
  %v4043 = vpop.permute.xlu0 %4042
  %4044 = vrot.lane.b32.xlu0 %v3774, 127
  %v4045 = vpop.permute.xlu0 %4044
  %4050 = vmatprep.subr.mxu0 0.0
  %4051 = vmatpush1.msra.mxu0 %v4039
  %4052 = vmatprep.subr.mxu0 0.0
  %4053 = vmatpush1.msra.mxu0 %v4041
  %4054 = vmatprep.subr.mxu0 0.0
  %4055 = vmatpush1.msra.mxu0 %v4043
  %4056 = vmatprep.subr.mxu0 0.0
  %4057 = vmatpush1.msra.mxu0 %v4045
  %4058 = vmatprep.subr.mxu0 0.0
  %4059 = vmatpush1.msra.mxu0 0.0
  %4060 = vmatprep.subr.mxu0 0.0
  %4061 = vmatpush1.msra.mxu0 0.0
  %4062 = vmatprep.subr.mxu0 0.0
  %4063 = vmatpush1.msra.mxu0 0.0
  %4064 = vmatprep.subr.mxu0 0.0
  %4065 = vmatpush1.msra.mxu0 0.0
  %4066 = vmatprep.subr.mxu0 0.0
  %4067 = vmatpush1.msra.mxu0 0.0
  %4068 = vmatprep.subr.mxu0 0.0
  %4069 = vmatpush1.msra.mxu0 0.0
  %4070 = vmatprep.subr.mxu0 0.0
  %4071 = vmatpush1.msra.mxu0 0.0
  %4072 = vmatprep.subr.mxu0 0.0
  %4073 = vmatpush1.msra.mxu0 0.0
  %4074 = vmatprep.subr.mxu0 0.0
  %4075 = vmatpush1.msra.mxu0 0.0
  %4076 = vmatprep.subr.mxu0 0.0
  %4077 = vmatpush1.msra.mxu0 0.0
  %4078 = vmatprep.subr.mxu0 0.0
  %4079 = vmatpush1.msra.mxu0 0.0
  %4080 = vmatprep.subr.mxu0 0.0
  %4081 = vmatpush1.msra.mxu0 0.0
  %4082 = vmatprep.subr.mxu0 0.0
  %4083 = vmatpush1.msra.mxu0 0.0
  %4084 = vmatprep.subr.mxu0 0.0
  %4085 = vmatpush1.msra.mxu0 0.0
  %4086 = vmatprep.subr.mxu0 0.0
  %4087 = vmatpush1.msra.mxu0 0.0
  %4088 = vmatprep.subr.mxu0 0.0
  %4089 = vmatpush1.msra.mxu0 0.0
  %4090 = vmatprep.subr.mxu0 0.0
  %4091 = vmatpush1.msra.mxu0 0.0
  %4092 = vmatprep.subr.mxu0 0.0
  %4093 = vmatpush1.msra.mxu0 0.0
  %4094 = vmatprep.subr.mxu0 0.0
  %4095 = vmatpush1.msra.mxu0 0.0
  %4096 = vmatprep.subr.mxu0 0.0
  %4097 = vmatpush1.msra.mxu0 0.0
  %4098 = vmatprep.subr.mxu0 0.0
  %4099 = vmatpush1.msra.mxu0 0.0
  %4100 = vmatprep.subr.mxu0 0.0
  %4101 = vmatpush1.msra.mxu0 0.0
  %4102 = vmatprep.subr.mxu0 0.0
  %4103 = vmatpush1.msra.mxu0 0.0
  %4104 = vmatprep.subr.mxu0 0.0
  %4105 = vmatpush1.msra.mxu0 0.0
  %4106 = vmatprep.subr.mxu0 0.0
  %4107 = vmatpush1.msra.mxu0 0.0
  %4108 = vmatprep.subr.mxu0 0.0
  %4109 = vmatpush1.msra.mxu0 0.0
  %4110 = vmatprep.subr.mxu0 0.0
  %4111 = vmatpush1.msra.mxu0 0.0
  %4112 = vmatprep.subr.mxu0 0.0
  %4113 = vmatpush1.msra.mxu0 0.0
  %4114 = vmatprep.mubr.f32.mxu0 0.0
  %4115 = vmatmul.mubr.f32.gmra.mrb[0].mxu0 %v686
  %v4116 = vpop.f32.mrb[0].mxu0
  %v4117 = vadd.f32 0.0, %v4116
  %v4118 = vpop.f32.mrb[0].mxu0
  %4119 = vmatprep.mubr.f32.mxu0 0.0
  %4120 = vmatmul.mubr.f32.gmra.mrb[0].mxu0 %v689
  %v4121 = vpop.f32.mrb[0].mxu0
  %v4122 = vadd.f32 0.0, %v4121
  %v4123 = vpop.f32.mrb[0].mxu0
  %4124 = vmatprep.mubr.f32.mxu0 0.0
  %4125 = vmatmul.mubr.f32.gmra.mrb[0].mxu0 %v692
  %v4126 = vpop.f32.mrb[0].mxu0
  %v4127 = vadd.f32 0.0, %v4126
  %v4128 = vpop.f32.mrb[0].mxu0
  %4129 = vmatprep.mubr.f32.mxu0 0.0
  %4130 = vmatmul.mubr.f32.gmra.mrb[0].mxu0 %v695
  %v4131 = vpop.f32.mrb[0].mxu0
  %v4132 = vadd.f32 0.0, %v4131
  %v4133 = vpop.f32.mrb[0].mxu0
  %4134 = vmatprep.mubr.f32.mxu0 0.0
  %4135 = vmatmul.mubr.f32.gmra.mrb[0].mxu0 %v698
  %v4136 = vpop.f32.mrb[0].mxu0
  %v4137 = vadd.f32 0.0, %v4136
  %v4138 = vpop.f32.mrb[0].mxu0
  %4139 = vmatprep.mubr.f32.mxu0 0.0
  %4140 = vmatmul.mubr.f32.gmra.mrb[0].mxu0 %v701
  %v4141 = vpop.f32.mrb[0].mxu0
  %v4142 = vadd.f32 0.0, %v4141
  %v4143 = vpop.f32.mrb[0].mxu0
  %4144 = vmatprep.mubr.f32.mxu0 0.0
  %4145 = vmatmul.mubr.f32.gmra.mrb[0].mxu0 %v704
  %v4146 = vpop.f32.mrb[0].mxu0
  %v4147 = vadd.f32 0.0, %v4146
  %v4148 = vpop.f32.mrb[0].mxu0
  %4149 = vmatprep.mubr.f32.mxu0 0.0
  %4150 = vmatmul.mubr.f32.gmra.mrb[0].mxu0 %v707
  %v4151 = vpop.f32.mrb[0].mxu0
  %v4152 = vadd.f32 0.0, %v4151
  %v4153 = vpop.f32.mrb[0].mxu0
  %4154 = vmatprep.mubr.f32.mxu0 0.0
  %4155 = vmatmul.mubr.f32.gmra.mrb[0].mxu0 %v710
  %v4156 = vpop.f32.mrb[0].mxu0
  %v4157 = vadd.f32 0.0, %v4156
  %v4158 = vpop.f32.mrb[0].mxu0
  %4159 = vmatprep.mubr.f32.mxu0 0.0
  %4160 = vmatmul.mubr.f32.gmra.mrb[0].mxu0 %v713
  %v4161 = vpop.f32.mrb[0].mxu0
  %v4162 = vadd.f32 0.0, %v4161
  %v4163 = vpop.f32.mrb[0].mxu0
  %4164 = vmatprep.mubr.f32.mxu0 0.0
  %4165 = vmatmul.mubr.f32.gmra.mrb[0].mxu0 %v716
  %v4166 = vpop.f32.mrb[0].mxu0
  %v4167 = vadd.f32 0.0, %v4166
  %v4168 = vpop.f32.mrb[0].mxu0
  %4169 = vmatprep.mubr.f32.mxu0 0.0
  %4170 = vmatmul.mubr.f32.gmra.mrb[0].mxu0 %v719
  %v4171 = vpop.f32.mrb[0].mxu0
  %v4172 = vadd.f32 0.0, %v4171
  %v4173 = vpop.f32.mrb[0].mxu0
  %4174 = vmatprep.mubr.f32.mxu0 0.0
  %4175 = vmatmul.mubr.f32.gmra.mrb[0].mxu0 %v722
  %v4176 = vpop.f32.mrb[0].mxu0
  %v4177 = vadd.f32 0.0, %v4176
  %v4178 = vpop.f32.mrb[0].mxu0
  %4179 = vmatprep.mubr.f32.mxu0 0.0
  %4180 = vmatmul.mubr.f32.gmra.mrb[0].mxu0 %v725
  %v4181 = vpop.f32.mrb[0].mxu0
  %v4182 = vadd.f32 0.0, %v4181
  %v4183 = vpop.f32.mrb[0].mxu0
  %4184 = vmatprep.mubr.f32.mxu0 0.0
  %4185 = vmatmul.mubr.f32.gmra.mrb[0].mxu0 %v728
  %v4186 = vpop.f32.mrb[0].mxu0
  %v4187 = vadd.f32 0.0, %v4186
  %v4188 = vpop.f32.mrb[0].mxu0
  %4189 = vmatprep.mubr.f32.mxu0 0.0
  %4190 = vmatmul.mubr.f32.gmra.mrb[0].mxu0 %v731
  %v4191 = vpop.f32.mrb[0].mxu0
  %v4192 = vadd.f32 0.0, %v4191
  %v4193 = vpop.f32.mrb[0].mxu0
  %4194 = vmatprep.mubr.f32.mxu0 0.0
  %4195 = vmatmul.mubr.f32.gmra.mrb[0].mxu0 %v734
  %v4196 = vpop.f32.mrb[0].mxu0
  %v4197 = vadd.f32 0.0, %v4196
  %v4198 = vpop.f32.mrb[0].mxu0
  %4199 = vmatprep.mubr.f32.mxu0 0.0
  %4200 = vmatmul.mubr.f32.gmra.mrb[0].mxu0 %v737
  %v4201 = vpop.f32.mrb[0].mxu0
  %v4202 = vadd.f32 0.0, %v4201
  %v4203 = vpop.f32.mrb[0].mxu0
  %4204 = vmatprep.mubr.f32.mxu0 0.0
  %4205 = vmatmul.mubr.f32.gmra.mrb[0].mxu0 %v740
  %v4206 = vpop.f32.mrb[0].mxu0
  %v4207 = vadd.f32 0.0, %v4206
  %v4208 = vpop.f32.mrb[0].mxu0
  %4209 = vmatprep.mubr.f32.mxu0 0.0
  %4210 = vmatmul.mubr.f32.gmra.mrb[0].mxu0 %v743
  %v4211 = vpop.f32.mrb[0].mxu0
  %v4212 = vadd.f32 0.0, %v4211
  %v4213 = vpop.f32.mrb[0].mxu0
  %4214 = vmatprep.mubr.f32.mxu0 0.0
  %4215 = vmatmul.mubr.f32.gmra.mrb[0].mxu0 %v746
  %v4216 = vpop.f32.mrb[0].mxu0
  %v4217 = vadd.f32 0.0, %v4216
  %v4218 = vpop.f32.mrb[0].mxu0
  %4219 = vmatprep.mubr.f32.mxu0 0.0
  %4220 = vmatmul.mubr.f32.gmra.mrb[0].mxu0 %v749
  %v4221 = vpop.f32.mrb[0].mxu0
  %v4222 = vadd.f32 0.0, %v4221
  %v4223 = vpop.f32.mrb[0].mxu0
  %4224 = vmatprep.mubr.f32.mxu0 0.0
  %4225 = vmatmul.mubr.f32.gmra.mrb[0].mxu0 %v752
  %v4226 = vpop.f32.mrb[0].mxu0
  %v4227 = vadd.f32 0.0, %v4226
  %v4228 = vpop.f32.mrb[0].mxu0
  %4229 = vmatprep.mubr.f32.mxu0 0.0
  %4230 = vmatmul.mubr.f32.gmra.mrb[0].mxu0 %v755
  %v4231 = vpop.f32.mrb[0].mxu0
  %v4232 = vadd.f32 0.0, %v4231
  %v4233 = vpop.f32.mrb[0].mxu0
  %4234 = vmatprep.mubr.f32.mxu0 0.0
  %4235 = vmatmul.mubr.f32.gmra.mrb[0].mxu0 %v758
  %v4236 = vpop.f32.mrb[0].mxu0
  %v4237 = vadd.f32 0.0, %v4236
  %v4238 = vpop.f32.mrb[0].mxu0
  %4239 = vmatprep.mubr.f32.mxu0 0.0
  %4240 = vmatmul.mubr.f32.gmra.mrb[0].mxu0 %v761
  %v4241 = vpop.f32.mrb[0].mxu0
  %v4242 = vadd.f32 0.0, %v4241
  %v4243 = vpop.f32.mrb[0].mxu0
  %4244 = vmatprep.mubr.f32.mxu0 0.0
  %4245 = vmatmul.mubr.f32.gmra.mrb[0].mxu0 %v764
  %v4246 = vpop.f32.mrb[0].mxu0
  %v4247 = vadd.f32 0.0, %v4246
  %v4248 = vpop.f32.mrb[0].mxu0
  %4249 = vmatprep.mubr.f32.mxu0 0.0
  %4250 = vmatmul.mubr.f32.gmra.mrb[0].mxu0 %v767
  %v4251 = vpop.f32.mrb[0].mxu0
  %v4252 = vadd.f32 0.0, %v4251
  %v4253 = vpop.f32.mrb[0].mxu0
  %4254 = vdwg.mxu0
  %v4255 = vmul.f32 %v4117, %v4117
  %v4256 = vmul.f32 %v4122, %v4122
  %v4257 = vmul.f32 %v4127, %v4127
  %v4258 = vmul.f32 %v4132, %v4132
  %v4259 = vmul.f32 %v4137, %v4137
  %v4260 = vmul.f32 %v4142, %v4142
  %v4261 = vmul.f32 %v4147, %v4147
  %v4262 = vmul.f32 %v4152, %v4152
  %v4263 = vmul.f32 %v4157, %v4157
  %v4264 = vmul.f32 %v4162, %v4162
  %v4265 = vmul.f32 %v4167, %v4167
  %v4266 = vmul.f32 %v4172, %v4172
  %v4267 = vmul.f32 %v4177, %v4177
  %v4268 = vmul.f32 %v4182, %v4182
  %v4269 = vmul.f32 %v4187, %v4187
  %v4270 = vmul.f32 %v4192, %v4192
  %v4271 = vmul.f32 %v4197, %v4197
  %v4272 = vmul.f32 %v4202, %v4202
  %v4273 = vmul.f32 %v4207, %v4207
  %v4274 = vmul.f32 %v4212, %v4212
  %v4275 = vmul.f32 %v4217, %v4217
  %v4276 = vmul.f32 %v4222, %v4222
  %v4277 = vmul.f32 %v4227, %v4227
  %v4278 = vmul.f32 %v4232, %v4232
  %v4279 = vmul.f32 %v4237, %v4237
  %v4280 = vmul.f32 %v4242, %v4242
  %v4281 = vmul.f32 %v4247, %v4247
  %v4282 = vmul.f32 %v4252, %v4252
  %v4283 = vsel %vm1002, %v4255, 0.0
  %4284 = vadd.xlane.f32.xlu0 %v4283
  %v4285 = vpop.xlane.xlu0 %4284
  %v4286 = vsel %vm1002, %v4256, 0.0
  %4287 = vadd.xlane.f32.xlu0 %v4286
  %v4288 = vpop.xlane.xlu0 %4287
  %v4289 = vsel %vm1002, %v4257, 0.0
  %4290 = vadd.xlane.f32.xlu0 %v4289
  %v4291 = vpop.xlane.xlu0 %4290
  %v4292 = vsel %vm1002, %v4258, 0.0
  %4293 = vadd.xlane.f32.xlu0 %v4292
  %v4294 = vpop.xlane.xlu0 %4293
  %v4295 = vsel %vm1002, %v4259, 0.0
  %4296 = vadd.xlane.f32.xlu0 %v4295
  %v4297 = vpop.xlane.xlu0 %4296
  %v4298 = vsel %vm1002, %v4260, 0.0
  %4299 = vadd.xlane.f32.xlu0 %v4298
  %v4300 = vpop.xlane.xlu0 %4299
  %v4301 = vsel %vm1002, %v4261, 0.0
  %4302 = vadd.xlane.f32.xlu0 %v4301
  %v4303 = vpop.xlane.xlu0 %4302
  %v4304 = vsel %vm1002, %v4262, 0.0
  %4305 = vadd.xlane.f32.xlu0 %v4304
  %v4306 = vpop.xlane.xlu0 %4305
  %v4307 = vsel %vm1002, %v4263, 0.0
  %4308 = vadd.xlane.f32.xlu0 %v4307
  %v4309 = vpop.xlane.xlu0 %4308
  %v4310 = vsel %vm1002, %v4264, 0.0
  %4311 = vadd.xlane.f32.xlu0 %v4310
  %v4312 = vpop.xlane.xlu0 %4311
  %v4313 = vsel %vm1002, %v4265, 0.0
  %4314 = vadd.xlane.f32.xlu0 %v4313
  %v4315 = vpop.xlane.xlu0 %4314
  %v4316 = vsel %vm1002, %v4266, 0.0
  %4317 = vadd.xlane.f32.xlu0 %v4316
  %v4318 = vpop.xlane.xlu0 %4317
  %v4319 = vsel %vm1002, %v4267, 0.0
  %4320 = vadd.xlane.f32.xlu0 %v4319
  %v4321 = vpop.xlane.xlu0 %4320
  %v4322 = vsel %vm1002, %v4268, 0.0
  %4323 = vadd.xlane.f32.xlu0 %v4322
  %v4324 = vpop.xlane.xlu0 %4323
  %v4325 = vsel %vm1002, %v4269, 0.0
  %4326 = vadd.xlane.f32.xlu0 %v4325
  %v4327 = vpop.xlane.xlu0 %4326
  %v4328 = vsel %vm1002, %v4270, 0.0
  %4329 = vadd.xlane.f32.xlu0 %v4328
  %v4330 = vpop.xlane.xlu0 %4329
  %v4331 = vsel %vm1002, %v4271, 0.0
  %4332 = vadd.xlane.f32.xlu0 %v4331
  %v4333 = vpop.xlane.xlu0 %4332
  %v4334 = vsel %vm1002, %v4272, 0.0
  %4335 = vadd.xlane.f32.xlu0 %v4334
  %v4336 = vpop.xlane.xlu0 %4335
  %v4337 = vsel %vm1002, %v4273, 0.0
  %4338 = vadd.xlane.f32.xlu0 %v4337
  %v4339 = vpop.xlane.xlu0 %4338
  %v4340 = vsel %vm1002, %v4274, 0.0
  %4341 = vadd.xlane.f32.xlu0 %v4340
  %v4342 = vpop.xlane.xlu0 %4341
  %v4343 = vsel %vm1002, %v4275, 0.0
  %4344 = vadd.xlane.f32.xlu0 %v4343
  %v4345 = vpop.xlane.xlu0 %4344
  %v4346 = vsel %vm1002, %v4276, 0.0
  %4347 = vadd.xlane.f32.xlu0 %v4346
  %v4348 = vpop.xlane.xlu0 %4347
  %v4349 = vsel %vm1002, %v4277, 0.0
  %4350 = vadd.xlane.f32.xlu0 %v4349
  %v4351 = vpop.xlane.xlu0 %4350
  %v4352 = vsel %vm1002, %v4278, 0.0
  %4353 = vadd.xlane.f32.xlu0 %v4352
  %v4354 = vpop.xlane.xlu0 %4353
  %v4355 = vsel %vm1002, %v4279, 0.0
  %4356 = vadd.xlane.f32.xlu0 %v4355
  %v4357 = vpop.xlane.xlu0 %4356
  %v4358 = vsel %vm1002, %v4280, 0.0
  %4359 = vadd.xlane.f32.xlu0 %v4358
  %v4360 = vpop.xlane.xlu0 %4359
  %v4361 = vsel %vm1002, %v4281, 0.0
  %4362 = vadd.xlane.f32.xlu0 %v4361
  %v4363 = vpop.xlane.xlu0 %4362
  %v4364 = vsel %vm1002, %v4282, 0.0
  %4365 = vadd.xlane.f32.xlu0 %v4364
  %v4366 = vpop.xlane.xlu0 %4365
  %s4367 = scalar_lea.vmem %s11, 4
  %v4368 = vld [vmem:[%s4367] sm:$0x7]
  %4373 = vrot.lane.b32.xlu0 %v4012, 96
  %v4374 = vpop.permute.xlu0 %4373
  %4375 = vrot.lane.b32.xlu0 %v4018, 96
  %v4376 = vpop.permute.xlu0 %4375
  %4377 = vrot.lane.b32.xlu0 %v4024, 96
  %v4378 = vpop.permute.xlu0 %4377
  %4379 = vrot.lane.b32.xlu0 %v4030, 96
  %v4380 = vpop.permute.xlu0 %4379
  %v4382 = vrot.slane %v4368, 1
  %4383 = vrot.lane.b32.xlu0 %v4382, 64
  %v4384 = vpop.permute.xlu0 %4383
  %v4385 = vlaneseq
  %v4386 = vshrl.u32 %v4385, 7
  %v4387 = vsub.s32 0, %v4386
  %v4388 = vrot.slane %v4368, %v4387
  %v4389 = vmul.f32 %v4285, %v4388
  %v4390 = vmul.f32 %v4288, %v4388
  %v4391 = vmul.f32 %v4291, %v4388
  %v4392 = vmul.f32 %v4294, %v4388
  %v4393 = vmul.f32 %v4297, %v4388
  %v4394 = vmul.f32 %v4300, %v4388
  %v4395 = vmul.f32 %v4303, %v4388
  %v4396 = vmul.f32 %v4306, %v4388
  %v4397 = vmul.f32 %v4309, %v4388
  %v4398 = vmul.f32 %v4312, %v4388
  %v4399 = vmul.f32 %v4315, %v4388
  %v4400 = vmul.f32 %v4318, %v4388
  %v4401 = vmul.f32 %v4321, %v4388
  %v4402 = vmul.f32 %v4324, %v4388
  %v4403 = vmul.f32 %v4327, %v4388
  %v4404 = vmul.f32 %v4330, %v4388
  %v4405 = vmul.f32 %v4333, %v4388
  %v4406 = vmul.f32 %v4336, %v4388
  %v4407 = vmul.f32 %v4339, %v4388
  %v4408 = vmul.f32 %v4342, %v4388
  %v4409 = vmul.f32 %v4345, %v4388
  %v4410 = vmul.f32 %v4348, %v4388
  %v4411 = vmul.f32 %v4351, %v4388
  %v4412 = vmul.f32 %v4354, %v4388
  %v4413 = vmul.f32 %v4357, %v4388
  %v4414 = vmul.f32 %v4360, %v4388
  %v4415 = vmul.f32 %v4363, %v4388
  %v4416 = vmul.f32 %v4366, %v4388
  %4417 = vrot.lane.b32.xlu0 %v4012, 64
  %v4418 = vpop.permute.xlu0 %4417
  %4419 = vrot.lane.b32.xlu0 %v4018, 64
  %v4420 = vpop.permute.xlu0 %4419
  %4421 = vrot.lane.b32.xlu0 %v4024, 64
  %v4422 = vpop.permute.xlu0 %4421
  %4423 = vrot.lane.b32.xlu0 %v4030, 64
  %v4424 = vpop.permute.xlu0 %4423
  %4425 = vrot.lane.b32.xlu0 %v4374, 64
  %v4426 = vpop.permute.xlu0 %4425
  %4427 = vrot.lane.b32.xlu0 %v4376, 64
  %v4428 = vpop.permute.xlu0 %4427
  %4429 = vrot.lane.b32.xlu0 %v4378, 64
  %v4430 = vpop.permute.xlu0 %4429
  %4431 = vrot.lane.b32.xlu0 %v4380, 64
  %v4432 = vpop.permute.xlu0 %4431
  %4433 = vrot.lane.b32.xlu0 %v4384, 64
  %v4434 = vpop.permute.xlu0 %4433
  %v4443 = vsel %vm1247, %v4434, 0
  %4445 = vmatprep.subr.mxu0 0.0
  %4446 = vmatpush1.msra.mxu0 %v4418
  %4447 = vmatprep.subr.mxu0 0.0
  %4448 = vmatpush1.msra.mxu0 %v4420
  %4449 = vmatprep.subr.mxu0 0.0
  %4450 = vmatpush1.msra.mxu0 %v4422
  %4451 = vmatprep.subr.mxu0 0.0
  %4452 = vmatpush1.msra.mxu0 %v4424
  %4453 = vmatprep.subr.mxu0 0.0
  %4454 = vmatpush1.msra.mxu0 %v4426
  %4455 = vmatprep.subr.mxu0 0.0
  %4456 = vmatpush1.msra.mxu0 %v4428
  %4457 = vmatprep.subr.mxu0 0.0
  %4458 = vmatpush1.msra.mxu0 %v4430
  %4459 = vmatprep.subr.mxu0 0.0
  %4460 = vmatpush1.msra.mxu0 %v4432
  %4461 = vmatprep.subr.mxu0 0.0
  %4462 = vmatpush1.msra.mxu0 %v4443
  %4463 = vmatprep.subr.mxu0 0.0
  %4464 = vmatpush1.msra.mxu0 0.0
  %4465 = vmatprep.subr.mxu0 0.0
  %4466 = vmatpush1.msra.mxu0 0.0
  %4467 = vmatprep.subr.mxu0 0.0
  %4468 = vmatpush1.msra.mxu0 0.0
  %4469 = vmatprep.subr.mxu0 0.0
  %4470 = vmatpush1.msra.mxu0 0.0
  %4471 = vmatprep.subr.mxu0 0.0
  %4472 = vmatpush1.msra.mxu0 0.0
  %4473 = vmatprep.subr.mxu0 0.0
  %4474 = vmatpush1.msra.mxu0 0.0
  %4475 = vmatprep.subr.mxu0 0.0
  %4476 = vmatpush1.msra.mxu0 0.0
  %4477 = vmatprep.subr.mxu0 0.0
  %4478 = vmatpush1.msra.mxu0 0.0
  %4479 = vmatprep.subr.mxu0 0.0
  %4480 = vmatpush1.msra.mxu0 0.0
  %4481 = vmatprep.subr.mxu0 0.0
  %4482 = vmatpush1.msra.mxu0 0.0
  %4483 = vmatprep.subr.mxu0 0.0
  %4484 = vmatpush1.msra.mxu0 0.0
  %4485 = vmatprep.subr.mxu0 0.0
  %4486 = vmatpush1.msra.mxu0 0.0
  %4487 = vmatprep.subr.mxu0 0.0
  %4488 = vmatpush1.msra.mxu0 0.0
  %4489 = vmatprep.subr.mxu0 0.0
  %4490 = vmatpush1.msra.mxu0 0.0
  %4491 = vmatprep.subr.mxu0 0.0
  %4492 = vmatpush1.msra.mxu0 0.0
  %4493 = vmatprep.subr.mxu0 0.0
  %4494 = vmatpush1.msra.mxu0 0.0
  %4495 = vmatprep.subr.mxu0 0.0
  %4496 = vmatpush1.msra.mxu0 0.0
  %4497 = vmatprep.subr.mxu0 0.0
  %4498 = vmatpush1.msra.mxu0 0.0
  %4499 = vmatprep.subr.mxu0 0.0
  %4500 = vmatpush1.msra.mxu0 0.0
  %4501 = vmatprep.subr.mxu0 0.0
  %4502 = vmatpush1.msra.mxu0 0.0
  %4503 = vmatprep.subr.mxu0 0.0
  %4504 = vmatpush1.msra.mxu0 0.0
  %4505 = vmatprep.subr.mxu0 0.0
  %4506 = vmatpush1.msra.mxu0 0.0
  %4507 = vmatprep.subr.mxu0 0.0
  %4508 = vmatpush1.msra.mxu0 0.0
  %4509 = vmatprep.mubr.f32.mxu0 0.0
  %4510 = vmatmul.mubr.f32.gmra.mrb[0].mxu0 %v1164
  %v4511 = vpop.f32.mrb[0].mxu0
  %v4512 = vadd.f32 %v4389, %v4511
  %v4513 = vpop.f32.mrb[0].mxu0
  %4514 = vmatprep.mubr.f32.mxu0 0.0
  %4515 = vmatmul.mubr.f32.gmra.mrb[0].mxu0 %v1167
  %v4516 = vpop.f32.mrb[0].mxu0
  %v4517 = vadd.f32 %v4390, %v4516
  %v4518 = vpop.f32.mrb[0].mxu0
  %4519 = vmatprep.mubr.f32.mxu0 0.0
  %4520 = vmatmul.mubr.f32.gmra.mrb[0].mxu0 %v1170
  %v4521 = vpop.f32.mrb[0].mxu0
  %v4522 = vadd.f32 %v4391, %v4521
  %v4523 = vpop.f32.mrb[0].mxu0
  %4524 = vmatprep.mubr.f32.mxu0 0.0
  %4525 = vmatmul.mubr.f32.gmra.mrb[0].mxu0 %v1173
  %v4526 = vpop.f32.mrb[0].mxu0
  %v4527 = vadd.f32 %v4392, %v4526
  %v4528 = vpop.f32.mrb[0].mxu0
  %4529 = vmatprep.mubr.f32.mxu0 0.0
  %4530 = vmatmul.mubr.f32.gmra.mrb[0].mxu0 %v1176
  %v4531 = vpop.f32.mrb[0].mxu0
  %v4532 = vadd.f32 %v4393, %v4531
  %v4533 = vpop.f32.mrb[0].mxu0
  %4534 = vmatprep.mubr.f32.mxu0 0.0
  %4535 = vmatmul.mubr.f32.gmra.mrb[0].mxu0 %v1179
  %v4536 = vpop.f32.mrb[0].mxu0
  %v4537 = vadd.f32 %v4394, %v4536
  %v4538 = vpop.f32.mrb[0].mxu0
  %4539 = vmatprep.mubr.f32.mxu0 0.0
  %4540 = vmatmul.mubr.f32.gmra.mrb[0].mxu0 %v1182
  %v4541 = vpop.f32.mrb[0].mxu0
  %v4542 = vadd.f32 %v4395, %v4541
  %v4543 = vpop.f32.mrb[0].mxu0
  %4544 = vmatprep.mubr.f32.mxu0 0.0
  %4545 = vmatmul.mubr.f32.gmra.mrb[0].mxu0 %v1185
  %v4546 = vpop.f32.mrb[0].mxu0
  %v4547 = vadd.f32 %v4396, %v4546
  %v4548 = vpop.f32.mrb[0].mxu0
  %4549 = vmatprep.mubr.f32.mxu0 0.0
  %4550 = vmatmul.mubr.f32.gmra.mrb[0].mxu0 %v1188
  %v4551 = vpop.f32.mrb[0].mxu0
  %v4552 = vadd.f32 %v4397, %v4551
  %v4553 = vpop.f32.mrb[0].mxu0
  %4554 = vmatprep.mubr.f32.mxu0 0.0
  %4555 = vmatmul.mubr.f32.gmra.mrb[0].mxu0 %v1191
  %v4556 = vpop.f32.mrb[0].mxu0
  %v4557 = vadd.f32 %v4398, %v4556
  %v4558 = vpop.f32.mrb[0].mxu0
  %4559 = vmatprep.mubr.f32.mxu0 0.0
  %4560 = vmatmul.mubr.f32.gmra.mrb[0].mxu0 %v1194
  %v4561 = vpop.f32.mrb[0].mxu0
  %v4562 = vadd.f32 %v4399, %v4561
  %v4563 = vpop.f32.mrb[0].mxu0
  %4564 = vmatprep.mubr.f32.mxu0 0.0
  %4565 = vmatmul.mubr.f32.gmra.mrb[0].mxu0 %v1197
  %v4566 = vpop.f32.mrb[0].mxu0
  %v4567 = vadd.f32 %v4400, %v4566
  %v4568 = vpop.f32.mrb[0].mxu0
  %4569 = vmatprep.mubr.f32.mxu0 0.0
  %4570 = vmatmul.mubr.f32.gmra.mrb[0].mxu0 %v1200
  %v4571 = vpop.f32.mrb[0].mxu0
  %v4572 = vadd.f32 %v4401, %v4571
  %v4573 = vpop.f32.mrb[0].mxu0
  %4574 = vmatprep.mubr.f32.mxu0 0.0
  %4575 = vmatmul.mubr.f32.gmra.mrb[0].mxu0 %v1203
  %v4576 = vpop.f32.mrb[0].mxu0
  %v4577 = vadd.f32 %v4402, %v4576
  %v4578 = vpop.f32.mrb[0].mxu0
  %4579 = vmatprep.mubr.f32.mxu0 0.0
  %4580 = vmatmul.mubr.f32.gmra.mrb[0].mxu0 %v1206
  %v4581 = vpop.f32.mrb[0].mxu0
  %v4582 = vadd.f32 %v4403, %v4581
  %v4583 = vpop.f32.mrb[0].mxu0
  %4584 = vmatprep.mubr.f32.mxu0 0.0
  %4585 = vmatmul.mubr.f32.gmra.mrb[0].mxu0 %v1209
  %v4586 = vpop.f32.mrb[0].mxu0
  %v4587 = vadd.f32 %v4404, %v4586
  %v4588 = vpop.f32.mrb[0].mxu0
  %4589 = vmatprep.mubr.f32.mxu0 0.0
  %4590 = vmatmul.mubr.f32.gmra.mrb[0].mxu0 %v1212
  %v4591 = vpop.f32.mrb[0].mxu0
  %v4592 = vadd.f32 %v4405, %v4591
  %v4593 = vpop.f32.mrb[0].mxu0
  %4594 = vmatprep.mubr.f32.mxu0 0.0
  %4595 = vmatmul.mubr.f32.gmra.mrb[0].mxu0 %v1215
  %v4596 = vpop.f32.mrb[0].mxu0
  %v4597 = vadd.f32 %v4406, %v4596
  %v4598 = vpop.f32.mrb[0].mxu0
  %4599 = vmatprep.mubr.f32.mxu0 0.0
  %4600 = vmatmul.mubr.f32.gmra.mrb[0].mxu0 %v1218
  %v4601 = vpop.f32.mrb[0].mxu0
  %v4602 = vadd.f32 %v4407, %v4601
  %v4603 = vpop.f32.mrb[0].mxu0
  %4604 = vmatprep.mubr.f32.mxu0 0.0
  %4605 = vmatmul.mubr.f32.gmra.mrb[0].mxu0 %v1221
  %v4606 = vpop.f32.mrb[0].mxu0
  %v4607 = vadd.f32 %v4408, %v4606
  %v4608 = vpop.f32.mrb[0].mxu0
  %4609 = vmatprep.mubr.f32.mxu0 0.0
  %4610 = vmatmul.mubr.f32.gmra.mrb[0].mxu0 %v1224
  %v4611 = vpop.f32.mrb[0].mxu0
  %v4612 = vadd.f32 %v4409, %v4611
  %v4613 = vpop.f32.mrb[0].mxu0
  %4614 = vmatprep.mubr.f32.mxu0 0.0
  %4615 = vmatmul.mubr.f32.gmra.mrb[0].mxu0 %v1227
  %v4616 = vpop.f32.mrb[0].mxu0
  %v4617 = vadd.f32 %v4410, %v4616
  %v4618 = vpop.f32.mrb[0].mxu0
  %4619 = vmatprep.mubr.f32.mxu0 0.0
  %4620 = vmatmul.mubr.f32.gmra.mrb[0].mxu0 %v1230
  %v4621 = vpop.f32.mrb[0].mxu0
  %v4622 = vadd.f32 %v4411, %v4621
  %v4623 = vpop.f32.mrb[0].mxu0
  %4624 = vmatprep.mubr.f32.mxu0 0.0
  %4625 = vmatmul.mubr.f32.gmra.mrb[0].mxu0 %v1233
  %v4626 = vpop.f32.mrb[0].mxu0
  %v4627 = vadd.f32 %v4412, %v4626
  %v4628 = vpop.f32.mrb[0].mxu0
  %4629 = vmatprep.mubr.f32.mxu0 0.0
  %4630 = vmatmul.mubr.f32.gmra.mrb[0].mxu0 %v1236
  %v4631 = vpop.f32.mrb[0].mxu0
  %v4632 = vadd.f32 %v4413, %v4631
  %v4633 = vpop.f32.mrb[0].mxu0
  %4634 = vmatprep.mubr.f32.mxu0 0.0
  %4635 = vmatmul.mubr.f32.gmra.mrb[0].mxu0 %v1239
  %v4636 = vpop.f32.mrb[0].mxu0
  %v4637 = vadd.f32 %v4414, %v4636
  %v4638 = vpop.f32.mrb[0].mxu0
  %4639 = vmatprep.mubr.f32.mxu0 0.0
  %4640 = vmatmul.mubr.f32.gmra.mrb[0].mxu0 %v1242
  %v4641 = vpop.f32.mrb[0].mxu0
  %v4642 = vadd.f32 %v4415, %v4641
  %v4643 = vpop.f32.mrb[0].mxu0
  %4644 = vmatprep.mubr.f32.mxu0 0.0
  %4645 = vmatmul.mubr.f32.gmra.mrb[0].mxu0 %v1245
  %v4646 = vpop.f32.mrb[0].mxu0
  %v4647 = vadd.f32 %v4416, %v4646
  %v4648 = vpop.f32.mrb[0].mxu0
  %4649 = vdwg.mxu0
  %v4650 = vxor.u32 %v4512, 2147483648
  %v4651 = vxor.u32 %v4517, 2147483648
  %v4652 = vxor.u32 %v4522, 2147483648
  %v4653 = vxor.u32 %v4527, 2147483648
  %v4654 = vxor.u32 %v4532, 2147483648
  %v4655 = vxor.u32 %v4537, 2147483648
  %v4656 = vxor.u32 %v4542, 2147483648
  %v4657 = vxor.u32 %v4547, 2147483648
  %v4658 = vxor.u32 %v4552, 2147483648
  %v4659 = vxor.u32 %v4557, 2147483648
  %v4660 = vxor.u32 %v4562, 2147483648
  %v4661 = vxor.u32 %v4567, 2147483648
  %v4662 = vxor.u32 %v4572, 2147483648
  %v4663 = vxor.u32 %v4577, 2147483648
  %v4664 = vxor.u32 %v4582, 2147483648
  %v4665 = vxor.u32 %v4587, 2147483648
  %v4666 = vxor.u32 %v4592, 2147483648
  %v4667 = vxor.u32 %v4597, 2147483648
  %v4668 = vxor.u32 %v4602, 2147483648
  %v4669 = vxor.u32 %v4607, 2147483648
  %v4670 = vxor.u32 %v4612, 2147483648
  %v4671 = vxor.u32 %v4617, 2147483648
  %v4672 = vxor.u32 %v4622, 2147483648
  %v4673 = vxor.u32 %v4627, 2147483648
  %v4674 = vxor.u32 %v4632, 2147483648
  %v4675 = vxor.u32 %v4637, 2147483648
  %v4676 = vxor.u32 %v4642, 2147483648
  %v4677 = vxor.u32 %v4647, 2147483648
  %v4678 = vmul.f32 %v4650, 1.442695
  %v4679 = vpow.pop %v4678
  %v4680 = vmul.f32 %v4651, 1.442695
  %v4681 = vpow.pop %v4680
  %v4682 = vmul.f32 %v4652, 1.442695
  %v4683 = vpow.pop %v4682
  %v4684 = vmul.f32 %v4653, 1.442695
  %v4685 = vpow.pop %v4684
  %v4686 = vmul.f32 %v4654, 1.442695
  %v4687 = vpow.pop %v4686
  %v4688 = vmul.f32 %v4655, 1.442695
  %v4689 = vpow.pop %v4688
  %v4690 = vmul.f32 %v4656, 1.442695
  %v4691 = vpow.pop %v4690
  %v4692 = vmul.f32 %v4657, 1.442695
  %v4693 = vpow.pop %v4692
  %v4694 = vmul.f32 %v4658, 1.442695
  %v4695 = vpow.pop %v4694
  %v4696 = vmul.f32 %v4659, 1.442695
  %v4697 = vpow.pop %v4696
  %v4698 = vmul.f32 %v4660, 1.442695
  %v4699 = vpow.pop %v4698
  %v4700 = vmul.f32 %v4661, 1.442695
  %v4701 = vpow.pop %v4700
  %v4702 = vmul.f32 %v4662, 1.442695
  %v4703 = vpow.pop %v4702
  %v4704 = vmul.f32 %v4663, 1.442695
  %v4705 = vpow.pop %v4704
  %v4706 = vmul.f32 %v4664, 1.442695
  %v4707 = vpow.pop %v4706
  %v4708 = vmul.f32 %v4665, 1.442695
  %v4709 = vpow.pop %v4708
  %v4710 = vmul.f32 %v4666, 1.442695
  %v4711 = vpow.pop %v4710
  %v4712 = vmul.f32 %v4667, 1.442695
  %v4713 = vpow.pop %v4712
  %v4714 = vmul.f32 %v4668, 1.442695
  %v4715 = vpow.pop %v4714
  %v4716 = vmul.f32 %v4669, 1.442695
  %v4717 = vpow.pop %v4716
  %v4718 = vmul.f32 %v4670, 1.442695
  %v4719 = vpow.pop %v4718
  %v4720 = vmul.f32 %v4671, 1.442695
  %v4721 = vpow.pop %v4720
  %v4722 = vmul.f32 %v4672, 1.442695
  %v4723 = vpow.pop %v4722
  %v4724 = vmul.f32 %v4673, 1.442695
  %v4725 = vpow.pop %v4724
  %v4726 = vmul.f32 %v4674, 1.442695
  %v4727 = vpow.pop %v4726
  %v4728 = vmul.f32 %v4675, 1.442695
  %v4729 = vpow.pop %v4728
  %v4730 = vmul.f32 %v4676, 1.442695
  %v4731 = vpow.pop %v4730
  %v4732 = vmul.f32 %v4677, 1.442695
  %v4733 = vpow.pop %v4732
  %v4734 = vadd.f32 %v4679, 1.0
  %v4735 = vadd.f32 %v4681, 1.0
  %v4736 = vadd.f32 %v4683, 1.0
  %v4737 = vadd.f32 %v4685, 1.0
  %v4738 = vadd.f32 %v4687, 1.0
  %v4739 = vadd.f32 %v4689, 1.0
  %v4740 = vadd.f32 %v4691, 1.0
  %v4741 = vadd.f32 %v4693, 1.0
  %v4742 = vadd.f32 %v4695, 1.0
  %v4743 = vadd.f32 %v4697, 1.0
  %v4744 = vadd.f32 %v4699, 1.0
  %v4745 = vadd.f32 %v4701, 1.0
  %v4746 = vadd.f32 %v4703, 1.0
  %v4747 = vadd.f32 %v4705, 1.0
  %v4748 = vadd.f32 %v4707, 1.0
  %v4749 = vadd.f32 %v4709, 1.0
  %v4750 = vadd.f32 %v4711, 1.0
  %v4751 = vadd.f32 %v4713, 1.0
  %v4752 = vadd.f32 %v4715, 1.0
  %v4753 = vadd.f32 %v4717, 1.0
  %v4754 = vadd.f32 %v4719, 1.0
  %v4755 = vadd.f32 %v4721, 1.0
  %v4756 = vadd.f32 %v4723, 1.0
  %v4757 = vadd.f32 %v4725, 1.0
  %v4758 = vadd.f32 %v4727, 1.0
  %v4759 = vadd.f32 %v4729, 1.0
  %v4760 = vadd.f32 %v4731, 1.0
  %v4761 = vadd.f32 %v4733, 1.0
  %v4762 = vrcp.pop %v4734
  %v4763 = vmul.f32 1.0, %v4762
  %v4764 = vrcp.pop %v4735
  %v4765 = vmul.f32 1.0, %v4764
  %v4766 = vrcp.pop %v4736
  %v4767 = vmul.f32 1.0, %v4766
  %v4768 = vrcp.pop %v4737
  %v4769 = vmul.f32 1.0, %v4768
  %v4770 = vrcp.pop %v4738
  %v4771 = vmul.f32 1.0, %v4770
  %v4772 = vrcp.pop %v4739
  %v4773 = vmul.f32 1.0, %v4772
  %v4774 = vrcp.pop %v4740
  %v4775 = vmul.f32 1.0, %v4774
  %v4776 = vrcp.pop %v4741
  %v4777 = vmul.f32 1.0, %v4776
  %v4778 = vrcp.pop %v4742
  %v4779 = vmul.f32 1.0, %v4778
  %v4780 = vrcp.pop %v4743
  %v4781 = vmul.f32 1.0, %v4780
  %v4782 = vrcp.pop %v4744
  %v4783 = vmul.f32 1.0, %v4782
  %v4784 = vrcp.pop %v4745
  %v4785 = vmul.f32 1.0, %v4784
  %v4786 = vrcp.pop %v4746
  %v4787 = vmul.f32 1.0, %v4786
  %v4788 = vrcp.pop %v4747
  %v4789 = vmul.f32 1.0, %v4788
  %v4790 = vrcp.pop %v4748
  %v4791 = vmul.f32 1.0, %v4790
  %v4792 = vrcp.pop %v4749
  %v4793 = vmul.f32 1.0, %v4792
  %v4794 = vrcp.pop %v4750
  %v4795 = vmul.f32 1.0, %v4794
  %v4796 = vrcp.pop %v4751
  %v4797 = vmul.f32 1.0, %v4796
  %v4798 = vrcp.pop %v4752
  %v4799 = vmul.f32 1.0, %v4798
  %v4800 = vrcp.pop %v4753
  %v4801 = vmul.f32 1.0, %v4800
  %v4802 = vrcp.pop %v4754
  %v4803 = vmul.f32 1.0, %v4802
  %v4804 = vrcp.pop %v4755
  %v4805 = vmul.f32 1.0, %v4804
  %v4806 = vrcp.pop %v4756
  %v4807 = vmul.f32 1.0, %v4806
  %v4808 = vrcp.pop %v4757
  %v4809 = vmul.f32 1.0, %v4808
  %v4810 = vrcp.pop %v4758
  %v4811 = vmul.f32 1.0, %v4810
  %v4812 = vrcp.pop %v4759
  %v4813 = vmul.f32 1.0, %v4812
  %v4814 = vrcp.pop %v4760
  %v4815 = vmul.f32 1.0, %v4814
  %v4816 = vrcp.pop %v4761
  %v4817 = vmul.f32 1.0, %v4816
  %v4818 = vmul.f32 %v4512, %v4763
  %v4819 = vmul.f32 %v4517, %v4765
  %v4820 = vmul.f32 %v4522, %v4767
  %v4821 = vmul.f32 %v4527, %v4769
  %v4822 = vmul.f32 %v4532, %v4771
  %v4823 = vmul.f32 %v4537, %v4773
  %v4824 = vmul.f32 %v4542, %v4775
  %v4825 = vmul.f32 %v4547, %v4777
  %v4826 = vmul.f32 %v4552, %v4779
  %v4827 = vmul.f32 %v4557, %v4781
  %v4828 = vmul.f32 %v4562, %v4783
  %v4829 = vmul.f32 %v4567, %v4785
  %v4830 = vmul.f32 %v4572, %v4787
  %v4831 = vmul.f32 %v4577, %v4789
  %v4832 = vmul.f32 %v4582, %v4791
  %v4833 = vmul.f32 %v4587, %v4793
  %v4834 = vmul.f32 %v4592, %v4795
  %v4835 = vmul.f32 %v4597, %v4797
  %v4836 = vmul.f32 %v4602, %v4799
  %v4837 = vmul.f32 %v4607, %v4801
  %v4838 = vmul.f32 %v4612, %v4803
  %v4839 = vmul.f32 %v4617, %v4805
  %v4840 = vmul.f32 %v4622, %v4807
  %v4841 = vmul.f32 %v4627, %v4809
  %v4842 = vmul.f32 %v4632, %v4811
  %v4843 = vmul.f32 %v4637, %v4813
  %v4844 = vmul.f32 %v4642, %v4815
  %v4845 = vmul.f32 %v4647, %v4817
  %s4846 = scalar_lea.vmem %s12, 32
  %v4847 = vld [vmem:[%s4846] sm:$0xff]
  %v4848 = vld [vmem:[%s4846 + $0x8] sm:$0xff]
  %v4849 = vld [vmem:[%s4846 + $0x10] sm:$0xff]
  %v4850 = vld [vmem:[%s4846 + $0x18] sm:$0xff]
  %s4851 = scalar_lea.vmem %s13, 1
  %v4852 = vld [vmem:[%s4851] sm:$0x1]
  %v4854 = vlaneseq
  %v4855 = vshrl.u32 %v4854, 7
  %v4856 = vsub.s32 0, %v4855
  %v4857 = vrot.slane %v4852, %v4856
  %v4860 = vsel %vm284, %v4818, 0
  %v4863 = vsel %vm284, %v4819, 0
  %v4866 = vsel %vm284, %v4820, 0
  %v4869 = vsel %vm284, %v4821, 0
  %v4872 = vsel %vm284, %v4822, 0
  %v4875 = vsel %vm284, %v4823, 0
  %v4878 = vsel %vm284, %v4824, 0
  %v4881 = vsel %vm284, %v4825, 0
  %v4884 = vsel %vm284, %v4826, 0
  %v4887 = vsel %vm284, %v4827, 0
  %v4890 = vsel %vm284, %v4828, 0
  %v4893 = vsel %vm284, %v4829, 0
  %v4896 = vsel %vm284, %v4830, 0
  %v4899 = vsel %vm284, %v4831, 0
  %v4902 = vsel %vm284, %v4832, 0
  %v4905 = vsel %vm284, %v4833, 0
  %v4908 = vsel %vm284, %v4834, 0
  %v4911 = vsel %vm284, %v4835, 0
  %v4914 = vsel %vm284, %v4836, 0
  %v4917 = vsel %vm284, %v4837, 0
  %v4920 = vsel %vm284, %v4838, 0
  %v4923 = vsel %vm284, %v4839, 0
  %v4926 = vsel %vm284, %v4840, 0
  %v4929 = vsel %vm284, %v4841, 0
  %v4932 = vsel %vm284, %v4842, 0
  %v4935 = vsel %vm284, %v4843, 0
  %v4938 = vsel %vm284, %v4844, 0
  %v4941 = vsel %vm284, %v4845, 0
  %4943 = vmatprep.subr.mxu0 0.0
  %4944 = vmatpush1.msra.mxu0 %v4847
  %4945 = vmatprep.subr.mxu0 0.0
  %4946 = vmatpush1.msra.mxu0 %v4848
  %4947 = vmatprep.subr.mxu0 0.0
  %4948 = vmatpush1.msra.mxu0 %v4849
  %4949 = vmatprep.subr.mxu0 0.0
  %4950 = vmatpush1.msra.mxu0 %v4850
  %4951 = vmatprep.subr.mxu0 0.0
  %4952 = vmatpush1.msra.mxu0 0.0
  %4953 = vmatprep.subr.mxu0 0.0
  %4954 = vmatpush1.msra.mxu0 0.0
  %4955 = vmatprep.subr.mxu0 0.0
  %4956 = vmatpush1.msra.mxu0 0.0
  %4957 = vmatprep.subr.mxu0 0.0
  %4958 = vmatpush1.msra.mxu0 0.0
  %4959 = vmatprep.subr.mxu0 0.0
  %4960 = vmatpush1.msra.mxu0 0.0
  %4961 = vmatprep.subr.mxu0 0.0
  %4962 = vmatpush1.msra.mxu0 0.0
  %4963 = vmatprep.subr.mxu0 0.0
  %4964 = vmatpush1.msra.mxu0 0.0
  %4965 = vmatprep.subr.mxu0 0.0
  %4966 = vmatpush1.msra.mxu0 0.0
  %4967 = vmatprep.subr.mxu0 0.0
  %4968 = vmatpush1.msra.mxu0 0.0
  %4969 = vmatprep.subr.mxu0 0.0
  %4970 = vmatpush1.msra.mxu0 0.0
  %4971 = vmatprep.subr.mxu0 0.0
  %4972 = vmatpush1.msra.mxu0 0.0
  %4973 = vmatprep.subr.mxu0 0.0
  %4974 = vmatpush1.msra.mxu0 0.0
  %4975 = vmatprep.subr.mxu0 0.0
  %4976 = vmatpush1.msra.mxu0 0.0
  %4977 = vmatprep.subr.mxu0 0.0
  %4978 = vmatpush1.msra.mxu0 0.0
  %4979 = vmatprep.subr.mxu0 0.0
  %4980 = vmatpush1.msra.mxu0 0.0
  %4981 = vmatprep.subr.mxu0 0.0
  %4982 = vmatpush1.msra.mxu0 0.0
  %4983 = vmatprep.subr.mxu0 0.0
  %4984 = vmatpush1.msra.mxu0 0.0
  %4985 = vmatprep.subr.mxu0 0.0
  %4986 = vmatpush1.msra.mxu0 0.0
  %4987 = vmatprep.subr.mxu0 0.0
  %4988 = vmatpush1.msra.mxu0 0.0
  %4989 = vmatprep.subr.mxu0 0.0
  %4990 = vmatpush1.msra.mxu0 0.0
  %4991 = vmatprep.subr.mxu0 0.0
  %4992 = vmatpush1.msra.mxu0 0.0
  %4993 = vmatprep.subr.mxu0 0.0
  %4994 = vmatpush1.msra.mxu0 0.0
  %4995 = vmatprep.subr.mxu0 0.0
  %4996 = vmatpush1.msra.mxu0 0.0
  %4997 = vmatprep.subr.mxu0 0.0
  %4998 = vmatpush1.msra.mxu0 0.0
  %4999 = vmatprep.subr.mxu0 0.0
  %5000 = vmatpush1.msra.mxu0 0.0
  %5001 = vmatprep.subr.mxu0 0.0
  %5002 = vmatpush1.msra.mxu0 0.0
  %5003 = vmatprep.subr.mxu0 0.0
  %5004 = vmatpush1.msra.mxu0 0.0
  %5005 = vmatprep.subr.mxu0 0.0
  %5006 = vmatpush1.msra.mxu0 0.0
  %5007 = vmatprep.mubr.f32.mxu0 0.0
  %5008 = vmatmul.mubr.f32.gmra.mrb[0].mxu0 %v4860
  %v5009 = vpop.f32.mrb[0].mxu0
  %v5010 = vadd.f32 %v4857, %v5009
  %v5011 = vpop.f32.mrb[0].mxu0
  %5012 = vmatprep.mubr.f32.mxu0 0.0
  %5013 = vmatmul.mubr.f32.gmra.mrb[0].mxu0 %v4863
  %v5014 = vpop.f32.mrb[0].mxu0
  %v5015 = vadd.f32 %v4857, %v5014
  %v5016 = vpop.f32.mrb[0].mxu0
  %5017 = vmatprep.mubr.f32.mxu0 0.0
  %5018 = vmatmul.mubr.f32.gmra.mrb[0].mxu0 %v4866
  %v5019 = vpop.f32.mrb[0].mxu0
  %v5020 = vadd.f32 %v4857, %v5019
  %v5021 = vpop.f32.mrb[0].mxu0
  %5022 = vmatprep.mubr.f32.mxu0 0.0
  %5023 = vmatmul.mubr.f32.gmra.mrb[0].mxu0 %v4869
  %v5024 = vpop.f32.mrb[0].mxu0
  %v5025 = vadd.f32 %v4857, %v5024
  %v5026 = vpop.f32.mrb[0].mxu0
  %5027 = vmatprep.mubr.f32.mxu0 0.0
  %5028 = vmatmul.mubr.f32.gmra.mrb[0].mxu0 %v4872
  %v5029 = vpop.f32.mrb[0].mxu0
  %v5030 = vadd.f32 %v4857, %v5029
  %v5031 = vpop.f32.mrb[0].mxu0
  %5032 = vmatprep.mubr.f32.mxu0 0.0
  %5033 = vmatmul.mubr.f32.gmra.mrb[0].mxu0 %v4875
  %v5034 = vpop.f32.mrb[0].mxu0
  %v5035 = vadd.f32 %v4857, %v5034
  %v5036 = vpop.f32.mrb[0].mxu0
  %5037 = vmatprep.mubr.f32.mxu0 0.0
  %5038 = vmatmul.mubr.f32.gmra.mrb[0].mxu0 %v4878
  %v5039 = vpop.f32.mrb[0].mxu0
  %v5040 = vadd.f32 %v4857, %v5039
  %v5041 = vpop.f32.mrb[0].mxu0
  %5042 = vmatprep.mubr.f32.mxu0 0.0
  %5043 = vmatmul.mubr.f32.gmra.mrb[0].mxu0 %v4881
  %v5044 = vpop.f32.mrb[0].mxu0
  %v5045 = vadd.f32 %v4857, %v5044
  %v5046 = vpop.f32.mrb[0].mxu0
  %5047 = vmatprep.mubr.f32.mxu0 0.0
  %5048 = vmatmul.mubr.f32.gmra.mrb[0].mxu0 %v4884
  %v5049 = vpop.f32.mrb[0].mxu0
  %v5050 = vadd.f32 %v4857, %v5049
  %v5051 = vpop.f32.mrb[0].mxu0
  %5052 = vmatprep.mubr.f32.mxu0 0.0
  %5053 = vmatmul.mubr.f32.gmra.mrb[0].mxu0 %v4887
  %v5054 = vpop.f32.mrb[0].mxu0
  %v5055 = vadd.f32 %v4857, %v5054
  %v5056 = vpop.f32.mrb[0].mxu0
  %5057 = vmatprep.mubr.f32.mxu0 0.0
  %5058 = vmatmul.mubr.f32.gmra.mrb[0].mxu0 %v4890
  %v5059 = vpop.f32.mrb[0].mxu0
  %v5060 = vadd.f32 %v4857, %v5059
  %v5061 = vpop.f32.mrb[0].mxu0
  %5062 = vmatprep.mubr.f32.mxu0 0.0
  %5063 = vmatmul.mubr.f32.gmra.mrb[0].mxu0 %v4893
  %v5064 = vpop.f32.mrb[0].mxu0
  %v5065 = vadd.f32 %v4857, %v5064
  %v5066 = vpop.f32.mrb[0].mxu0
  %5067 = vmatprep.mubr.f32.mxu0 0.0
  %5068 = vmatmul.mubr.f32.gmra.mrb[0].mxu0 %v4896
  %v5069 = vpop.f32.mrb[0].mxu0
  %v5070 = vadd.f32 %v4857, %v5069
  %v5071 = vpop.f32.mrb[0].mxu0
  %5072 = vmatprep.mubr.f32.mxu0 0.0
  %5073 = vmatmul.mubr.f32.gmra.mrb[0].mxu0 %v4899
  %v5074 = vpop.f32.mrb[0].mxu0
  %v5075 = vadd.f32 %v4857, %v5074
  %v5076 = vpop.f32.mrb[0].mxu0
  %5077 = vmatprep.mubr.f32.mxu0 0.0
  %5078 = vmatmul.mubr.f32.gmra.mrb[0].mxu0 %v4902
  %v5079 = vpop.f32.mrb[0].mxu0
  %v5080 = vadd.f32 %v4857, %v5079
  %v5081 = vpop.f32.mrb[0].mxu0
  %5082 = vmatprep.mubr.f32.mxu0 0.0
  %5083 = vmatmul.mubr.f32.gmra.mrb[0].mxu0 %v4905
  %v5084 = vpop.f32.mrb[0].mxu0
  %v5085 = vadd.f32 %v4857, %v5084
  %v5086 = vpop.f32.mrb[0].mxu0
  %5087 = vmatprep.mubr.f32.mxu0 0.0
  %5088 = vmatmul.mubr.f32.gmra.mrb[0].mxu0 %v4908
  %v5089 = vpop.f32.mrb[0].mxu0
  %v5090 = vadd.f32 %v4857, %v5089
  %v5091 = vpop.f32.mrb[0].mxu0
  %5092 = vmatprep.mubr.f32.mxu0 0.0
  %5093 = vmatmul.mubr.f32.gmra.mrb[0].mxu0 %v4911
  %v5094 = vpop.f32.mrb[0].mxu0
  %v5095 = vadd.f32 %v4857, %v5094
  %v5096 = vpop.f32.mrb[0].mxu0
  %5097 = vmatprep.mubr.f32.mxu0 0.0
  %5098 = vmatmul.mubr.f32.gmra.mrb[0].mxu0 %v4914
  %v5099 = vpop.f32.mrb[0].mxu0
  %v5100 = vadd.f32 %v4857, %v5099
  %v5101 = vpop.f32.mrb[0].mxu0
  %5102 = vmatprep.mubr.f32.mxu0 0.0
  %5103 = vmatmul.mubr.f32.gmra.mrb[0].mxu0 %v4917
  %v5104 = vpop.f32.mrb[0].mxu0
  %v5105 = vadd.f32 %v4857, %v5104
  %v5106 = vpop.f32.mrb[0].mxu0
  %5107 = vmatprep.mubr.f32.mxu0 0.0
  %5108 = vmatmul.mubr.f32.gmra.mrb[0].mxu0 %v4920
  %v5109 = vpop.f32.mrb[0].mxu0
  %v5110 = vadd.f32 %v4857, %v5109
  %v5111 = vpop.f32.mrb[0].mxu0
  %5112 = vmatprep.mubr.f32.mxu0 0.0
  %5113 = vmatmul.mubr.f32.gmra.mrb[0].mxu0 %v4923
  %v5114 = vpop.f32.mrb[0].mxu0
  %v5115 = vadd.f32 %v4857, %v5114
  %v5116 = vpop.f32.mrb[0].mxu0
  %5117 = vmatprep.mubr.f32.mxu0 0.0
  %5118 = vmatmul.mubr.f32.gmra.mrb[0].mxu0 %v4926
  %v5119 = vpop.f32.mrb[0].mxu0
  %v5120 = vadd.f32 %v4857, %v5119
  %v5121 = vpop.f32.mrb[0].mxu0
  %5122 = vmatprep.mubr.f32.mxu0 0.0
  %5123 = vmatmul.mubr.f32.gmra.mrb[0].mxu0 %v4929
  %v5124 = vpop.f32.mrb[0].mxu0
  %v5125 = vadd.f32 %v4857, %v5124
  %v5126 = vpop.f32.mrb[0].mxu0
  %5127 = vmatprep.mubr.f32.mxu0 0.0
  %5128 = vmatmul.mubr.f32.gmra.mrb[0].mxu0 %v4932
  %v5129 = vpop.f32.mrb[0].mxu0
  %v5130 = vadd.f32 %v4857, %v5129
  %v5131 = vpop.f32.mrb[0].mxu0
  %5132 = vmatprep.mubr.f32.mxu0 0.0
  %5133 = vmatmul.mubr.f32.gmra.mrb[0].mxu0 %v4935
  %v5134 = vpop.f32.mrb[0].mxu0
  %v5135 = vadd.f32 %v4857, %v5134
  %v5136 = vpop.f32.mrb[0].mxu0
  %5137 = vmatprep.mubr.f32.mxu0 0.0
  %5138 = vmatmul.mubr.f32.gmra.mrb[0].mxu0 %v4938
  %v5139 = vpop.f32.mrb[0].mxu0
  %v5140 = vadd.f32 %v4857, %v5139
  %v5141 = vpop.f32.mrb[0].mxu0
  %5142 = vmatprep.mubr.f32.mxu0 0.0
  %5143 = vmatmul.mubr.f32.gmra.mrb[0].mxu0 %v4941
  %v5144 = vpop.f32.mrb[0].mxu0
  %v5145 = vadd.f32 %v4857, %v5144
  %v5146 = vpop.f32.mrb[0].mxu0
  %5147 = vdwg.mxu0
  %v5148 = vxor.u32 %v5010, 2147483648
  %v5149 = vxor.u32 %v5015, 2147483648
  %v5150 = vxor.u32 %v5020, 2147483648
  %v5151 = vxor.u32 %v5025, 2147483648
  %v5152 = vxor.u32 %v5030, 2147483648
  %v5153 = vxor.u32 %v5035, 2147483648
  %v5154 = vxor.u32 %v5040, 2147483648
  %v5155 = vxor.u32 %v5045, 2147483648
  %v5156 = vxor.u32 %v5050, 2147483648
  %v5157 = vxor.u32 %v5055, 2147483648
  %v5158 = vxor.u32 %v5060, 2147483648
  %v5159 = vxor.u32 %v5065, 2147483648
  %v5160 = vxor.u32 %v5070, 2147483648
  %v5161 = vxor.u32 %v5075, 2147483648
  %v5162 = vxor.u32 %v5080, 2147483648
  %v5163 = vxor.u32 %v5085, 2147483648
  %v5164 = vxor.u32 %v5090, 2147483648
  %v5165 = vxor.u32 %v5095, 2147483648
  %v5166 = vxor.u32 %v5100, 2147483648
  %v5167 = vxor.u32 %v5105, 2147483648
  %v5168 = vxor.u32 %v5110, 2147483648
  %v5169 = vxor.u32 %v5115, 2147483648
  %v5170 = vxor.u32 %v5120, 2147483648
  %v5171 = vxor.u32 %v5125, 2147483648
  %v5172 = vxor.u32 %v5130, 2147483648
  %v5173 = vxor.u32 %v5135, 2147483648
  %v5174 = vxor.u32 %v5140, 2147483648
  %v5175 = vxor.u32 %v5145, 2147483648
  %v5176 = vmul.f32 %v5148, 1.442695
  %v5177 = vpow.pop %v5176
  %v5178 = vmul.f32 %v5149, 1.442695
  %v5179 = vpow.pop %v5178
  %v5180 = vmul.f32 %v5150, 1.442695
  %v5181 = vpow.pop %v5180
  %v5182 = vmul.f32 %v5151, 1.442695
  %v5183 = vpow.pop %v5182
  %v5184 = vmul.f32 %v5152, 1.442695
  %v5185 = vpow.pop %v5184
  %v5186 = vmul.f32 %v5153, 1.442695
  %v5187 = vpow.pop %v5186
  %v5188 = vmul.f32 %v5154, 1.442695
  %v5189 = vpow.pop %v5188
  %v5190 = vmul.f32 %v5155, 1.442695
  %v5191 = vpow.pop %v5190
  %v5192 = vmul.f32 %v5156, 1.442695
  %v5193 = vpow.pop %v5192
  %v5194 = vmul.f32 %v5157, 1.442695
  %v5195 = vpow.pop %v5194
  %v5196 = vmul.f32 %v5158, 1.442695
  %v5197 = vpow.pop %v5196
  %v5198 = vmul.f32 %v5159, 1.442695
  %v5199 = vpow.pop %v5198
  %v5200 = vmul.f32 %v5160, 1.442695
  %v5201 = vpow.pop %v5200
  %v5202 = vmul.f32 %v5161, 1.442695
  %v5203 = vpow.pop %v5202
  %v5204 = vmul.f32 %v5162, 1.442695
  %v5205 = vpow.pop %v5204
  %v5206 = vmul.f32 %v5163, 1.442695
  %v5207 = vpow.pop %v5206
  %v5208 = vmul.f32 %v5164, 1.442695
  %v5209 = vpow.pop %v5208
  %v5210 = vmul.f32 %v5165, 1.442695
  %v5211 = vpow.pop %v5210
  %v5212 = vmul.f32 %v5166, 1.442695
  %v5213 = vpow.pop %v5212
  %v5214 = vmul.f32 %v5167, 1.442695
  %v5215 = vpow.pop %v5214
  %v5216 = vmul.f32 %v5168, 1.442695
  %v5217 = vpow.pop %v5216
  %v5218 = vmul.f32 %v5169, 1.442695
  %v5219 = vpow.pop %v5218
  %v5220 = vmul.f32 %v5170, 1.442695
  %v5221 = vpow.pop %v5220
  %v5222 = vmul.f32 %v5171, 1.442695
  %v5223 = vpow.pop %v5222
  %v5224 = vmul.f32 %v5172, 1.442695
  %v5225 = vpow.pop %v5224
  %v5226 = vmul.f32 %v5173, 1.442695
  %v5227 = vpow.pop %v5226
  %v5228 = vmul.f32 %v5174, 1.442695
  %v5229 = vpow.pop %v5228
  %v5230 = vmul.f32 %v5175, 1.442695
  %v5231 = vpow.pop %v5230
  %v5232 = vadd.f32 %v5177, 1.0
  %v5233 = vadd.f32 %v5179, 1.0
  %v5234 = vadd.f32 %v5181, 1.0
  %v5235 = vadd.f32 %v5183, 1.0
  %v5236 = vadd.f32 %v5185, 1.0
  %v5237 = vadd.f32 %v5187, 1.0
  %v5238 = vadd.f32 %v5189, 1.0
  %v5239 = vadd.f32 %v5191, 1.0
  %v5240 = vadd.f32 %v5193, 1.0
  %v5241 = vadd.f32 %v5195, 1.0
  %v5242 = vadd.f32 %v5197, 1.0
  %v5243 = vadd.f32 %v5199, 1.0
  %v5244 = vadd.f32 %v5201, 1.0
  %v5245 = vadd.f32 %v5203, 1.0
  %v5246 = vadd.f32 %v5205, 1.0
  %v5247 = vadd.f32 %v5207, 1.0
  %v5248 = vadd.f32 %v5209, 1.0
  %v5249 = vadd.f32 %v5211, 1.0
  %v5250 = vadd.f32 %v5213, 1.0
  %v5251 = vadd.f32 %v5215, 1.0
  %v5252 = vadd.f32 %v5217, 1.0
  %v5253 = vadd.f32 %v5219, 1.0
  %v5254 = vadd.f32 %v5221, 1.0
  %v5255 = vadd.f32 %v5223, 1.0
  %v5256 = vadd.f32 %v5225, 1.0
  %v5257 = vadd.f32 %v5227, 1.0
  %v5258 = vadd.f32 %v5229, 1.0
  %v5259 = vadd.f32 %v5231, 1.0
  %v5260 = vrcp.pop %v5232
  %v5261 = vmul.f32 1.0, %v5260
  %v5262 = vrcp.pop %v5233
  %v5263 = vmul.f32 1.0, %v5262
  %v5264 = vrcp.pop %v5234
  %v5265 = vmul.f32 1.0, %v5264
  %v5266 = vrcp.pop %v5235
  %v5267 = vmul.f32 1.0, %v5266
  %v5268 = vrcp.pop %v5236
  %v5269 = vmul.f32 1.0, %v5268
  %v5270 = vrcp.pop %v5237
  %v5271 = vmul.f32 1.0, %v5270
  %v5272 = vrcp.pop %v5238
  %v5273 = vmul.f32 1.0, %v5272
  %v5274 = vrcp.pop %v5239
  %v5275 = vmul.f32 1.0, %v5274
  %v5276 = vrcp.pop %v5240
  %v5277 = vmul.f32 1.0, %v5276
  %v5278 = vrcp.pop %v5241
  %v5279 = vmul.f32 1.0, %v5278
  %v5280 = vrcp.pop %v5242
  %v5281 = vmul.f32 1.0, %v5280
  %v5282 = vrcp.pop %v5243
  %v5283 = vmul.f32 1.0, %v5282
  %v5284 = vrcp.pop %v5244
  %v5285 = vmul.f32 1.0, %v5284
  %v5286 = vrcp.pop %v5245
  %v5287 = vmul.f32 1.0, %v5286
  %v5288 = vrcp.pop %v5246
  %v5289 = vmul.f32 1.0, %v5288
  %v5290 = vrcp.pop %v5247
  %v5291 = vmul.f32 1.0, %v5290
  %v5292 = vrcp.pop %v5248
  %v5293 = vmul.f32 1.0, %v5292
  %v5294 = vrcp.pop %v5249
  %v5295 = vmul.f32 1.0, %v5294
  %v5296 = vrcp.pop %v5250
  %v5297 = vmul.f32 1.0, %v5296
  %v5298 = vrcp.pop %v5251
  %v5299 = vmul.f32 1.0, %v5298
  %v5300 = vrcp.pop %v5252
  %v5301 = vmul.f32 1.0, %v5300
  %v5302 = vrcp.pop %v5253
  %v5303 = vmul.f32 1.0, %v5302
  %v5304 = vrcp.pop %v5254
  %v5305 = vmul.f32 1.0, %v5304
  %v5306 = vrcp.pop %v5255
  %v5307 = vmul.f32 1.0, %v5306
  %v5308 = vrcp.pop %v5256
  %v5309 = vmul.f32 1.0, %v5308
  %v5310 = vrcp.pop %v5257
  %v5311 = vmul.f32 1.0, %v5310
  %v5312 = vrcp.pop %v5258
  %v5313 = vmul.f32 1.0, %v5312
  %v5314 = vrcp.pop %v5259
  %v5315 = vmul.f32 1.0, %v5314
  %v5316 = vmul.f32 %v5010, %v5261
  %v5317 = vmul.f32 %v5015, %v5263
  %v5318 = vmul.f32 %v5020, %v5265
  %v5319 = vmul.f32 %v5025, %v5267
  %v5320 = vmul.f32 %v5030, %v5269
  %v5321 = vmul.f32 %v5035, %v5271
  %v5322 = vmul.f32 %v5040, %v5273
  %v5323 = vmul.f32 %v5045, %v5275
  %v5324 = vmul.f32 %v5050, %v5277
  %v5325 = vmul.f32 %v5055, %v5279
  %v5326 = vmul.f32 %v5060, %v5281
  %v5327 = vmul.f32 %v5065, %v5283
  %v5328 = vmul.f32 %v5070, %v5285
  %v5329 = vmul.f32 %v5075, %v5287
  %v5330 = vmul.f32 %v5080, %v5289
  %v5331 = vmul.f32 %v5085, %v5291
  %v5332 = vmul.f32 %v5090, %v5293
  %v5333 = vmul.f32 %v5095, %v5295
  %v5334 = vmul.f32 %v5100, %v5297
  %v5335 = vmul.f32 %v5105, %v5299
  %v5336 = vmul.f32 %v5110, %v5301
  %v5337 = vmul.f32 %v5115, %v5303
  %v5338 = vmul.f32 %v5120, %v5305
  %v5339 = vmul.f32 %v5125, %v5307
  %v5340 = vmul.f32 %v5130, %v5309
  %v5341 = vmul.f32 %v5135, %v5311
  %v5342 = vmul.f32 %v5140, %v5313
  %v5343 = vmul.f32 %v5145, %v5315
  %5348 = vrot.lane.b32.xlu0 %v4847, 96
  %v5349 = vpop.permute.xlu0 %5348
  %5350 = vrot.lane.b32.xlu0 %v4848, 96
  %v5351 = vpop.permute.xlu0 %5350
  %5352 = vrot.lane.b32.xlu0 %v4849, 96
  %v5353 = vpop.permute.xlu0 %5352
  %5354 = vrot.lane.b32.xlu0 %v4850, 96
  %v5355 = vpop.permute.xlu0 %5354
  %v5361 = vsel %vm284, %v5316, 0
  %v5364 = vsel %vm284, %v5317, 0
  %v5367 = vsel %vm284, %v5318, 0
  %v5370 = vsel %vm284, %v5319, 0
  %v5373 = vsel %vm284, %v5320, 0
  %v5376 = vsel %vm284, %v5321, 0
  %v5379 = vsel %vm284, %v5322, 0
  %v5382 = vsel %vm284, %v5323, 0
  %v5385 = vsel %vm284, %v5324, 0
  %v5388 = vsel %vm284, %v5325, 0
  %v5391 = vsel %vm284, %v5326, 0
  %v5394 = vsel %vm284, %v5327, 0
  %v5397 = vsel %vm284, %v5328, 0
  %v5400 = vsel %vm284, %v5329, 0
  %v5403 = vsel %vm284, %v5330, 0
  %v5406 = vsel %vm284, %v5331, 0
  %v5409 = vsel %vm284, %v5332, 0
  %v5412 = vsel %vm284, %v5333, 0
  %v5415 = vsel %vm284, %v5334, 0
  %v5418 = vsel %vm284, %v5335, 0
  %v5421 = vsel %vm284, %v5336, 0
  %v5424 = vsel %vm284, %v5337, 0
  %v5427 = vsel %vm284, %v5338, 0
  %v5430 = vsel %vm284, %v5339, 0
  %v5433 = vsel %vm284, %v5340, 0
  %v5436 = vsel %vm284, %v5341, 0
  %v5439 = vsel %vm284, %v5342, 0
  %v5442 = vsel %vm284, %v5343, 0
  %5444 = vmatprep.subr.mxu0 0.0
  %5445 = vmatpush1.msra.mxu0 %v5349
  %5446 = vmatprep.subr.mxu0 0.0
  %5447 = vmatpush1.msra.mxu0 %v5351
  %5448 = vmatprep.subr.mxu0 0.0
  %5449 = vmatpush1.msra.mxu0 %v5353
  %5450 = vmatprep.subr.mxu0 0.0
  %5451 = vmatpush1.msra.mxu0 %v5355
  %5452 = vmatprep.subr.mxu0 0.0
  %5453 = vmatpush1.msra.mxu0 0.0
  %5454 = vmatprep.subr.mxu0 0.0
  %5455 = vmatpush1.msra.mxu0 0.0
  %5456 = vmatprep.subr.mxu0 0.0
  %5457 = vmatpush1.msra.mxu0 0.0
  %5458 = vmatprep.subr.mxu0 0.0
  %5459 = vmatpush1.msra.mxu0 0.0
  %5460 = vmatprep.subr.mxu0 0.0
  %5461 = vmatpush1.msra.mxu0 0.0
  %5462 = vmatprep.subr.mxu0 0.0
  %5463 = vmatpush1.msra.mxu0 0.0
  %5464 = vmatprep.subr.mxu0 0.0
  %5465 = vmatpush1.msra.mxu0 0.0
  %5466 = vmatprep.subr.mxu0 0.0
  %5467 = vmatpush1.msra.mxu0 0.0
  %5468 = vmatprep.subr.mxu0 0.0
  %5469 = vmatpush1.msra.mxu0 0.0
  %5470 = vmatprep.subr.mxu0 0.0
  %5471 = vmatpush1.msra.mxu0 0.0
  %5472 = vmatprep.subr.mxu0 0.0
  %5473 = vmatpush1.msra.mxu0 0.0
  %5474 = vmatprep.subr.mxu0 0.0
  %5475 = vmatpush1.msra.mxu0 0.0
  %5476 = vmatprep.subr.mxu0 0.0
  %5477 = vmatpush1.msra.mxu0 0.0
  %5478 = vmatprep.subr.mxu0 0.0
  %5479 = vmatpush1.msra.mxu0 0.0
  %5480 = vmatprep.subr.mxu0 0.0
  %5481 = vmatpush1.msra.mxu0 0.0
  %5482 = vmatprep.subr.mxu0 0.0
  %5483 = vmatpush1.msra.mxu0 0.0
  %5484 = vmatprep.subr.mxu0 0.0
  %5485 = vmatpush1.msra.mxu0 0.0
  %5486 = vmatprep.subr.mxu0 0.0
  %5487 = vmatpush1.msra.mxu0 0.0
  %5488 = vmatprep.subr.mxu0 0.0
  %5489 = vmatpush1.msra.mxu0 0.0
  %5490 = vmatprep.subr.mxu0 0.0
  %5491 = vmatpush1.msra.mxu0 0.0
  %5492 = vmatprep.subr.mxu0 0.0
  %5493 = vmatpush1.msra.mxu0 0.0
  %5494 = vmatprep.subr.mxu0 0.0
  %5495 = vmatpush1.msra.mxu0 0.0
  %5496 = vmatprep.subr.mxu0 0.0
  %5497 = vmatpush1.msra.mxu0 0.0
  %5498 = vmatprep.subr.mxu0 0.0
  %5499 = vmatpush1.msra.mxu0 0.0
  %5500 = vmatprep.subr.mxu0 0.0
  %5501 = vmatpush1.msra.mxu0 0.0
  %5502 = vmatprep.subr.mxu0 0.0
  %5503 = vmatpush1.msra.mxu0 0.0
  %5504 = vmatprep.subr.mxu0 0.0
  %5505 = vmatpush1.msra.mxu0 0.0
  %5506 = vmatprep.subr.mxu0 0.0
  %5507 = vmatpush1.msra.mxu0 0.0
  %5508 = vmatprep.mubr.f32.mxu0 0.0
  %5509 = vmatmul.mubr.f32.gmra.mrb[0].mxu0 %v5361
  %v5510 = vpop.f32.mrb[0].mxu0
  %v5511 = vadd.f32 0.0, %v5510
  %v5512 = vpop.f32.mrb[0].mxu0
  %5513 = vmatprep.mubr.f32.mxu0 0.0
  %5514 = vmatmul.mubr.f32.gmra.mrb[0].mxu0 %v5364
  %v5515 = vpop.f32.mrb[0].mxu0
  %v5516 = vadd.f32 0.0, %v5515
  %v5517 = vpop.f32.mrb[0].mxu0
  %5518 = vmatprep.mubr.f32.mxu0 0.0
  %5519 = vmatmul.mubr.f32.gmra.mrb[0].mxu0 %v5367
  %v5520 = vpop.f32.mrb[0].mxu0
  %v5521 = vadd.f32 0.0, %v5520
  %v5522 = vpop.f32.mrb[0].mxu0
  %5523 = vmatprep.mubr.f32.mxu0 0.0
  %5524 = vmatmul.mubr.f32.gmra.mrb[0].mxu0 %v5370
  %v5525 = vpop.f32.mrb[0].mxu0
  %v5526 = vadd.f32 0.0, %v5525
  %v5527 = vpop.f32.mrb[0].mxu0
  %5528 = vmatprep.mubr.f32.mxu0 0.0
  %5529 = vmatmul.mubr.f32.gmra.mrb[0].mxu0 %v5373
  %v5530 = vpop.f32.mrb[0].mxu0
  %v5531 = vadd.f32 0.0, %v5530
  %v5532 = vpop.f32.mrb[0].mxu0
  %5533 = vmatprep.mubr.f32.mxu0 0.0
  %5534 = vmatmul.mubr.f32.gmra.mrb[0].mxu0 %v5376
  %v5535 = vpop.f32.mrb[0].mxu0
  %v5536 = vadd.f32 0.0, %v5535
  %v5537 = vpop.f32.mrb[0].mxu0
  %5538 = vmatprep.mubr.f32.mxu0 0.0
  %5539 = vmatmul.mubr.f32.gmra.mrb[0].mxu0 %v5379
  %v5540 = vpop.f32.mrb[0].mxu0
  %v5541 = vadd.f32 0.0, %v5540
  %v5542 = vpop.f32.mrb[0].mxu0
  %5543 = vmatprep.mubr.f32.mxu0 0.0
  %5544 = vmatmul.mubr.f32.gmra.mrb[0].mxu0 %v5382
  %v5545 = vpop.f32.mrb[0].mxu0
  %v5546 = vadd.f32 0.0, %v5545
  %v5547 = vpop.f32.mrb[0].mxu0
  %5548 = vmatprep.mubr.f32.mxu0 0.0
  %5549 = vmatmul.mubr.f32.gmra.mrb[0].mxu0 %v5385
  %v5550 = vpop.f32.mrb[0].mxu0
  %v5551 = vadd.f32 0.0, %v5550
  %v5552 = vpop.f32.mrb[0].mxu0
  %5553 = vmatprep.mubr.f32.mxu0 0.0
  %5554 = vmatmul.mubr.f32.gmra.mrb[0].mxu0 %v5388
  %v5555 = vpop.f32.mrb[0].mxu0
  %v5556 = vadd.f32 0.0, %v5555
  %v5557 = vpop.f32.mrb[0].mxu0
  %5558 = vmatprep.mubr.f32.mxu0 0.0
  %5559 = vmatmul.mubr.f32.gmra.mrb[0].mxu0 %v5391
  %v5560 = vpop.f32.mrb[0].mxu0
  %v5561 = vadd.f32 0.0, %v5560
  %v5562 = vpop.f32.mrb[0].mxu0
  %5563 = vmatprep.mubr.f32.mxu0 0.0
  %5564 = vmatmul.mubr.f32.gmra.mrb[0].mxu0 %v5394
  %v5565 = vpop.f32.mrb[0].mxu0
  %v5566 = vadd.f32 0.0, %v5565
  %v5567 = vpop.f32.mrb[0].mxu0
  %5568 = vmatprep.mubr.f32.mxu0 0.0
  %5569 = vmatmul.mubr.f32.gmra.mrb[0].mxu0 %v5397
  %v5570 = vpop.f32.mrb[0].mxu0
  %v5571 = vadd.f32 0.0, %v5570
  %v5572 = vpop.f32.mrb[0].mxu0
  %5573 = vmatprep.mubr.f32.mxu0 0.0
  %5574 = vmatmul.mubr.f32.gmra.mrb[0].mxu0 %v5400
  %v5575 = vpop.f32.mrb[0].mxu0
  %v5576 = vadd.f32 0.0, %v5575
  %v5577 = vpop.f32.mrb[0].mxu0
  %5578 = vmatprep.mubr.f32.mxu0 0.0
  %5579 = vmatmul.mubr.f32.gmra.mrb[0].mxu0 %v5403
  %v5580 = vpop.f32.mrb[0].mxu0
  %v5581 = vadd.f32 0.0, %v5580
  %v5582 = vpop.f32.mrb[0].mxu0
  %5583 = vmatprep.mubr.f32.mxu0 0.0
  %5584 = vmatmul.mubr.f32.gmra.mrb[0].mxu0 %v5406
  %v5585 = vpop.f32.mrb[0].mxu0
  %v5586 = vadd.f32 0.0, %v5585
  %v5587 = vpop.f32.mrb[0].mxu0
  %5588 = vmatprep.mubr.f32.mxu0 0.0
  %5589 = vmatmul.mubr.f32.gmra.mrb[0].mxu0 %v5409
  %v5590 = vpop.f32.mrb[0].mxu0
  %v5591 = vadd.f32 0.0, %v5590
  %v5592 = vpop.f32.mrb[0].mxu0
  %5593 = vmatprep.mubr.f32.mxu0 0.0
  %5594 = vmatmul.mubr.f32.gmra.mrb[0].mxu0 %v5412
  %v5595 = vpop.f32.mrb[0].mxu0
  %v5596 = vadd.f32 0.0, %v5595
  %v5597 = vpop.f32.mrb[0].mxu0
  %5598 = vmatprep.mubr.f32.mxu0 0.0
  %5599 = vmatmul.mubr.f32.gmra.mrb[0].mxu0 %v5415
  %v5600 = vpop.f32.mrb[0].mxu0
  %v5601 = vadd.f32 0.0, %v5600
  %v5602 = vpop.f32.mrb[0].mxu0
  %5603 = vmatprep.mubr.f32.mxu0 0.0
  %5604 = vmatmul.mubr.f32.gmra.mrb[0].mxu0 %v5418
  %v5605 = vpop.f32.mrb[0].mxu0
  %v5606 = vadd.f32 0.0, %v5605
  %v5607 = vpop.f32.mrb[0].mxu0
  %5608 = vmatprep.mubr.f32.mxu0 0.0
  %5609 = vmatmul.mubr.f32.gmra.mrb[0].mxu0 %v5421
  %v5610 = vpop.f32.mrb[0].mxu0
  %v5611 = vadd.f32 0.0, %v5610
  %v5612 = vpop.f32.mrb[0].mxu0
  %5613 = vmatprep.mubr.f32.mxu0 0.0
  %5614 = vmatmul.mubr.f32.gmra.mrb[0].mxu0 %v5424
  %v5615 = vpop.f32.mrb[0].mxu0
  %v5616 = vadd.f32 0.0, %v5615
  %v5617 = vpop.f32.mrb[0].mxu0
  %5618 = vmatprep.mubr.f32.mxu0 0.0
  %5619 = vmatmul.mubr.f32.gmra.mrb[0].mxu0 %v5427
  %v5620 = vpop.f32.mrb[0].mxu0
  %v5621 = vadd.f32 0.0, %v5620
  %v5622 = vpop.f32.mrb[0].mxu0
  %5623 = vmatprep.mubr.f32.mxu0 0.0
  %5624 = vmatmul.mubr.f32.gmra.mrb[0].mxu0 %v5430
  %v5625 = vpop.f32.mrb[0].mxu0
  %v5626 = vadd.f32 0.0, %v5625
  %v5627 = vpop.f32.mrb[0].mxu0
  %5628 = vmatprep.mubr.f32.mxu0 0.0
  %5629 = vmatmul.mubr.f32.gmra.mrb[0].mxu0 %v5433
  %v5630 = vpop.f32.mrb[0].mxu0
  %v5631 = vadd.f32 0.0, %v5630
  %v5632 = vpop.f32.mrb[0].mxu0
  %5633 = vmatprep.mubr.f32.mxu0 0.0
  %5634 = vmatmul.mubr.f32.gmra.mrb[0].mxu0 %v5436
  %v5635 = vpop.f32.mrb[0].mxu0
  %v5636 = vadd.f32 0.0, %v5635
  %v5637 = vpop.f32.mrb[0].mxu0
  %5638 = vmatprep.mubr.f32.mxu0 0.0
  %5639 = vmatmul.mubr.f32.gmra.mrb[0].mxu0 %v5439
  %v5640 = vpop.f32.mrb[0].mxu0
  %v5641 = vadd.f32 0.0, %v5640
  %v5642 = vpop.f32.mrb[0].mxu0
  %5643 = vmatprep.mubr.f32.mxu0 0.0
  %5644 = vmatmul.mubr.f32.gmra.mrb[0].mxu0 %v5442
  %v5645 = vpop.f32.mrb[0].mxu0
  %v5646 = vadd.f32 0.0, %v5645
  %v5647 = vpop.f32.mrb[0].mxu0
  %5648 = vdwg.mxu0
  %5649 = vrot.lane.b32.xlu0 %v4857, 96
  %v5650 = vpop.permute.xlu0 %5649
  %v5652 = vadd.f32 %v5511, %v5650
  %v5653 = vadd.f32 %v5516, %v5650
  %v5654 = vadd.f32 %v5521, %v5650
  %v5655 = vadd.f32 %v5526, %v5650
  %v5656 = vadd.f32 %v5531, %v5650
  %v5657 = vadd.f32 %v5536, %v5650
  %v5658 = vadd.f32 %v5541, %v5650
  %v5659 = vadd.f32 %v5546, %v5650
  %v5660 = vadd.f32 %v5551, %v5650
  %v5661 = vadd.f32 %v5556, %v5650
  %v5662 = vadd.f32 %v5561, %v5650
  %v5663 = vadd.f32 %v5566, %v5650
  %v5664 = vadd.f32 %v5571, %v5650
  %v5665 = vadd.f32 %v5576, %v5650
  %v5666 = vadd.f32 %v5581, %v5650
  %v5667 = vadd.f32 %v5586, %v5650
  %v5668 = vadd.f32 %v5591, %v5650
  %v5669 = vadd.f32 %v5596, %v5650
  %v5670 = vadd.f32 %v5601, %v5650
  %v5671 = vadd.f32 %v5606, %v5650
  %v5672 = vadd.f32 %v5611, %v5650
  %v5673 = vadd.f32 %v5616, %v5650
  %v5674 = vadd.f32 %v5621, %v5650
  %v5675 = vadd.f32 %v5626, %v5650
  %v5676 = vadd.f32 %v5631, %v5650
  %v5677 = vadd.f32 %v5636, %v5650
  %v5678 = vadd.f32 %v5641, %v5650
  %v5679 = vadd.f32 %v5646, %v5650
  %v5680 = vxor.u32 %v5652, 2147483648
  %v5681 = vxor.u32 %v5653, 2147483648
  %v5682 = vxor.u32 %v5654, 2147483648
  %v5683 = vxor.u32 %v5655, 2147483648
  %v5684 = vxor.u32 %v5656, 2147483648
  %v5685 = vxor.u32 %v5657, 2147483648
  %v5686 = vxor.u32 %v5658, 2147483648
  %v5687 = vxor.u32 %v5659, 2147483648
  %v5688 = vxor.u32 %v5660, 2147483648
  %v5689 = vxor.u32 %v5661, 2147483648
  %v5690 = vxor.u32 %v5662, 2147483648
  %v5691 = vxor.u32 %v5663, 2147483648
  %v5692 = vxor.u32 %v5664, 2147483648
  %v5693 = vxor.u32 %v5665, 2147483648
  %v5694 = vxor.u32 %v5666, 2147483648
  %v5695 = vxor.u32 %v5667, 2147483648
  %v5696 = vxor.u32 %v5668, 2147483648
  %v5697 = vxor.u32 %v5669, 2147483648
  %v5698 = vxor.u32 %v5670, 2147483648
  %v5699 = vxor.u32 %v5671, 2147483648
  %v5700 = vxor.u32 %v5672, 2147483648
  %v5701 = vxor.u32 %v5673, 2147483648
  %v5702 = vxor.u32 %v5674, 2147483648
  %v5703 = vxor.u32 %v5675, 2147483648
  %v5704 = vxor.u32 %v5676, 2147483648
  %v5705 = vxor.u32 %v5677, 2147483648
  %v5706 = vxor.u32 %v5678, 2147483648
  %v5707 = vxor.u32 %v5679, 2147483648
  %v5708 = vmul.f32 %v5680, 1.442695
  %v5709 = vpow.pop %v5708
  %v5710 = vmul.f32 %v5681, 1.442695
  %v5711 = vpow.pop %v5710
  %v5712 = vmul.f32 %v5682, 1.442695
  %v5713 = vpow.pop %v5712
  %v5714 = vmul.f32 %v5683, 1.442695
  %v5715 = vpow.pop %v5714
  %v5716 = vmul.f32 %v5684, 1.442695
  %v5717 = vpow.pop %v5716
  %v5718 = vmul.f32 %v5685, 1.442695
  %v5719 = vpow.pop %v5718
  %v5720 = vmul.f32 %v5686, 1.442695
  %v5721 = vpow.pop %v5720
  %v5722 = vmul.f32 %v5687, 1.442695
  %v5723 = vpow.pop %v5722
  %v5724 = vmul.f32 %v5688, 1.442695
  %v5725 = vpow.pop %v5724
  %v5726 = vmul.f32 %v5689, 1.442695
  %v5727 = vpow.pop %v5726
  %v5728 = vmul.f32 %v5690, 1.442695
  %v5729 = vpow.pop %v5728
  %v5730 = vmul.f32 %v5691, 1.442695
  %v5731 = vpow.pop %v5730
  %v5732 = vmul.f32 %v5692, 1.442695
  %v5733 = vpow.pop %v5732
  %v5734 = vmul.f32 %v5693, 1.442695
  %v5735 = vpow.pop %v5734
  %v5736 = vmul.f32 %v5694, 1.442695
  %v5737 = vpow.pop %v5736
  %v5738 = vmul.f32 %v5695, 1.442695
  %v5739 = vpow.pop %v5738
  %v5740 = vmul.f32 %v5696, 1.442695
  %v5741 = vpow.pop %v5740
  %v5742 = vmul.f32 %v5697, 1.442695
  %v5743 = vpow.pop %v5742
  %v5744 = vmul.f32 %v5698, 1.442695
  %v5745 = vpow.pop %v5744
  %v5746 = vmul.f32 %v5699, 1.442695
  %v5747 = vpow.pop %v5746
  %v5748 = vmul.f32 %v5700, 1.442695
  %v5749 = vpow.pop %v5748
  %v5750 = vmul.f32 %v5701, 1.442695
  %v5751 = vpow.pop %v5750
  %v5752 = vmul.f32 %v5702, 1.442695
  %v5753 = vpow.pop %v5752
  %v5754 = vmul.f32 %v5703, 1.442695
  %v5755 = vpow.pop %v5754
  %v5756 = vmul.f32 %v5704, 1.442695
  %v5757 = vpow.pop %v5756
  %v5758 = vmul.f32 %v5705, 1.442695
  %v5759 = vpow.pop %v5758
  %v5760 = vmul.f32 %v5706, 1.442695
  %v5761 = vpow.pop %v5760
  %v5762 = vmul.f32 %v5707, 1.442695
  %v5763 = vpow.pop %v5762
  %v5764 = vadd.f32 %v5709, 1.0
  %v5765 = vadd.f32 %v5711, 1.0
  %v5766 = vadd.f32 %v5713, 1.0
  %v5767 = vadd.f32 %v5715, 1.0
  %v5768 = vadd.f32 %v5717, 1.0
  %v5769 = vadd.f32 %v5719, 1.0
  %v5770 = vadd.f32 %v5721, 1.0
  %v5771 = vadd.f32 %v5723, 1.0
  %v5772 = vadd.f32 %v5725, 1.0
  %v5773 = vadd.f32 %v5727, 1.0
  %v5774 = vadd.f32 %v5729, 1.0
  %v5775 = vadd.f32 %v5731, 1.0
  %v5776 = vadd.f32 %v5733, 1.0
  %v5777 = vadd.f32 %v5735, 1.0
  %v5778 = vadd.f32 %v5737, 1.0
  %v5779 = vadd.f32 %v5739, 1.0
  %v5780 = vadd.f32 %v5741, 1.0
  %v5781 = vadd.f32 %v5743, 1.0
  %v5782 = vadd.f32 %v5745, 1.0
  %v5783 = vadd.f32 %v5747, 1.0
  %v5784 = vadd.f32 %v5749, 1.0
  %v5785 = vadd.f32 %v5751, 1.0
  %v5786 = vadd.f32 %v5753, 1.0
  %v5787 = vadd.f32 %v5755, 1.0
  %v5788 = vadd.f32 %v5757, 1.0
  %v5789 = vadd.f32 %v5759, 1.0
  %v5790 = vadd.f32 %v5761, 1.0
  %v5791 = vadd.f32 %v5763, 1.0
  %v5792 = vrcp.pop %v5764
  %v5793 = vmul.f32 1.0, %v5792
  %v5794 = vrcp.pop %v5765
  %v5795 = vmul.f32 1.0, %v5794
  %v5796 = vrcp.pop %v5766
  %v5797 = vmul.f32 1.0, %v5796
  %v5798 = vrcp.pop %v5767
  %v5799 = vmul.f32 1.0, %v5798
  %v5800 = vrcp.pop %v5768
  %v5801 = vmul.f32 1.0, %v5800
  %v5802 = vrcp.pop %v5769
  %v5803 = vmul.f32 1.0, %v5802
  %v5804 = vrcp.pop %v5770
  %v5805 = vmul.f32 1.0, %v5804
  %v5806 = vrcp.pop %v5771
  %v5807 = vmul.f32 1.0, %v5806
  %v5808 = vrcp.pop %v5772
  %v5809 = vmul.f32 1.0, %v5808
  %v5810 = vrcp.pop %v5773
  %v5811 = vmul.f32 1.0, %v5810
  %v5812 = vrcp.pop %v5774
  %v5813 = vmul.f32 1.0, %v5812
  %v5814 = vrcp.pop %v5775
  %v5815 = vmul.f32 1.0, %v5814
  %v5816 = vrcp.pop %v5776
  %v5817 = vmul.f32 1.0, %v5816
  %v5818 = vrcp.pop %v5777
  %v5819 = vmul.f32 1.0, %v5818
  %v5820 = vrcp.pop %v5778
  %v5821 = vmul.f32 1.0, %v5820
  %v5822 = vrcp.pop %v5779
  %v5823 = vmul.f32 1.0, %v5822
  %v5824 = vrcp.pop %v5780
  %v5825 = vmul.f32 1.0, %v5824
  %v5826 = vrcp.pop %v5781
  %v5827 = vmul.f32 1.0, %v5826
  %v5828 = vrcp.pop %v5782
  %v5829 = vmul.f32 1.0, %v5828
  %v5830 = vrcp.pop %v5783
  %v5831 = vmul.f32 1.0, %v5830
  %v5832 = vrcp.pop %v5784
  %v5833 = vmul.f32 1.0, %v5832
  %v5834 = vrcp.pop %v5785
  %v5835 = vmul.f32 1.0, %v5834
  %v5836 = vrcp.pop %v5786
  %v5837 = vmul.f32 1.0, %v5836
  %v5838 = vrcp.pop %v5787
  %v5839 = vmul.f32 1.0, %v5838
  %v5840 = vrcp.pop %v5788
  %v5841 = vmul.f32 1.0, %v5840
  %v5842 = vrcp.pop %v5789
  %v5843 = vmul.f32 1.0, %v5842
  %v5844 = vrcp.pop %v5790
  %v5845 = vmul.f32 1.0, %v5844
  %v5846 = vrcp.pop %v5791
  %v5847 = vmul.f32 1.0, %v5846
  %v5848 = vmul.f32 %v5652, %v5793
  %v5849 = vmul.f32 %v5653, %v5795
  %v5850 = vmul.f32 %v5654, %v5797
  %v5851 = vmul.f32 %v5655, %v5799
  %v5852 = vmul.f32 %v5656, %v5801
  %v5853 = vmul.f32 %v5657, %v5803
  %v5854 = vmul.f32 %v5658, %v5805
  %v5855 = vmul.f32 %v5659, %v5807
  %v5856 = vmul.f32 %v5660, %v5809
  %v5857 = vmul.f32 %v5661, %v5811
  %v5858 = vmul.f32 %v5662, %v5813
  %v5859 = vmul.f32 %v5663, %v5815
  %v5860 = vmul.f32 %v5664, %v5817
  %v5861 = vmul.f32 %v5665, %v5819
  %v5862 = vmul.f32 %v5666, %v5821
  %v5863 = vmul.f32 %v5667, %v5823
  %v5864 = vmul.f32 %v5668, %v5825
  %v5865 = vmul.f32 %v5669, %v5827
  %v5866 = vmul.f32 %v5670, %v5829
  %v5867 = vmul.f32 %v5671, %v5831
  %v5868 = vmul.f32 %v5672, %v5833
  %v5869 = vmul.f32 %v5673, %v5835
  %v5870 = vmul.f32 %v5674, %v5837
  %v5871 = vmul.f32 %v5675, %v5839
  %v5872 = vmul.f32 %v5676, %v5841
  %v5873 = vmul.f32 %v5677, %v5843
  %v5874 = vmul.f32 %v5678, %v5845
  %v5875 = vmul.f32 %v5679, %v5847
  %s5876 = scalar_lea.vmem %s14, 32
  %v5877 = vld [vmem:[%s5876] sm:$0xff]
  %v5878 = vld [vmem:[%s5876 + $0x8] sm:$0xff]
  %v5879 = vld [vmem:[%s5876 + $0x10] sm:$0xff]
  %v5880 = vld [vmem:[%s5876 + $0x18] sm:$0xff]
  %5885 = vrot.lane.b32.xlu0 %v5877, 96
  %v5886 = vpop.permute.xlu0 %5885
  %5887 = vrot.lane.b32.xlu0 %v5878, 96
  %v5888 = vpop.permute.xlu0 %5887
  %5889 = vrot.lane.b32.xlu0 %v5879, 96
  %v5890 = vpop.permute.xlu0 %5889
  %5891 = vrot.lane.b32.xlu0 %v5880, 96
  %v5892 = vpop.permute.xlu0 %5891
  %v5898 = vsel %vm284, %v5848, 0
  %v5901 = vsel %vm284, %v5849, 0
  %v5904 = vsel %vm284, %v5850, 0
  %v5907 = vsel %vm284, %v5851, 0
  %v5910 = vsel %vm284, %v5852, 0
  %v5913 = vsel %vm284, %v5853, 0
  %v5916 = vsel %vm284, %v5854, 0
  %v5919 = vsel %vm284, %v5855, 0
  %v5922 = vsel %vm284, %v5856, 0
  %v5925 = vsel %vm284, %v5857, 0
  %v5928 = vsel %vm284, %v5858, 0
  %v5931 = vsel %vm284, %v5859, 0
  %v5934 = vsel %vm284, %v5860, 0
  %v5937 = vsel %vm284, %v5861, 0
  %v5940 = vsel %vm284, %v5862, 0
  %v5943 = vsel %vm284, %v5863, 0
  %v5946 = vsel %vm284, %v5864, 0
  %v5949 = vsel %vm284, %v5865, 0
  %v5952 = vsel %vm284, %v5866, 0
  %v5955 = vsel %vm284, %v5867, 0
  %v5958 = vsel %vm284, %v5868, 0
  %v5961 = vsel %vm284, %v5869, 0
  %v5964 = vsel %vm284, %v5870, 0
  %v5967 = vsel %vm284, %v5871, 0
  %v5970 = vsel %vm284, %v5872, 0
  %v5973 = vsel %vm284, %v5873, 0
  %v5976 = vsel %vm284, %v5874, 0
  %v5979 = vsel %vm284, %v5875, 0
  %5981 = vmatprep.subr.mxu0 0.0
  %5982 = vmatpush1.msra.mxu0 %v5886
  %5983 = vmatprep.subr.mxu0 0.0
  %5984 = vmatpush1.msra.mxu0 %v5888
  %5985 = vmatprep.subr.mxu0 0.0
  %5986 = vmatpush1.msra.mxu0 %v5890
  %5987 = vmatprep.subr.mxu0 0.0
  %5988 = vmatpush1.msra.mxu0 %v5892
  %5989 = vmatprep.subr.mxu0 0.0
  %5990 = vmatpush1.msra.mxu0 0.0
  %5991 = vmatprep.subr.mxu0 0.0
  %5992 = vmatpush1.msra.mxu0 0.0
  %5993 = vmatprep.subr.mxu0 0.0
  %5994 = vmatpush1.msra.mxu0 0.0
  %5995 = vmatprep.subr.mxu0 0.0
  %5996 = vmatpush1.msra.mxu0 0.0
  %5997 = vmatprep.subr.mxu0 0.0
  %5998 = vmatpush1.msra.mxu0 0.0
  %5999 = vmatprep.subr.mxu0 0.0
  %6000 = vmatpush1.msra.mxu0 0.0
  %6001 = vmatprep.subr.mxu0 0.0
  %6002 = vmatpush1.msra.mxu0 0.0
  %6003 = vmatprep.subr.mxu0 0.0
  %6004 = vmatpush1.msra.mxu0 0.0
  %6005 = vmatprep.subr.mxu0 0.0
  %6006 = vmatpush1.msra.mxu0 0.0
  %6007 = vmatprep.subr.mxu0 0.0
  %6008 = vmatpush1.msra.mxu0 0.0
  %6009 = vmatprep.subr.mxu0 0.0
  %6010 = vmatpush1.msra.mxu0 0.0
  %6011 = vmatprep.subr.mxu0 0.0
  %6012 = vmatpush1.msra.mxu0 0.0
  %6013 = vmatprep.subr.mxu0 0.0
  %6014 = vmatpush1.msra.mxu0 0.0
  %6015 = vmatprep.subr.mxu0 0.0
  %6016 = vmatpush1.msra.mxu0 0.0
  %6017 = vmatprep.subr.mxu0 0.0
  %6018 = vmatpush1.msra.mxu0 0.0
  %6019 = vmatprep.subr.mxu0 0.0
  %6020 = vmatpush1.msra.mxu0 0.0
  %6021 = vmatprep.subr.mxu0 0.0
  %6022 = vmatpush1.msra.mxu0 0.0
  %6023 = vmatprep.subr.mxu0 0.0
  %6024 = vmatpush1.msra.mxu0 0.0
  %6025 = vmatprep.subr.mxu0 0.0
  %6026 = vmatpush1.msra.mxu0 0.0
  %6027 = vmatprep.subr.mxu0 0.0
  %6028 = vmatpush1.msra.mxu0 0.0
  %6029 = vmatprep.subr.mxu0 0.0
  %6030 = vmatpush1.msra.mxu0 0.0
  %6031 = vmatprep.subr.mxu0 0.0
  %6032 = vmatpush1.msra.mxu0 0.0
  %6033 = vmatprep.subr.mxu0 0.0
  %6034 = vmatpush1.msra.mxu0 0.0
  %6035 = vmatprep.subr.mxu0 0.0
  %6036 = vmatpush1.msra.mxu0 0.0
  %6037 = vmatprep.subr.mxu0 0.0
  %6038 = vmatpush1.msra.mxu0 0.0
  %6039 = vmatprep.subr.mxu0 0.0
  %6040 = vmatpush1.msra.mxu0 0.0
  %6041 = vmatprep.subr.mxu0 0.0
  %6042 = vmatpush1.msra.mxu0 0.0
  %6043 = vmatprep.subr.mxu0 0.0
  %6044 = vmatpush1.msra.mxu0 0.0
  %6045 = vmatprep.mubr.f32.mxu0 0.0
  %6046 = vmatmul.mubr.f32.gmra.mrb[0].mxu0 %v5898
  %v6047 = vpop.f32.mrb[0].mxu0
  %v6048 = vadd.f32 0.0, %v6047
  %v6049 = vpop.f32.mrb[0].mxu0
  %6050 = vmatprep.mubr.f32.mxu0 0.0
  %6051 = vmatmul.mubr.f32.gmra.mrb[0].mxu0 %v5901
  %v6052 = vpop.f32.mrb[0].mxu0
  %v6053 = vadd.f32 0.0, %v6052
  %v6054 = vpop.f32.mrb[0].mxu0
  %6055 = vmatprep.mubr.f32.mxu0 0.0
  %6056 = vmatmul.mubr.f32.gmra.mrb[0].mxu0 %v5904
  %v6057 = vpop.f32.mrb[0].mxu0
  %v6058 = vadd.f32 0.0, %v6057
  %v6059 = vpop.f32.mrb[0].mxu0
  %6060 = vmatprep.mubr.f32.mxu0 0.0
  %6061 = vmatmul.mubr.f32.gmra.mrb[0].mxu0 %v5907
  %v6062 = vpop.f32.mrb[0].mxu0
  %v6063 = vadd.f32 0.0, %v6062
  %v6064 = vpop.f32.mrb[0].mxu0
  %6065 = vmatprep.mubr.f32.mxu0 0.0
  %6066 = vmatmul.mubr.f32.gmra.mrb[0].mxu0 %v5910
  %v6067 = vpop.f32.mrb[0].mxu0
  %v6068 = vadd.f32 0.0, %v6067
  %v6069 = vpop.f32.mrb[0].mxu0
  %6070 = vmatprep.mubr.f32.mxu0 0.0
  %6071 = vmatmul.mubr.f32.gmra.mrb[0].mxu0 %v5913
  %v6072 = vpop.f32.mrb[0].mxu0
  %v6073 = vadd.f32 0.0, %v6072
  %v6074 = vpop.f32.mrb[0].mxu0
  %6075 = vmatprep.mubr.f32.mxu0 0.0
  %6076 = vmatmul.mubr.f32.gmra.mrb[0].mxu0 %v5916
  %v6077 = vpop.f32.mrb[0].mxu0
  %v6078 = vadd.f32 0.0, %v6077
  %v6079 = vpop.f32.mrb[0].mxu0
  %6080 = vmatprep.mubr.f32.mxu0 0.0
  %6081 = vmatmul.mubr.f32.gmra.mrb[0].mxu0 %v5919
  %v6082 = vpop.f32.mrb[0].mxu0
  %v6083 = vadd.f32 0.0, %v6082
  %v6084 = vpop.f32.mrb[0].mxu0
  %6085 = vmatprep.mubr.f32.mxu0 0.0
  %6086 = vmatmul.mubr.f32.gmra.mrb[0].mxu0 %v5922
  %v6087 = vpop.f32.mrb[0].mxu0
  %v6088 = vadd.f32 0.0, %v6087
  %v6089 = vpop.f32.mrb[0].mxu0
  %6090 = vmatprep.mubr.f32.mxu0 0.0
  %6091 = vmatmul.mubr.f32.gmra.mrb[0].mxu0 %v5925
  %v6092 = vpop.f32.mrb[0].mxu0
  %v6093 = vadd.f32 0.0, %v6092
  %v6094 = vpop.f32.mrb[0].mxu0
  %6095 = vmatprep.mubr.f32.mxu0 0.0
  %6096 = vmatmul.mubr.f32.gmra.mrb[0].mxu0 %v5928
  %v6097 = vpop.f32.mrb[0].mxu0
  %v6098 = vadd.f32 0.0, %v6097
  %v6099 = vpop.f32.mrb[0].mxu0
  %6100 = vmatprep.mubr.f32.mxu0 0.0
  %6101 = vmatmul.mubr.f32.gmra.mrb[0].mxu0 %v5931
  %v6102 = vpop.f32.mrb[0].mxu0
  %v6103 = vadd.f32 0.0, %v6102
  %v6104 = vpop.f32.mrb[0].mxu0
  %6105 = vmatprep.mubr.f32.mxu0 0.0
  %6106 = vmatmul.mubr.f32.gmra.mrb[0].mxu0 %v5934
  %v6107 = vpop.f32.mrb[0].mxu0
  %v6108 = vadd.f32 0.0, %v6107
  %v6109 = vpop.f32.mrb[0].mxu0
  %6110 = vmatprep.mubr.f32.mxu0 0.0
  %6111 = vmatmul.mubr.f32.gmra.mrb[0].mxu0 %v5937
  %v6112 = vpop.f32.mrb[0].mxu0
  %v6113 = vadd.f32 0.0, %v6112
  %v6114 = vpop.f32.mrb[0].mxu0
  %6115 = vmatprep.mubr.f32.mxu0 0.0
  %6116 = vmatmul.mubr.f32.gmra.mrb[0].mxu0 %v5940
  %v6117 = vpop.f32.mrb[0].mxu0
  %v6118 = vadd.f32 0.0, %v6117
  %v6119 = vpop.f32.mrb[0].mxu0
  %6120 = vmatprep.mubr.f32.mxu0 0.0
  %6121 = vmatmul.mubr.f32.gmra.mrb[0].mxu0 %v5943
  %v6122 = vpop.f32.mrb[0].mxu0
  %v6123 = vadd.f32 0.0, %v6122
  %v6124 = vpop.f32.mrb[0].mxu0
  %6125 = vmatprep.mubr.f32.mxu0 0.0
  %6126 = vmatmul.mubr.f32.gmra.mrb[0].mxu0 %v5946
  %v6127 = vpop.f32.mrb[0].mxu0
  %v6128 = vadd.f32 0.0, %v6127
  %v6129 = vpop.f32.mrb[0].mxu0
  %6130 = vmatprep.mubr.f32.mxu0 0.0
  %6131 = vmatmul.mubr.f32.gmra.mrb[0].mxu0 %v5949
  %v6132 = vpop.f32.mrb[0].mxu0
  %v6133 = vadd.f32 0.0, %v6132
  %v6134 = vpop.f32.mrb[0].mxu0
  %6135 = vmatprep.mubr.f32.mxu0 0.0
  %6136 = vmatmul.mubr.f32.gmra.mrb[0].mxu0 %v5952
  %v6137 = vpop.f32.mrb[0].mxu0
  %v6138 = vadd.f32 0.0, %v6137
  %v6139 = vpop.f32.mrb[0].mxu0
  %6140 = vmatprep.mubr.f32.mxu0 0.0
  %6141 = vmatmul.mubr.f32.gmra.mrb[0].mxu0 %v5955
  %v6142 = vpop.f32.mrb[0].mxu0
  %v6143 = vadd.f32 0.0, %v6142
  %v6144 = vpop.f32.mrb[0].mxu0
  %6145 = vmatprep.mubr.f32.mxu0 0.0
  %6146 = vmatmul.mubr.f32.gmra.mrb[0].mxu0 %v5958
  %v6147 = vpop.f32.mrb[0].mxu0
  %v6148 = vadd.f32 0.0, %v6147
  %v6149 = vpop.f32.mrb[0].mxu0
  %6150 = vmatprep.mubr.f32.mxu0 0.0
  %6151 = vmatmul.mubr.f32.gmra.mrb[0].mxu0 %v5961
  %v6152 = vpop.f32.mrb[0].mxu0
  %v6153 = vadd.f32 0.0, %v6152
  %v6154 = vpop.f32.mrb[0].mxu0
  %6155 = vmatprep.mubr.f32.mxu0 0.0
  %6156 = vmatmul.mubr.f32.gmra.mrb[0].mxu0 %v5964
  %v6157 = vpop.f32.mrb[0].mxu0
  %v6158 = vadd.f32 0.0, %v6157
  %v6159 = vpop.f32.mrb[0].mxu0
  %6160 = vmatprep.mubr.f32.mxu0 0.0
  %6161 = vmatmul.mubr.f32.gmra.mrb[0].mxu0 %v5967
  %v6162 = vpop.f32.mrb[0].mxu0
  %v6163 = vadd.f32 0.0, %v6162
  %v6164 = vpop.f32.mrb[0].mxu0
  %6165 = vmatprep.mubr.f32.mxu0 0.0
  %6166 = vmatmul.mubr.f32.gmra.mrb[0].mxu0 %v5970
  %v6167 = vpop.f32.mrb[0].mxu0
  %v6168 = vadd.f32 0.0, %v6167
  %v6169 = vpop.f32.mrb[0].mxu0
  %6170 = vmatprep.mubr.f32.mxu0 0.0
  %6171 = vmatmul.mubr.f32.gmra.mrb[0].mxu0 %v5973
  %v6172 = vpop.f32.mrb[0].mxu0
  %v6173 = vadd.f32 0.0, %v6172
  %v6174 = vpop.f32.mrb[0].mxu0
  %6175 = vmatprep.mubr.f32.mxu0 0.0
  %6176 = vmatmul.mubr.f32.gmra.mrb[0].mxu0 %v5976
  %v6177 = vpop.f32.mrb[0].mxu0
  %v6178 = vadd.f32 0.0, %v6177
  %v6179 = vpop.f32.mrb[0].mxu0
  %6180 = vmatprep.mubr.f32.mxu0 0.0
  %6181 = vmatmul.mubr.f32.gmra.mrb[0].mxu0 %v5979
  %v6182 = vpop.f32.mrb[0].mxu0
  %v6183 = vadd.f32 0.0, %v6182
  %v6184 = vpop.f32.mrb[0].mxu0
  %6185 = vdwg.mxu0
  %6187 = vset.pattern.permute.xlu0 0
  %6188 = vperm.xlu0 %6187, %v6048
  %v6189 = vpop.permute.xlu0 %6188
  %6192 = vset.pattern.permute.xlu0 0
  %6193 = vperm.xlu0 %6192, %v6053
  %v6194 = vpop.permute.xlu0 %6193
  %6197 = vset.pattern.permute.xlu0 0
  %6198 = vperm.xlu0 %6197, %v6058
  %v6199 = vpop.permute.xlu0 %6198
  %6202 = vset.pattern.permute.xlu0 0
  %6203 = vperm.xlu0 %6202, %v6063
  %v6204 = vpop.permute.xlu0 %6203
  %6207 = vset.pattern.permute.xlu0 0
  %6208 = vperm.xlu0 %6207, %v6068
  %v6209 = vpop.permute.xlu0 %6208
  %6212 = vset.pattern.permute.xlu0 0
  %6213 = vperm.xlu0 %6212, %v6073
  %v6214 = vpop.permute.xlu0 %6213
  %6217 = vset.pattern.permute.xlu0 0
  %6218 = vperm.xlu0 %6217, %v6078
  %v6219 = vpop.permute.xlu0 %6218
  %6222 = vset.pattern.permute.xlu0 0
  %6223 = vperm.xlu0 %6222, %v6083
  %v6224 = vpop.permute.xlu0 %6223
  %6227 = vset.pattern.permute.xlu0 0
  %6228 = vperm.xlu0 %6227, %v6088
  %v6229 = vpop.permute.xlu0 %6228
  %6232 = vset.pattern.permute.xlu0 0
  %6233 = vperm.xlu0 %6232, %v6093
  %v6234 = vpop.permute.xlu0 %6233
  %6237 = vset.pattern.permute.xlu0 0
  %6238 = vperm.xlu0 %6237, %v6098
  %v6239 = vpop.permute.xlu0 %6238
  %6242 = vset.pattern.permute.xlu0 0
  %6243 = vperm.xlu0 %6242, %v6103
  %v6244 = vpop.permute.xlu0 %6243
  %6247 = vset.pattern.permute.xlu0 0
  %6248 = vperm.xlu0 %6247, %v6108
  %v6249 = vpop.permute.xlu0 %6248
  %6252 = vset.pattern.permute.xlu0 0
  %6253 = vperm.xlu0 %6252, %v6113
  %v6254 = vpop.permute.xlu0 %6253
  %6257 = vset.pattern.permute.xlu0 0
  %6258 = vperm.xlu0 %6257, %v6118
  %v6259 = vpop.permute.xlu0 %6258
  %6262 = vset.pattern.permute.xlu0 0
  %6263 = vperm.xlu0 %6262, %v6123
  %v6264 = vpop.permute.xlu0 %6263
  %6267 = vset.pattern.permute.xlu0 0
  %6268 = vperm.xlu0 %6267, %v6128
  %v6269 = vpop.permute.xlu0 %6268
  %6272 = vset.pattern.permute.xlu0 0
  %6273 = vperm.xlu0 %6272, %v6133
  %v6274 = vpop.permute.xlu0 %6273
  %6277 = vset.pattern.permute.xlu0 0
  %6278 = vperm.xlu0 %6277, %v6138
  %v6279 = vpop.permute.xlu0 %6278
  %6282 = vset.pattern.permute.xlu0 0
  %6283 = vperm.xlu0 %6282, %v6143
  %v6284 = vpop.permute.xlu0 %6283
  %6287 = vset.pattern.permute.xlu0 0
  %6288 = vperm.xlu0 %6287, %v6148
  %v6289 = vpop.permute.xlu0 %6288
  %6292 = vset.pattern.permute.xlu0 0
  %6293 = vperm.xlu0 %6292, %v6153
  %v6294 = vpop.permute.xlu0 %6293
  %6297 = vset.pattern.permute.xlu0 0
  %6298 = vperm.xlu0 %6297, %v6158
  %v6299 = vpop.permute.xlu0 %6298
  %6302 = vset.pattern.permute.xlu0 0
  %6303 = vperm.xlu0 %6302, %v6163
  %v6304 = vpop.permute.xlu0 %6303
  %6307 = vset.pattern.permute.xlu0 0
  %6308 = vperm.xlu0 %6307, %v6168
  %v6309 = vpop.permute.xlu0 %6308
  %6312 = vset.pattern.permute.xlu0 0
  %6313 = vperm.xlu0 %6312, %v6173
  %v6314 = vpop.permute.xlu0 %6313
  %6317 = vset.pattern.permute.xlu0 0
  %6318 = vperm.xlu0 %6317, %v6178
  %v6319 = vpop.permute.xlu0 %6318
  %6322 = vset.pattern.permute.xlu0 0
  %6323 = vperm.xlu0 %6322, %v6183
  %v6324 = vpop.permute.xlu0 %6323
  %v6326 = vmul.f32 %v4117, %v6189
  %v6327 = vmul.f32 %v4122, %v6194
  %v6328 = vmul.f32 %v4127, %v6199
  %v6329 = vmul.f32 %v4132, %v6204
  %v6330 = vmul.f32 %v4137, %v6209
  %v6331 = vmul.f32 %v4142, %v6214
  %v6332 = vmul.f32 %v4147, %v6219
  %v6333 = vmul.f32 %v4152, %v6224
  %v6334 = vmul.f32 %v4157, %v6229
  %v6335 = vmul.f32 %v4162, %v6234
  %v6336 = vmul.f32 %v4167, %v6239
  %v6337 = vmul.f32 %v4172, %v6244
  %v6338 = vmul.f32 %v4177, %v6249
  %v6339 = vmul.f32 %v4182, %v6254
  %v6340 = vmul.f32 %v4187, %v6259
  %v6341 = vmul.f32 %v4192, %v6264
  %v6342 = vmul.f32 %v4197, %v6269
  %v6343 = vmul.f32 %v4202, %v6274
  %v6344 = vmul.f32 %v4207, %v6279
  %v6345 = vmul.f32 %v4212, %v6284
  %v6346 = vmul.f32 %v4217, %v6289
  %v6347 = vmul.f32 %v4222, %v6294
  %v6348 = vmul.f32 %v4227, %v6299
  %v6349 = vmul.f32 %v4232, %v6304
  %v6350 = vmul.f32 %v4237, %v6309
  %v6351 = vmul.f32 %v4242, %v6314
  %v6352 = vmul.f32 %v4247, %v6319
  %v6353 = vmul.f32 %v4252, %v6324
  %6382 = vrot.lane.b32.xlu0 %v5511, 96
  %v6383 = vpop.permute.xlu0 %6382
  %6384 = vrot.lane.b32.xlu0 %v5516, 96
  %v6385 = vpop.permute.xlu0 %6384
  %6386 = vrot.lane.b32.xlu0 %v5521, 96
  %v6387 = vpop.permute.xlu0 %6386
  %6388 = vrot.lane.b32.xlu0 %v5526, 96
  %v6389 = vpop.permute.xlu0 %6388
  %6390 = vrot.lane.b32.xlu0 %v5531, 96
  %v6391 = vpop.permute.xlu0 %6390
  %6392 = vrot.lane.b32.xlu0 %v5536, 96
  %v6393 = vpop.permute.xlu0 %6392
  %6394 = vrot.lane.b32.xlu0 %v5541, 96
  %v6395 = vpop.permute.xlu0 %6394
  %6396 = vrot.lane.b32.xlu0 %v5546, 96
  %v6397 = vpop.permute.xlu0 %6396
  %6398 = vrot.lane.b32.xlu0 %v5551, 96
  %v6399 = vpop.permute.xlu0 %6398
  %6400 = vrot.lane.b32.xlu0 %v5556, 96
  %v6401 = vpop.permute.xlu0 %6400
  %6402 = vrot.lane.b32.xlu0 %v5561, 96
  %v6403 = vpop.permute.xlu0 %6402
  %6404 = vrot.lane.b32.xlu0 %v5566, 96
  %v6405 = vpop.permute.xlu0 %6404
  %6406 = vrot.lane.b32.xlu0 %v5571, 96
  %v6407 = vpop.permute.xlu0 %6406
  %6408 = vrot.lane.b32.xlu0 %v5576, 96
  %v6409 = vpop.permute.xlu0 %6408
  %6410 = vrot.lane.b32.xlu0 %v5581, 96
  %v6411 = vpop.permute.xlu0 %6410
  %6412 = vrot.lane.b32.xlu0 %v5586, 96
  %v6413 = vpop.permute.xlu0 %6412
  %6414 = vrot.lane.b32.xlu0 %v5591, 96
  %v6415 = vpop.permute.xlu0 %6414
  %6416 = vrot.lane.b32.xlu0 %v5596, 96
  %v6417 = vpop.permute.xlu0 %6416
  %6418 = vrot.lane.b32.xlu0 %v5601, 96
  %v6419 = vpop.permute.xlu0 %6418
  %6420 = vrot.lane.b32.xlu0 %v5606, 96
  %v6421 = vpop.permute.xlu0 %6420
  %6422 = vrot.lane.b32.xlu0 %v5611, 96
  %v6423 = vpop.permute.xlu0 %6422
  %6424 = vrot.lane.b32.xlu0 %v5616, 96
  %v6425 = vpop.permute.xlu0 %6424
  %6426 = vrot.lane.b32.xlu0 %v5621, 96
  %v6427 = vpop.permute.xlu0 %6426
  %6428 = vrot.lane.b32.xlu0 %v5626, 96
  %v6429 = vpop.permute.xlu0 %6428
  %6430 = vrot.lane.b32.xlu0 %v5631, 96
  %v6431 = vpop.permute.xlu0 %6430
  %6432 = vrot.lane.b32.xlu0 %v5636, 96
  %v6433 = vpop.permute.xlu0 %6432
  %6434 = vrot.lane.b32.xlu0 %v5641, 96
  %v6435 = vpop.permute.xlu0 %6434
  %6436 = vrot.lane.b32.xlu0 %v5646, 96
  %v6437 = vpop.permute.xlu0 %6436
  %6494 = vrot.lane.b32.xlu0 %v6326, 32
  %v6495 = vpop.permute.xlu0 %6494
  %6496 = vrot.lane.b32.xlu0 %v6327, 32
  %v6497 = vpop.permute.xlu0 %6496
  %6498 = vrot.lane.b32.xlu0 %v6328, 32
  %v6499 = vpop.permute.xlu0 %6498
  %6500 = vrot.lane.b32.xlu0 %v6329, 32
  %v6501 = vpop.permute.xlu0 %6500
  %6502 = vrot.lane.b32.xlu0 %v6330, 32
  %v6503 = vpop.permute.xlu0 %6502
  %6504 = vrot.lane.b32.xlu0 %v6331, 32
  %v6505 = vpop.permute.xlu0 %6504
  %6506 = vrot.lane.b32.xlu0 %v6332, 32
  %v6507 = vpop.permute.xlu0 %6506
  %6508 = vrot.lane.b32.xlu0 %v6333, 32
  %v6509 = vpop.permute.xlu0 %6508
  %6510 = vrot.lane.b32.xlu0 %v6334, 32
  %v6511 = vpop.permute.xlu0 %6510
  %6512 = vrot.lane.b32.xlu0 %v6335, 32
  %v6513 = vpop.permute.xlu0 %6512
  %6514 = vrot.lane.b32.xlu0 %v6336, 32
  %v6515 = vpop.permute.xlu0 %6514
  %6516 = vrot.lane.b32.xlu0 %v6337, 32
  %v6517 = vpop.permute.xlu0 %6516
  %6518 = vrot.lane.b32.xlu0 %v6338, 32
  %v6519 = vpop.permute.xlu0 %6518
  %6520 = vrot.lane.b32.xlu0 %v6339, 32
  %v6521 = vpop.permute.xlu0 %6520
  %6522 = vrot.lane.b32.xlu0 %v6340, 32
  %v6523 = vpop.permute.xlu0 %6522
  %6524 = vrot.lane.b32.xlu0 %v6341, 32
  %v6525 = vpop.permute.xlu0 %6524
  %6526 = vrot.lane.b32.xlu0 %v6342, 32
  %v6527 = vpop.permute.xlu0 %6526
  %6528 = vrot.lane.b32.xlu0 %v6343, 32
  %v6529 = vpop.permute.xlu0 %6528
  %6530 = vrot.lane.b32.xlu0 %v6344, 32
  %v6531 = vpop.permute.xlu0 %6530
  %6532 = vrot.lane.b32.xlu0 %v6345, 32
  %v6533 = vpop.permute.xlu0 %6532
  %6534 = vrot.lane.b32.xlu0 %v6346, 32
  %v6535 = vpop.permute.xlu0 %6534
  %6536 = vrot.lane.b32.xlu0 %v6347, 32
  %v6537 = vpop.permute.xlu0 %6536
  %6538 = vrot.lane.b32.xlu0 %v6348, 32
  %v6539 = vpop.permute.xlu0 %6538
  %6540 = vrot.lane.b32.xlu0 %v6349, 32
  %v6541 = vpop.permute.xlu0 %6540
  %6542 = vrot.lane.b32.xlu0 %v6350, 32
  %v6543 = vpop.permute.xlu0 %6542
  %6544 = vrot.lane.b32.xlu0 %v6351, 32
  %v6545 = vpop.permute.xlu0 %6544
  %6546 = vrot.lane.b32.xlu0 %v6352, 32
  %v6547 = vpop.permute.xlu0 %6546
  %6548 = vrot.lane.b32.xlu0 %v6353, 32
  %v6549 = vpop.permute.xlu0 %6548
  %v6578 = vsel %vm284, %v6383, %v6495
  %v6579 = vsel %vm284, %v6385, %v6497
  %v6580 = vsel %vm284, %v6387, %v6499
  %v6581 = vsel %vm284, %v6389, %v6501
  %v6582 = vsel %vm284, %v6391, %v6503
  %v6583 = vsel %vm284, %v6393, %v6505
  %v6584 = vsel %vm284, %v6395, %v6507
  %v6585 = vsel %vm284, %v6397, %v6509
  %v6586 = vsel %vm284, %v6399, %v6511
  %v6587 = vsel %vm284, %v6401, %v6513
  %v6588 = vsel %vm284, %v6403, %v6515
  %v6589 = vsel %vm284, %v6405, %v6517
  %v6590 = vsel %vm284, %v6407, %v6519
  %v6591 = vsel %vm284, %v6409, %v6521
  %v6592 = vsel %vm284, %v6411, %v6523
  %v6593 = vsel %vm284, %v6413, %v6525
  %v6594 = vsel %vm284, %v6415, %v6527
  %v6595 = vsel %vm284, %v6417, %v6529
  %v6596 = vsel %vm284, %v6419, %v6531
  %v6597 = vsel %vm284, %v6421, %v6533
  %v6598 = vsel %vm284, %v6423, %v6535
  %v6599 = vsel %vm284, %v6425, %v6537
  %v6600 = vsel %vm284, %v6427, %v6539
  %v6601 = vsel %vm284, %v6429, %v6541
  %v6602 = vsel %vm284, %v6431, %v6543
  %v6603 = vsel %vm284, %v6433, %v6545
  %v6604 = vsel %vm284, %v6435, %v6547
  %v6605 = vsel %vm284, %v6437, %v6549
  %6606 = vmatprep.subr.mxu0 0.0
  %6607 = vmatpush1.msra.mxu0 %v6578
  %6608 = vmatprep.subr.mxu0 0.0
  %6609 = vmatpush1.msra.mxu0 %v6579
  %6610 = vmatprep.subr.mxu0 0.0
  %6611 = vmatpush1.msra.mxu0 %v6580
  %6612 = vmatprep.subr.mxu0 0.0
  %6613 = vmatpush1.msra.mxu0 %v6581
  %6614 = vmatprep.subr.mxu0 0.0
  %6615 = vmatpush1.msra.mxu0 %v6582
  %6616 = vmatprep.subr.mxu0 0.0
  %6617 = vmatpush1.msra.mxu0 %v6583
  %6618 = vmatprep.subr.mxu0 0.0
  %6619 = vmatpush1.msra.mxu0 %v6584
  %6620 = vmatprep.subr.mxu0 0.0
  %6621 = vmatpush1.msra.mxu0 %v6585
  %6622 = vmatprep.subr.mxu0 0.0
  %6623 = vmatpush1.msra.mxu0 %v6586
  %6624 = vmatprep.subr.mxu0 0.0
  %6625 = vmatpush1.msra.mxu0 %v6587
  %6626 = vmatprep.subr.mxu0 0.0
  %6627 = vmatpush1.msra.mxu0 %v6588
  %6628 = vmatprep.subr.mxu0 0.0
  %6629 = vmatpush1.msra.mxu0 %v6589
  %6630 = vmatprep.subr.mxu0 0.0
  %6631 = vmatpush1.msra.mxu0 %v6590
  %6632 = vmatprep.subr.mxu0 0.0
  %6633 = vmatpush1.msra.mxu0 %v6591
  %6634 = vmatprep.subr.mxu0 0.0
  %6635 = vmatpush1.msra.mxu0 %v6592
  %6636 = vmatprep.subr.mxu0 0.0
  %6637 = vmatpush1.msra.mxu0 %v6593
  %6638 = vmatprep.subr.mxu0 0.0
  %6639 = vmatpush1.msra.mxu0 %v6594
  %6640 = vmatprep.subr.mxu0 0.0
  %6641 = vmatpush1.msra.mxu0 %v6595
  %6642 = vmatprep.subr.mxu0 0.0
  %6643 = vmatpush1.msra.mxu0 %v6596
  %6644 = vmatprep.subr.mxu0 0.0
  %6645 = vmatpush1.msra.mxu0 %v6597
  %6646 = vmatprep.subr.mxu0 0.0
  %6647 = vmatpush1.msra.mxu0 %v6598
  %6648 = vmatprep.subr.mxu0 0.0
  %6649 = vmatpush1.msra.mxu0 %v6599
  %6650 = vmatprep.subr.mxu0 0.0
  %6651 = vmatpush1.msra.mxu0 %v6600
  %6652 = vmatprep.subr.mxu0 0.0
  %6653 = vmatpush1.msra.mxu0 %v6601
  %6654 = vmatprep.subr.mxu0 0.0
  %6655 = vmatpush1.msra.mxu0 %v6602
  %6656 = vmatprep.subr.mxu0 0.0
  %6657 = vmatpush1.msra.mxu0 %v6603
  %6658 = vmatprep.subr.mxu0 0.0
  %6659 = vmatpush1.msra.mxu0 %v6604
  %6660 = vmatprep.subr.mxu0 0.0
  %6661 = vmatpush1.msra.mxu0 %v6605
  %6662 = vmatprep.subr.mxu0 0.0
  %6663 = vmatpush1.msra.mxu0 0.0
  %6664 = vmatprep.subr.mxu0 0.0
  %6665 = vmatpush1.msra.mxu0 0.0
  %6666 = vmatprep.subr.mxu0 0.0
  %6667 = vmatpush1.msra.mxu0 0.0
  %6668 = vmatprep.subr.mxu0 0.0
  %6669 = vmatpush1.msra.mxu0 0.0
  %6670 = vmatprep.mubr.f32.mxu0 %v3410
  %6671 = vmatmul.mubr.f32.gmra.mrb[0].mxu0 %v119
  %v6672 = vpop.f32.mrb[0].mxu0
  %v6673 = vadd.f32 0.0, %v6672
  %v6674 = vpop.f32.mrb[0].mxu0
  %6675 = vmatprep.mubr.f32.mxu0 %v3413
  %6676 = vmatmul.mubr.f32.gmra.mrb[0].mxu0 %v121
  %v6677 = vpop.f32.mrb[0].mxu0
  %v6678 = vadd.f32 0.0, %v6677
  %v6679 = vpop.f32.mrb[0].mxu0
  %6680 = vmatprep.mubr.f32.mxu0 %v3416
  %6681 = vmatmul.mubr.f32.gmra.mrb[0].mxu0 %v123
  %v6682 = vpop.f32.mrb[0].mxu0
  %v6683 = vadd.f32 0.0, %v6682
  %v6684 = vpop.f32.mrb[0].mxu0
  %6685 = vmatprep.mubr.f32.mxu0 %v3419
  %6686 = vmatmul.mubr.f32.gmra.mrb[0].mxu0 %v125
  %v6687 = vpop.f32.mrb[0].mxu0
  %v6688 = vadd.f32 0.0, %v6687
  %v6689 = vpop.f32.mrb[0].mxu0
  %6690 = vdwg.mxu0
  %v6691 = vmul.f32 %v6673, %v3509
  %v6692 = vmul.f32 %v6678, %v3514
  %v6693 = vmul.f32 %v6683, %v3519
  %v6694 = vmul.f32 %v6688, %v3524
  %v6695 = vxor.u32 %v4012, 2147483648
  %v6696 = vxor.u32 %v4018, 2147483648
  %v6697 = vxor.u32 %v4024, 2147483648
  %v6698 = vxor.u32 %v4030, 2147483648
  %v6699 = vmul.f32 %v6695, 1.442695
  %v6700 = vpow.pop %v6699
  %v6701 = vmul.f32 %v6696, 1.442695
  %v6702 = vpow.pop %v6701
  %v6703 = vmul.f32 %v6697, 1.442695
  %v6704 = vpow.pop %v6703
  %v6705 = vmul.f32 %v6698, 1.442695
  %v6706 = vpow.pop %v6705
  %v6707 = vadd.f32 %v6700, 1.0
  %v6708 = vadd.f32 %v6702, 1.0
  %v6709 = vadd.f32 %v6704, 1.0
  %v6710 = vadd.f32 %v6706, 1.0
  %v6711 = vrcp.pop %v6707
  %v6712 = vmul.f32 1.0, %v6711
  %v6713 = vrcp.pop %v6708
  %v6714 = vmul.f32 1.0, %v6713
  %v6715 = vrcp.pop %v6709
  %v6716 = vmul.f32 1.0, %v6715
  %v6717 = vrcp.pop %v6710
  %v6718 = vmul.f32 1.0, %v6717
  %v6719 = vmul.f32 %v4012, %v6712
  %v6720 = vmul.f32 %v4018, %v6714
  %v6721 = vmul.f32 %v4024, %v6716
  %v6722 = vmul.f32 %v4030, %v6718
  %s6723 = scalar_lea.vmem %s16, 64
  %v6724 = vld [vmem:[%s6723] sm:$0xff]
  %v6725 = vld [vmem:[%s6723 + $0x8] sm:$0xff]
  %v6726 = vld [vmem:[%s6723 + $0x10] sm:$0xff]
  %v6727 = vld [vmem:[%s6723 + $0x18] sm:$0xff]
  %v6728 = vld [vmem:[%s6723 + $0x20] sm:$0xff]
  %v6729 = vld [vmem:[%s6723 + $0x28] sm:$0xff]
  %v6730 = vld [vmem:[%s6723 + $0x30] sm:$0xff]
  %v6731 = vld [vmem:[%s6723 + $0x38] sm:$0xff]
  %s6732 = scalar_lea.vmem %s17, 1
  %v6733 = vld [vmem:[%s6732] sm:$0x1]
  %v6735 = vlaneseq
  %v6736 = vshrl.u32 %v6735, 7
  %v6737 = vsub.s32 0, %v6736
  %v6738 = vrot.slane %v6733, %v6737
  %v6741 = vsel %vm3573, %v6719, 0
  %v6744 = vsel %vm3573, %v6720, 0
  %v6747 = vsel %vm3573, %v6721, 0
  %v6750 = vsel %vm3573, %v6722, 0
  %6752 = vmatprep.subr.mxu0 0.0
  %6753 = vmatpush1.msra.mxu0 %v6724
  %6754 = vmatprep.subr.mxu0 0.0
  %6755 = vmatpush1.msra.mxu0 %v6725
  %6756 = vmatprep.subr.mxu0 0.0
  %6757 = vmatpush1.msra.mxu0 %v6726
  %6758 = vmatprep.subr.mxu0 0.0
  %6759 = vmatpush1.msra.mxu0 %v6727
  %6760 = vmatprep.subr.mxu0 0.0
  %6761 = vmatpush1.msra.mxu0 %v6728
  %6762 = vmatprep.subr.mxu0 0.0
  %6763 = vmatpush1.msra.mxu0 %v6729
  %6764 = vmatprep.subr.mxu0 0.0
  %6765 = vmatpush1.msra.mxu0 %v6730
  %6766 = vmatprep.subr.mxu0 0.0
  %6767 = vmatpush1.msra.mxu0 %v6731
  %6768 = vmatprep.subr.mxu0 0.0
  %6769 = vmatpush1.msra.mxu0 0.0
  %6770 = vmatprep.subr.mxu0 0.0
  %6771 = vmatpush1.msra.mxu0 0.0
  %6772 = vmatprep.subr.mxu0 0.0
  %6773 = vmatpush1.msra.mxu0 0.0
  %6774 = vmatprep.subr.mxu0 0.0
  %6775 = vmatpush1.msra.mxu0 0.0
  %6776 = vmatprep.subr.mxu0 0.0
  %6777 = vmatpush1.msra.mxu0 0.0
  %6778 = vmatprep.subr.mxu0 0.0
  %6779 = vmatpush1.msra.mxu0 0.0
  %6780 = vmatprep.subr.mxu0 0.0
  %6781 = vmatpush1.msra.mxu0 0.0
  %6782 = vmatprep.subr.mxu0 0.0
  %6783 = vmatpush1.msra.mxu0 0.0
  %6784 = vmatprep.subr.mxu0 0.0
  %6785 = vmatpush1.msra.mxu0 0.0
  %6786 = vmatprep.subr.mxu0 0.0
  %6787 = vmatpush1.msra.mxu0 0.0
  %6788 = vmatprep.subr.mxu0 0.0
  %6789 = vmatpush1.msra.mxu0 0.0
  %6790 = vmatprep.subr.mxu0 0.0
  %6791 = vmatpush1.msra.mxu0 0.0
  %6792 = vmatprep.subr.mxu0 0.0
  %6793 = vmatpush1.msra.mxu0 0.0
  %6794 = vmatprep.subr.mxu0 0.0
  %6795 = vmatpush1.msra.mxu0 0.0
  %6796 = vmatprep.subr.mxu0 0.0
  %6797 = vmatpush1.msra.mxu0 0.0
  %6798 = vmatprep.subr.mxu0 0.0
  %6799 = vmatpush1.msra.mxu0 0.0
  %6800 = vmatprep.subr.mxu0 0.0
  %6801 = vmatpush1.msra.mxu0 0.0
  %6802 = vmatprep.subr.mxu0 0.0
  %6803 = vmatpush1.msra.mxu0 0.0
  %6804 = vmatprep.subr.mxu0 0.0
  %6805 = vmatpush1.msra.mxu0 0.0
  %6806 = vmatprep.subr.mxu0 0.0
  %6807 = vmatpush1.msra.mxu0 0.0
  %6808 = vmatprep.subr.mxu0 0.0
  %6809 = vmatpush1.msra.mxu0 0.0
  %6810 = vmatprep.subr.mxu0 0.0
  %6811 = vmatpush1.msra.mxu0 0.0
  %6812 = vmatprep.subr.mxu0 0.0
  %6813 = vmatpush1.msra.mxu0 0.0
  %6814 = vmatprep.subr.mxu0 0.0
  %6815 = vmatpush1.msra.mxu0 0.0
  %6816 = vmatprep.mubr.f32.mxu0 0.0
  %6817 = vmatmul.mubr.f32.gmra.mrb[0].mxu0 %v6741
  %v6818 = vpop.f32.mrb[0].mxu0
  %v6819 = vadd.f32 %v6738, %v6818
  %v6820 = vpop.f32.mrb[0].mxu0
  %6821 = vmatprep.mubr.f32.mxu0 0.0
  %6822 = vmatmul.mubr.f32.gmra.mrb[0].mxu0 %v6744
  %v6823 = vpop.f32.mrb[0].mxu0
  %v6824 = vadd.f32 %v6738, %v6823
  %v6825 = vpop.f32.mrb[0].mxu0
  %6826 = vmatprep.mubr.f32.mxu0 0.0
  %6827 = vmatmul.mubr.f32.gmra.mrb[0].mxu0 %v6747
  %v6828 = vpop.f32.mrb[0].mxu0
  %v6829 = vadd.f32 %v6738, %v6828
  %v6830 = vpop.f32.mrb[0].mxu0
  %6831 = vmatprep.mubr.f32.mxu0 0.0
  %6832 = vmatmul.mubr.f32.gmra.mrb[0].mxu0 %v6750
  %v6833 = vpop.f32.mrb[0].mxu0
  %v6834 = vadd.f32 %v6738, %v6833
  %v6835 = vpop.f32.mrb[0].mxu0
  %6836 = vdwg.mxu0
  %6841 = vrot.lane.b32.xlu0 %v6691, 97
  %v6842 = vpop.permute.xlu0 %6841
  %6843 = vrot.lane.b32.xlu0 %v6692, 97
  %v6844 = vpop.permute.xlu0 %6843
  %6845 = vrot.lane.b32.xlu0 %v6693, 97
  %v6846 = vpop.permute.xlu0 %6845
  %6847 = vrot.lane.b32.xlu0 %v6694, 97
  %v6848 = vpop.permute.xlu0 %6847
  %v6853 = vadd.f32 %v3771, %v6842
  %v6854 = vadd.f32 %v3772, %v6844
  %v6855 = vadd.f32 %v3773, %v6846
  %v6856 = vadd.f32 %v3774, %v6848
  %6858 = vset.pattern.permute.xlu0 0
  %6859 = vperm.xlu0 %6858, %v6819
  %v6860 = vpop.permute.xlu0 %6859
  %6863 = vset.pattern.permute.xlu0 0
  %6864 = vperm.xlu0 %6863, %v6824
  %v6865 = vpop.permute.xlu0 %6864
  %6868 = vset.pattern.permute.xlu0 0
  %6869 = vperm.xlu0 %6868, %v6829
  %v6870 = vpop.permute.xlu0 %6869
  %6873 = vset.pattern.permute.xlu0 0
  %6874 = vperm.xlu0 %6873, %v6834
  %v6875 = vpop.permute.xlu0 %6874
  %v6877 = vmul.f32 %v6860, %v59
  %v6878 = vmul.f32 %v6865, %v60
  %v6879 = vmul.f32 %v6870, %v61
  %v6880 = vmul.f32 %v6875, %v62
  %6885 = vrot.lane.b32.xlu0 %v6877, 125
  %v6886 = vpop.permute.xlu0 %6885
  %6887 = vrot.lane.b32.xlu0 %v6878, 125
  %v6888 = vpop.permute.xlu0 %6887
  %6889 = vrot.lane.b32.xlu0 %v6879, 125
  %v6890 = vpop.permute.xlu0 %6889
  %6891 = vrot.lane.b32.xlu0 %v6880, 125
  %v6892 = vpop.permute.xlu0 %6891
  %v6897 = vadd.f32 %v6853, %v6886
  %v6898 = vadd.f32 %v6854, %v6888
  %v6899 = vadd.f32 %v6855, %v6890
  %v6900 = vadd.f32 %v6856, %v6892
  %6901 = vset.pattern.permute.xlu0 1
  %6902 = vperm.xlu0 %6901, %v6819
  %v6903 = vpop.permute.xlu0 %6902
  %6905 = vset.pattern.permute.xlu0 1
  %6906 = vperm.xlu0 %6905, %v6824
  %v6907 = vpop.permute.xlu0 %6906
  %6909 = vset.pattern.permute.xlu0 1
  %6910 = vperm.xlu0 %6909, %v6829
  %v6911 = vpop.permute.xlu0 %6910
  %6913 = vset.pattern.permute.xlu0 1
  %6914 = vperm.xlu0 %6913, %v6834
  %v6915 = vpop.permute.xlu0 %6914
  %v6917 = vmul.f32 %v6903, %v508
  %v6918 = vmul.f32 %v6907, %v513
  %v6919 = vmul.f32 %v6911, %v518
  %v6920 = vmul.f32 %v6915, %v523
  %6925 = vrot.lane.b32.xlu0 %v6917, 1
  %v6926 = vpop.permute.xlu0 %6925
  %6927 = vrot.lane.b32.xlu0 %v6918, 1
  %v6928 = vpop.permute.xlu0 %6927
  %6929 = vrot.lane.b32.xlu0 %v6919, 1
  %v6930 = vpop.permute.xlu0 %6929
  %6931 = vrot.lane.b32.xlu0 %v6920, 1
  %v6932 = vpop.permute.xlu0 %6931
  %v6937 = vadd.f32 %v6897, %v6926
  %v6938 = vadd.f32 %v6898, %v6928
  %v6939 = vadd.f32 %v6899, %v6930
  %v6940 = vadd.f32 %v6900, %v6932
  %v6941 = vadd.f32 %v4014, %v6673
  %v6942 = vadd.f32 %v4020, %v6678
  %v6943 = vadd.f32 %v4026, %v6683
  %v6944 = vadd.f32 %v4032, %v6688
  %v6945 = vxor.u32 %v6941, 2147483648
  %v6946 = vxor.u32 %v6942, 2147483648
  %v6947 = vxor.u32 %v6943, 2147483648
  %v6948 = vxor.u32 %v6944, 2147483648
  %v6949 = vmul.f32 %v6945, 1.442695
  %v6950 = vpow.pop %v6949
  %v6951 = vmul.f32 %v6946, 1.442695
  %v6952 = vpow.pop %v6951
  %v6953 = vmul.f32 %v6947, 1.442695
  %v6954 = vpow.pop %v6953
  %v6955 = vmul.f32 %v6948, 1.442695
  %v6956 = vpow.pop %v6955
  %v6957 = vadd.f32 %v6950, 1.0
  %v6958 = vadd.f32 %v6952, 1.0
  %v6959 = vadd.f32 %v6954, 1.0
  %v6960 = vadd.f32 %v6956, 1.0
  %v6961 = vrcp.pop %v6957
  %v6962 = vmul.f32 1.0, %v6961
  %v6963 = vrcp.pop %v6958
  %v6964 = vmul.f32 1.0, %v6963
  %v6965 = vrcp.pop %v6959
  %v6966 = vmul.f32 1.0, %v6965
  %v6967 = vrcp.pop %v6960
  %v6968 = vmul.f32 1.0, %v6967
  %v6969 = vmul.f32 %v6941, %v6962
  %v6970 = vmul.f32 %v6942, %v6964
  %v6971 = vmul.f32 %v6943, %v6966
  %v6972 = vmul.f32 %v6944, %v6968
  %s6973 = scalar_lea.vmem %s15, 1
  %v6974 = vld [vmem:[%s6973] sm:$0x1]
  %v6976 = vlaneseq
  %v6977 = vshrl.u32 %v6976, 7
  %v6978 = vsub.s32 0, %v6977
  %v6979 = vrot.slane %v6974, %v6978
  %v6982 = vsel %vm284, %v6969, 0
  %v6985 = vsel %vm284, %v6970, 0
  %v6988 = vsel %vm284, %v6971, 0
  %v6991 = vsel %vm284, %v6972, 0
  %6993 = vmatprep.subr.mxu0 0.0
  %6994 = vmatpush1.msra.mxu0 %v5877
  %6995 = vmatprep.subr.mxu0 0.0
  %6996 = vmatpush1.msra.mxu0 %v5878
  %6997 = vmatprep.subr.mxu0 0.0
  %6998 = vmatpush1.msra.mxu0 %v5879
  %6999 = vmatprep.subr.mxu0 0.0
  %7000 = vmatpush1.msra.mxu0 %v5880
  %7001 = vmatprep.subr.mxu0 0.0
  %7002 = vmatpush1.msra.mxu0 0.0
  %7003 = vmatprep.subr.mxu0 0.0
  %7004 = vmatpush1.msra.mxu0 0.0
  %7005 = vmatprep.subr.mxu0 0.0
  %7006 = vmatpush1.msra.mxu0 0.0
  %7007 = vmatprep.subr.mxu0 0.0
  %7008 = vmatpush1.msra.mxu0 0.0
  %7009 = vmatprep.subr.mxu0 0.0
  %7010 = vmatpush1.msra.mxu0 0.0
  %7011 = vmatprep.subr.mxu0 0.0
  %7012 = vmatpush1.msra.mxu0 0.0
  %7013 = vmatprep.subr.mxu0 0.0
  %7014 = vmatpush1.msra.mxu0 0.0
  %7015 = vmatprep.subr.mxu0 0.0
  %7016 = vmatpush1.msra.mxu0 0.0
  %7017 = vmatprep.subr.mxu0 0.0
  %7018 = vmatpush1.msra.mxu0 0.0
  %7019 = vmatprep.subr.mxu0 0.0
  %7020 = vmatpush1.msra.mxu0 0.0
  %7021 = vmatprep.subr.mxu0 0.0
  %7022 = vmatpush1.msra.mxu0 0.0
  %7023 = vmatprep.subr.mxu0 0.0
  %7024 = vmatpush1.msra.mxu0 0.0
  %7025 = vmatprep.subr.mxu0 0.0
  %7026 = vmatpush1.msra.mxu0 0.0
  %7027 = vmatprep.subr.mxu0 0.0
  %7028 = vmatpush1.msra.mxu0 0.0
  %7029 = vmatprep.subr.mxu0 0.0
  %7030 = vmatpush1.msra.mxu0 0.0
  %7031 = vmatprep.subr.mxu0 0.0
  %7032 = vmatpush1.msra.mxu0 0.0
  %7033 = vmatprep.subr.mxu0 0.0
  %7034 = vmatpush1.msra.mxu0 0.0
  %7035 = vmatprep.subr.mxu0 0.0
  %7036 = vmatpush1.msra.mxu0 0.0
  %7037 = vmatprep.subr.mxu0 0.0
  %7038 = vmatpush1.msra.mxu0 0.0
  %7039 = vmatprep.subr.mxu0 0.0
  %7040 = vmatpush1.msra.mxu0 0.0
  %7041 = vmatprep.subr.mxu0 0.0
  %7042 = vmatpush1.msra.mxu0 0.0
  %7043 = vmatprep.subr.mxu0 0.0
  %7044 = vmatpush1.msra.mxu0 0.0
  %7045 = vmatprep.subr.mxu0 0.0
  %7046 = vmatpush1.msra.mxu0 0.0
  %7047 = vmatprep.subr.mxu0 0.0
  %7048 = vmatpush1.msra.mxu0 0.0
  %7049 = vmatprep.subr.mxu0 0.0
  %7050 = vmatpush1.msra.mxu0 0.0
  %7051 = vmatprep.subr.mxu0 0.0
  %7052 = vmatpush1.msra.mxu0 0.0
  %7053 = vmatprep.subr.mxu0 0.0
  %7054 = vmatpush1.msra.mxu0 0.0
  %7055 = vmatprep.subr.mxu0 0.0
  %7056 = vmatpush1.msra.mxu0 0.0
  %7057 = vmatprep.mubr.f32.mxu0 0.0
  %7058 = vmatmul.mubr.f32.gmra.mrb[0].mxu0 %v6982
  %v7059 = vpop.f32.mrb[0].mxu0
  %v7060 = vadd.f32 %v6979, %v7059
  %v7061 = vpop.f32.mrb[0].mxu0
  %7062 = vmatprep.mubr.f32.mxu0 0.0
  %7063 = vmatmul.mubr.f32.gmra.mrb[0].mxu0 %v6985
  %v7064 = vpop.f32.mrb[0].mxu0
  %v7065 = vadd.f32 %v6979, %v7064
  %v7066 = vpop.f32.mrb[0].mxu0
  %7067 = vmatprep.mubr.f32.mxu0 0.0
  %7068 = vmatmul.mubr.f32.gmra.mrb[0].mxu0 %v6988
  %v7069 = vpop.f32.mrb[0].mxu0
  %v7070 = vadd.f32 %v6979, %v7069
  %v7071 = vpop.f32.mrb[0].mxu0
  %7072 = vmatprep.mubr.f32.mxu0 0.0
  %7073 = vmatmul.mubr.f32.gmra.mrb[0].mxu0 %v6991
  %v7074 = vpop.f32.mrb[0].mxu0
  %v7075 = vadd.f32 %v6979, %v7074
  %v7076 = vpop.f32.mrb[0].mxu0
  %7077 = vdwg.mxu0
  %s7078 = scalar_lea.vmem %s9, 128
  %v7079 = vld [vmem:[%s7078] sm:$0xff]
  %v7080 = vld [vmem:[%s7078 + $0x8] sm:$0xff]
  %v7081 = vld [vmem:[%s7078 + $0x10] sm:$0xff]
  %v7082 = vld [vmem:[%s7078 + $0x18] sm:$0xff]
  %v7083 = vld [vmem:[%s7078 + $0x20] sm:$0xff]
  %v7084 = vld [vmem:[%s7078 + $0x28] sm:$0xff]
  %v7085 = vld [vmem:[%s7078 + $0x30] sm:$0xff]
  %v7086 = vld [vmem:[%s7078 + $0x38] sm:$0xff]
  %s7087 = scalar_lea.vmem %s10, 4
  %v7088 = vld [vmem:[%s7087] sm:$0x3]
  %v7090 = vlaneseq
  %v7091 = vshrl.u32 %v7090, 7
  %v7092 = vsub.s32 0, %v7091
  %v7093 = vrot.slane %v7088, %v7092
  %v7094 = vlaneseq
  %v7095 = vshrl.u32 %v7094, 7
  %v7096 = vsub.s32 1, %v7095
  %v7097 = vrot.slane %v7088, %v7096
  %v7101 = vsel %vm284, %v7060, 0
  %v7104 = vsel %vm284, %v7065, 0
  %v7107 = vsel %vm284, %v7070, 0
  %v7110 = vsel %vm284, %v7075, 0
  %7112 = vmatprep.subr.mxu0 %v7080
  %7113 = vmatpush1.msra.mxu0 %v7079
  %7114 = vmatprep.subr.mxu0 %v7082
  %7115 = vmatpush1.msra.mxu0 %v7081
  %7116 = vmatprep.subr.mxu0 %v7084
  %7117 = vmatpush1.msra.mxu0 %v7083
  %7118 = vmatprep.subr.mxu0 %v7086
  %7119 = vmatpush1.msra.mxu0 %v7085
  %7120 = vmatprep.subr.mxu0 0.0
  %7121 = vmatpush1.msra.mxu0 0.0
  %7122 = vmatprep.subr.mxu0 0.0
  %7123 = vmatpush1.msra.mxu0 0.0
  %7124 = vmatprep.subr.mxu0 0.0
  %7125 = vmatpush1.msra.mxu0 0.0
  %7126 = vmatprep.subr.mxu0 0.0
  %7127 = vmatpush1.msra.mxu0 0.0
  %7128 = vmatprep.subr.mxu0 0.0
  %7129 = vmatpush1.msra.mxu0 0.0
  %7130 = vmatprep.subr.mxu0 0.0
  %7131 = vmatpush1.msra.mxu0 0.0
  %7132 = vmatprep.subr.mxu0 0.0
  %7133 = vmatpush1.msra.mxu0 0.0
  %7134 = vmatprep.subr.mxu0 0.0
  %7135 = vmatpush1.msra.mxu0 0.0
  %7136 = vmatprep.subr.mxu0 0.0
  %7137 = vmatpush1.msra.mxu0 0.0
  %7138 = vmatprep.subr.mxu0 0.0
  %7139 = vmatpush1.msra.mxu0 0.0
  %7140 = vmatprep.subr.mxu0 0.0
  %7141 = vmatpush1.msra.mxu0 0.0
  %7142 = vmatprep.subr.mxu0 0.0
  %7143 = vmatpush1.msra.mxu0 0.0
  %7144 = vmatprep.subr.mxu0 0.0
  %7145 = vmatpush1.msra.mxu0 0.0
  %7146 = vmatprep.subr.mxu0 0.0
  %7147 = vmatpush1.msra.mxu0 0.0
  %7148 = vmatprep.subr.mxu0 0.0
  %7149 = vmatpush1.msra.mxu0 0.0
  %7150 = vmatprep.subr.mxu0 0.0
  %7151 = vmatpush1.msra.mxu0 0.0
  %7152 = vmatprep.subr.mxu0 0.0
  %7153 = vmatpush1.msra.mxu0 0.0
  %7154 = vmatprep.subr.mxu0 0.0
  %7155 = vmatpush1.msra.mxu0 0.0
  %7156 = vmatprep.subr.mxu0 0.0
  %7157 = vmatpush1.msra.mxu0 0.0
  %7158 = vmatprep.subr.mxu0 0.0
  %7159 = vmatpush1.msra.mxu0 0.0
  %7160 = vmatprep.subr.mxu0 0.0
  %7161 = vmatpush1.msra.mxu0 0.0
  %7162 = vmatprep.subr.mxu0 0.0
  %7163 = vmatpush1.msra.mxu0 0.0
  %7164 = vmatprep.subr.mxu0 0.0
  %7165 = vmatpush1.msra.mxu0 0.0
  %7166 = vmatprep.subr.mxu0 0.0
  %7167 = vmatpush1.msra.mxu0 0.0
  %7168 = vmatprep.subr.mxu0 0.0
  %7169 = vmatpush1.msra.mxu0 0.0
  %7170 = vmatprep.subr.mxu0 0.0
  %7171 = vmatpush1.msra.mxu0 0.0
  %7172 = vmatprep.subr.mxu0 0.0
  %7173 = vmatpush1.msra.mxu0 0.0
  %7174 = vmatprep.subr.mxu0 0.0
  %7175 = vmatpush1.msra.mxu0 0.0
  %7176 = vmatprep.mubr.f32.mxu0 0.0
  %7177 = vmatmul.mubr.f32.gmra.mrb[0].mxu0 %v7101
  %v7178 = vpop.f32.mrb[0].mxu0
  %v7179 = vadd.f32 %v7093, %v7178
  %v7180 = vpop.f32.mrb[0].mxu0
  %v7181 = vadd.f32 %v7097, %v7180
  %7182 = vmatprep.mubr.f32.mxu0 0.0
  %7183 = vmatmul.mubr.f32.gmra.mrb[0].mxu0 %v7104
  %v7184 = vpop.f32.mrb[0].mxu0
  %v7185 = vadd.f32 %v7093, %v7184
  %v7186 = vpop.f32.mrb[0].mxu0
  %v7187 = vadd.f32 %v7097, %v7186
  %7188 = vmatprep.mubr.f32.mxu0 0.0
  %7189 = vmatmul.mubr.f32.gmra.mrb[0].mxu0 %v7107
  %v7190 = vpop.f32.mrb[0].mxu0
  %v7191 = vadd.f32 %v7093, %v7190
  %v7192 = vpop.f32.mrb[0].mxu0
  %v7193 = vadd.f32 %v7097, %v7192
  %7194 = vmatprep.mubr.f32.mxu0 0.0
  %7195 = vmatmul.mubr.f32.gmra.mrb[0].mxu0 %v7110
  %v7196 = vpop.f32.mrb[0].mxu0
  %v7197 = vadd.f32 %v7093, %v7196
  %v7198 = vpop.f32.mrb[0].mxu0
  %v7199 = vadd.f32 %v7097, %v7198
  %7200 = vdwg.mxu0
  %7205 = vrot.lane.b32.xlu0 %v6937, 127
  %v7206 = vpop.permute.xlu0 %7205
  %7207 = vrot.lane.b32.xlu0 %v6938, 127
  %v7208 = vpop.permute.xlu0 %7207
  %7209 = vrot.lane.b32.xlu0 %v6939, 127
  %v7210 = vpop.permute.xlu0 %7209
  %7211 = vrot.lane.b32.xlu0 %v6940, 127
  %v7212 = vpop.permute.xlu0 %7211
  %7217 = vmatprep.subr.mxu0 0.0
  %7218 = vmatpush1.msra.mxu0 %v7206
  %7219 = vmatprep.subr.mxu0 0.0
  %7220 = vmatpush1.msra.mxu0 %v7208
  %7221 = vmatprep.subr.mxu0 0.0
  %7222 = vmatpush1.msra.mxu0 %v7210
  %7223 = vmatprep.subr.mxu0 0.0
  %7224 = vmatpush1.msra.mxu0 %v7212
  %7225 = vmatprep.subr.mxu0 0.0
  %7226 = vmatpush1.msra.mxu0 0.0
  %7227 = vmatprep.subr.mxu0 0.0
  %7228 = vmatpush1.msra.mxu0 0.0
  %7229 = vmatprep.subr.mxu0 0.0
  %7230 = vmatpush1.msra.mxu0 0.0
  %7231 = vmatprep.subr.mxu0 0.0
  %7232 = vmatpush1.msra.mxu0 0.0
  %7233 = vmatprep.subr.mxu0 0.0
  %7234 = vmatpush1.msra.mxu0 0.0
  %7235 = vmatprep.subr.mxu0 0.0
  %7236 = vmatpush1.msra.mxu0 0.0
  %7237 = vmatprep.subr.mxu0 0.0
  %7238 = vmatpush1.msra.mxu0 0.0
  %7239 = vmatprep.subr.mxu0 0.0
  %7240 = vmatpush1.msra.mxu0 0.0
  %7241 = vmatprep.subr.mxu0 0.0
  %7242 = vmatpush1.msra.mxu0 0.0
  %7243 = vmatprep.subr.mxu0 0.0
  %7244 = vmatpush1.msra.mxu0 0.0
  %7245 = vmatprep.subr.mxu0 0.0
  %7246 = vmatpush1.msra.mxu0 0.0
  %7247 = vmatprep.subr.mxu0 0.0
  %7248 = vmatpush1.msra.mxu0 0.0
  %7249 = vmatprep.subr.mxu0 0.0
  %7250 = vmatpush1.msra.mxu0 0.0
  %7251 = vmatprep.subr.mxu0 0.0
  %7252 = vmatpush1.msra.mxu0 0.0
  %7253 = vmatprep.subr.mxu0 0.0
  %7254 = vmatpush1.msra.mxu0 0.0
  %7255 = vmatprep.subr.mxu0 0.0
  %7256 = vmatpush1.msra.mxu0 0.0
  %7257 = vmatprep.subr.mxu0 0.0
  %7258 = vmatpush1.msra.mxu0 0.0
  %7259 = vmatprep.subr.mxu0 0.0
  %7260 = vmatpush1.msra.mxu0 0.0
  %7261 = vmatprep.subr.mxu0 0.0
  %7262 = vmatpush1.msra.mxu0 0.0
  %7263 = vmatprep.subr.mxu0 0.0
  %7264 = vmatpush1.msra.mxu0 0.0
  %7265 = vmatprep.subr.mxu0 0.0
  %7266 = vmatpush1.msra.mxu0 0.0
  %7267 = vmatprep.subr.mxu0 0.0
  %7268 = vmatpush1.msra.mxu0 0.0
  %7269 = vmatprep.subr.mxu0 0.0
  %7270 = vmatpush1.msra.mxu0 0.0
  %7271 = vmatprep.subr.mxu0 0.0
  %7272 = vmatpush1.msra.mxu0 0.0
  %7273 = vmatprep.subr.mxu0 0.0
  %7274 = vmatpush1.msra.mxu0 0.0
  %7275 = vmatprep.subr.mxu0 0.0
  %7276 = vmatpush1.msra.mxu0 0.0
  %7277 = vmatprep.subr.mxu0 0.0
  %7278 = vmatpush1.msra.mxu0 0.0
  %7279 = vmatprep.subr.mxu0 0.0
  %7280 = vmatpush1.msra.mxu0 0.0
  %7281 = vmatprep.mubr.f32.mxu0 0.0
  %7282 = vmatmul.mubr.f32.gmra.mrb[0].mxu0 %v686
  %v7283 = vpop.f32.mrb[0].mxu0
  %v7284 = vadd.f32 0.0, %v7283
  %v7285 = vpop.f32.mrb[0].mxu0
  %7286 = vmatprep.mubr.f32.mxu0 0.0
  %7287 = vmatmul.mubr.f32.gmra.mrb[0].mxu0 %v689
  %v7288 = vpop.f32.mrb[0].mxu0
  %v7289 = vadd.f32 0.0, %v7288
  %v7290 = vpop.f32.mrb[0].mxu0
  %7291 = vmatprep.mubr.f32.mxu0 0.0
  %7292 = vmatmul.mubr.f32.gmra.mrb[0].mxu0 %v692
  %v7293 = vpop.f32.mrb[0].mxu0
  %v7294 = vadd.f32 0.0, %v7293
  %v7295 = vpop.f32.mrb[0].mxu0
  %7296 = vmatprep.mubr.f32.mxu0 0.0
  %7297 = vmatmul.mubr.f32.gmra.mrb[0].mxu0 %v695
  %v7298 = vpop.f32.mrb[0].mxu0
  %v7299 = vadd.f32 0.0, %v7298
  %v7300 = vpop.f32.mrb[0].mxu0
  %7301 = vmatprep.mubr.f32.mxu0 0.0
  %7302 = vmatmul.mubr.f32.gmra.mrb[0].mxu0 %v698
  %v7303 = vpop.f32.mrb[0].mxu0
  %v7304 = vadd.f32 0.0, %v7303
  %v7305 = vpop.f32.mrb[0].mxu0
  %7306 = vmatprep.mubr.f32.mxu0 0.0
  %7307 = vmatmul.mubr.f32.gmra.mrb[0].mxu0 %v701
  %v7308 = vpop.f32.mrb[0].mxu0
  %v7309 = vadd.f32 0.0, %v7308
  %v7310 = vpop.f32.mrb[0].mxu0
  %7311 = vmatprep.mubr.f32.mxu0 0.0
  %7312 = vmatmul.mubr.f32.gmra.mrb[0].mxu0 %v704
  %v7313 = vpop.f32.mrb[0].mxu0
  %v7314 = vadd.f32 0.0, %v7313
  %v7315 = vpop.f32.mrb[0].mxu0
  %7316 = vmatprep.mubr.f32.mxu0 0.0
  %7317 = vmatmul.mubr.f32.gmra.mrb[0].mxu0 %v707
  %v7318 = vpop.f32.mrb[0].mxu0
  %v7319 = vadd.f32 0.0, %v7318
  %v7320 = vpop.f32.mrb[0].mxu0
  %7321 = vmatprep.mubr.f32.mxu0 0.0
  %7322 = vmatmul.mubr.f32.gmra.mrb[0].mxu0 %v710
  %v7323 = vpop.f32.mrb[0].mxu0
  %v7324 = vadd.f32 0.0, %v7323
  %v7325 = vpop.f32.mrb[0].mxu0
  %7326 = vmatprep.mubr.f32.mxu0 0.0
  %7327 = vmatmul.mubr.f32.gmra.mrb[0].mxu0 %v713
  %v7328 = vpop.f32.mrb[0].mxu0
  %v7329 = vadd.f32 0.0, %v7328
  %v7330 = vpop.f32.mrb[0].mxu0
  %7331 = vmatprep.mubr.f32.mxu0 0.0
  %7332 = vmatmul.mubr.f32.gmra.mrb[0].mxu0 %v716
  %v7333 = vpop.f32.mrb[0].mxu0
  %v7334 = vadd.f32 0.0, %v7333
  %v7335 = vpop.f32.mrb[0].mxu0
  %7336 = vmatprep.mubr.f32.mxu0 0.0
  %7337 = vmatmul.mubr.f32.gmra.mrb[0].mxu0 %v719
  %v7338 = vpop.f32.mrb[0].mxu0
  %v7339 = vadd.f32 0.0, %v7338
  %v7340 = vpop.f32.mrb[0].mxu0
  %7341 = vmatprep.mubr.f32.mxu0 0.0
  %7342 = vmatmul.mubr.f32.gmra.mrb[0].mxu0 %v722
  %v7343 = vpop.f32.mrb[0].mxu0
  %v7344 = vadd.f32 0.0, %v7343
  %v7345 = vpop.f32.mrb[0].mxu0
  %7346 = vmatprep.mubr.f32.mxu0 0.0
  %7347 = vmatmul.mubr.f32.gmra.mrb[0].mxu0 %v725
  %v7348 = vpop.f32.mrb[0].mxu0
  %v7349 = vadd.f32 0.0, %v7348
  %v7350 = vpop.f32.mrb[0].mxu0
  %7351 = vmatprep.mubr.f32.mxu0 0.0
  %7352 = vmatmul.mubr.f32.gmra.mrb[0].mxu0 %v728
  %v7353 = vpop.f32.mrb[0].mxu0
  %v7354 = vadd.f32 0.0, %v7353
  %v7355 = vpop.f32.mrb[0].mxu0
  %7356 = vmatprep.mubr.f32.mxu0 0.0
  %7357 = vmatmul.mubr.f32.gmra.mrb[0].mxu0 %v731
  %v7358 = vpop.f32.mrb[0].mxu0
  %v7359 = vadd.f32 0.0, %v7358
  %v7360 = vpop.f32.mrb[0].mxu0
  %7361 = vmatprep.mubr.f32.mxu0 0.0
  %7362 = vmatmul.mubr.f32.gmra.mrb[0].mxu0 %v734
  %v7363 = vpop.f32.mrb[0].mxu0
  %v7364 = vadd.f32 0.0, %v7363
  %v7365 = vpop.f32.mrb[0].mxu0
  %7366 = vmatprep.mubr.f32.mxu0 0.0
  %7367 = vmatmul.mubr.f32.gmra.mrb[0].mxu0 %v737
  %v7368 = vpop.f32.mrb[0].mxu0
  %v7369 = vadd.f32 0.0, %v7368
  %v7370 = vpop.f32.mrb[0].mxu0
  %7371 = vmatprep.mubr.f32.mxu0 0.0
  %7372 = vmatmul.mubr.f32.gmra.mrb[0].mxu0 %v740
  %v7373 = vpop.f32.mrb[0].mxu0
  %v7374 = vadd.f32 0.0, %v7373
  %v7375 = vpop.f32.mrb[0].mxu0
  %7376 = vmatprep.mubr.f32.mxu0 0.0
  %7377 = vmatmul.mubr.f32.gmra.mrb[0].mxu0 %v743
  %v7378 = vpop.f32.mrb[0].mxu0
  %v7379 = vadd.f32 0.0, %v7378
  %v7380 = vpop.f32.mrb[0].mxu0
  %7381 = vmatprep.mubr.f32.mxu0 0.0
  %7382 = vmatmul.mubr.f32.gmra.mrb[0].mxu0 %v746
  %v7383 = vpop.f32.mrb[0].mxu0
  %v7384 = vadd.f32 0.0, %v7383
  %v7385 = vpop.f32.mrb[0].mxu0
  %7386 = vmatprep.mubr.f32.mxu0 0.0
  %7387 = vmatmul.mubr.f32.gmra.mrb[0].mxu0 %v749
  %v7388 = vpop.f32.mrb[0].mxu0
  %v7389 = vadd.f32 0.0, %v7388
  %v7390 = vpop.f32.mrb[0].mxu0
  %7391 = vmatprep.mubr.f32.mxu0 0.0
  %7392 = vmatmul.mubr.f32.gmra.mrb[0].mxu0 %v752
  %v7393 = vpop.f32.mrb[0].mxu0
  %v7394 = vadd.f32 0.0, %v7393
  %v7395 = vpop.f32.mrb[0].mxu0
  %7396 = vmatprep.mubr.f32.mxu0 0.0
  %7397 = vmatmul.mubr.f32.gmra.mrb[0].mxu0 %v755
  %v7398 = vpop.f32.mrb[0].mxu0
  %v7399 = vadd.f32 0.0, %v7398
  %v7400 = vpop.f32.mrb[0].mxu0
  %7401 = vmatprep.mubr.f32.mxu0 0.0
  %7402 = vmatmul.mubr.f32.gmra.mrb[0].mxu0 %v758
  %v7403 = vpop.f32.mrb[0].mxu0
  %v7404 = vadd.f32 0.0, %v7403
  %v7405 = vpop.f32.mrb[0].mxu0
  %7406 = vmatprep.mubr.f32.mxu0 0.0
  %7407 = vmatmul.mubr.f32.gmra.mrb[0].mxu0 %v761
  %v7408 = vpop.f32.mrb[0].mxu0
  %v7409 = vadd.f32 0.0, %v7408
  %v7410 = vpop.f32.mrb[0].mxu0
  %7411 = vmatprep.mubr.f32.mxu0 0.0
  %7412 = vmatmul.mubr.f32.gmra.mrb[0].mxu0 %v764
  %v7413 = vpop.f32.mrb[0].mxu0
  %v7414 = vadd.f32 0.0, %v7413
  %v7415 = vpop.f32.mrb[0].mxu0
  %7416 = vmatprep.mubr.f32.mxu0 0.0
  %7417 = vmatmul.mubr.f32.gmra.mrb[0].mxu0 %v767
  %v7418 = vpop.f32.mrb[0].mxu0
  %v7419 = vadd.f32 0.0, %v7418
  %v7420 = vpop.f32.mrb[0].mxu0
  %7421 = vdwg.mxu0
  %v7422 = vmul.f32 %v7284, %v7284
  %v7423 = vmul.f32 %v7289, %v7289
  %v7424 = vmul.f32 %v7294, %v7294
  %v7425 = vmul.f32 %v7299, %v7299
  %v7426 = vmul.f32 %v7304, %v7304
  %v7427 = vmul.f32 %v7309, %v7309
  %v7428 = vmul.f32 %v7314, %v7314
  %v7429 = vmul.f32 %v7319, %v7319
  %v7430 = vmul.f32 %v7324, %v7324
  %v7431 = vmul.f32 %v7329, %v7329
  %v7432 = vmul.f32 %v7334, %v7334
  %v7433 = vmul.f32 %v7339, %v7339
  %v7434 = vmul.f32 %v7344, %v7344
  %v7435 = vmul.f32 %v7349, %v7349
  %v7436 = vmul.f32 %v7354, %v7354
  %v7437 = vmul.f32 %v7359, %v7359
  %v7438 = vmul.f32 %v7364, %v7364
  %v7439 = vmul.f32 %v7369, %v7369
  %v7440 = vmul.f32 %v7374, %v7374
  %v7441 = vmul.f32 %v7379, %v7379
  %v7442 = vmul.f32 %v7384, %v7384
  %v7443 = vmul.f32 %v7389, %v7389
  %v7444 = vmul.f32 %v7394, %v7394
  %v7445 = vmul.f32 %v7399, %v7399
  %v7446 = vmul.f32 %v7404, %v7404
  %v7447 = vmul.f32 %v7409, %v7409
  %v7448 = vmul.f32 %v7414, %v7414
  %v7449 = vmul.f32 %v7419, %v7419
  %v7450 = vsel %vm1002, %v7422, 0.0
  %7451 = vadd.xlane.f32.xlu0 %v7450
  %v7452 = vpop.xlane.xlu0 %7451
  %v7453 = vsel %vm1002, %v7423, 0.0
  %7454 = vadd.xlane.f32.xlu0 %v7453
  %v7455 = vpop.xlane.xlu0 %7454
  %v7456 = vsel %vm1002, %v7424, 0.0
  %7457 = vadd.xlane.f32.xlu0 %v7456
  %v7458 = vpop.xlane.xlu0 %7457
  %v7459 = vsel %vm1002, %v7425, 0.0
  %7460 = vadd.xlane.f32.xlu0 %v7459
  %v7461 = vpop.xlane.xlu0 %7460
  %v7462 = vsel %vm1002, %v7426, 0.0
  %7463 = vadd.xlane.f32.xlu0 %v7462
  %v7464 = vpop.xlane.xlu0 %7463
  %v7465 = vsel %vm1002, %v7427, 0.0
  %7466 = vadd.xlane.f32.xlu0 %v7465
  %v7467 = vpop.xlane.xlu0 %7466
  %v7468 = vsel %vm1002, %v7428, 0.0
  %7469 = vadd.xlane.f32.xlu0 %v7468
  %v7470 = vpop.xlane.xlu0 %7469
  %v7471 = vsel %vm1002, %v7429, 0.0
  %7472 = vadd.xlane.f32.xlu0 %v7471
  %v7473 = vpop.xlane.xlu0 %7472
  %v7474 = vsel %vm1002, %v7430, 0.0
  %7475 = vadd.xlane.f32.xlu0 %v7474
  %v7476 = vpop.xlane.xlu0 %7475
  %v7477 = vsel %vm1002, %v7431, 0.0
  %7478 = vadd.xlane.f32.xlu0 %v7477
  %v7479 = vpop.xlane.xlu0 %7478
  %v7480 = vsel %vm1002, %v7432, 0.0
  %7481 = vadd.xlane.f32.xlu0 %v7480
  %v7482 = vpop.xlane.xlu0 %7481
  %v7483 = vsel %vm1002, %v7433, 0.0
  %7484 = vadd.xlane.f32.xlu0 %v7483
  %v7485 = vpop.xlane.xlu0 %7484
  %v7486 = vsel %vm1002, %v7434, 0.0
  %7487 = vadd.xlane.f32.xlu0 %v7486
  %v7488 = vpop.xlane.xlu0 %7487
  %v7489 = vsel %vm1002, %v7435, 0.0
  %7490 = vadd.xlane.f32.xlu0 %v7489
  %v7491 = vpop.xlane.xlu0 %7490
  %v7492 = vsel %vm1002, %v7436, 0.0
  %7493 = vadd.xlane.f32.xlu0 %v7492
  %v7494 = vpop.xlane.xlu0 %7493
  %v7495 = vsel %vm1002, %v7437, 0.0
  %7496 = vadd.xlane.f32.xlu0 %v7495
  %v7497 = vpop.xlane.xlu0 %7496
  %v7498 = vsel %vm1002, %v7438, 0.0
  %7499 = vadd.xlane.f32.xlu0 %v7498
  %v7500 = vpop.xlane.xlu0 %7499
  %v7501 = vsel %vm1002, %v7439, 0.0
  %7502 = vadd.xlane.f32.xlu0 %v7501
  %v7503 = vpop.xlane.xlu0 %7502
  %v7504 = vsel %vm1002, %v7440, 0.0
  %7505 = vadd.xlane.f32.xlu0 %v7504
  %v7506 = vpop.xlane.xlu0 %7505
  %v7507 = vsel %vm1002, %v7441, 0.0
  %7508 = vadd.xlane.f32.xlu0 %v7507
  %v7509 = vpop.xlane.xlu0 %7508
  %v7510 = vsel %vm1002, %v7442, 0.0
  %7511 = vadd.xlane.f32.xlu0 %v7510
  %v7512 = vpop.xlane.xlu0 %7511
  %v7513 = vsel %vm1002, %v7443, 0.0
  %7514 = vadd.xlane.f32.xlu0 %v7513
  %v7515 = vpop.xlane.xlu0 %7514
  %v7516 = vsel %vm1002, %v7444, 0.0
  %7517 = vadd.xlane.f32.xlu0 %v7516
  %v7518 = vpop.xlane.xlu0 %7517
  %v7519 = vsel %vm1002, %v7445, 0.0
  %7520 = vadd.xlane.f32.xlu0 %v7519
  %v7521 = vpop.xlane.xlu0 %7520
  %v7522 = vsel %vm1002, %v7446, 0.0
  %7523 = vadd.xlane.f32.xlu0 %v7522
  %v7524 = vpop.xlane.xlu0 %7523
  %v7525 = vsel %vm1002, %v7447, 0.0
  %7526 = vadd.xlane.f32.xlu0 %v7525
  %v7527 = vpop.xlane.xlu0 %7526
  %v7528 = vsel %vm1002, %v7448, 0.0
  %7529 = vadd.xlane.f32.xlu0 %v7528
  %v7530 = vpop.xlane.xlu0 %7529
  %v7531 = vsel %vm1002, %v7449, 0.0
  %7532 = vadd.xlane.f32.xlu0 %v7531
  %v7533 = vpop.xlane.xlu0 %7532
  %s7534 = scalar_lea.vmem %s11, 8
  %v7535 = vld [vmem:[%s7534] sm:$0x7]
  %7540 = vrot.lane.b32.xlu0 %v7179, 96
  %v7541 = vpop.permute.xlu0 %7540
  %7542 = vrot.lane.b32.xlu0 %v7185, 96
  %v7543 = vpop.permute.xlu0 %7542
  %7544 = vrot.lane.b32.xlu0 %v7191, 96
  %v7545 = vpop.permute.xlu0 %7544
  %7546 = vrot.lane.b32.xlu0 %v7197, 96
  %v7547 = vpop.permute.xlu0 %7546
  %v7549 = vrot.slane %v7535, 1
  %7550 = vrot.lane.b32.xlu0 %v7549, 64
  %v7551 = vpop.permute.xlu0 %7550
  %v7552 = vlaneseq
  %v7553 = vshrl.u32 %v7552, 7
  %v7554 = vsub.s32 0, %v7553
  %v7555 = vrot.slane %v7535, %v7554
  %v7556 = vmul.f32 %v7452, %v7555
  %v7557 = vmul.f32 %v7455, %v7555
  %v7558 = vmul.f32 %v7458, %v7555
  %v7559 = vmul.f32 %v7461, %v7555
  %v7560 = vmul.f32 %v7464, %v7555
  %v7561 = vmul.f32 %v7467, %v7555
  %v7562 = vmul.f32 %v7470, %v7555
  %v7563 = vmul.f32 %v7473, %v7555
  %v7564 = vmul.f32 %v7476, %v7555
  %v7565 = vmul.f32 %v7479, %v7555
  %v7566 = vmul.f32 %v7482, %v7555
  %v7567 = vmul.f32 %v7485, %v7555
  %v7568 = vmul.f32 %v7488, %v7555
  %v7569 = vmul.f32 %v7491, %v7555
  %v7570 = vmul.f32 %v7494, %v7555
  %v7571 = vmul.f32 %v7497, %v7555
  %v7572 = vmul.f32 %v7500, %v7555
  %v7573 = vmul.f32 %v7503, %v7555
  %v7574 = vmul.f32 %v7506, %v7555
  %v7575 = vmul.f32 %v7509, %v7555
  %v7576 = vmul.f32 %v7512, %v7555
  %v7577 = vmul.f32 %v7515, %v7555
  %v7578 = vmul.f32 %v7518, %v7555
  %v7579 = vmul.f32 %v7521, %v7555
  %v7580 = vmul.f32 %v7524, %v7555
  %v7581 = vmul.f32 %v7527, %v7555
  %v7582 = vmul.f32 %v7530, %v7555
  %v7583 = vmul.f32 %v7533, %v7555
  %7584 = vrot.lane.b32.xlu0 %v7179, 64
  %v7585 = vpop.permute.xlu0 %7584
  %7586 = vrot.lane.b32.xlu0 %v7185, 64
  %v7587 = vpop.permute.xlu0 %7586
  %7588 = vrot.lane.b32.xlu0 %v7191, 64
  %v7589 = vpop.permute.xlu0 %7588
  %7590 = vrot.lane.b32.xlu0 %v7197, 64
  %v7591 = vpop.permute.xlu0 %7590
  %7592 = vrot.lane.b32.xlu0 %v7541, 64
  %v7593 = vpop.permute.xlu0 %7592
  %7594 = vrot.lane.b32.xlu0 %v7543, 64
  %v7595 = vpop.permute.xlu0 %7594
  %7596 = vrot.lane.b32.xlu0 %v7545, 64
  %v7597 = vpop.permute.xlu0 %7596
  %7598 = vrot.lane.b32.xlu0 %v7547, 64
  %v7599 = vpop.permute.xlu0 %7598
  %7600 = vrot.lane.b32.xlu0 %v7551, 64
  %v7601 = vpop.permute.xlu0 %7600
  %v7610 = vsel %vm1247, %v7601, 0
  %7612 = vmatprep.subr.mxu0 0.0
  %7613 = vmatpush1.msra.mxu0 %v7585
  %7614 = vmatprep.subr.mxu0 0.0
  %7615 = vmatpush1.msra.mxu0 %v7587
  %7616 = vmatprep.subr.mxu0 0.0
  %7617 = vmatpush1.msra.mxu0 %v7589
  %7618 = vmatprep.subr.mxu0 0.0
  %7619 = vmatpush1.msra.mxu0 %v7591
  %7620 = vmatprep.subr.mxu0 0.0
  %7621 = vmatpush1.msra.mxu0 %v7593
  %7622 = vmatprep.subr.mxu0 0.0
  %7623 = vmatpush1.msra.mxu0 %v7595
  %7624 = vmatprep.subr.mxu0 0.0
  %7625 = vmatpush1.msra.mxu0 %v7597
  %7626 = vmatprep.subr.mxu0 0.0
  %7627 = vmatpush1.msra.mxu0 %v7599
  %7628 = vmatprep.subr.mxu0 0.0
  %7629 = vmatpush1.msra.mxu0 %v7610
  %7630 = vmatprep.subr.mxu0 0.0
  %7631 = vmatpush1.msra.mxu0 0.0
  %7632 = vmatprep.subr.mxu0 0.0
  %7633 = vmatpush1.msra.mxu0 0.0
  %7634 = vmatprep.subr.mxu0 0.0
  %7635 = vmatpush1.msra.mxu0 0.0
  %7636 = vmatprep.subr.mxu0 0.0
  %7637 = vmatpush1.msra.mxu0 0.0
  %7638 = vmatprep.subr.mxu0 0.0
  %7639 = vmatpush1.msra.mxu0 0.0
  %7640 = vmatprep.subr.mxu0 0.0
  %7641 = vmatpush1.msra.mxu0 0.0
  %7642 = vmatprep.subr.mxu0 0.0
  %7643 = vmatpush1.msra.mxu0 0.0
  %7644 = vmatprep.subr.mxu0 0.0
  %7645 = vmatpush1.msra.mxu0 0.0
  %7646 = vmatprep.subr.mxu0 0.0
  %7647 = vmatpush1.msra.mxu0 0.0
  %7648 = vmatprep.subr.mxu0 0.0
  %7649 = vmatpush1.msra.mxu0 0.0
  %7650 = vmatprep.subr.mxu0 0.0
  %7651 = vmatpush1.msra.mxu0 0.0
  %7652 = vmatprep.subr.mxu0 0.0
  %7653 = vmatpush1.msra.mxu0 0.0
  %7654 = vmatprep.subr.mxu0 0.0
  %7655 = vmatpush1.msra.mxu0 0.0
  %7656 = vmatprep.subr.mxu0 0.0
  %7657 = vmatpush1.msra.mxu0 0.0
  %7658 = vmatprep.subr.mxu0 0.0
  %7659 = vmatpush1.msra.mxu0 0.0
  %7660 = vmatprep.subr.mxu0 0.0
  %7661 = vmatpush1.msra.mxu0 0.0
  %7662 = vmatprep.subr.mxu0 0.0
  %7663 = vmatpush1.msra.mxu0 0.0
  %7664 = vmatprep.subr.mxu0 0.0
  %7665 = vmatpush1.msra.mxu0 0.0
  %7666 = vmatprep.subr.mxu0 0.0
  %7667 = vmatpush1.msra.mxu0 0.0
  %7668 = vmatprep.subr.mxu0 0.0
  %7669 = vmatpush1.msra.mxu0 0.0
  %7670 = vmatprep.subr.mxu0 0.0
  %7671 = vmatpush1.msra.mxu0 0.0
  %7672 = vmatprep.subr.mxu0 0.0
  %7673 = vmatpush1.msra.mxu0 0.0
  %7674 = vmatprep.subr.mxu0 0.0
  %7675 = vmatpush1.msra.mxu0 0.0
  %7676 = vmatprep.mubr.f32.mxu0 0.0
  %7677 = vmatmul.mubr.f32.gmra.mrb[0].mxu0 %v1164
  %v7678 = vpop.f32.mrb[0].mxu0
  %v7679 = vadd.f32 %v7556, %v7678
  %v7680 = vpop.f32.mrb[0].mxu0
  %7681 = vmatprep.mubr.f32.mxu0 0.0
  %7682 = vmatmul.mubr.f32.gmra.mrb[0].mxu0 %v1167
  %v7683 = vpop.f32.mrb[0].mxu0
  %v7684 = vadd.f32 %v7557, %v7683
  %v7685 = vpop.f32.mrb[0].mxu0
  %7686 = vmatprep.mubr.f32.mxu0 0.0
  %7687 = vmatmul.mubr.f32.gmra.mrb[0].mxu0 %v1170
  %v7688 = vpop.f32.mrb[0].mxu0
  %v7689 = vadd.f32 %v7558, %v7688
  %v7690 = vpop.f32.mrb[0].mxu0
  %7691 = vmatprep.mubr.f32.mxu0 0.0
  %7692 = vmatmul.mubr.f32.gmra.mrb[0].mxu0 %v1173
  %v7693 = vpop.f32.mrb[0].mxu0
  %v7694 = vadd.f32 %v7559, %v7693
  %v7695 = vpop.f32.mrb[0].mxu0
  %7696 = vmatprep.mubr.f32.mxu0 0.0
  %7697 = vmatmul.mubr.f32.gmra.mrb[0].mxu0 %v1176
  %v7698 = vpop.f32.mrb[0].mxu0
  %v7699 = vadd.f32 %v7560, %v7698
  %v7700 = vpop.f32.mrb[0].mxu0
  %7701 = vmatprep.mubr.f32.mxu0 0.0
  %7702 = vmatmul.mubr.f32.gmra.mrb[0].mxu0 %v1179
  %v7703 = vpop.f32.mrb[0].mxu0
  %v7704 = vadd.f32 %v7561, %v7703
  %v7705 = vpop.f32.mrb[0].mxu0
  %7706 = vmatprep.mubr.f32.mxu0 0.0
  %7707 = vmatmul.mubr.f32.gmra.mrb[0].mxu0 %v1182
  %v7708 = vpop.f32.mrb[0].mxu0
  %v7709 = vadd.f32 %v7562, %v7708
  %v7710 = vpop.f32.mrb[0].mxu0
  %7711 = vmatprep.mubr.f32.mxu0 0.0
  %7712 = vmatmul.mubr.f32.gmra.mrb[0].mxu0 %v1185
  %v7713 = vpop.f32.mrb[0].mxu0
  %v7714 = vadd.f32 %v7563, %v7713
  %v7715 = vpop.f32.mrb[0].mxu0
  %7716 = vmatprep.mubr.f32.mxu0 0.0
  %7717 = vmatmul.mubr.f32.gmra.mrb[0].mxu0 %v1188
  %v7718 = vpop.f32.mrb[0].mxu0
  %v7719 = vadd.f32 %v7564, %v7718
  %v7720 = vpop.f32.mrb[0].mxu0
  %7721 = vmatprep.mubr.f32.mxu0 0.0
  %7722 = vmatmul.mubr.f32.gmra.mrb[0].mxu0 %v1191
  %v7723 = vpop.f32.mrb[0].mxu0
  %v7724 = vadd.f32 %v7565, %v7723
  %v7725 = vpop.f32.mrb[0].mxu0
  %7726 = vmatprep.mubr.f32.mxu0 0.0
  %7727 = vmatmul.mubr.f32.gmra.mrb[0].mxu0 %v1194
  %v7728 = vpop.f32.mrb[0].mxu0
  %v7729 = vadd.f32 %v7566, %v7728
  %v7730 = vpop.f32.mrb[0].mxu0
  %7731 = vmatprep.mubr.f32.mxu0 0.0
  %7732 = vmatmul.mubr.f32.gmra.mrb[0].mxu0 %v1197
  %v7733 = vpop.f32.mrb[0].mxu0
  %v7734 = vadd.f32 %v7567, %v7733
  %v7735 = vpop.f32.mrb[0].mxu0
  %7736 = vmatprep.mubr.f32.mxu0 0.0
  %7737 = vmatmul.mubr.f32.gmra.mrb[0].mxu0 %v1200
  %v7738 = vpop.f32.mrb[0].mxu0
  %v7739 = vadd.f32 %v7568, %v7738
  %v7740 = vpop.f32.mrb[0].mxu0
  %7741 = vmatprep.mubr.f32.mxu0 0.0
  %7742 = vmatmul.mubr.f32.gmra.mrb[0].mxu0 %v1203
  %v7743 = vpop.f32.mrb[0].mxu0
  %v7744 = vadd.f32 %v7569, %v7743
  %v7745 = vpop.f32.mrb[0].mxu0
  %7746 = vmatprep.mubr.f32.mxu0 0.0
  %7747 = vmatmul.mubr.f32.gmra.mrb[0].mxu0 %v1206
  %v7748 = vpop.f32.mrb[0].mxu0
  %v7749 = vadd.f32 %v7570, %v7748
  %v7750 = vpop.f32.mrb[0].mxu0
  %7751 = vmatprep.mubr.f32.mxu0 0.0
  %7752 = vmatmul.mubr.f32.gmra.mrb[0].mxu0 %v1209
  %v7753 = vpop.f32.mrb[0].mxu0
  %v7754 = vadd.f32 %v7571, %v7753
  %v7755 = vpop.f32.mrb[0].mxu0
  %7756 = vmatprep.mubr.f32.mxu0 0.0
  %7757 = vmatmul.mubr.f32.gmra.mrb[0].mxu0 %v1212
  %v7758 = vpop.f32.mrb[0].mxu0
  %v7759 = vadd.f32 %v7572, %v7758
  %v7760 = vpop.f32.mrb[0].mxu0
  %7761 = vmatprep.mubr.f32.mxu0 0.0
  %7762 = vmatmul.mubr.f32.gmra.mrb[0].mxu0 %v1215
  %v7763 = vpop.f32.mrb[0].mxu0
  %v7764 = vadd.f32 %v7573, %v7763
  %v7765 = vpop.f32.mrb[0].mxu0
  %7766 = vmatprep.mubr.f32.mxu0 0.0
  %7767 = vmatmul.mubr.f32.gmra.mrb[0].mxu0 %v1218
  %v7768 = vpop.f32.mrb[0].mxu0
  %v7769 = vadd.f32 %v7574, %v7768
  %v7770 = vpop.f32.mrb[0].mxu0
  %7771 = vmatprep.mubr.f32.mxu0 0.0
  %7772 = vmatmul.mubr.f32.gmra.mrb[0].mxu0 %v1221
  %v7773 = vpop.f32.mrb[0].mxu0
  %v7774 = vadd.f32 %v7575, %v7773
  %v7775 = vpop.f32.mrb[0].mxu0
  %7776 = vmatprep.mubr.f32.mxu0 0.0
  %7777 = vmatmul.mubr.f32.gmra.mrb[0].mxu0 %v1224
  %v7778 = vpop.f32.mrb[0].mxu0
  %v7779 = vadd.f32 %v7576, %v7778
  %v7780 = vpop.f32.mrb[0].mxu0
  %7781 = vmatprep.mubr.f32.mxu0 0.0
  %7782 = vmatmul.mubr.f32.gmra.mrb[0].mxu0 %v1227
  %v7783 = vpop.f32.mrb[0].mxu0
  %v7784 = vadd.f32 %v7577, %v7783
  %v7785 = vpop.f32.mrb[0].mxu0
  %7786 = vmatprep.mubr.f32.mxu0 0.0
  %7787 = vmatmul.mubr.f32.gmra.mrb[0].mxu0 %v1230
  %v7788 = vpop.f32.mrb[0].mxu0
  %v7789 = vadd.f32 %v7578, %v7788
  %v7790 = vpop.f32.mrb[0].mxu0
  %7791 = vmatprep.mubr.f32.mxu0 0.0
  %7792 = vmatmul.mubr.f32.gmra.mrb[0].mxu0 %v1233
  %v7793 = vpop.f32.mrb[0].mxu0
  %v7794 = vadd.f32 %v7579, %v7793
  %v7795 = vpop.f32.mrb[0].mxu0
  %7796 = vmatprep.mubr.f32.mxu0 0.0
  %7797 = vmatmul.mubr.f32.gmra.mrb[0].mxu0 %v1236
  %v7798 = vpop.f32.mrb[0].mxu0
  %v7799 = vadd.f32 %v7580, %v7798
  %v7800 = vpop.f32.mrb[0].mxu0
  %7801 = vmatprep.mubr.f32.mxu0 0.0
  %7802 = vmatmul.mubr.f32.gmra.mrb[0].mxu0 %v1239
  %v7803 = vpop.f32.mrb[0].mxu0
  %v7804 = vadd.f32 %v7581, %v7803
  %v7805 = vpop.f32.mrb[0].mxu0
  %7806 = vmatprep.mubr.f32.mxu0 0.0
  %7807 = vmatmul.mubr.f32.gmra.mrb[0].mxu0 %v1242
  %v7808 = vpop.f32.mrb[0].mxu0
  %v7809 = vadd.f32 %v7582, %v7808
  %v7810 = vpop.f32.mrb[0].mxu0
  %7811 = vmatprep.mubr.f32.mxu0 0.0
  %7812 = vmatmul.mubr.f32.gmra.mrb[0].mxu0 %v1245
  %v7813 = vpop.f32.mrb[0].mxu0
  %v7814 = vadd.f32 %v7583, %v7813
  %v7815 = vpop.f32.mrb[0].mxu0
  %7816 = vdwg.mxu0
  %v7817 = vxor.u32 %v7679, 2147483648
  %v7818 = vxor.u32 %v7684, 2147483648
  %v7819 = vxor.u32 %v7689, 2147483648
  %v7820 = vxor.u32 %v7694, 2147483648
  %v7821 = vxor.u32 %v7699, 2147483648
  %v7822 = vxor.u32 %v7704, 2147483648
  %v7823 = vxor.u32 %v7709, 2147483648
  %v7824 = vxor.u32 %v7714, 2147483648
  %v7825 = vxor.u32 %v7719, 2147483648
  %v7826 = vxor.u32 %v7724, 2147483648
  %v7827 = vxor.u32 %v7729, 2147483648
  %v7828 = vxor.u32 %v7734, 2147483648
  %v7829 = vxor.u32 %v7739, 2147483648
  %v7830 = vxor.u32 %v7744, 2147483648
  %v7831 = vxor.u32 %v7749, 2147483648
  %v7832 = vxor.u32 %v7754, 2147483648
  %v7833 = vxor.u32 %v7759, 2147483648
  %v7834 = vxor.u32 %v7764, 2147483648
  %v7835 = vxor.u32 %v7769, 2147483648
  %v7836 = vxor.u32 %v7774, 2147483648
  %v7837 = vxor.u32 %v7779, 2147483648
  %v7838 = vxor.u32 %v7784, 2147483648
  %v7839 = vxor.u32 %v7789, 2147483648
  %v7840 = vxor.u32 %v7794, 2147483648
  %v7841 = vxor.u32 %v7799, 2147483648
  %v7842 = vxor.u32 %v7804, 2147483648
  %v7843 = vxor.u32 %v7809, 2147483648
  %v7844 = vxor.u32 %v7814, 2147483648
  %v7845 = vmul.f32 %v7817, 1.442695
  %v7846 = vpow.pop %v7845
  %v7847 = vmul.f32 %v7818, 1.442695
  %v7848 = vpow.pop %v7847
  %v7849 = vmul.f32 %v7819, 1.442695
  %v7850 = vpow.pop %v7849
  %v7851 = vmul.f32 %v7820, 1.442695
  %v7852 = vpow.pop %v7851
  %v7853 = vmul.f32 %v7821, 1.442695
  %v7854 = vpow.pop %v7853
  %v7855 = vmul.f32 %v7822, 1.442695
  %v7856 = vpow.pop %v7855
  %v7857 = vmul.f32 %v7823, 1.442695
  %v7858 = vpow.pop %v7857
  %v7859 = vmul.f32 %v7824, 1.442695
  %v7860 = vpow.pop %v7859
  %v7861 = vmul.f32 %v7825, 1.442695
  %v7862 = vpow.pop %v7861
  %v7863 = vmul.f32 %v7826, 1.442695
  %v7864 = vpow.pop %v7863
  %v7865 = vmul.f32 %v7827, 1.442695
  %v7866 = vpow.pop %v7865
  %v7867 = vmul.f32 %v7828, 1.442695
  %v7868 = vpow.pop %v7867
  %v7869 = vmul.f32 %v7829, 1.442695
  %v7870 = vpow.pop %v7869
  %v7871 = vmul.f32 %v7830, 1.442695
  %v7872 = vpow.pop %v7871
  %v7873 = vmul.f32 %v7831, 1.442695
  %v7874 = vpow.pop %v7873
  %v7875 = vmul.f32 %v7832, 1.442695
  %v7876 = vpow.pop %v7875
  %v7877 = vmul.f32 %v7833, 1.442695
  %v7878 = vpow.pop %v7877
  %v7879 = vmul.f32 %v7834, 1.442695
  %v7880 = vpow.pop %v7879
  %v7881 = vmul.f32 %v7835, 1.442695
  %v7882 = vpow.pop %v7881
  %v7883 = vmul.f32 %v7836, 1.442695
  %v7884 = vpow.pop %v7883
  %v7885 = vmul.f32 %v7837, 1.442695
  %v7886 = vpow.pop %v7885
  %v7887 = vmul.f32 %v7838, 1.442695
  %v7888 = vpow.pop %v7887
  %v7889 = vmul.f32 %v7839, 1.442695
  %v7890 = vpow.pop %v7889
  %v7891 = vmul.f32 %v7840, 1.442695
  %v7892 = vpow.pop %v7891
  %v7893 = vmul.f32 %v7841, 1.442695
  %v7894 = vpow.pop %v7893
  %v7895 = vmul.f32 %v7842, 1.442695
  %v7896 = vpow.pop %v7895
  %v7897 = vmul.f32 %v7843, 1.442695
  %v7898 = vpow.pop %v7897
  %v7899 = vmul.f32 %v7844, 1.442695
  %v7900 = vpow.pop %v7899
  %v7901 = vadd.f32 %v7846, 1.0
  %v7902 = vadd.f32 %v7848, 1.0
  %v7903 = vadd.f32 %v7850, 1.0
  %v7904 = vadd.f32 %v7852, 1.0
  %v7905 = vadd.f32 %v7854, 1.0
  %v7906 = vadd.f32 %v7856, 1.0
  %v7907 = vadd.f32 %v7858, 1.0
  %v7908 = vadd.f32 %v7860, 1.0
  %v7909 = vadd.f32 %v7862, 1.0
  %v7910 = vadd.f32 %v7864, 1.0
  %v7911 = vadd.f32 %v7866, 1.0
  %v7912 = vadd.f32 %v7868, 1.0
  %v7913 = vadd.f32 %v7870, 1.0
  %v7914 = vadd.f32 %v7872, 1.0
  %v7915 = vadd.f32 %v7874, 1.0
  %v7916 = vadd.f32 %v7876, 1.0
  %v7917 = vadd.f32 %v7878, 1.0
  %v7918 = vadd.f32 %v7880, 1.0
  %v7919 = vadd.f32 %v7882, 1.0
  %v7920 = vadd.f32 %v7884, 1.0
  %v7921 = vadd.f32 %v7886, 1.0
  %v7922 = vadd.f32 %v7888, 1.0
  %v7923 = vadd.f32 %v7890, 1.0
  %v7924 = vadd.f32 %v7892, 1.0
  %v7925 = vadd.f32 %v7894, 1.0
  %v7926 = vadd.f32 %v7896, 1.0
  %v7927 = vadd.f32 %v7898, 1.0
  %v7928 = vadd.f32 %v7900, 1.0
  %v7929 = vrcp.pop %v7901
  %v7930 = vmul.f32 1.0, %v7929
  %v7931 = vrcp.pop %v7902
  %v7932 = vmul.f32 1.0, %v7931
  %v7933 = vrcp.pop %v7903
  %v7934 = vmul.f32 1.0, %v7933
  %v7935 = vrcp.pop %v7904
  %v7936 = vmul.f32 1.0, %v7935
  %v7937 = vrcp.pop %v7905
  %v7938 = vmul.f32 1.0, %v7937
  %v7939 = vrcp.pop %v7906
  %v7940 = vmul.f32 1.0, %v7939
  %v7941 = vrcp.pop %v7907
  %v7942 = vmul.f32 1.0, %v7941
  %v7943 = vrcp.pop %v7908
  %v7944 = vmul.f32 1.0, %v7943
  %v7945 = vrcp.pop %v7909
  %v7946 = vmul.f32 1.0, %v7945
  %v7947 = vrcp.pop %v7910
  %v7948 = vmul.f32 1.0, %v7947
  %v7949 = vrcp.pop %v7911
  %v7950 = vmul.f32 1.0, %v7949
  %v7951 = vrcp.pop %v7912
  %v7952 = vmul.f32 1.0, %v7951
  %v7953 = vrcp.pop %v7913
  %v7954 = vmul.f32 1.0, %v7953
  %v7955 = vrcp.pop %v7914
  %v7956 = vmul.f32 1.0, %v7955
  %v7957 = vrcp.pop %v7915
  %v7958 = vmul.f32 1.0, %v7957
  %v7959 = vrcp.pop %v7916
  %v7960 = vmul.f32 1.0, %v7959
  %v7961 = vrcp.pop %v7917
  %v7962 = vmul.f32 1.0, %v7961
  %v7963 = vrcp.pop %v7918
  %v7964 = vmul.f32 1.0, %v7963
  %v7965 = vrcp.pop %v7919
  %v7966 = vmul.f32 1.0, %v7965
  %v7967 = vrcp.pop %v7920
  %v7968 = vmul.f32 1.0, %v7967
  %v7969 = vrcp.pop %v7921
  %v7970 = vmul.f32 1.0, %v7969
  %v7971 = vrcp.pop %v7922
  %v7972 = vmul.f32 1.0, %v7971
  %v7973 = vrcp.pop %v7923
  %v7974 = vmul.f32 1.0, %v7973
  %v7975 = vrcp.pop %v7924
  %v7976 = vmul.f32 1.0, %v7975
  %v7977 = vrcp.pop %v7925
  %v7978 = vmul.f32 1.0, %v7977
  %v7979 = vrcp.pop %v7926
  %v7980 = vmul.f32 1.0, %v7979
  %v7981 = vrcp.pop %v7927
  %v7982 = vmul.f32 1.0, %v7981
  %v7983 = vrcp.pop %v7928
  %v7984 = vmul.f32 1.0, %v7983
  %v7985 = vmul.f32 %v7679, %v7930
  %v7986 = vmul.f32 %v7684, %v7932
  %v7987 = vmul.f32 %v7689, %v7934
  %v7988 = vmul.f32 %v7694, %v7936
  %v7989 = vmul.f32 %v7699, %v7938
  %v7990 = vmul.f32 %v7704, %v7940
  %v7991 = vmul.f32 %v7709, %v7942
  %v7992 = vmul.f32 %v7714, %v7944
  %v7993 = vmul.f32 %v7719, %v7946
  %v7994 = vmul.f32 %v7724, %v7948
  %v7995 = vmul.f32 %v7729, %v7950
  %v7996 = vmul.f32 %v7734, %v7952
  %v7997 = vmul.f32 %v7739, %v7954
  %v7998 = vmul.f32 %v7744, %v7956
  %v7999 = vmul.f32 %v7749, %v7958
  %v8000 = vmul.f32 %v7754, %v7960
  %v8001 = vmul.f32 %v7759, %v7962
  %v8002 = vmul.f32 %v7764, %v7964
  %v8003 = vmul.f32 %v7769, %v7966
  %v8004 = vmul.f32 %v7774, %v7968
  %v8005 = vmul.f32 %v7779, %v7970
  %v8006 = vmul.f32 %v7784, %v7972
  %v8007 = vmul.f32 %v7789, %v7974
  %v8008 = vmul.f32 %v7794, %v7976
  %v8009 = vmul.f32 %v7799, %v7978
  %v8010 = vmul.f32 %v7804, %v7980
  %v8011 = vmul.f32 %v7809, %v7982
  %v8012 = vmul.f32 %v7814, %v7984
  %s8013 = scalar_lea.vmem %s12, 64
  %v8014 = vld [vmem:[%s8013] sm:$0xff]
  %v8015 = vld [vmem:[%s8013 + $0x8] sm:$0xff]
  %v8016 = vld [vmem:[%s8013 + $0x10] sm:$0xff]
  %v8017 = vld [vmem:[%s8013 + $0x18] sm:$0xff]
  %s8018 = scalar_lea.vmem %s13, 2
  %v8019 = vld [vmem:[%s8018] sm:$0x1]
  %v8021 = vlaneseq
  %v8022 = vshrl.u32 %v8021, 7
  %v8023 = vsub.s32 0, %v8022
  %v8024 = vrot.slane %v8019, %v8023
  %v8027 = vsel %vm284, %v7985, 0
  %v8030 = vsel %vm284, %v7986, 0
  %v8033 = vsel %vm284, %v7987, 0
  %v8036 = vsel %vm284, %v7988, 0
  %v8039 = vsel %vm284, %v7989, 0
  %v8042 = vsel %vm284, %v7990, 0
  %v8045 = vsel %vm284, %v7991, 0
  %v8048 = vsel %vm284, %v7992, 0
  %v8051 = vsel %vm284, %v7993, 0
  %v8054 = vsel %vm284, %v7994, 0
  %v8057 = vsel %vm284, %v7995, 0
  %v8060 = vsel %vm284, %v7996, 0
  %v8063 = vsel %vm284, %v7997, 0
  %v8066 = vsel %vm284, %v7998, 0
  %v8069 = vsel %vm284, %v7999, 0
  %v8072 = vsel %vm284, %v8000, 0
  %v8075 = vsel %vm284, %v8001, 0
  %v8078 = vsel %vm284, %v8002, 0
  %v8081 = vsel %vm284, %v8003, 0
  %v8084 = vsel %vm284, %v8004, 0
  %v8087 = vsel %vm284, %v8005, 0
  %v8090 = vsel %vm284, %v8006, 0
  %v8093 = vsel %vm284, %v8007, 0
  %v8096 = vsel %vm284, %v8008, 0
  %v8099 = vsel %vm284, %v8009, 0
  %v8102 = vsel %vm284, %v8010, 0
  %v8105 = vsel %vm284, %v8011, 0
  %v8108 = vsel %vm284, %v8012, 0
  %8110 = vmatprep.subr.mxu0 0.0
  %8111 = vmatpush1.msra.mxu0 %v8014
  %8112 = vmatprep.subr.mxu0 0.0
  %8113 = vmatpush1.msra.mxu0 %v8015
  %8114 = vmatprep.subr.mxu0 0.0
  %8115 = vmatpush1.msra.mxu0 %v8016
  %8116 = vmatprep.subr.mxu0 0.0
  %8117 = vmatpush1.msra.mxu0 %v8017
  %8118 = vmatprep.subr.mxu0 0.0
  %8119 = vmatpush1.msra.mxu0 0.0
  %8120 = vmatprep.subr.mxu0 0.0
  %8121 = vmatpush1.msra.mxu0 0.0
  %8122 = vmatprep.subr.mxu0 0.0
  %8123 = vmatpush1.msra.mxu0 0.0
  %8124 = vmatprep.subr.mxu0 0.0
  %8125 = vmatpush1.msra.mxu0 0.0
  %8126 = vmatprep.subr.mxu0 0.0
  %8127 = vmatpush1.msra.mxu0 0.0
  %8128 = vmatprep.subr.mxu0 0.0
  %8129 = vmatpush1.msra.mxu0 0.0
  %8130 = vmatprep.subr.mxu0 0.0
  %8131 = vmatpush1.msra.mxu0 0.0
  %8132 = vmatprep.subr.mxu0 0.0
  %8133 = vmatpush1.msra.mxu0 0.0
  %8134 = vmatprep.subr.mxu0 0.0
  %8135 = vmatpush1.msra.mxu0 0.0
  %8136 = vmatprep.subr.mxu0 0.0
  %8137 = vmatpush1.msra.mxu0 0.0
  %8138 = vmatprep.subr.mxu0 0.0
  %8139 = vmatpush1.msra.mxu0 0.0
  %8140 = vmatprep.subr.mxu0 0.0
  %8141 = vmatpush1.msra.mxu0 0.0
  %8142 = vmatprep.subr.mxu0 0.0
  %8143 = vmatpush1.msra.mxu0 0.0
  %8144 = vmatprep.subr.mxu0 0.0
  %8145 = vmatpush1.msra.mxu0 0.0
  %8146 = vmatprep.subr.mxu0 0.0
  %8147 = vmatpush1.msra.mxu0 0.0
  %8148 = vmatprep.subr.mxu0 0.0
  %8149 = vmatpush1.msra.mxu0 0.0
  %8150 = vmatprep.subr.mxu0 0.0
  %8151 = vmatpush1.msra.mxu0 0.0
  %8152 = vmatprep.subr.mxu0 0.0
  %8153 = vmatpush1.msra.mxu0 0.0
  %8154 = vmatprep.subr.mxu0 0.0
  %8155 = vmatpush1.msra.mxu0 0.0
  %8156 = vmatprep.subr.mxu0 0.0
  %8157 = vmatpush1.msra.mxu0 0.0
  %8158 = vmatprep.subr.mxu0 0.0
  %8159 = vmatpush1.msra.mxu0 0.0
  %8160 = vmatprep.subr.mxu0 0.0
  %8161 = vmatpush1.msra.mxu0 0.0
  %8162 = vmatprep.subr.mxu0 0.0
  %8163 = vmatpush1.msra.mxu0 0.0
  %8164 = vmatprep.subr.mxu0 0.0
  %8165 = vmatpush1.msra.mxu0 0.0
  %8166 = vmatprep.subr.mxu0 0.0
  %8167 = vmatpush1.msra.mxu0 0.0
  %8168 = vmatprep.subr.mxu0 0.0
  %8169 = vmatpush1.msra.mxu0 0.0
  %8170 = vmatprep.subr.mxu0 0.0
  %8171 = vmatpush1.msra.mxu0 0.0
  %8172 = vmatprep.subr.mxu0 0.0
  %8173 = vmatpush1.msra.mxu0 0.0
  %8174 = vmatprep.mubr.f32.mxu0 0.0
  %8175 = vmatmul.mubr.f32.gmra.mrb[0].mxu0 %v8027
  %v8176 = vpop.f32.mrb[0].mxu0
  %v8177 = vadd.f32 %v8024, %v8176
  %v8178 = vpop.f32.mrb[0].mxu0
  %8179 = vmatprep.mubr.f32.mxu0 0.0
  %8180 = vmatmul.mubr.f32.gmra.mrb[0].mxu0 %v8030
  %v8181 = vpop.f32.mrb[0].mxu0
  %v8182 = vadd.f32 %v8024, %v8181
  %v8183 = vpop.f32.mrb[0].mxu0
  %8184 = vmatprep.mubr.f32.mxu0 0.0
  %8185 = vmatmul.mubr.f32.gmra.mrb[0].mxu0 %v8033
  %v8186 = vpop.f32.mrb[0].mxu0
  %v8187 = vadd.f32 %v8024, %v8186
  %v8188 = vpop.f32.mrb[0].mxu0
  %8189 = vmatprep.mubr.f32.mxu0 0.0
  %8190 = vmatmul.mubr.f32.gmra.mrb[0].mxu0 %v8036
  %v8191 = vpop.f32.mrb[0].mxu0
  %v8192 = vadd.f32 %v8024, %v8191
  %v8193 = vpop.f32.mrb[0].mxu0
  %8194 = vmatprep.mubr.f32.mxu0 0.0
  %8195 = vmatmul.mubr.f32.gmra.mrb[0].mxu0 %v8039
  %v8196 = vpop.f32.mrb[0].mxu0
  %v8197 = vadd.f32 %v8024, %v8196
  %v8198 = vpop.f32.mrb[0].mxu0
  %8199 = vmatprep.mubr.f32.mxu0 0.0
  %8200 = vmatmul.mubr.f32.gmra.mrb[0].mxu0 %v8042
  %v8201 = vpop.f32.mrb[0].mxu0
  %v8202 = vadd.f32 %v8024, %v8201
  %v8203 = vpop.f32.mrb[0].mxu0
  %8204 = vmatprep.mubr.f32.mxu0 0.0
  %8205 = vmatmul.mubr.f32.gmra.mrb[0].mxu0 %v8045
  %v8206 = vpop.f32.mrb[0].mxu0
  %v8207 = vadd.f32 %v8024, %v8206
  %v8208 = vpop.f32.mrb[0].mxu0
  %8209 = vmatprep.mubr.f32.mxu0 0.0
  %8210 = vmatmul.mubr.f32.gmra.mrb[0].mxu0 %v8048
  %v8211 = vpop.f32.mrb[0].mxu0
  %v8212 = vadd.f32 %v8024, %v8211
  %v8213 = vpop.f32.mrb[0].mxu0
  %8214 = vmatprep.mubr.f32.mxu0 0.0
  %8215 = vmatmul.mubr.f32.gmra.mrb[0].mxu0 %v8051
  %v8216 = vpop.f32.mrb[0].mxu0
  %v8217 = vadd.f32 %v8024, %v8216
  %v8218 = vpop.f32.mrb[0].mxu0
  %8219 = vmatprep.mubr.f32.mxu0 0.0
  %8220 = vmatmul.mubr.f32.gmra.mrb[0].mxu0 %v8054
  %v8221 = vpop.f32.mrb[0].mxu0
  %v8222 = vadd.f32 %v8024, %v8221
  %v8223 = vpop.f32.mrb[0].mxu0
  %8224 = vmatprep.mubr.f32.mxu0 0.0
  %8225 = vmatmul.mubr.f32.gmra.mrb[0].mxu0 %v8057
  %v8226 = vpop.f32.mrb[0].mxu0
  %v8227 = vadd.f32 %v8024, %v8226
  %v8228 = vpop.f32.mrb[0].mxu0
  %8229 = vmatprep.mubr.f32.mxu0 0.0
  %8230 = vmatmul.mubr.f32.gmra.mrb[0].mxu0 %v8060
  %v8231 = vpop.f32.mrb[0].mxu0
  %v8232 = vadd.f32 %v8024, %v8231
  %v8233 = vpop.f32.mrb[0].mxu0
  %8234 = vmatprep.mubr.f32.mxu0 0.0
  %8235 = vmatmul.mubr.f32.gmra.mrb[0].mxu0 %v8063
  %v8236 = vpop.f32.mrb[0].mxu0
  %v8237 = vadd.f32 %v8024, %v8236
  %v8238 = vpop.f32.mrb[0].mxu0
  %8239 = vmatprep.mubr.f32.mxu0 0.0
  %8240 = vmatmul.mubr.f32.gmra.mrb[0].mxu0 %v8066
  %v8241 = vpop.f32.mrb[0].mxu0
  %v8242 = vadd.f32 %v8024, %v8241
  %v8243 = vpop.f32.mrb[0].mxu0
  %8244 = vmatprep.mubr.f32.mxu0 0.0
  %8245 = vmatmul.mubr.f32.gmra.mrb[0].mxu0 %v8069
  %v8246 = vpop.f32.mrb[0].mxu0
  %v8247 = vadd.f32 %v8024, %v8246
  %v8248 = vpop.f32.mrb[0].mxu0
  %8249 = vmatprep.mubr.f32.mxu0 0.0
  %8250 = vmatmul.mubr.f32.gmra.mrb[0].mxu0 %v8072
  %v8251 = vpop.f32.mrb[0].mxu0
  %v8252 = vadd.f32 %v8024, %v8251
  %v8253 = vpop.f32.mrb[0].mxu0
  %8254 = vmatprep.mubr.f32.mxu0 0.0
  %8255 = vmatmul.mubr.f32.gmra.mrb[0].mxu0 %v8075
  %v8256 = vpop.f32.mrb[0].mxu0
  %v8257 = vadd.f32 %v8024, %v8256
  %v8258 = vpop.f32.mrb[0].mxu0
  %8259 = vmatprep.mubr.f32.mxu0 0.0
  %8260 = vmatmul.mubr.f32.gmra.mrb[0].mxu0 %v8078
  %v8261 = vpop.f32.mrb[0].mxu0
  %v8262 = vadd.f32 %v8024, %v8261
  %v8263 = vpop.f32.mrb[0].mxu0
  %8264 = vmatprep.mubr.f32.mxu0 0.0
  %8265 = vmatmul.mubr.f32.gmra.mrb[0].mxu0 %v8081
  %v8266 = vpop.f32.mrb[0].mxu0
  %v8267 = vadd.f32 %v8024, %v8266
  %v8268 = vpop.f32.mrb[0].mxu0
  %8269 = vmatprep.mubr.f32.mxu0 0.0
  %8270 = vmatmul.mubr.f32.gmra.mrb[0].mxu0 %v8084
  %v8271 = vpop.f32.mrb[0].mxu0
  %v8272 = vadd.f32 %v8024, %v8271
  %v8273 = vpop.f32.mrb[0].mxu0
  %8274 = vmatprep.mubr.f32.mxu0 0.0
  %8275 = vmatmul.mubr.f32.gmra.mrb[0].mxu0 %v8087
  %v8276 = vpop.f32.mrb[0].mxu0
  %v8277 = vadd.f32 %v8024, %v8276
  %v8278 = vpop.f32.mrb[0].mxu0
  %8279 = vmatprep.mubr.f32.mxu0 0.0
  %8280 = vmatmul.mubr.f32.gmra.mrb[0].mxu0 %v8090
  %v8281 = vpop.f32.mrb[0].mxu0
  %v8282 = vadd.f32 %v8024, %v8281
  %v8283 = vpop.f32.mrb[0].mxu0
  %8284 = vmatprep.mubr.f32.mxu0 0.0
  %8285 = vmatmul.mubr.f32.gmra.mrb[0].mxu0 %v8093
  %v8286 = vpop.f32.mrb[0].mxu0
  %v8287 = vadd.f32 %v8024, %v8286
  %v8288 = vpop.f32.mrb[0].mxu0
  %8289 = vmatprep.mubr.f32.mxu0 0.0
  %8290 = vmatmul.mubr.f32.gmra.mrb[0].mxu0 %v8096
  %v8291 = vpop.f32.mrb[0].mxu0
  %v8292 = vadd.f32 %v8024, %v8291
  %v8293 = vpop.f32.mrb[0].mxu0
  %8294 = vmatprep.mubr.f32.mxu0 0.0
  %8295 = vmatmul.mubr.f32.gmra.mrb[0].mxu0 %v8099
  %v8296 = vpop.f32.mrb[0].mxu0
  %v8297 = vadd.f32 %v8024, %v8296
  %v8298 = vpop.f32.mrb[0].mxu0
  %8299 = vmatprep.mubr.f32.mxu0 0.0
  %8300 = vmatmul.mubr.f32.gmra.mrb[0].mxu0 %v8102
  %v8301 = vpop.f32.mrb[0].mxu0
  %v8302 = vadd.f32 %v8024, %v8301
  %v8303 = vpop.f32.mrb[0].mxu0
  %8304 = vmatprep.mubr.f32.mxu0 0.0
  %8305 = vmatmul.mubr.f32.gmra.mrb[0].mxu0 %v8105
  %v8306 = vpop.f32.mrb[0].mxu0
  %v8307 = vadd.f32 %v8024, %v8306
  %v8308 = vpop.f32.mrb[0].mxu0
  %8309 = vmatprep.mubr.f32.mxu0 0.0
  %8310 = vmatmul.mubr.f32.gmra.mrb[0].mxu0 %v8108
  %v8311 = vpop.f32.mrb[0].mxu0
  %v8312 = vadd.f32 %v8024, %v8311
  %v8313 = vpop.f32.mrb[0].mxu0
  %8314 = vdwg.mxu0
  %v8315 = vxor.u32 %v8177, 2147483648
  %v8316 = vxor.u32 %v8182, 2147483648
  %v8317 = vxor.u32 %v8187, 2147483648
  %v8318 = vxor.u32 %v8192, 2147483648
  %v8319 = vxor.u32 %v8197, 2147483648
  %v8320 = vxor.u32 %v8202, 2147483648
  %v8321 = vxor.u32 %v8207, 2147483648
  %v8322 = vxor.u32 %v8212, 2147483648
  %v8323 = vxor.u32 %v8217, 2147483648
  %v8324 = vxor.u32 %v8222, 2147483648
  %v8325 = vxor.u32 %v8227, 2147483648
  %v8326 = vxor.u32 %v8232, 2147483648
  %v8327 = vxor.u32 %v8237, 2147483648
  %v8328 = vxor.u32 %v8242, 2147483648
  %v8329 = vxor.u32 %v8247, 2147483648
  %v8330 = vxor.u32 %v8252, 2147483648
  %v8331 = vxor.u32 %v8257, 2147483648
  %v8332 = vxor.u32 %v8262, 2147483648
  %v8333 = vxor.u32 %v8267, 2147483648
  %v8334 = vxor.u32 %v8272, 2147483648
  %v8335 = vxor.u32 %v8277, 2147483648
  %v8336 = vxor.u32 %v8282, 2147483648
  %v8337 = vxor.u32 %v8287, 2147483648
  %v8338 = vxor.u32 %v8292, 2147483648
  %v8339 = vxor.u32 %v8297, 2147483648
  %v8340 = vxor.u32 %v8302, 2147483648
  %v8341 = vxor.u32 %v8307, 2147483648
  %v8342 = vxor.u32 %v8312, 2147483648
  %v8343 = vmul.f32 %v8315, 1.442695
  %v8344 = vpow.pop %v8343
  %v8345 = vmul.f32 %v8316, 1.442695
  %v8346 = vpow.pop %v8345
  %v8347 = vmul.f32 %v8317, 1.442695
  %v8348 = vpow.pop %v8347
  %v8349 = vmul.f32 %v8318, 1.442695
  %v8350 = vpow.pop %v8349
  %v8351 = vmul.f32 %v8319, 1.442695
  %v8352 = vpow.pop %v8351
  %v8353 = vmul.f32 %v8320, 1.442695
  %v8354 = vpow.pop %v8353
  %v8355 = vmul.f32 %v8321, 1.442695
  %v8356 = vpow.pop %v8355
  %v8357 = vmul.f32 %v8322, 1.442695
  %v8358 = vpow.pop %v8357
  %v8359 = vmul.f32 %v8323, 1.442695
  %v8360 = vpow.pop %v8359
  %v8361 = vmul.f32 %v8324, 1.442695
  %v8362 = vpow.pop %v8361
  %v8363 = vmul.f32 %v8325, 1.442695
  %v8364 = vpow.pop %v8363
  %v8365 = vmul.f32 %v8326, 1.442695
  %v8366 = vpow.pop %v8365
  %v8367 = vmul.f32 %v8327, 1.442695
  %v8368 = vpow.pop %v8367
  %v8369 = vmul.f32 %v8328, 1.442695
  %v8370 = vpow.pop %v8369
  %v8371 = vmul.f32 %v8329, 1.442695
  %v8372 = vpow.pop %v8371
  %v8373 = vmul.f32 %v8330, 1.442695
  %v8374 = vpow.pop %v8373
  %v8375 = vmul.f32 %v8331, 1.442695
  %v8376 = vpow.pop %v8375
  %v8377 = vmul.f32 %v8332, 1.442695
  %v8378 = vpow.pop %v8377
  %v8379 = vmul.f32 %v8333, 1.442695
  %v8380 = vpow.pop %v8379
  %v8381 = vmul.f32 %v8334, 1.442695
  %v8382 = vpow.pop %v8381
  %v8383 = vmul.f32 %v8335, 1.442695
  %v8384 = vpow.pop %v8383
  %v8385 = vmul.f32 %v8336, 1.442695
  %v8386 = vpow.pop %v8385
  %v8387 = vmul.f32 %v8337, 1.442695
  %v8388 = vpow.pop %v8387
  %v8389 = vmul.f32 %v8338, 1.442695
  %v8390 = vpow.pop %v8389
  %v8391 = vmul.f32 %v8339, 1.442695
  %v8392 = vpow.pop %v8391
  %v8393 = vmul.f32 %v8340, 1.442695
  %v8394 = vpow.pop %v8393
  %v8395 = vmul.f32 %v8341, 1.442695
  %v8396 = vpow.pop %v8395
  %v8397 = vmul.f32 %v8342, 1.442695
  %v8398 = vpow.pop %v8397
  %v8399 = vadd.f32 %v8344, 1.0
  %v8400 = vadd.f32 %v8346, 1.0
  %v8401 = vadd.f32 %v8348, 1.0
  %v8402 = vadd.f32 %v8350, 1.0
  %v8403 = vadd.f32 %v8352, 1.0
  %v8404 = vadd.f32 %v8354, 1.0
  %v8405 = vadd.f32 %v8356, 1.0
  %v8406 = vadd.f32 %v8358, 1.0
  %v8407 = vadd.f32 %v8360, 1.0
  %v8408 = vadd.f32 %v8362, 1.0
  %v8409 = vadd.f32 %v8364, 1.0
  %v8410 = vadd.f32 %v8366, 1.0
  %v8411 = vadd.f32 %v8368, 1.0
  %v8412 = vadd.f32 %v8370, 1.0
  %v8413 = vadd.f32 %v8372, 1.0
  %v8414 = vadd.f32 %v8374, 1.0
  %v8415 = vadd.f32 %v8376, 1.0
  %v8416 = vadd.f32 %v8378, 1.0
  %v8417 = vadd.f32 %v8380, 1.0
  %v8418 = vadd.f32 %v8382, 1.0
  %v8419 = vadd.f32 %v8384, 1.0
  %v8420 = vadd.f32 %v8386, 1.0
  %v8421 = vadd.f32 %v8388, 1.0
  %v8422 = vadd.f32 %v8390, 1.0
  %v8423 = vadd.f32 %v8392, 1.0
  %v8424 = vadd.f32 %v8394, 1.0
  %v8425 = vadd.f32 %v8396, 1.0
  %v8426 = vadd.f32 %v8398, 1.0
  %v8427 = vrcp.pop %v8399
  %v8428 = vmul.f32 1.0, %v8427
  %v8429 = vrcp.pop %v8400
  %v8430 = vmul.f32 1.0, %v8429
  %v8431 = vrcp.pop %v8401
  %v8432 = vmul.f32 1.0, %v8431
  %v8433 = vrcp.pop %v8402
  %v8434 = vmul.f32 1.0, %v8433
  %v8435 = vrcp.pop %v8403
  %v8436 = vmul.f32 1.0, %v8435
  %v8437 = vrcp.pop %v8404
  %v8438 = vmul.f32 1.0, %v8437
  %v8439 = vrcp.pop %v8405
  %v8440 = vmul.f32 1.0, %v8439
  %v8441 = vrcp.pop %v8406
  %v8442 = vmul.f32 1.0, %v8441
  %v8443 = vrcp.pop %v8407
  %v8444 = vmul.f32 1.0, %v8443
  %v8445 = vrcp.pop %v8408
  %v8446 = vmul.f32 1.0, %v8445
  %v8447 = vrcp.pop %v8409
  %v8448 = vmul.f32 1.0, %v8447
  %v8449 = vrcp.pop %v8410
  %v8450 = vmul.f32 1.0, %v8449
  %v8451 = vrcp.pop %v8411
  %v8452 = vmul.f32 1.0, %v8451
  %v8453 = vrcp.pop %v8412
  %v8454 = vmul.f32 1.0, %v8453
  %v8455 = vrcp.pop %v8413
  %v8456 = vmul.f32 1.0, %v8455
  %v8457 = vrcp.pop %v8414
  %v8458 = vmul.f32 1.0, %v8457
  %v8459 = vrcp.pop %v8415
  %v8460 = vmul.f32 1.0, %v8459
  %v8461 = vrcp.pop %v8416
  %v8462 = vmul.f32 1.0, %v8461
  %v8463 = vrcp.pop %v8417
  %v8464 = vmul.f32 1.0, %v8463
  %v8465 = vrcp.pop %v8418
  %v8466 = vmul.f32 1.0, %v8465
  %v8467 = vrcp.pop %v8419
  %v8468 = vmul.f32 1.0, %v8467
  %v8469 = vrcp.pop %v8420
  %v8470 = vmul.f32 1.0, %v8469
  %v8471 = vrcp.pop %v8421
  %v8472 = vmul.f32 1.0, %v8471
  %v8473 = vrcp.pop %v8422
  %v8474 = vmul.f32 1.0, %v8473
  %v8475 = vrcp.pop %v8423
  %v8476 = vmul.f32 1.0, %v8475
  %v8477 = vrcp.pop %v8424
  %v8478 = vmul.f32 1.0, %v8477
  %v8479 = vrcp.pop %v8425
  %v8480 = vmul.f32 1.0, %v8479
  %v8481 = vrcp.pop %v8426
  %v8482 = vmul.f32 1.0, %v8481
  %v8483 = vmul.f32 %v8177, %v8428
  %v8484 = vmul.f32 %v8182, %v8430
  %v8485 = vmul.f32 %v8187, %v8432
  %v8486 = vmul.f32 %v8192, %v8434
  %v8487 = vmul.f32 %v8197, %v8436
  %v8488 = vmul.f32 %v8202, %v8438
  %v8489 = vmul.f32 %v8207, %v8440
  %v8490 = vmul.f32 %v8212, %v8442
  %v8491 = vmul.f32 %v8217, %v8444
  %v8492 = vmul.f32 %v8222, %v8446
  %v8493 = vmul.f32 %v8227, %v8448
  %v8494 = vmul.f32 %v8232, %v8450
  %v8495 = vmul.f32 %v8237, %v8452
  %v8496 = vmul.f32 %v8242, %v8454
  %v8497 = vmul.f32 %v8247, %v8456
  %v8498 = vmul.f32 %v8252, %v8458
  %v8499 = vmul.f32 %v8257, %v8460
  %v8500 = vmul.f32 %v8262, %v8462
  %v8501 = vmul.f32 %v8267, %v8464
  %v8502 = vmul.f32 %v8272, %v8466
  %v8503 = vmul.f32 %v8277, %v8468
  %v8504 = vmul.f32 %v8282, %v8470
  %v8505 = vmul.f32 %v8287, %v8472
  %v8506 = vmul.f32 %v8292, %v8474
  %v8507 = vmul.f32 %v8297, %v8476
  %v8508 = vmul.f32 %v8302, %v8478
  %v8509 = vmul.f32 %v8307, %v8480
  %v8510 = vmul.f32 %v8312, %v8482
  %8515 = vrot.lane.b32.xlu0 %v8014, 96
  %v8516 = vpop.permute.xlu0 %8515
  %8517 = vrot.lane.b32.xlu0 %v8015, 96
  %v8518 = vpop.permute.xlu0 %8517
  %8519 = vrot.lane.b32.xlu0 %v8016, 96
  %v8520 = vpop.permute.xlu0 %8519
  %8521 = vrot.lane.b32.xlu0 %v8017, 96
  %v8522 = vpop.permute.xlu0 %8521
  %v8528 = vsel %vm284, %v8483, 0
  %v8531 = vsel %vm284, %v8484, 0
  %v8534 = vsel %vm284, %v8485, 0
  %v8537 = vsel %vm284, %v8486, 0
  %v8540 = vsel %vm284, %v8487, 0
  %v8543 = vsel %vm284, %v8488, 0
  %v8546 = vsel %vm284, %v8489, 0
  %v8549 = vsel %vm284, %v8490, 0
  %v8552 = vsel %vm284, %v8491, 0
  %v8555 = vsel %vm284, %v8492, 0
  %v8558 = vsel %vm284, %v8493, 0
  %v8561 = vsel %vm284, %v8494, 0
  %v8564 = vsel %vm284, %v8495, 0
  %v8567 = vsel %vm284, %v8496, 0
  %v8570 = vsel %vm284, %v8497, 0
  %v8573 = vsel %vm284, %v8498, 0
  %v8576 = vsel %vm284, %v8499, 0
  %v8579 = vsel %vm284, %v8500, 0
  %v8582 = vsel %vm284, %v8501, 0
  %v8585 = vsel %vm284, %v8502, 0
  %v8588 = vsel %vm284, %v8503, 0
  %v8591 = vsel %vm284, %v8504, 0
  %v8594 = vsel %vm284, %v8505, 0
  %v8597 = vsel %vm284, %v8506, 0
  %v8600 = vsel %vm284, %v8507, 0
  %v8603 = vsel %vm284, %v8508, 0
  %v8606 = vsel %vm284, %v8509, 0
  %v8609 = vsel %vm284, %v8510, 0
  %8611 = vmatprep.subr.mxu0 0.0
  %8612 = vmatpush1.msra.mxu0 %v8516
  %8613 = vmatprep.subr.mxu0 0.0
  %8614 = vmatpush1.msra.mxu0 %v8518
  %8615 = vmatprep.subr.mxu0 0.0
  %8616 = vmatpush1.msra.mxu0 %v8520
  %8617 = vmatprep.subr.mxu0 0.0
  %8618 = vmatpush1.msra.mxu0 %v8522
  %8619 = vmatprep.subr.mxu0 0.0
  %8620 = vmatpush1.msra.mxu0 0.0
  %8621 = vmatprep.subr.mxu0 0.0
  %8622 = vmatpush1.msra.mxu0 0.0
  %8623 = vmatprep.subr.mxu0 0.0
  %8624 = vmatpush1.msra.mxu0 0.0
  %8625 = vmatprep.subr.mxu0 0.0
  %8626 = vmatpush1.msra.mxu0 0.0
  %8627 = vmatprep.subr.mxu0 0.0
  %8628 = vmatpush1.msra.mxu0 0.0
  %8629 = vmatprep.subr.mxu0 0.0
  %8630 = vmatpush1.msra.mxu0 0.0
  %8631 = vmatprep.subr.mxu0 0.0
  %8632 = vmatpush1.msra.mxu0 0.0
  %8633 = vmatprep.subr.mxu0 0.0
  %8634 = vmatpush1.msra.mxu0 0.0
  %8635 = vmatprep.subr.mxu0 0.0
  %8636 = vmatpush1.msra.mxu0 0.0
  %8637 = vmatprep.subr.mxu0 0.0
  %8638 = vmatpush1.msra.mxu0 0.0
  %8639 = vmatprep.subr.mxu0 0.0
  %8640 = vmatpush1.msra.mxu0 0.0
  %8641 = vmatprep.subr.mxu0 0.0
  %8642 = vmatpush1.msra.mxu0 0.0
  %8643 = vmatprep.subr.mxu0 0.0
  %8644 = vmatpush1.msra.mxu0 0.0
  %8645 = vmatprep.subr.mxu0 0.0
  %8646 = vmatpush1.msra.mxu0 0.0
  %8647 = vmatprep.subr.mxu0 0.0
  %8648 = vmatpush1.msra.mxu0 0.0
  %8649 = vmatprep.subr.mxu0 0.0
  %8650 = vmatpush1.msra.mxu0 0.0
  %8651 = vmatprep.subr.mxu0 0.0
  %8652 = vmatpush1.msra.mxu0 0.0
  %8653 = vmatprep.subr.mxu0 0.0
  %8654 = vmatpush1.msra.mxu0 0.0
  %8655 = vmatprep.subr.mxu0 0.0
  %8656 = vmatpush1.msra.mxu0 0.0
  %8657 = vmatprep.subr.mxu0 0.0
  %8658 = vmatpush1.msra.mxu0 0.0
  %8659 = vmatprep.subr.mxu0 0.0
  %8660 = vmatpush1.msra.mxu0 0.0
  %8661 = vmatprep.subr.mxu0 0.0
  %8662 = vmatpush1.msra.mxu0 0.0
  %8663 = vmatprep.subr.mxu0 0.0
  %8664 = vmatpush1.msra.mxu0 0.0
  %8665 = vmatprep.subr.mxu0 0.0
  %8666 = vmatpush1.msra.mxu0 0.0
  %8667 = vmatprep.subr.mxu0 0.0
  %8668 = vmatpush1.msra.mxu0 0.0
  %8669 = vmatprep.subr.mxu0 0.0
  %8670 = vmatpush1.msra.mxu0 0.0
  %8671 = vmatprep.subr.mxu0 0.0
  %8672 = vmatpush1.msra.mxu0 0.0
  %8673 = vmatprep.subr.mxu0 0.0
  %8674 = vmatpush1.msra.mxu0 0.0
  %8675 = vmatprep.mubr.f32.mxu0 0.0
  %8676 = vmatmul.mubr.f32.gmra.mrb[0].mxu0 %v8528
  %v8677 = vpop.f32.mrb[0].mxu0
  %v8678 = vadd.f32 0.0, %v8677
  %v8679 = vpop.f32.mrb[0].mxu0
  %8680 = vmatprep.mubr.f32.mxu0 0.0
  %8681 = vmatmul.mubr.f32.gmra.mrb[0].mxu0 %v8531
  %v8682 = vpop.f32.mrb[0].mxu0
  %v8683 = vadd.f32 0.0, %v8682
  %v8684 = vpop.f32.mrb[0].mxu0
  %8685 = vmatprep.mubr.f32.mxu0 0.0
  %8686 = vmatmul.mubr.f32.gmra.mrb[0].mxu0 %v8534
  %v8687 = vpop.f32.mrb[0].mxu0
  %v8688 = vadd.f32 0.0, %v8687
  %v8689 = vpop.f32.mrb[0].mxu0
  %8690 = vmatprep.mubr.f32.mxu0 0.0
  %8691 = vmatmul.mubr.f32.gmra.mrb[0].mxu0 %v8537
  %v8692 = vpop.f32.mrb[0].mxu0
  %v8693 = vadd.f32 0.0, %v8692
  %v8694 = vpop.f32.mrb[0].mxu0
  %8695 = vmatprep.mubr.f32.mxu0 0.0
  %8696 = vmatmul.mubr.f32.gmra.mrb[0].mxu0 %v8540
  %v8697 = vpop.f32.mrb[0].mxu0
  %v8698 = vadd.f32 0.0, %v8697
  %v8699 = vpop.f32.mrb[0].mxu0
  %8700 = vmatprep.mubr.f32.mxu0 0.0
  %8701 = vmatmul.mubr.f32.gmra.mrb[0].mxu0 %v8543
  %v8702 = vpop.f32.mrb[0].mxu0
  %v8703 = vadd.f32 0.0, %v8702
  %v8704 = vpop.f32.mrb[0].mxu0
  %8705 = vmatprep.mubr.f32.mxu0 0.0
  %8706 = vmatmul.mubr.f32.gmra.mrb[0].mxu0 %v8546
  %v8707 = vpop.f32.mrb[0].mxu0
  %v8708 = vadd.f32 0.0, %v8707
  %v8709 = vpop.f32.mrb[0].mxu0
  %8710 = vmatprep.mubr.f32.mxu0 0.0
  %8711 = vmatmul.mubr.f32.gmra.mrb[0].mxu0 %v8549
  %v8712 = vpop.f32.mrb[0].mxu0
  %v8713 = vadd.f32 0.0, %v8712
  %v8714 = vpop.f32.mrb[0].mxu0
  %8715 = vmatprep.mubr.f32.mxu0 0.0
  %8716 = vmatmul.mubr.f32.gmra.mrb[0].mxu0 %v8552
  %v8717 = vpop.f32.mrb[0].mxu0
  %v8718 = vadd.f32 0.0, %v8717
  %v8719 = vpop.f32.mrb[0].mxu0
  %8720 = vmatprep.mubr.f32.mxu0 0.0
  %8721 = vmatmul.mubr.f32.gmra.mrb[0].mxu0 %v8555
  %v8722 = vpop.f32.mrb[0].mxu0
  %v8723 = vadd.f32 0.0, %v8722
  %v8724 = vpop.f32.mrb[0].mxu0
  %8725 = vmatprep.mubr.f32.mxu0 0.0
  %8726 = vmatmul.mubr.f32.gmra.mrb[0].mxu0 %v8558
  %v8727 = vpop.f32.mrb[0].mxu0
  %v8728 = vadd.f32 0.0, %v8727
  %v8729 = vpop.f32.mrb[0].mxu0
  %8730 = vmatprep.mubr.f32.mxu0 0.0
  %8731 = vmatmul.mubr.f32.gmra.mrb[0].mxu0 %v8561
  %v8732 = vpop.f32.mrb[0].mxu0
  %v8733 = vadd.f32 0.0, %v8732
  %v8734 = vpop.f32.mrb[0].mxu0
  %8735 = vmatprep.mubr.f32.mxu0 0.0
  %8736 = vmatmul.mubr.f32.gmra.mrb[0].mxu0 %v8564
  %v8737 = vpop.f32.mrb[0].mxu0
  %v8738 = vadd.f32 0.0, %v8737
  %v8739 = vpop.f32.mrb[0].mxu0
  %8740 = vmatprep.mubr.f32.mxu0 0.0
  %8741 = vmatmul.mubr.f32.gmra.mrb[0].mxu0 %v8567
  %v8742 = vpop.f32.mrb[0].mxu0
  %v8743 = vadd.f32 0.0, %v8742
  %v8744 = vpop.f32.mrb[0].mxu0
  %8745 = vmatprep.mubr.f32.mxu0 0.0
  %8746 = vmatmul.mubr.f32.gmra.mrb[0].mxu0 %v8570
  %v8747 = vpop.f32.mrb[0].mxu0
  %v8748 = vadd.f32 0.0, %v8747
  %v8749 = vpop.f32.mrb[0].mxu0
  %8750 = vmatprep.mubr.f32.mxu0 0.0
  %8751 = vmatmul.mubr.f32.gmra.mrb[0].mxu0 %v8573
  %v8752 = vpop.f32.mrb[0].mxu0
  %v8753 = vadd.f32 0.0, %v8752
  %v8754 = vpop.f32.mrb[0].mxu0
  %8755 = vmatprep.mubr.f32.mxu0 0.0
  %8756 = vmatmul.mubr.f32.gmra.mrb[0].mxu0 %v8576
  %v8757 = vpop.f32.mrb[0].mxu0
  %v8758 = vadd.f32 0.0, %v8757
  %v8759 = vpop.f32.mrb[0].mxu0
  %8760 = vmatprep.mubr.f32.mxu0 0.0
  %8761 = vmatmul.mubr.f32.gmra.mrb[0].mxu0 %v8579
  %v8762 = vpop.f32.mrb[0].mxu0
  %v8763 = vadd.f32 0.0, %v8762
  %v8764 = vpop.f32.mrb[0].mxu0
  %8765 = vmatprep.mubr.f32.mxu0 0.0
  %8766 = vmatmul.mubr.f32.gmra.mrb[0].mxu0 %v8582
  %v8767 = vpop.f32.mrb[0].mxu0
  %v8768 = vadd.f32 0.0, %v8767
  %v8769 = vpop.f32.mrb[0].mxu0
  %8770 = vmatprep.mubr.f32.mxu0 0.0
  %8771 = vmatmul.mubr.f32.gmra.mrb[0].mxu0 %v8585
  %v8772 = vpop.f32.mrb[0].mxu0
  %v8773 = vadd.f32 0.0, %v8772
  %v8774 = vpop.f32.mrb[0].mxu0
  %8775 = vmatprep.mubr.f32.mxu0 0.0
  %8776 = vmatmul.mubr.f32.gmra.mrb[0].mxu0 %v8588
  %v8777 = vpop.f32.mrb[0].mxu0
  %v8778 = vadd.f32 0.0, %v8777
  %v8779 = vpop.f32.mrb[0].mxu0
  %8780 = vmatprep.mubr.f32.mxu0 0.0
  %8781 = vmatmul.mubr.f32.gmra.mrb[0].mxu0 %v8591
  %v8782 = vpop.f32.mrb[0].mxu0
  %v8783 = vadd.f32 0.0, %v8782
  %v8784 = vpop.f32.mrb[0].mxu0
  %8785 = vmatprep.mubr.f32.mxu0 0.0
  %8786 = vmatmul.mubr.f32.gmra.mrb[0].mxu0 %v8594
  %v8787 = vpop.f32.mrb[0].mxu0
  %v8788 = vadd.f32 0.0, %v8787
  %v8789 = vpop.f32.mrb[0].mxu0
  %8790 = vmatprep.mubr.f32.mxu0 0.0
  %8791 = vmatmul.mubr.f32.gmra.mrb[0].mxu0 %v8597
  %v8792 = vpop.f32.mrb[0].mxu0
  %v8793 = vadd.f32 0.0, %v8792
  %v8794 = vpop.f32.mrb[0].mxu0
  %8795 = vmatprep.mubr.f32.mxu0 0.0
  %8796 = vmatmul.mubr.f32.gmra.mrb[0].mxu0 %v8600
  %v8797 = vpop.f32.mrb[0].mxu0
  %v8798 = vadd.f32 0.0, %v8797
  %v8799 = vpop.f32.mrb[0].mxu0
  %8800 = vmatprep.mubr.f32.mxu0 0.0
  %8801 = vmatmul.mubr.f32.gmra.mrb[0].mxu0 %v8603
  %v8802 = vpop.f32.mrb[0].mxu0
  %v8803 = vadd.f32 0.0, %v8802
  %v8804 = vpop.f32.mrb[0].mxu0
  %8805 = vmatprep.mubr.f32.mxu0 0.0
  %8806 = vmatmul.mubr.f32.gmra.mrb[0].mxu0 %v8606
  %v8807 = vpop.f32.mrb[0].mxu0
  %v8808 = vadd.f32 0.0, %v8807
  %v8809 = vpop.f32.mrb[0].mxu0
  %8810 = vmatprep.mubr.f32.mxu0 0.0
  %8811 = vmatmul.mubr.f32.gmra.mrb[0].mxu0 %v8609
  %v8812 = vpop.f32.mrb[0].mxu0
  %v8813 = vadd.f32 0.0, %v8812
  %v8814 = vpop.f32.mrb[0].mxu0
  %8815 = vdwg.mxu0
  %8816 = vrot.lane.b32.xlu0 %v8024, 96
  %v8817 = vpop.permute.xlu0 %8816
  %v8819 = vadd.f32 %v8678, %v8817
  %v8820 = vadd.f32 %v8683, %v8817
  %v8821 = vadd.f32 %v8688, %v8817
  %v8822 = vadd.f32 %v8693, %v8817
  %v8823 = vadd.f32 %v8698, %v8817
  %v8824 = vadd.f32 %v8703, %v8817
  %v8825 = vadd.f32 %v8708, %v8817
  %v8826 = vadd.f32 %v8713, %v8817
  %v8827 = vadd.f32 %v8718, %v8817
  %v8828 = vadd.f32 %v8723, %v8817
  %v8829 = vadd.f32 %v8728, %v8817
  %v8830 = vadd.f32 %v8733, %v8817
  %v8831 = vadd.f32 %v8738, %v8817
  %v8832 = vadd.f32 %v8743, %v8817
  %v8833 = vadd.f32 %v8748, %v8817
  %v8834 = vadd.f32 %v8753, %v8817
  %v8835 = vadd.f32 %v8758, %v8817
  %v8836 = vadd.f32 %v8763, %v8817
  %v8837 = vadd.f32 %v8768, %v8817
  %v8838 = vadd.f32 %v8773, %v8817
  %v8839 = vadd.f32 %v8778, %v8817
  %v8840 = vadd.f32 %v8783, %v8817
  %v8841 = vadd.f32 %v8788, %v8817
  %v8842 = vadd.f32 %v8793, %v8817
  %v8843 = vadd.f32 %v8798, %v8817
  %v8844 = vadd.f32 %v8803, %v8817
  %v8845 = vadd.f32 %v8808, %v8817
  %v8846 = vadd.f32 %v8813, %v8817
  %v8847 = vxor.u32 %v8819, 2147483648
  %v8848 = vxor.u32 %v8820, 2147483648
  %v8849 = vxor.u32 %v8821, 2147483648
  %v8850 = vxor.u32 %v8822, 2147483648
  %v8851 = vxor.u32 %v8823, 2147483648
  %v8852 = vxor.u32 %v8824, 2147483648
  %v8853 = vxor.u32 %v8825, 2147483648
  %v8854 = vxor.u32 %v8826, 2147483648
  %v8855 = vxor.u32 %v8827, 2147483648
  %v8856 = vxor.u32 %v8828, 2147483648
  %v8857 = vxor.u32 %v8829, 2147483648
  %v8858 = vxor.u32 %v8830, 2147483648
  %v8859 = vxor.u32 %v8831, 2147483648
  %v8860 = vxor.u32 %v8832, 2147483648
  %v8861 = vxor.u32 %v8833, 2147483648
  %v8862 = vxor.u32 %v8834, 2147483648
  %v8863 = vxor.u32 %v8835, 2147483648
  %v8864 = vxor.u32 %v8836, 2147483648
  %v8865 = vxor.u32 %v8837, 2147483648
  %v8866 = vxor.u32 %v8838, 2147483648
  %v8867 = vxor.u32 %v8839, 2147483648
  %v8868 = vxor.u32 %v8840, 2147483648
  %v8869 = vxor.u32 %v8841, 2147483648
  %v8870 = vxor.u32 %v8842, 2147483648
  %v8871 = vxor.u32 %v8843, 2147483648
  %v8872 = vxor.u32 %v8844, 2147483648
  %v8873 = vxor.u32 %v8845, 2147483648
  %v8874 = vxor.u32 %v8846, 2147483648
  %v8875 = vmul.f32 %v8847, 1.442695
  %v8876 = vpow.pop %v8875
  %v8877 = vmul.f32 %v8848, 1.442695
  %v8878 = vpow.pop %v8877
  %v8879 = vmul.f32 %v8849, 1.442695
  %v8880 = vpow.pop %v8879
  %v8881 = vmul.f32 %v8850, 1.442695
  %v8882 = vpow.pop %v8881
  %v8883 = vmul.f32 %v8851, 1.442695
  %v8884 = vpow.pop %v8883
  %v8885 = vmul.f32 %v8852, 1.442695
  %v8886 = vpow.pop %v8885
  %v8887 = vmul.f32 %v8853, 1.442695
  %v8888 = vpow.pop %v8887
  %v8889 = vmul.f32 %v8854, 1.442695
  %v8890 = vpow.pop %v8889
  %v8891 = vmul.f32 %v8855, 1.442695
  %v8892 = vpow.pop %v8891
  %v8893 = vmul.f32 %v8856, 1.442695
  %v8894 = vpow.pop %v8893
  %v8895 = vmul.f32 %v8857, 1.442695
  %v8896 = vpow.pop %v8895
  %v8897 = vmul.f32 %v8858, 1.442695
  %v8898 = vpow.pop %v8897
  %v8899 = vmul.f32 %v8859, 1.442695
  %v8900 = vpow.pop %v8899
  %v8901 = vmul.f32 %v8860, 1.442695
  %v8902 = vpow.pop %v8901
  %v8903 = vmul.f32 %v8861, 1.442695
  %v8904 = vpow.pop %v8903
  %v8905 = vmul.f32 %v8862, 1.442695
  %v8906 = vpow.pop %v8905
  %v8907 = vmul.f32 %v8863, 1.442695
  %v8908 = vpow.pop %v8907
  %v8909 = vmul.f32 %v8864, 1.442695
  %v8910 = vpow.pop %v8909
  %v8911 = vmul.f32 %v8865, 1.442695
  %v8912 = vpow.pop %v8911
  %v8913 = vmul.f32 %v8866, 1.442695
  %v8914 = vpow.pop %v8913
  %v8915 = vmul.f32 %v8867, 1.442695
  %v8916 = vpow.pop %v8915
  %v8917 = vmul.f32 %v8868, 1.442695
  %v8918 = vpow.pop %v8917
  %v8919 = vmul.f32 %v8869, 1.442695
  %v8920 = vpow.pop %v8919
  %v8921 = vmul.f32 %v8870, 1.442695
  %v8922 = vpow.pop %v8921
  %v8923 = vmul.f32 %v8871, 1.442695
  %v8924 = vpow.pop %v8923
  %v8925 = vmul.f32 %v8872, 1.442695
  %v8926 = vpow.pop %v8925
  %v8927 = vmul.f32 %v8873, 1.442695
  %v8928 = vpow.pop %v8927
  %v8929 = vmul.f32 %v8874, 1.442695
  %v8930 = vpow.pop %v8929
  %v8931 = vadd.f32 %v8876, 1.0
  %v8932 = vadd.f32 %v8878, 1.0
  %v8933 = vadd.f32 %v8880, 1.0
  %v8934 = vadd.f32 %v8882, 1.0
  %v8935 = vadd.f32 %v8884, 1.0
  %v8936 = vadd.f32 %v8886, 1.0
  %v8937 = vadd.f32 %v8888, 1.0
  %v8938 = vadd.f32 %v8890, 1.0
  %v8939 = vadd.f32 %v8892, 1.0
  %v8940 = vadd.f32 %v8894, 1.0
  %v8941 = vadd.f32 %v8896, 1.0
  %v8942 = vadd.f32 %v8898, 1.0
  %v8943 = vadd.f32 %v8900, 1.0
  %v8944 = vadd.f32 %v8902, 1.0
  %v8945 = vadd.f32 %v8904, 1.0
  %v8946 = vadd.f32 %v8906, 1.0
  %v8947 = vadd.f32 %v8908, 1.0
  %v8948 = vadd.f32 %v8910, 1.0
  %v8949 = vadd.f32 %v8912, 1.0
  %v8950 = vadd.f32 %v8914, 1.0
  %v8951 = vadd.f32 %v8916, 1.0
  %v8952 = vadd.f32 %v8918, 1.0
  %v8953 = vadd.f32 %v8920, 1.0
  %v8954 = vadd.f32 %v8922, 1.0
  %v8955 = vadd.f32 %v8924, 1.0
  %v8956 = vadd.f32 %v8926, 1.0
  %v8957 = vadd.f32 %v8928, 1.0
  %v8958 = vadd.f32 %v8930, 1.0
  %v8959 = vrcp.pop %v8931
  %v8960 = vmul.f32 1.0, %v8959
  %v8961 = vrcp.pop %v8932
  %v8962 = vmul.f32 1.0, %v8961
  %v8963 = vrcp.pop %v8933
  %v8964 = vmul.f32 1.0, %v8963
  %v8965 = vrcp.pop %v8934
  %v8966 = vmul.f32 1.0, %v8965
  %v8967 = vrcp.pop %v8935
  %v8968 = vmul.f32 1.0, %v8967
  %v8969 = vrcp.pop %v8936
  %v8970 = vmul.f32 1.0, %v8969
  %v8971 = vrcp.pop %v8937
  %v8972 = vmul.f32 1.0, %v8971
  %v8973 = vrcp.pop %v8938
  %v8974 = vmul.f32 1.0, %v8973
  %v8975 = vrcp.pop %v8939
  %v8976 = vmul.f32 1.0, %v8975
  %v8977 = vrcp.pop %v8940
  %v8978 = vmul.f32 1.0, %v8977
  %v8979 = vrcp.pop %v8941
  %v8980 = vmul.f32 1.0, %v8979
  %v8981 = vrcp.pop %v8942
  %v8982 = vmul.f32 1.0, %v8981
  %v8983 = vrcp.pop %v8943
  %v8984 = vmul.f32 1.0, %v8983
  %v8985 = vrcp.pop %v8944
  %v8986 = vmul.f32 1.0, %v8985
  %v8987 = vrcp.pop %v8945
  %v8988 = vmul.f32 1.0, %v8987
  %v8989 = vrcp.pop %v8946
  %v8990 = vmul.f32 1.0, %v8989
  %v8991 = vrcp.pop %v8947
  %v8992 = vmul.f32 1.0, %v8991
  %v8993 = vrcp.pop %v8948
  %v8994 = vmul.f32 1.0, %v8993
  %v8995 = vrcp.pop %v8949
  %v8996 = vmul.f32 1.0, %v8995
  %v8997 = vrcp.pop %v8950
  %v8998 = vmul.f32 1.0, %v8997
  %v8999 = vrcp.pop %v8951
  %v9000 = vmul.f32 1.0, %v8999
  %v9001 = vrcp.pop %v8952
  %v9002 = vmul.f32 1.0, %v9001
  %v9003 = vrcp.pop %v8953
  %v9004 = vmul.f32 1.0, %v9003
  %v9005 = vrcp.pop %v8954
  %v9006 = vmul.f32 1.0, %v9005
  %v9007 = vrcp.pop %v8955
  %v9008 = vmul.f32 1.0, %v9007
  %v9009 = vrcp.pop %v8956
  %v9010 = vmul.f32 1.0, %v9009
  %v9011 = vrcp.pop %v8957
  %v9012 = vmul.f32 1.0, %v9011
  %v9013 = vrcp.pop %v8958
  %v9014 = vmul.f32 1.0, %v9013
  %v9015 = vmul.f32 %v8819, %v8960
  %v9016 = vmul.f32 %v8820, %v8962
  %v9017 = vmul.f32 %v8821, %v8964
  %v9018 = vmul.f32 %v8822, %v8966
  %v9019 = vmul.f32 %v8823, %v8968
  %v9020 = vmul.f32 %v8824, %v8970
  %v9021 = vmul.f32 %v8825, %v8972
  %v9022 = vmul.f32 %v8826, %v8974
  %v9023 = vmul.f32 %v8827, %v8976
  %v9024 = vmul.f32 %v8828, %v8978
  %v9025 = vmul.f32 %v8829, %v8980
  %v9026 = vmul.f32 %v8830, %v8982
  %v9027 = vmul.f32 %v8831, %v8984
  %v9028 = vmul.f32 %v8832, %v8986
  %v9029 = vmul.f32 %v8833, %v8988
  %v9030 = vmul.f32 %v8834, %v8990
  %v9031 = vmul.f32 %v8835, %v8992
  %v9032 = vmul.f32 %v8836, %v8994
  %v9033 = vmul.f32 %v8837, %v8996
  %v9034 = vmul.f32 %v8838, %v8998
  %v9035 = vmul.f32 %v8839, %v9000
  %v9036 = vmul.f32 %v8840, %v9002
  %v9037 = vmul.f32 %v8841, %v9004
  %v9038 = vmul.f32 %v8842, %v9006
  %v9039 = vmul.f32 %v8843, %v9008
  %v9040 = vmul.f32 %v8844, %v9010
  %v9041 = vmul.f32 %v8845, %v9012
  %v9042 = vmul.f32 %v8846, %v9014
  %s9043 = scalar_lea.vmem %s14, 64
  %v9044 = vld [vmem:[%s9043] sm:$0xff]
  %v9045 = vld [vmem:[%s9043 + $0x8] sm:$0xff]
  %v9046 = vld [vmem:[%s9043 + $0x10] sm:$0xff]
  %v9047 = vld [vmem:[%s9043 + $0x18] sm:$0xff]
  %9052 = vrot.lane.b32.xlu0 %v9044, 96
  %v9053 = vpop.permute.xlu0 %9052
  %9054 = vrot.lane.b32.xlu0 %v9045, 96
  %v9055 = vpop.permute.xlu0 %9054
  %9056 = vrot.lane.b32.xlu0 %v9046, 96
  %v9057 = vpop.permute.xlu0 %9056
  %9058 = vrot.lane.b32.xlu0 %v9047, 96
  %v9059 = vpop.permute.xlu0 %9058
  %v9065 = vsel %vm284, %v9015, 0
  %v9068 = vsel %vm284, %v9016, 0
  %v9071 = vsel %vm284, %v9017, 0
  %v9074 = vsel %vm284, %v9018, 0
  %v9077 = vsel %vm284, %v9019, 0
  %v9080 = vsel %vm284, %v9020, 0
  %v9083 = vsel %vm284, %v9021, 0
  %v9086 = vsel %vm284, %v9022, 0
  %v9089 = vsel %vm284, %v9023, 0
  %v9092 = vsel %vm284, %v9024, 0
  %v9095 = vsel %vm284, %v9025, 0
  %v9098 = vsel %vm284, %v9026, 0
  %v9101 = vsel %vm284, %v9027, 0
  %v9104 = vsel %vm284, %v9028, 0
  %v9107 = vsel %vm284, %v9029, 0
  %v9110 = vsel %vm284, %v9030, 0
  %v9113 = vsel %vm284, %v9031, 0
  %v9116 = vsel %vm284, %v9032, 0
  %v9119 = vsel %vm284, %v9033, 0
  %v9122 = vsel %vm284, %v9034, 0
  %v9125 = vsel %vm284, %v9035, 0
  %v9128 = vsel %vm284, %v9036, 0
  %v9131 = vsel %vm284, %v9037, 0
  %v9134 = vsel %vm284, %v9038, 0
  %v9137 = vsel %vm284, %v9039, 0
  %v9140 = vsel %vm284, %v9040, 0
  %v9143 = vsel %vm284, %v9041, 0
  %v9146 = vsel %vm284, %v9042, 0
  %9148 = vmatprep.subr.mxu0 0.0
  %9149 = vmatpush1.msra.mxu0 %v9053
  %9150 = vmatprep.subr.mxu0 0.0
  %9151 = vmatpush1.msra.mxu0 %v9055
  %9152 = vmatprep.subr.mxu0 0.0
  %9153 = vmatpush1.msra.mxu0 %v9057
  %9154 = vmatprep.subr.mxu0 0.0
  %9155 = vmatpush1.msra.mxu0 %v9059
  %9156 = vmatprep.subr.mxu0 0.0
  %9157 = vmatpush1.msra.mxu0 0.0
  %9158 = vmatprep.subr.mxu0 0.0
  %9159 = vmatpush1.msra.mxu0 0.0
  %9160 = vmatprep.subr.mxu0 0.0
  %9161 = vmatpush1.msra.mxu0 0.0
  %9162 = vmatprep.subr.mxu0 0.0
  %9163 = vmatpush1.msra.mxu0 0.0
  %9164 = vmatprep.subr.mxu0 0.0
  %9165 = vmatpush1.msra.mxu0 0.0
  %9166 = vmatprep.subr.mxu0 0.0
  %9167 = vmatpush1.msra.mxu0 0.0
  %9168 = vmatprep.subr.mxu0 0.0
  %9169 = vmatpush1.msra.mxu0 0.0
  %9170 = vmatprep.subr.mxu0 0.0
  %9171 = vmatpush1.msra.mxu0 0.0
  %9172 = vmatprep.subr.mxu0 0.0
  %9173 = vmatpush1.msra.mxu0 0.0
  %9174 = vmatprep.subr.mxu0 0.0
  %9175 = vmatpush1.msra.mxu0 0.0
  %9176 = vmatprep.subr.mxu0 0.0
  %9177 = vmatpush1.msra.mxu0 0.0
  %9178 = vmatprep.subr.mxu0 0.0
  %9179 = vmatpush1.msra.mxu0 0.0
  %9180 = vmatprep.subr.mxu0 0.0
  %9181 = vmatpush1.msra.mxu0 0.0
  %9182 = vmatprep.subr.mxu0 0.0
  %9183 = vmatpush1.msra.mxu0 0.0
  %9184 = vmatprep.subr.mxu0 0.0
  %9185 = vmatpush1.msra.mxu0 0.0
  %9186 = vmatprep.subr.mxu0 0.0
  %9187 = vmatpush1.msra.mxu0 0.0
  %9188 = vmatprep.subr.mxu0 0.0
  %9189 = vmatpush1.msra.mxu0 0.0
  %9190 = vmatprep.subr.mxu0 0.0
  %9191 = vmatpush1.msra.mxu0 0.0
  %9192 = vmatprep.subr.mxu0 0.0
  %9193 = vmatpush1.msra.mxu0 0.0
  %9194 = vmatprep.subr.mxu0 0.0
  %9195 = vmatpush1.msra.mxu0 0.0
  %9196 = vmatprep.subr.mxu0 0.0
  %9197 = vmatpush1.msra.mxu0 0.0
  %9198 = vmatprep.subr.mxu0 0.0
  %9199 = vmatpush1.msra.mxu0 0.0
  %9200 = vmatprep.subr.mxu0 0.0
  %9201 = vmatpush1.msra.mxu0 0.0
  %9202 = vmatprep.subr.mxu0 0.0
  %9203 = vmatpush1.msra.mxu0 0.0
  %9204 = vmatprep.subr.mxu0 0.0
  %9205 = vmatpush1.msra.mxu0 0.0
  %9206 = vmatprep.subr.mxu0 0.0
  %9207 = vmatpush1.msra.mxu0 0.0
  %9208 = vmatprep.subr.mxu0 0.0
  %9209 = vmatpush1.msra.mxu0 0.0
  %9210 = vmatprep.subr.mxu0 0.0
  %9211 = vmatpush1.msra.mxu0 0.0
  %9212 = vmatprep.mubr.f32.mxu0 0.0
  %9213 = vmatmul.mubr.f32.gmra.mrb[0].mxu0 %v9065
  %v9214 = vpop.f32.mrb[0].mxu0
  %v9215 = vadd.f32 0.0, %v9214
  %v9216 = vpop.f32.mrb[0].mxu0
  %9217 = vmatprep.mubr.f32.mxu0 0.0
  %9218 = vmatmul.mubr.f32.gmra.mrb[0].mxu0 %v9068
  %v9219 = vpop.f32.mrb[0].mxu0
  %v9220 = vadd.f32 0.0, %v9219
  %v9221 = vpop.f32.mrb[0].mxu0
  %9222 = vmatprep.mubr.f32.mxu0 0.0
  %9223 = vmatmul.mubr.f32.gmra.mrb[0].mxu0 %v9071
  %v9224 = vpop.f32.mrb[0].mxu0
  %v9225 = vadd.f32 0.0, %v9224
  %v9226 = vpop.f32.mrb[0].mxu0
  %9227 = vmatprep.mubr.f32.mxu0 0.0
  %9228 = vmatmul.mubr.f32.gmra.mrb[0].mxu0 %v9074
  %v9229 = vpop.f32.mrb[0].mxu0
  %v9230 = vadd.f32 0.0, %v9229
  %v9231 = vpop.f32.mrb[0].mxu0
  %9232 = vmatprep.mubr.f32.mxu0 0.0
  %9233 = vmatmul.mubr.f32.gmra.mrb[0].mxu0 %v9077
  %v9234 = vpop.f32.mrb[0].mxu0
  %v9235 = vadd.f32 0.0, %v9234
  %v9236 = vpop.f32.mrb[0].mxu0
  %9237 = vmatprep.mubr.f32.mxu0 0.0
  %9238 = vmatmul.mubr.f32.gmra.mrb[0].mxu0 %v9080
  %v9239 = vpop.f32.mrb[0].mxu0
  %v9240 = vadd.f32 0.0, %v9239
  %v9241 = vpop.f32.mrb[0].mxu0
  %9242 = vmatprep.mubr.f32.mxu0 0.0
  %9243 = vmatmul.mubr.f32.gmra.mrb[0].mxu0 %v9083
  %v9244 = vpop.f32.mrb[0].mxu0
  %v9245 = vadd.f32 0.0, %v9244
  %v9246 = vpop.f32.mrb[0].mxu0
  %9247 = vmatprep.mubr.f32.mxu0 0.0
  %9248 = vmatmul.mubr.f32.gmra.mrb[0].mxu0 %v9086
  %v9249 = vpop.f32.mrb[0].mxu0
  %v9250 = vadd.f32 0.0, %v9249
  %v9251 = vpop.f32.mrb[0].mxu0
  %9252 = vmatprep.mubr.f32.mxu0 0.0
  %9253 = vmatmul.mubr.f32.gmra.mrb[0].mxu0 %v9089
  %v9254 = vpop.f32.mrb[0].mxu0
  %v9255 = vadd.f32 0.0, %v9254
  %v9256 = vpop.f32.mrb[0].mxu0
  %9257 = vmatprep.mubr.f32.mxu0 0.0
  %9258 = vmatmul.mubr.f32.gmra.mrb[0].mxu0 %v9092
  %v9259 = vpop.f32.mrb[0].mxu0
  %v9260 = vadd.f32 0.0, %v9259
  %v9261 = vpop.f32.mrb[0].mxu0
  %9262 = vmatprep.mubr.f32.mxu0 0.0
  %9263 = vmatmul.mubr.f32.gmra.mrb[0].mxu0 %v9095
  %v9264 = vpop.f32.mrb[0].mxu0
  %v9265 = vadd.f32 0.0, %v9264
  %v9266 = vpop.f32.mrb[0].mxu0
  %9267 = vmatprep.mubr.f32.mxu0 0.0
  %9268 = vmatmul.mubr.f32.gmra.mrb[0].mxu0 %v9098
  %v9269 = vpop.f32.mrb[0].mxu0
  %v9270 = vadd.f32 0.0, %v9269
  %v9271 = vpop.f32.mrb[0].mxu0
  %9272 = vmatprep.mubr.f32.mxu0 0.0
  %9273 = vmatmul.mubr.f32.gmra.mrb[0].mxu0 %v9101
  %v9274 = vpop.f32.mrb[0].mxu0
  %v9275 = vadd.f32 0.0, %v9274
  %v9276 = vpop.f32.mrb[0].mxu0
  %9277 = vmatprep.mubr.f32.mxu0 0.0
  %9278 = vmatmul.mubr.f32.gmra.mrb[0].mxu0 %v9104
  %v9279 = vpop.f32.mrb[0].mxu0
  %v9280 = vadd.f32 0.0, %v9279
  %v9281 = vpop.f32.mrb[0].mxu0
  %9282 = vmatprep.mubr.f32.mxu0 0.0
  %9283 = vmatmul.mubr.f32.gmra.mrb[0].mxu0 %v9107
  %v9284 = vpop.f32.mrb[0].mxu0
  %v9285 = vadd.f32 0.0, %v9284
  %v9286 = vpop.f32.mrb[0].mxu0
  %9287 = vmatprep.mubr.f32.mxu0 0.0
  %9288 = vmatmul.mubr.f32.gmra.mrb[0].mxu0 %v9110
  %v9289 = vpop.f32.mrb[0].mxu0
  %v9290 = vadd.f32 0.0, %v9289
  %v9291 = vpop.f32.mrb[0].mxu0
  %9292 = vmatprep.mubr.f32.mxu0 0.0
  %9293 = vmatmul.mubr.f32.gmra.mrb[0].mxu0 %v9113
  %v9294 = vpop.f32.mrb[0].mxu0
  %v9295 = vadd.f32 0.0, %v9294
  %v9296 = vpop.f32.mrb[0].mxu0
  %9297 = vmatprep.mubr.f32.mxu0 0.0
  %9298 = vmatmul.mubr.f32.gmra.mrb[0].mxu0 %v9116
  %v9299 = vpop.f32.mrb[0].mxu0
  %v9300 = vadd.f32 0.0, %v9299
  %v9301 = vpop.f32.mrb[0].mxu0
  %9302 = vmatprep.mubr.f32.mxu0 0.0
  %9303 = vmatmul.mubr.f32.gmra.mrb[0].mxu0 %v9119
  %v9304 = vpop.f32.mrb[0].mxu0
  %v9305 = vadd.f32 0.0, %v9304
  %v9306 = vpop.f32.mrb[0].mxu0
  %9307 = vmatprep.mubr.f32.mxu0 0.0
  %9308 = vmatmul.mubr.f32.gmra.mrb[0].mxu0 %v9122
  %v9309 = vpop.f32.mrb[0].mxu0
  %v9310 = vadd.f32 0.0, %v9309
  %v9311 = vpop.f32.mrb[0].mxu0
  %9312 = vmatprep.mubr.f32.mxu0 0.0
  %9313 = vmatmul.mubr.f32.gmra.mrb[0].mxu0 %v9125
  %v9314 = vpop.f32.mrb[0].mxu0
  %v9315 = vadd.f32 0.0, %v9314
  %v9316 = vpop.f32.mrb[0].mxu0
  %9317 = vmatprep.mubr.f32.mxu0 0.0
  %9318 = vmatmul.mubr.f32.gmra.mrb[0].mxu0 %v9128
  %v9319 = vpop.f32.mrb[0].mxu0
  %v9320 = vadd.f32 0.0, %v9319
  %v9321 = vpop.f32.mrb[0].mxu0
  %9322 = vmatprep.mubr.f32.mxu0 0.0
  %9323 = vmatmul.mubr.f32.gmra.mrb[0].mxu0 %v9131
  %v9324 = vpop.f32.mrb[0].mxu0
  %v9325 = vadd.f32 0.0, %v9324
  %v9326 = vpop.f32.mrb[0].mxu0
  %9327 = vmatprep.mubr.f32.mxu0 0.0
  %9328 = vmatmul.mubr.f32.gmra.mrb[0].mxu0 %v9134
  %v9329 = vpop.f32.mrb[0].mxu0
  %v9330 = vadd.f32 0.0, %v9329
  %v9331 = vpop.f32.mrb[0].mxu0
  %9332 = vmatprep.mubr.f32.mxu0 0.0
  %9333 = vmatmul.mubr.f32.gmra.mrb[0].mxu0 %v9137
  %v9334 = vpop.f32.mrb[0].mxu0
  %v9335 = vadd.f32 0.0, %v9334
  %v9336 = vpop.f32.mrb[0].mxu0
  %9337 = vmatprep.mubr.f32.mxu0 0.0
  %9338 = vmatmul.mubr.f32.gmra.mrb[0].mxu0 %v9140
  %v9339 = vpop.f32.mrb[0].mxu0
  %v9340 = vadd.f32 0.0, %v9339
  %v9341 = vpop.f32.mrb[0].mxu0
  %9342 = vmatprep.mubr.f32.mxu0 0.0
  %9343 = vmatmul.mubr.f32.gmra.mrb[0].mxu0 %v9143
  %v9344 = vpop.f32.mrb[0].mxu0
  %v9345 = vadd.f32 0.0, %v9344
  %v9346 = vpop.f32.mrb[0].mxu0
  %9347 = vmatprep.mubr.f32.mxu0 0.0
  %9348 = vmatmul.mubr.f32.gmra.mrb[0].mxu0 %v9146
  %v9349 = vpop.f32.mrb[0].mxu0
  %v9350 = vadd.f32 0.0, %v9349
  %v9351 = vpop.f32.mrb[0].mxu0
  %9352 = vdwg.mxu0
  %9354 = vset.pattern.permute.xlu0 0
  %9355 = vperm.xlu0 %9354, %v9215
  %v9356 = vpop.permute.xlu0 %9355
  %9359 = vset.pattern.permute.xlu0 0
  %9360 = vperm.xlu0 %9359, %v9220
  %v9361 = vpop.permute.xlu0 %9360
  %9364 = vset.pattern.permute.xlu0 0
  %9365 = vperm.xlu0 %9364, %v9225
  %v9366 = vpop.permute.xlu0 %9365
  %9369 = vset.pattern.permute.xlu0 0
  %9370 = vperm.xlu0 %9369, %v9230
  %v9371 = vpop.permute.xlu0 %9370
  %9374 = vset.pattern.permute.xlu0 0
  %9375 = vperm.xlu0 %9374, %v9235
  %v9376 = vpop.permute.xlu0 %9375
  %9379 = vset.pattern.permute.xlu0 0
  %9380 = vperm.xlu0 %9379, %v9240
  %v9381 = vpop.permute.xlu0 %9380
  %9384 = vset.pattern.permute.xlu0 0
  %9385 = vperm.xlu0 %9384, %v9245
  %v9386 = vpop.permute.xlu0 %9385
  %9389 = vset.pattern.permute.xlu0 0
  %9390 = vperm.xlu0 %9389, %v9250
  %v9391 = vpop.permute.xlu0 %9390
  %9394 = vset.pattern.permute.xlu0 0
  %9395 = vperm.xlu0 %9394, %v9255
  %v9396 = vpop.permute.xlu0 %9395
  %9399 = vset.pattern.permute.xlu0 0
  %9400 = vperm.xlu0 %9399, %v9260
  %v9401 = vpop.permute.xlu0 %9400
  %9404 = vset.pattern.permute.xlu0 0
  %9405 = vperm.xlu0 %9404, %v9265
  %v9406 = vpop.permute.xlu0 %9405
  %9409 = vset.pattern.permute.xlu0 0
  %9410 = vperm.xlu0 %9409, %v9270
  %v9411 = vpop.permute.xlu0 %9410
  %9414 = vset.pattern.permute.xlu0 0
  %9415 = vperm.xlu0 %9414, %v9275
  %v9416 = vpop.permute.xlu0 %9415
  %9419 = vset.pattern.permute.xlu0 0
  %9420 = vperm.xlu0 %9419, %v9280
  %v9421 = vpop.permute.xlu0 %9420
  %9424 = vset.pattern.permute.xlu0 0
  %9425 = vperm.xlu0 %9424, %v9285
  %v9426 = vpop.permute.xlu0 %9425
  %9429 = vset.pattern.permute.xlu0 0
  %9430 = vperm.xlu0 %9429, %v9290
  %v9431 = vpop.permute.xlu0 %9430
  %9434 = vset.pattern.permute.xlu0 0
  %9435 = vperm.xlu0 %9434, %v9295
  %v9436 = vpop.permute.xlu0 %9435
  %9439 = vset.pattern.permute.xlu0 0
  %9440 = vperm.xlu0 %9439, %v9300
  %v9441 = vpop.permute.xlu0 %9440
  %9444 = vset.pattern.permute.xlu0 0
  %9445 = vperm.xlu0 %9444, %v9305
  %v9446 = vpop.permute.xlu0 %9445
  %9449 = vset.pattern.permute.xlu0 0
  %9450 = vperm.xlu0 %9449, %v9310
  %v9451 = vpop.permute.xlu0 %9450
  %9454 = vset.pattern.permute.xlu0 0
  %9455 = vperm.xlu0 %9454, %v9315
  %v9456 = vpop.permute.xlu0 %9455
  %9459 = vset.pattern.permute.xlu0 0
  %9460 = vperm.xlu0 %9459, %v9320
  %v9461 = vpop.permute.xlu0 %9460
  %9464 = vset.pattern.permute.xlu0 0
  %9465 = vperm.xlu0 %9464, %v9325
  %v9466 = vpop.permute.xlu0 %9465
  %9469 = vset.pattern.permute.xlu0 0
  %9470 = vperm.xlu0 %9469, %v9330
  %v9471 = vpop.permute.xlu0 %9470
  %9474 = vset.pattern.permute.xlu0 0
  %9475 = vperm.xlu0 %9474, %v9335
  %v9476 = vpop.permute.xlu0 %9475
  %9479 = vset.pattern.permute.xlu0 0
  %9480 = vperm.xlu0 %9479, %v9340
  %v9481 = vpop.permute.xlu0 %9480
  %9484 = vset.pattern.permute.xlu0 0
  %9485 = vperm.xlu0 %9484, %v9345
  %v9486 = vpop.permute.xlu0 %9485
  %9489 = vset.pattern.permute.xlu0 0
  %9490 = vperm.xlu0 %9489, %v9350
  %v9491 = vpop.permute.xlu0 %9490
  %v9493 = vmul.f32 %v7284, %v9356
  %v9494 = vmul.f32 %v7289, %v9361
  %v9495 = vmul.f32 %v7294, %v9366
  %v9496 = vmul.f32 %v7299, %v9371
  %v9497 = vmul.f32 %v7304, %v9376
  %v9498 = vmul.f32 %v7309, %v9381
  %v9499 = vmul.f32 %v7314, %v9386
  %v9500 = vmul.f32 %v7319, %v9391
  %v9501 = vmul.f32 %v7324, %v9396
  %v9502 = vmul.f32 %v7329, %v9401
  %v9503 = vmul.f32 %v7334, %v9406
  %v9504 = vmul.f32 %v7339, %v9411
  %v9505 = vmul.f32 %v7344, %v9416
  %v9506 = vmul.f32 %v7349, %v9421
  %v9507 = vmul.f32 %v7354, %v9426
  %v9508 = vmul.f32 %v7359, %v9431
  %v9509 = vmul.f32 %v7364, %v9436
  %v9510 = vmul.f32 %v7369, %v9441
  %v9511 = vmul.f32 %v7374, %v9446
  %v9512 = vmul.f32 %v7379, %v9451
  %v9513 = vmul.f32 %v7384, %v9456
  %v9514 = vmul.f32 %v7389, %v9461
  %v9515 = vmul.f32 %v7394, %v9466
  %v9516 = vmul.f32 %v7399, %v9471
  %v9517 = vmul.f32 %v7404, %v9476
  %v9518 = vmul.f32 %v7409, %v9481
  %v9519 = vmul.f32 %v7414, %v9486
  %v9520 = vmul.f32 %v7419, %v9491
  %9549 = vrot.lane.b32.xlu0 %v8678, 96
  %v9550 = vpop.permute.xlu0 %9549
  %9551 = vrot.lane.b32.xlu0 %v8683, 96
  %v9552 = vpop.permute.xlu0 %9551
  %9553 = vrot.lane.b32.xlu0 %v8688, 96
  %v9554 = vpop.permute.xlu0 %9553
  %9555 = vrot.lane.b32.xlu0 %v8693, 96
  %v9556 = vpop.permute.xlu0 %9555
  %9557 = vrot.lane.b32.xlu0 %v8698, 96
  %v9558 = vpop.permute.xlu0 %9557
  %9559 = vrot.lane.b32.xlu0 %v8703, 96
  %v9560 = vpop.permute.xlu0 %9559
  %9561 = vrot.lane.b32.xlu0 %v8708, 96
  %v9562 = vpop.permute.xlu0 %9561
  %9563 = vrot.lane.b32.xlu0 %v8713, 96
  %v9564 = vpop.permute.xlu0 %9563
  %9565 = vrot.lane.b32.xlu0 %v8718, 96
  %v9566 = vpop.permute.xlu0 %9565
  %9567 = vrot.lane.b32.xlu0 %v8723, 96
  %v9568 = vpop.permute.xlu0 %9567
  %9569 = vrot.lane.b32.xlu0 %v8728, 96
  %v9570 = vpop.permute.xlu0 %9569
  %9571 = vrot.lane.b32.xlu0 %v8733, 96
  %v9572 = vpop.permute.xlu0 %9571
  %9573 = vrot.lane.b32.xlu0 %v8738, 96
  %v9574 = vpop.permute.xlu0 %9573
  %9575 = vrot.lane.b32.xlu0 %v8743, 96
  %v9576 = vpop.permute.xlu0 %9575
  %9577 = vrot.lane.b32.xlu0 %v8748, 96
  %v9578 = vpop.permute.xlu0 %9577
  %9579 = vrot.lane.b32.xlu0 %v8753, 96
  %v9580 = vpop.permute.xlu0 %9579
  %9581 = vrot.lane.b32.xlu0 %v8758, 96
  %v9582 = vpop.permute.xlu0 %9581
  %9583 = vrot.lane.b32.xlu0 %v8763, 96
  %v9584 = vpop.permute.xlu0 %9583
  %9585 = vrot.lane.b32.xlu0 %v8768, 96
  %v9586 = vpop.permute.xlu0 %9585
  %9587 = vrot.lane.b32.xlu0 %v8773, 96
  %v9588 = vpop.permute.xlu0 %9587
  %9589 = vrot.lane.b32.xlu0 %v8778, 96
  %v9590 = vpop.permute.xlu0 %9589
  %9591 = vrot.lane.b32.xlu0 %v8783, 96
  %v9592 = vpop.permute.xlu0 %9591
  %9593 = vrot.lane.b32.xlu0 %v8788, 96
  %v9594 = vpop.permute.xlu0 %9593
  %9595 = vrot.lane.b32.xlu0 %v8793, 96
  %v9596 = vpop.permute.xlu0 %9595
  %9597 = vrot.lane.b32.xlu0 %v8798, 96
  %v9598 = vpop.permute.xlu0 %9597
  %9599 = vrot.lane.b32.xlu0 %v8803, 96
  %v9600 = vpop.permute.xlu0 %9599
  %9601 = vrot.lane.b32.xlu0 %v8808, 96
  %v9602 = vpop.permute.xlu0 %9601
  %9603 = vrot.lane.b32.xlu0 %v8813, 96
  %v9604 = vpop.permute.xlu0 %9603
  %9661 = vrot.lane.b32.xlu0 %v9493, 32
  %v9662 = vpop.permute.xlu0 %9661
  %9663 = vrot.lane.b32.xlu0 %v9494, 32
  %v9664 = vpop.permute.xlu0 %9663
  %9665 = vrot.lane.b32.xlu0 %v9495, 32
  %v9666 = vpop.permute.xlu0 %9665
  %9667 = vrot.lane.b32.xlu0 %v9496, 32
  %v9668 = vpop.permute.xlu0 %9667
  %9669 = vrot.lane.b32.xlu0 %v9497, 32
  %v9670 = vpop.permute.xlu0 %9669
  %9671 = vrot.lane.b32.xlu0 %v9498, 32
  %v9672 = vpop.permute.xlu0 %9671
  %9673 = vrot.lane.b32.xlu0 %v9499, 32
  %v9674 = vpop.permute.xlu0 %9673
  %9675 = vrot.lane.b32.xlu0 %v9500, 32
  %v9676 = vpop.permute.xlu0 %9675
  %9677 = vrot.lane.b32.xlu0 %v9501, 32
  %v9678 = vpop.permute.xlu0 %9677
  %9679 = vrot.lane.b32.xlu0 %v9502, 32
  %v9680 = vpop.permute.xlu0 %9679
  %9681 = vrot.lane.b32.xlu0 %v9503, 32
  %v9682 = vpop.permute.xlu0 %9681
  %9683 = vrot.lane.b32.xlu0 %v9504, 32
  %v9684 = vpop.permute.xlu0 %9683
  %9685 = vrot.lane.b32.xlu0 %v9505, 32
  %v9686 = vpop.permute.xlu0 %9685
  %9687 = vrot.lane.b32.xlu0 %v9506, 32
  %v9688 = vpop.permute.xlu0 %9687
  %9689 = vrot.lane.b32.xlu0 %v9507, 32
  %v9690 = vpop.permute.xlu0 %9689
  %9691 = vrot.lane.b32.xlu0 %v9508, 32
  %v9692 = vpop.permute.xlu0 %9691
  %9693 = vrot.lane.b32.xlu0 %v9509, 32
  %v9694 = vpop.permute.xlu0 %9693
  %9695 = vrot.lane.b32.xlu0 %v9510, 32
  %v9696 = vpop.permute.xlu0 %9695
  %9697 = vrot.lane.b32.xlu0 %v9511, 32
  %v9698 = vpop.permute.xlu0 %9697
  %9699 = vrot.lane.b32.xlu0 %v9512, 32
  %v9700 = vpop.permute.xlu0 %9699
  %9701 = vrot.lane.b32.xlu0 %v9513, 32
  %v9702 = vpop.permute.xlu0 %9701
  %9703 = vrot.lane.b32.xlu0 %v9514, 32
  %v9704 = vpop.permute.xlu0 %9703
  %9705 = vrot.lane.b32.xlu0 %v9515, 32
  %v9706 = vpop.permute.xlu0 %9705
  %9707 = vrot.lane.b32.xlu0 %v9516, 32
  %v9708 = vpop.permute.xlu0 %9707
  %9709 = vrot.lane.b32.xlu0 %v9517, 32
  %v9710 = vpop.permute.xlu0 %9709
  %9711 = vrot.lane.b32.xlu0 %v9518, 32
  %v9712 = vpop.permute.xlu0 %9711
  %9713 = vrot.lane.b32.xlu0 %v9519, 32
  %v9714 = vpop.permute.xlu0 %9713
  %9715 = vrot.lane.b32.xlu0 %v9520, 32
  %v9716 = vpop.permute.xlu0 %9715
  %v9745 = vsel %vm284, %v9550, %v9662
  %v9746 = vsel %vm284, %v9552, %v9664
  %v9747 = vsel %vm284, %v9554, %v9666
  %v9748 = vsel %vm284, %v9556, %v9668
  %v9749 = vsel %vm284, %v9558, %v9670
  %v9750 = vsel %vm284, %v9560, %v9672
  %v9751 = vsel %vm284, %v9562, %v9674
  %v9752 = vsel %vm284, %v9564, %v9676
  %v9753 = vsel %vm284, %v9566, %v9678
  %v9754 = vsel %vm284, %v9568, %v9680
  %v9755 = vsel %vm284, %v9570, %v9682
  %v9756 = vsel %vm284, %v9572, %v9684
  %v9757 = vsel %vm284, %v9574, %v9686
  %v9758 = vsel %vm284, %v9576, %v9688
  %v9759 = vsel %vm284, %v9578, %v9690
  %v9760 = vsel %vm284, %v9580, %v9692
  %v9761 = vsel %vm284, %v9582, %v9694
  %v9762 = vsel %vm284, %v9584, %v9696
  %v9763 = vsel %vm284, %v9586, %v9698
  %v9764 = vsel %vm284, %v9588, %v9700
  %v9765 = vsel %vm284, %v9590, %v9702
  %v9766 = vsel %vm284, %v9592, %v9704
  %v9767 = vsel %vm284, %v9594, %v9706
  %v9768 = vsel %vm284, %v9596, %v9708
  %v9769 = vsel %vm284, %v9598, %v9710
  %v9770 = vsel %vm284, %v9600, %v9712
  %v9771 = vsel %vm284, %v9602, %v9714
  %v9772 = vsel %vm284, %v9604, %v9716
  %9773 = vmatprep.subr.mxu0 0.0
  %9774 = vmatpush1.msra.mxu0 %v9745
  %9775 = vmatprep.subr.mxu0 0.0
  %9776 = vmatpush1.msra.mxu0 %v9746
  %9777 = vmatprep.subr.mxu0 0.0
  %9778 = vmatpush1.msra.mxu0 %v9747
  %9779 = vmatprep.subr.mxu0 0.0
  %9780 = vmatpush1.msra.mxu0 %v9748
  %9781 = vmatprep.subr.mxu0 0.0
  %9782 = vmatpush1.msra.mxu0 %v9749
  %9783 = vmatprep.subr.mxu0 0.0
  %9784 = vmatpush1.msra.mxu0 %v9750
  %9785 = vmatprep.subr.mxu0 0.0
  %9786 = vmatpush1.msra.mxu0 %v9751
  %9787 = vmatprep.subr.mxu0 0.0
  %9788 = vmatpush1.msra.mxu0 %v9752
  %9789 = vmatprep.subr.mxu0 0.0
  %9790 = vmatpush1.msra.mxu0 %v9753
  %9791 = vmatprep.subr.mxu0 0.0
  %9792 = vmatpush1.msra.mxu0 %v9754
  %9793 = vmatprep.subr.mxu0 0.0
  %9794 = vmatpush1.msra.mxu0 %v9755
  %9795 = vmatprep.subr.mxu0 0.0
  %9796 = vmatpush1.msra.mxu0 %v9756
  %9797 = vmatprep.subr.mxu0 0.0
  %9798 = vmatpush1.msra.mxu0 %v9757
  %9799 = vmatprep.subr.mxu0 0.0
  %9800 = vmatpush1.msra.mxu0 %v9758
  %9801 = vmatprep.subr.mxu0 0.0
  %9802 = vmatpush1.msra.mxu0 %v9759
  %9803 = vmatprep.subr.mxu0 0.0
  %9804 = vmatpush1.msra.mxu0 %v9760
  %9805 = vmatprep.subr.mxu0 0.0
  %9806 = vmatpush1.msra.mxu0 %v9761
  %9807 = vmatprep.subr.mxu0 0.0
  %9808 = vmatpush1.msra.mxu0 %v9762
  %9809 = vmatprep.subr.mxu0 0.0
  %9810 = vmatpush1.msra.mxu0 %v9763
  %9811 = vmatprep.subr.mxu0 0.0
  %9812 = vmatpush1.msra.mxu0 %v9764
  %9813 = vmatprep.subr.mxu0 0.0
  %9814 = vmatpush1.msra.mxu0 %v9765
  %9815 = vmatprep.subr.mxu0 0.0
  %9816 = vmatpush1.msra.mxu0 %v9766
  %9817 = vmatprep.subr.mxu0 0.0
  %9818 = vmatpush1.msra.mxu0 %v9767
  %9819 = vmatprep.subr.mxu0 0.0
  %9820 = vmatpush1.msra.mxu0 %v9768
  %9821 = vmatprep.subr.mxu0 0.0
  %9822 = vmatpush1.msra.mxu0 %v9769
  %9823 = vmatprep.subr.mxu0 0.0
  %9824 = vmatpush1.msra.mxu0 %v9770
  %9825 = vmatprep.subr.mxu0 0.0
  %9826 = vmatpush1.msra.mxu0 %v9771
  %9827 = vmatprep.subr.mxu0 0.0
  %9828 = vmatpush1.msra.mxu0 %v9772
  %9829 = vmatprep.subr.mxu0 0.0
  %9830 = vmatpush1.msra.mxu0 0.0
  %9831 = vmatprep.subr.mxu0 0.0
  %9832 = vmatpush1.msra.mxu0 0.0
  %9833 = vmatprep.subr.mxu0 0.0
  %9834 = vmatpush1.msra.mxu0 0.0
  %9835 = vmatprep.subr.mxu0 0.0
  %9836 = vmatpush1.msra.mxu0 0.0
  %9837 = vmatprep.mubr.f32.mxu0 %v3410
  %9838 = vmatmul.mubr.f32.gmra.mrb[0].mxu0 %v119
  %v9839 = vpop.f32.mrb[0].mxu0
  %v9840 = vadd.f32 0.0, %v9839
  %v9841 = vpop.f32.mrb[0].mxu0
  %9842 = vmatprep.mubr.f32.mxu0 %v3413
  %9843 = vmatmul.mubr.f32.gmra.mrb[0].mxu0 %v121
  %v9844 = vpop.f32.mrb[0].mxu0
  %v9845 = vadd.f32 0.0, %v9844
  %v9846 = vpop.f32.mrb[0].mxu0
  %9847 = vmatprep.mubr.f32.mxu0 %v3416
  %9848 = vmatmul.mubr.f32.gmra.mrb[0].mxu0 %v123
  %v9849 = vpop.f32.mrb[0].mxu0
  %v9850 = vadd.f32 0.0, %v9849
  %v9851 = vpop.f32.mrb[0].mxu0
  %9852 = vmatprep.mubr.f32.mxu0 %v3419
  %9853 = vmatmul.mubr.f32.gmra.mrb[0].mxu0 %v125
  %v9854 = vpop.f32.mrb[0].mxu0
  %v9855 = vadd.f32 0.0, %v9854
  %v9856 = vpop.f32.mrb[0].mxu0
  %9857 = vdwg.mxu0
  %v9858 = vmul.f32 %v9840, %v3509
  %v9859 = vmul.f32 %v9845, %v3514
  %v9860 = vmul.f32 %v9850, %v3519
  %v9861 = vmul.f32 %v9855, %v3524
  %v9862 = vxor.u32 %v7179, 2147483648
  %v9863 = vxor.u32 %v7185, 2147483648
  %v9864 = vxor.u32 %v7191, 2147483648
  %v9865 = vxor.u32 %v7197, 2147483648
  %v9866 = vmul.f32 %v9862, 1.442695
  %v9867 = vpow.pop %v9866
  %v9868 = vmul.f32 %v9863, 1.442695
  %v9869 = vpow.pop %v9868
  %v9870 = vmul.f32 %v9864, 1.442695
  %v9871 = vpow.pop %v9870
  %v9872 = vmul.f32 %v9865, 1.442695
  %v9873 = vpow.pop %v9872
  %v9874 = vadd.f32 %v9867, 1.0
  %v9875 = vadd.f32 %v9869, 1.0
  %v9876 = vadd.f32 %v9871, 1.0
  %v9877 = vadd.f32 %v9873, 1.0
  %v9878 = vrcp.pop %v9874
  %v9879 = vmul.f32 1.0, %v9878
  %v9880 = vrcp.pop %v9875
  %v9881 = vmul.f32 1.0, %v9880
  %v9882 = vrcp.pop %v9876
  %v9883 = vmul.f32 1.0, %v9882
  %v9884 = vrcp.pop %v9877
  %v9885 = vmul.f32 1.0, %v9884
  %v9886 = vmul.f32 %v7179, %v9879
  %v9887 = vmul.f32 %v7185, %v9881
  %v9888 = vmul.f32 %v7191, %v9883
  %v9889 = vmul.f32 %v7197, %v9885
  %s9890 = scalar_lea.vmem %s16, 128
  %v9891 = vld [vmem:[%s9890] sm:$0xff]
  %v9892 = vld [vmem:[%s9890 + $0x8] sm:$0xff]
  %v9893 = vld [vmem:[%s9890 + $0x10] sm:$0xff]
  %v9894 = vld [vmem:[%s9890 + $0x18] sm:$0xff]
  %v9895 = vld [vmem:[%s9890 + $0x20] sm:$0xff]
  %v9896 = vld [vmem:[%s9890 + $0x28] sm:$0xff]
  %v9897 = vld [vmem:[%s9890 + $0x30] sm:$0xff]
  %v9898 = vld [vmem:[%s9890 + $0x38] sm:$0xff]
  %s9899 = scalar_lea.vmem %s17, 2
  %v9900 = vld [vmem:[%s9899] sm:$0x1]
  %v9902 = vlaneseq
  %v9903 = vshrl.u32 %v9902, 7
  %v9904 = vsub.s32 0, %v9903
  %v9905 = vrot.slane %v9900, %v9904
  %v9908 = vsel %vm3573, %v9886, 0
  %v9911 = vsel %vm3573, %v9887, 0
  %v9914 = vsel %vm3573, %v9888, 0
  %v9917 = vsel %vm3573, %v9889, 0
  %9919 = vmatprep.subr.mxu0 0.0
  %9920 = vmatpush1.msra.mxu0 %v9891
  %9921 = vmatprep.subr.mxu0 0.0
  %9922 = vmatpush1.msra.mxu0 %v9892
  %9923 = vmatprep.subr.mxu0 0.0
  %9924 = vmatpush1.msra.mxu0 %v9893
  %9925 = vmatprep.subr.mxu0 0.0
  %9926 = vmatpush1.msra.mxu0 %v9894
  %9927 = vmatprep.subr.mxu0 0.0
  %9928 = vmatpush1.msra.mxu0 %v9895
  %9929 = vmatprep.subr.mxu0 0.0
  %9930 = vmatpush1.msra.mxu0 %v9896
  %9931 = vmatprep.subr.mxu0 0.0
  %9932 = vmatpush1.msra.mxu0 %v9897
  %9933 = vmatprep.subr.mxu0 0.0
  %9934 = vmatpush1.msra.mxu0 %v9898
  %9935 = vmatprep.subr.mxu0 0.0
  %9936 = vmatpush1.msra.mxu0 0.0
  %9937 = vmatprep.subr.mxu0 0.0
  %9938 = vmatpush1.msra.mxu0 0.0
  %9939 = vmatprep.subr.mxu0 0.0
  %9940 = vmatpush1.msra.mxu0 0.0
  %9941 = vmatprep.subr.mxu0 0.0
  %9942 = vmatpush1.msra.mxu0 0.0
  %9943 = vmatprep.subr.mxu0 0.0
  %9944 = vmatpush1.msra.mxu0 0.0
  %9945 = vmatprep.subr.mxu0 0.0
  %9946 = vmatpush1.msra.mxu0 0.0
  %9947 = vmatprep.subr.mxu0 0.0
  %9948 = vmatpush1.msra.mxu0 0.0
  %9949 = vmatprep.subr.mxu0 0.0
  %9950 = vmatpush1.msra.mxu0 0.0
  %9951 = vmatprep.subr.mxu0 0.0
  %9952 = vmatpush1.msra.mxu0 0.0
  %9953 = vmatprep.subr.mxu0 0.0
  %9954 = vmatpush1.msra.mxu0 0.0
  %9955 = vmatprep.subr.mxu0 0.0
  %9956 = vmatpush1.msra.mxu0 0.0
  %9957 = vmatprep.subr.mxu0 0.0
  %9958 = vmatpush1.msra.mxu0 0.0
  %9959 = vmatprep.subr.mxu0 0.0
  %9960 = vmatpush1.msra.mxu0 0.0
  %9961 = vmatprep.subr.mxu0 0.0
  %9962 = vmatpush1.msra.mxu0 0.0
  %9963 = vmatprep.subr.mxu0 0.0
  %9964 = vmatpush1.msra.mxu0 0.0
  %9965 = vmatprep.subr.mxu0 0.0
  %9966 = vmatpush1.msra.mxu0 0.0
  %9967 = vmatprep.subr.mxu0 0.0
  %9968 = vmatpush1.msra.mxu0 0.0
  %9969 = vmatprep.subr.mxu0 0.0
  %9970 = vmatpush1.msra.mxu0 0.0
  %9971 = vmatprep.subr.mxu0 0.0
  %9972 = vmatpush1.msra.mxu0 0.0
  %9973 = vmatprep.subr.mxu0 0.0
  %9974 = vmatpush1.msra.mxu0 0.0
  %9975 = vmatprep.subr.mxu0 0.0
  %9976 = vmatpush1.msra.mxu0 0.0
  %9977 = vmatprep.subr.mxu0 0.0
  %9978 = vmatpush1.msra.mxu0 0.0
  %9979 = vmatprep.subr.mxu0 0.0
  %9980 = vmatpush1.msra.mxu0 0.0
  %9981 = vmatprep.subr.mxu0 0.0
  %9982 = vmatpush1.msra.mxu0 0.0
  %9983 = vmatprep.mubr.f32.mxu0 0.0
  %9984 = vmatmul.mubr.f32.gmra.mrb[0].mxu0 %v9908
  %v9985 = vpop.f32.mrb[0].mxu0
  %v9986 = vadd.f32 %v9905, %v9985
  %v9987 = vpop.f32.mrb[0].mxu0
  %9988 = vmatprep.mubr.f32.mxu0 0.0
  %9989 = vmatmul.mubr.f32.gmra.mrb[0].mxu0 %v9911
  %v9990 = vpop.f32.mrb[0].mxu0
  %v9991 = vadd.f32 %v9905, %v9990
  %v9992 = vpop.f32.mrb[0].mxu0
  %9993 = vmatprep.mubr.f32.mxu0 0.0
  %9994 = vmatmul.mubr.f32.gmra.mrb[0].mxu0 %v9914
  %v9995 = vpop.f32.mrb[0].mxu0
  %v9996 = vadd.f32 %v9905, %v9995
  %v9997 = vpop.f32.mrb[0].mxu0
  %9998 = vmatprep.mubr.f32.mxu0 0.0
  %9999 = vmatmul.mubr.f32.gmra.mrb[0].mxu0 %v9917
  %v10000 = vpop.f32.mrb[0].mxu0
  %v10001 = vadd.f32 %v9905, %v10000
  %v10002 = vpop.f32.mrb[0].mxu0
  %10003 = vdwg.mxu0
  %10008 = vrot.lane.b32.xlu0 %v9858, 97
  %v10009 = vpop.permute.xlu0 %10008
  %10010 = vrot.lane.b32.xlu0 %v9859, 97
  %v10011 = vpop.permute.xlu0 %10010
  %10012 = vrot.lane.b32.xlu0 %v9860, 97
  %v10013 = vpop.permute.xlu0 %10012
  %10014 = vrot.lane.b32.xlu0 %v9861, 97
  %v10015 = vpop.permute.xlu0 %10014
  %v10020 = vadd.f32 %v6937, %v10009
  %v10021 = vadd.f32 %v6938, %v10011
  %v10022 = vadd.f32 %v6939, %v10013
  %v10023 = vadd.f32 %v6940, %v10015
  %10025 = vset.pattern.permute.xlu0 0
  %10026 = vperm.xlu0 %10025, %v9986
  %v10027 = vpop.permute.xlu0 %10026
  %10030 = vset.pattern.permute.xlu0 0
  %10031 = vperm.xlu0 %10030, %v9991
  %v10032 = vpop.permute.xlu0 %10031
  %10035 = vset.pattern.permute.xlu0 0
  %10036 = vperm.xlu0 %10035, %v9996
  %v10037 = vpop.permute.xlu0 %10036
  %10040 = vset.pattern.permute.xlu0 0
  %10041 = vperm.xlu0 %10040, %v10001
  %v10042 = vpop.permute.xlu0 %10041
  %v10044 = vmul.f32 %v10027, %v59
  %v10045 = vmul.f32 %v10032, %v60
  %v10046 = vmul.f32 %v10037, %v61
  %v10047 = vmul.f32 %v10042, %v62
  %10052 = vrot.lane.b32.xlu0 %v10044, 125
  %v10053 = vpop.permute.xlu0 %10052
  %10054 = vrot.lane.b32.xlu0 %v10045, 125
  %v10055 = vpop.permute.xlu0 %10054
  %10056 = vrot.lane.b32.xlu0 %v10046, 125
  %v10057 = vpop.permute.xlu0 %10056
  %10058 = vrot.lane.b32.xlu0 %v10047, 125
  %v10059 = vpop.permute.xlu0 %10058
  %v10064 = vadd.f32 %v10020, %v10053
  %v10065 = vadd.f32 %v10021, %v10055
  %v10066 = vadd.f32 %v10022, %v10057
  %v10067 = vadd.f32 %v10023, %v10059
  %10068 = vset.pattern.permute.xlu0 1
  %10069 = vperm.xlu0 %10068, %v9986
  %v10070 = vpop.permute.xlu0 %10069
  %10072 = vset.pattern.permute.xlu0 1
  %10073 = vperm.xlu0 %10072, %v9991
  %v10074 = vpop.permute.xlu0 %10073
  %10076 = vset.pattern.permute.xlu0 1
  %10077 = vperm.xlu0 %10076, %v9996
  %v10078 = vpop.permute.xlu0 %10077
  %10080 = vset.pattern.permute.xlu0 1
  %10081 = vperm.xlu0 %10080, %v10001
  %v10082 = vpop.permute.xlu0 %10081
  %v10084 = vmul.f32 %v10070, %v508
  %v10085 = vmul.f32 %v10074, %v513
  %v10086 = vmul.f32 %v10078, %v518
  %v10087 = vmul.f32 %v10082, %v523
  %10092 = vrot.lane.b32.xlu0 %v10084, 1
  %v10093 = vpop.permute.xlu0 %10092
  %10094 = vrot.lane.b32.xlu0 %v10085, 1
  %v10095 = vpop.permute.xlu0 %10094
  %10096 = vrot.lane.b32.xlu0 %v10086, 1
  %v10097 = vpop.permute.xlu0 %10096
  %10098 = vrot.lane.b32.xlu0 %v10087, 1
  %v10099 = vpop.permute.xlu0 %10098
  %v10104 = vadd.f32 %v10064, %v10093
  %v10105 = vadd.f32 %v10065, %v10095
  %v10106 = vadd.f32 %v10066, %v10097
  %v10107 = vadd.f32 %v10067, %v10099
  %v10108 = vadd.f32 %v7181, %v9840
  %v10109 = vadd.f32 %v7187, %v9845
  %v10110 = vadd.f32 %v7193, %v9850
  %v10111 = vadd.f32 %v7199, %v9855
  %v10112 = vxor.u32 %v10108, 2147483648
  %v10113 = vxor.u32 %v10109, 2147483648
  %v10114 = vxor.u32 %v10110, 2147483648
  %v10115 = vxor.u32 %v10111, 2147483648
  %v10116 = vmul.f32 %v10112, 1.442695
  %v10117 = vpow.pop %v10116
  %v10118 = vmul.f32 %v10113, 1.442695
  %v10119 = vpow.pop %v10118
  %v10120 = vmul.f32 %v10114, 1.442695
  %v10121 = vpow.pop %v10120
  %v10122 = vmul.f32 %v10115, 1.442695
  %v10123 = vpow.pop %v10122
  %v10124 = vadd.f32 %v10117, 1.0
  %v10125 = vadd.f32 %v10119, 1.0
  %v10126 = vadd.f32 %v10121, 1.0
  %v10127 = vadd.f32 %v10123, 1.0
  %v10128 = vrcp.pop %v10124
  %v10129 = vmul.f32 1.0, %v10128
  %v10130 = vrcp.pop %v10125
  %v10131 = vmul.f32 1.0, %v10130
  %v10132 = vrcp.pop %v10126
  %v10133 = vmul.f32 1.0, %v10132
  %v10134 = vrcp.pop %v10127
  %v10135 = vmul.f32 1.0, %v10134
  %v10136 = vmul.f32 %v10108, %v10129
  %v10137 = vmul.f32 %v10109, %v10131
  %v10138 = vmul.f32 %v10110, %v10133
  %v10139 = vmul.f32 %v10111, %v10135
  %s10140 = scalar_lea.vmem %s15, 2
  %v10141 = vld [vmem:[%s10140] sm:$0x1]
  %v10143 = vlaneseq
  %v10144 = vshrl.u32 %v10143, 7
  %v10145 = vsub.s32 0, %v10144
  %v10146 = vrot.slane %v10141, %v10145
  %v10149 = vsel %vm284, %v10136, 0
  %v10152 = vsel %vm284, %v10137, 0
  %v10155 = vsel %vm284, %v10138, 0
  %v10158 = vsel %vm284, %v10139, 0
  %10160 = vmatprep.subr.mxu0 0.0
  %10161 = vmatpush1.msra.mxu0 %v9044
  %10162 = vmatprep.subr.mxu0 0.0
  %10163 = vmatpush1.msra.mxu0 %v9045
  %10164 = vmatprep.subr.mxu0 0.0
  %10165 = vmatpush1.msra.mxu0 %v9046
  %10166 = vmatprep.subr.mxu0 0.0
  %10167 = vmatpush1.msra.mxu0 %v9047
  %10168 = vmatprep.subr.mxu0 0.0
  %10169 = vmatpush1.msra.mxu0 0.0
  %10170 = vmatprep.subr.mxu0 0.0
  %10171 = vmatpush1.msra.mxu0 0.0
  %10172 = vmatprep.subr.mxu0 0.0
  %10173 = vmatpush1.msra.mxu0 0.0
  %10174 = vmatprep.subr.mxu0 0.0
  %10175 = vmatpush1.msra.mxu0 0.0
  %10176 = vmatprep.subr.mxu0 0.0
  %10177 = vmatpush1.msra.mxu0 0.0
  %10178 = vmatprep.subr.mxu0 0.0
  %10179 = vmatpush1.msra.mxu0 0.0
  %10180 = vmatprep.subr.mxu0 0.0
  %10181 = vmatpush1.msra.mxu0 0.0
  %10182 = vmatprep.subr.mxu0 0.0
  %10183 = vmatpush1.msra.mxu0 0.0
  %10184 = vmatprep.subr.mxu0 0.0
  %10185 = vmatpush1.msra.mxu0 0.0
  %10186 = vmatprep.subr.mxu0 0.0
  %10187 = vmatpush1.msra.mxu0 0.0
  %10188 = vmatprep.subr.mxu0 0.0
  %10189 = vmatpush1.msra.mxu0 0.0
  %10190 = vmatprep.subr.mxu0 0.0
  %10191 = vmatpush1.msra.mxu0 0.0
  %10192 = vmatprep.subr.mxu0 0.0
  %10193 = vmatpush1.msra.mxu0 0.0
  %10194 = vmatprep.subr.mxu0 0.0
  %10195 = vmatpush1.msra.mxu0 0.0
  %10196 = vmatprep.subr.mxu0 0.0
  %10197 = vmatpush1.msra.mxu0 0.0
  %10198 = vmatprep.subr.mxu0 0.0
  %10199 = vmatpush1.msra.mxu0 0.0
  %10200 = vmatprep.subr.mxu0 0.0
  %10201 = vmatpush1.msra.mxu0 0.0
  %10202 = vmatprep.subr.mxu0 0.0
  %10203 = vmatpush1.msra.mxu0 0.0
  %10204 = vmatprep.subr.mxu0 0.0
  %10205 = vmatpush1.msra.mxu0 0.0
  %10206 = vmatprep.subr.mxu0 0.0
  %10207 = vmatpush1.msra.mxu0 0.0
  %10208 = vmatprep.subr.mxu0 0.0
  %10209 = vmatpush1.msra.mxu0 0.0
  %10210 = vmatprep.subr.mxu0 0.0
  %10211 = vmatpush1.msra.mxu0 0.0
  %10212 = vmatprep.subr.mxu0 0.0
  %10213 = vmatpush1.msra.mxu0 0.0
  %10214 = vmatprep.subr.mxu0 0.0
  %10215 = vmatpush1.msra.mxu0 0.0
  %10216 = vmatprep.subr.mxu0 0.0
  %10217 = vmatpush1.msra.mxu0 0.0
  %10218 = vmatprep.subr.mxu0 0.0
  %10219 = vmatpush1.msra.mxu0 0.0
  %10220 = vmatprep.subr.mxu0 0.0
  %10221 = vmatpush1.msra.mxu0 0.0
  %10222 = vmatprep.subr.mxu0 0.0
  %10223 = vmatpush1.msra.mxu0 0.0
  %10224 = vmatprep.mubr.f32.mxu0 0.0
  %10225 = vmatmul.mubr.f32.gmra.mrb[0].mxu0 %v10149
  %v10226 = vpop.f32.mrb[0].mxu0
  %v10227 = vadd.f32 %v10146, %v10226
  %v10228 = vpop.f32.mrb[0].mxu0
  %10229 = vmatprep.mubr.f32.mxu0 0.0
  %10230 = vmatmul.mubr.f32.gmra.mrb[0].mxu0 %v10152
  %v10231 = vpop.f32.mrb[0].mxu0
  %v10232 = vadd.f32 %v10146, %v10231
  %v10233 = vpop.f32.mrb[0].mxu0
  %10234 = vmatprep.mubr.f32.mxu0 0.0
  %10235 = vmatmul.mubr.f32.gmra.mrb[0].mxu0 %v10155
  %v10236 = vpop.f32.mrb[0].mxu0
  %v10237 = vadd.f32 %v10146, %v10236
  %v10238 = vpop.f32.mrb[0].mxu0
  %10239 = vmatprep.mubr.f32.mxu0 0.0
  %10240 = vmatmul.mubr.f32.gmra.mrb[0].mxu0 %v10158
  %v10241 = vpop.f32.mrb[0].mxu0
  %v10242 = vadd.f32 %v10146, %v10241
  %v10243 = vpop.f32.mrb[0].mxu0
  %10244 = vdwg.mxu0
  %s10245 = scalar_lea.vmem %s9, 192
  %v10246 = vld [vmem:[%s10245] sm:$0xff]
  %v10247 = vld [vmem:[%s10245 + $0x8] sm:$0xff]
  %v10248 = vld [vmem:[%s10245 + $0x10] sm:$0xff]
  %v10249 = vld [vmem:[%s10245 + $0x18] sm:$0xff]
  %v10250 = vld [vmem:[%s10245 + $0x20] sm:$0xff]
  %v10251 = vld [vmem:[%s10245 + $0x28] sm:$0xff]
  %v10252 = vld [vmem:[%s10245 + $0x30] sm:$0xff]
  %v10253 = vld [vmem:[%s10245 + $0x38] sm:$0xff]
  %s10254 = scalar_lea.vmem %s10, 6
  %v10255 = vld [vmem:[%s10254] sm:$0x3]
  %v10257 = vlaneseq
  %v10258 = vshrl.u32 %v10257, 7
  %v10259 = vsub.s32 0, %v10258
  %v10260 = vrot.slane %v10255, %v10259
  %v10263 = vsel %vm284, %v10227, 0
  %v10266 = vsel %vm284, %v10232, 0
  %v10269 = vsel %vm284, %v10237, 0
  %v10272 = vsel %vm284, %v10242, 0
  %10274 = vmatprep.subr.mxu0 %v10247
  %10275 = vmatpush1.msra.mxu0 %v10246
  %10276 = vmatprep.subr.mxu0 %v10249
  %10277 = vmatpush1.msra.mxu0 %v10248
  %10278 = vmatprep.subr.mxu0 %v10251
  %10279 = vmatpush1.msra.mxu0 %v10250
  %10280 = vmatprep.subr.mxu0 %v10253
  %10281 = vmatpush1.msra.mxu0 %v10252
  %10282 = vmatprep.subr.mxu0 0.0
  %10283 = vmatpush1.msra.mxu0 0.0
  %10284 = vmatprep.subr.mxu0 0.0
  %10285 = vmatpush1.msra.mxu0 0.0
  %10286 = vmatprep.subr.mxu0 0.0
  %10287 = vmatpush1.msra.mxu0 0.0
  %10288 = vmatprep.subr.mxu0 0.0
  %10289 = vmatpush1.msra.mxu0 0.0
  %10290 = vmatprep.subr.mxu0 0.0
  %10291 = vmatpush1.msra.mxu0 0.0
  %10292 = vmatprep.subr.mxu0 0.0
  %10293 = vmatpush1.msra.mxu0 0.0
  %10294 = vmatprep.subr.mxu0 0.0
  %10295 = vmatpush1.msra.mxu0 0.0
  %10296 = vmatprep.subr.mxu0 0.0
  %10297 = vmatpush1.msra.mxu0 0.0
  %10298 = vmatprep.subr.mxu0 0.0
  %10299 = vmatpush1.msra.mxu0 0.0
  %10300 = vmatprep.subr.mxu0 0.0
  %10301 = vmatpush1.msra.mxu0 0.0
  %10302 = vmatprep.subr.mxu0 0.0
  %10303 = vmatpush1.msra.mxu0 0.0
  %10304 = vmatprep.subr.mxu0 0.0
  %10305 = vmatpush1.msra.mxu0 0.0
  %10306 = vmatprep.subr.mxu0 0.0
  %10307 = vmatpush1.msra.mxu0 0.0
  %10308 = vmatprep.subr.mxu0 0.0
  %10309 = vmatpush1.msra.mxu0 0.0
  %10310 = vmatprep.subr.mxu0 0.0
  %10311 = vmatpush1.msra.mxu0 0.0
  %10312 = vmatprep.subr.mxu0 0.0
  %10313 = vmatpush1.msra.mxu0 0.0
  %10314 = vmatprep.subr.mxu0 0.0
  %10315 = vmatpush1.msra.mxu0 0.0
  %10316 = vmatprep.subr.mxu0 0.0
  %10317 = vmatpush1.msra.mxu0 0.0
  %10318 = vmatprep.subr.mxu0 0.0
  %10319 = vmatpush1.msra.mxu0 0.0
  %10320 = vmatprep.subr.mxu0 0.0
  %10321 = vmatpush1.msra.mxu0 0.0
  %10322 = vmatprep.subr.mxu0 0.0
  %10323 = vmatpush1.msra.mxu0 0.0
  %10324 = vmatprep.subr.mxu0 0.0
  %10325 = vmatpush1.msra.mxu0 0.0
  %10326 = vmatprep.subr.mxu0 0.0
  %10327 = vmatpush1.msra.mxu0 0.0
  %10328 = vmatprep.subr.mxu0 0.0
  %10329 = vmatpush1.msra.mxu0 0.0
  %10330 = vmatprep.subr.mxu0 0.0
  %10331 = vmatpush1.msra.mxu0 0.0
  %10332 = vmatprep.subr.mxu0 0.0
  %10333 = vmatpush1.msra.mxu0 0.0
  %10334 = vmatprep.subr.mxu0 0.0
  %10335 = vmatpush1.msra.mxu0 0.0
  %10336 = vmatprep.subr.mxu0 0.0
  %10337 = vmatpush1.msra.mxu0 0.0
  %10338 = vmatprep.mubr.f32.mxu0 0.0
  %10339 = vmatmul.mubr.f32.gmra.mrb[0].mxu0 %v10263
  %v10340 = vpop.f32.mrb[0].mxu0
  %v10341 = vadd.f32 %v10260, %v10340
  %v10342 = vpop.f32.mrb[0].mxu0
  %10343 = vmatprep.mubr.f32.mxu0 0.0
  %10344 = vmatmul.mubr.f32.gmra.mrb[0].mxu0 %v10266
  %v10345 = vpop.f32.mrb[0].mxu0
  %v10346 = vadd.f32 %v10260, %v10345
  %v10347 = vpop.f32.mrb[0].mxu0
  %10348 = vmatprep.mubr.f32.mxu0 0.0
  %10349 = vmatmul.mubr.f32.gmra.mrb[0].mxu0 %v10269
  %v10350 = vpop.f32.mrb[0].mxu0
  %v10351 = vadd.f32 %v10260, %v10350
  %v10352 = vpop.f32.mrb[0].mxu0
  %10353 = vmatprep.mubr.f32.mxu0 0.0
  %10354 = vmatmul.mubr.f32.gmra.mrb[0].mxu0 %v10272
  %v10355 = vpop.f32.mrb[0].mxu0
  %v10356 = vadd.f32 %v10260, %v10355
  %v10357 = vpop.f32.mrb[0].mxu0
  %10358 = vdwg.mxu0
  %10363 = vrot.lane.b32.xlu0 %v10104, 127
  %v10364 = vpop.permute.xlu0 %10363
  %10365 = vrot.lane.b32.xlu0 %v10105, 127
  %v10366 = vpop.permute.xlu0 %10365
  %10367 = vrot.lane.b32.xlu0 %v10106, 127
  %v10368 = vpop.permute.xlu0 %10367
  %10369 = vrot.lane.b32.xlu0 %v10107, 127
  %v10370 = vpop.permute.xlu0 %10369
  %10375 = vmatprep.subr.mxu0 0.0
  %10376 = vmatpush1.msra.mxu0 %v10364
  %10377 = vmatprep.subr.mxu0 0.0
  %10378 = vmatpush1.msra.mxu0 %v10366
  %10379 = vmatprep.subr.mxu0 0.0
  %10380 = vmatpush1.msra.mxu0 %v10368
  %10381 = vmatprep.subr.mxu0 0.0
  %10382 = vmatpush1.msra.mxu0 %v10370
  %10383 = vmatprep.subr.mxu0 0.0
  %10384 = vmatpush1.msra.mxu0 0.0
  %10385 = vmatprep.subr.mxu0 0.0
  %10386 = vmatpush1.msra.mxu0 0.0
  %10387 = vmatprep.subr.mxu0 0.0
  %10388 = vmatpush1.msra.mxu0 0.0
  %10389 = vmatprep.subr.mxu0 0.0
  %10390 = vmatpush1.msra.mxu0 0.0
  %10391 = vmatprep.subr.mxu0 0.0
  %10392 = vmatpush1.msra.mxu0 0.0
  %10393 = vmatprep.subr.mxu0 0.0
  %10394 = vmatpush1.msra.mxu0 0.0
  %10395 = vmatprep.subr.mxu0 0.0
  %10396 = vmatpush1.msra.mxu0 0.0
  %10397 = vmatprep.subr.mxu0 0.0
  %10398 = vmatpush1.msra.mxu0 0.0
  %10399 = vmatprep.subr.mxu0 0.0
  %10400 = vmatpush1.msra.mxu0 0.0
  %10401 = vmatprep.subr.mxu0 0.0
  %10402 = vmatpush1.msra.mxu0 0.0
  %10403 = vmatprep.subr.mxu0 0.0
  %10404 = vmatpush1.msra.mxu0 0.0
  %10405 = vmatprep.subr.mxu0 0.0
  %10406 = vmatpush1.msra.mxu0 0.0
  %10407 = vmatprep.subr.mxu0 0.0
  %10408 = vmatpush1.msra.mxu0 0.0
  %10409 = vmatprep.subr.mxu0 0.0
  %10410 = vmatpush1.msra.mxu0 0.0
  %10411 = vmatprep.subr.mxu0 0.0
  %10412 = vmatpush1.msra.mxu0 0.0
  %10413 = vmatprep.subr.mxu0 0.0
  %10414 = vmatpush1.msra.mxu0 0.0
  %10415 = vmatprep.subr.mxu0 0.0
  %10416 = vmatpush1.msra.mxu0 0.0
  %10417 = vmatprep.subr.mxu0 0.0
  %10418 = vmatpush1.msra.mxu0 0.0
  %10419 = vmatprep.subr.mxu0 0.0
  %10420 = vmatpush1.msra.mxu0 0.0
  %10421 = vmatprep.subr.mxu0 0.0
  %10422 = vmatpush1.msra.mxu0 0.0
  %10423 = vmatprep.subr.mxu0 0.0
  %10424 = vmatpush1.msra.mxu0 0.0
  %10425 = vmatprep.subr.mxu0 0.0
  %10426 = vmatpush1.msra.mxu0 0.0
  %10427 = vmatprep.subr.mxu0 0.0
  %10428 = vmatpush1.msra.mxu0 0.0
  %10429 = vmatprep.subr.mxu0 0.0
  %10430 = vmatpush1.msra.mxu0 0.0
  %10431 = vmatprep.subr.mxu0 0.0
  %10432 = vmatpush1.msra.mxu0 0.0
  %10433 = vmatprep.subr.mxu0 0.0
  %10434 = vmatpush1.msra.mxu0 0.0
  %10435 = vmatprep.subr.mxu0 0.0
  %10436 = vmatpush1.msra.mxu0 0.0
  %10437 = vmatprep.subr.mxu0 0.0
  %10438 = vmatpush1.msra.mxu0 0.0
  %10439 = vmatprep.mubr.f32.mxu0 0.0
  %10440 = vmatmul.mubr.f32.gmra.mrb[0].mxu0 %v686
  %v10441 = vpop.f32.mrb[0].mxu0
  %v10442 = vadd.f32 0.0, %v10441
  %v10443 = vpop.f32.mrb[0].mxu0
  %10444 = vmatprep.mubr.f32.mxu0 0.0
  %10445 = vmatmul.mubr.f32.gmra.mrb[0].mxu0 %v689
  %v10446 = vpop.f32.mrb[0].mxu0
  %v10447 = vadd.f32 0.0, %v10446
  %v10448 = vpop.f32.mrb[0].mxu0
  %10449 = vmatprep.mubr.f32.mxu0 0.0
  %10450 = vmatmul.mubr.f32.gmra.mrb[0].mxu0 %v692
  %v10451 = vpop.f32.mrb[0].mxu0
  %v10452 = vadd.f32 0.0, %v10451
  %v10453 = vpop.f32.mrb[0].mxu0
  %10454 = vmatprep.mubr.f32.mxu0 0.0
  %10455 = vmatmul.mubr.f32.gmra.mrb[0].mxu0 %v695
  %v10456 = vpop.f32.mrb[0].mxu0
  %v10457 = vadd.f32 0.0, %v10456
  %v10458 = vpop.f32.mrb[0].mxu0
  %10459 = vmatprep.mubr.f32.mxu0 0.0
  %10460 = vmatmul.mubr.f32.gmra.mrb[0].mxu0 %v698
  %v10461 = vpop.f32.mrb[0].mxu0
  %v10462 = vadd.f32 0.0, %v10461
  %v10463 = vpop.f32.mrb[0].mxu0
  %10464 = vmatprep.mubr.f32.mxu0 0.0
  %10465 = vmatmul.mubr.f32.gmra.mrb[0].mxu0 %v701
  %v10466 = vpop.f32.mrb[0].mxu0
  %v10467 = vadd.f32 0.0, %v10466
  %v10468 = vpop.f32.mrb[0].mxu0
  %10469 = vmatprep.mubr.f32.mxu0 0.0
  %10470 = vmatmul.mubr.f32.gmra.mrb[0].mxu0 %v704
  %v10471 = vpop.f32.mrb[0].mxu0
  %v10472 = vadd.f32 0.0, %v10471
  %v10473 = vpop.f32.mrb[0].mxu0
  %10474 = vmatprep.mubr.f32.mxu0 0.0
  %10475 = vmatmul.mubr.f32.gmra.mrb[0].mxu0 %v707
  %v10476 = vpop.f32.mrb[0].mxu0
  %v10477 = vadd.f32 0.0, %v10476
  %v10478 = vpop.f32.mrb[0].mxu0
  %10479 = vmatprep.mubr.f32.mxu0 0.0
  %10480 = vmatmul.mubr.f32.gmra.mrb[0].mxu0 %v710
  %v10481 = vpop.f32.mrb[0].mxu0
  %v10482 = vadd.f32 0.0, %v10481
  %v10483 = vpop.f32.mrb[0].mxu0
  %10484 = vmatprep.mubr.f32.mxu0 0.0
  %10485 = vmatmul.mubr.f32.gmra.mrb[0].mxu0 %v713
  %v10486 = vpop.f32.mrb[0].mxu0
  %v10487 = vadd.f32 0.0, %v10486
  %v10488 = vpop.f32.mrb[0].mxu0
  %10489 = vmatprep.mubr.f32.mxu0 0.0
  %10490 = vmatmul.mubr.f32.gmra.mrb[0].mxu0 %v716
  %v10491 = vpop.f32.mrb[0].mxu0
  %v10492 = vadd.f32 0.0, %v10491
  %v10493 = vpop.f32.mrb[0].mxu0
  %10494 = vmatprep.mubr.f32.mxu0 0.0
  %10495 = vmatmul.mubr.f32.gmra.mrb[0].mxu0 %v719
  %v10496 = vpop.f32.mrb[0].mxu0
  %v10497 = vadd.f32 0.0, %v10496
  %v10498 = vpop.f32.mrb[0].mxu0
  %10499 = vmatprep.mubr.f32.mxu0 0.0
  %10500 = vmatmul.mubr.f32.gmra.mrb[0].mxu0 %v722
  %v10501 = vpop.f32.mrb[0].mxu0
  %v10502 = vadd.f32 0.0, %v10501
  %v10503 = vpop.f32.mrb[0].mxu0
  %10504 = vmatprep.mubr.f32.mxu0 0.0
  %10505 = vmatmul.mubr.f32.gmra.mrb[0].mxu0 %v725
  %v10506 = vpop.f32.mrb[0].mxu0
  %v10507 = vadd.f32 0.0, %v10506
  %v10508 = vpop.f32.mrb[0].mxu0
  %10509 = vmatprep.mubr.f32.mxu0 0.0
  %10510 = vmatmul.mubr.f32.gmra.mrb[0].mxu0 %v728
  %v10511 = vpop.f32.mrb[0].mxu0
  %v10512 = vadd.f32 0.0, %v10511
  %v10513 = vpop.f32.mrb[0].mxu0
  %10514 = vmatprep.mubr.f32.mxu0 0.0
  %10515 = vmatmul.mubr.f32.gmra.mrb[0].mxu0 %v731
  %v10516 = vpop.f32.mrb[0].mxu0
  %v10517 = vadd.f32 0.0, %v10516
  %v10518 = vpop.f32.mrb[0].mxu0
  %10519 = vmatprep.mubr.f32.mxu0 0.0
  %10520 = vmatmul.mubr.f32.gmra.mrb[0].mxu0 %v734
  %v10521 = vpop.f32.mrb[0].mxu0
  %v10522 = vadd.f32 0.0, %v10521
  %v10523 = vpop.f32.mrb[0].mxu0
  %10524 = vmatprep.mubr.f32.mxu0 0.0
  %10525 = vmatmul.mubr.f32.gmra.mrb[0].mxu0 %v737
  %v10526 = vpop.f32.mrb[0].mxu0
  %v10527 = vadd.f32 0.0, %v10526
  %v10528 = vpop.f32.mrb[0].mxu0
  %10529 = vmatprep.mubr.f32.mxu0 0.0
  %10530 = vmatmul.mubr.f32.gmra.mrb[0].mxu0 %v740
  %v10531 = vpop.f32.mrb[0].mxu0
  %v10532 = vadd.f32 0.0, %v10531
  %v10533 = vpop.f32.mrb[0].mxu0
  %10534 = vmatprep.mubr.f32.mxu0 0.0
  %10535 = vmatmul.mubr.f32.gmra.mrb[0].mxu0 %v743
  %v10536 = vpop.f32.mrb[0].mxu0
  %v10537 = vadd.f32 0.0, %v10536
  %v10538 = vpop.f32.mrb[0].mxu0
  %10539 = vmatprep.mubr.f32.mxu0 0.0
  %10540 = vmatmul.mubr.f32.gmra.mrb[0].mxu0 %v746
  %v10541 = vpop.f32.mrb[0].mxu0
  %v10542 = vadd.f32 0.0, %v10541
  %v10543 = vpop.f32.mrb[0].mxu0
  %10544 = vmatprep.mubr.f32.mxu0 0.0
  %10545 = vmatmul.mubr.f32.gmra.mrb[0].mxu0 %v749
  %v10546 = vpop.f32.mrb[0].mxu0
  %v10547 = vadd.f32 0.0, %v10546
  %v10548 = vpop.f32.mrb[0].mxu0
  %10549 = vmatprep.mubr.f32.mxu0 0.0
  %10550 = vmatmul.mubr.f32.gmra.mrb[0].mxu0 %v752
  %v10551 = vpop.f32.mrb[0].mxu0
  %v10552 = vadd.f32 0.0, %v10551
  %v10553 = vpop.f32.mrb[0].mxu0
  %10554 = vmatprep.mubr.f32.mxu0 0.0
  %10555 = vmatmul.mubr.f32.gmra.mrb[0].mxu0 %v755
  %v10556 = vpop.f32.mrb[0].mxu0
  %v10557 = vadd.f32 0.0, %v10556
  %v10558 = vpop.f32.mrb[0].mxu0
  %10559 = vmatprep.mubr.f32.mxu0 0.0
  %10560 = vmatmul.mubr.f32.gmra.mrb[0].mxu0 %v758
  %v10561 = vpop.f32.mrb[0].mxu0
  %v10562 = vadd.f32 0.0, %v10561
  %v10563 = vpop.f32.mrb[0].mxu0
  %10564 = vmatprep.mubr.f32.mxu0 0.0
  %10565 = vmatmul.mubr.f32.gmra.mrb[0].mxu0 %v761
  %v10566 = vpop.f32.mrb[0].mxu0
  %v10567 = vadd.f32 0.0, %v10566
  %v10568 = vpop.f32.mrb[0].mxu0
  %10569 = vmatprep.mubr.f32.mxu0 0.0
  %10570 = vmatmul.mubr.f32.gmra.mrb[0].mxu0 %v764
  %v10571 = vpop.f32.mrb[0].mxu0
  %v10572 = vadd.f32 0.0, %v10571
  %v10573 = vpop.f32.mrb[0].mxu0
  %10574 = vmatprep.mubr.f32.mxu0 0.0
  %10575 = vmatmul.mubr.f32.gmra.mrb[0].mxu0 %v767
  %v10576 = vpop.f32.mrb[0].mxu0
  %v10577 = vadd.f32 0.0, %v10576
  %v10578 = vpop.f32.mrb[0].mxu0
  %10579 = vdwg.mxu0
  %v10580 = vmul.f32 %v10442, %v10442
  %v10581 = vmul.f32 %v10447, %v10447
  %v10582 = vmul.f32 %v10452, %v10452
  %v10583 = vmul.f32 %v10457, %v10457
  %v10584 = vmul.f32 %v10462, %v10462
  %v10585 = vmul.f32 %v10467, %v10467
  %v10586 = vmul.f32 %v10472, %v10472
  %v10587 = vmul.f32 %v10477, %v10477
  %v10588 = vmul.f32 %v10482, %v10482
  %v10589 = vmul.f32 %v10487, %v10487
  %v10590 = vmul.f32 %v10492, %v10492
  %v10591 = vmul.f32 %v10497, %v10497
  %v10592 = vmul.f32 %v10502, %v10502
  %v10593 = vmul.f32 %v10507, %v10507
  %v10594 = vmul.f32 %v10512, %v10512
  %v10595 = vmul.f32 %v10517, %v10517
  %v10596 = vmul.f32 %v10522, %v10522
  %v10597 = vmul.f32 %v10527, %v10527
  %v10598 = vmul.f32 %v10532, %v10532
  %v10599 = vmul.f32 %v10537, %v10537
  %v10600 = vmul.f32 %v10542, %v10542
  %v10601 = vmul.f32 %v10547, %v10547
  %v10602 = vmul.f32 %v10552, %v10552
  %v10603 = vmul.f32 %v10557, %v10557
  %v10604 = vmul.f32 %v10562, %v10562
  %v10605 = vmul.f32 %v10567, %v10567
  %v10606 = vmul.f32 %v10572, %v10572
  %v10607 = vmul.f32 %v10577, %v10577
  %v10608 = vsel %vm1002, %v10580, 0.0
  %10609 = vadd.xlane.f32.xlu0 %v10608
  %v10610 = vpop.xlane.xlu0 %10609
  %v10611 = vsel %vm1002, %v10581, 0.0
  %10612 = vadd.xlane.f32.xlu0 %v10611
  %v10613 = vpop.xlane.xlu0 %10612
  %v10614 = vsel %vm1002, %v10582, 0.0
  %10615 = vadd.xlane.f32.xlu0 %v10614
  %v10616 = vpop.xlane.xlu0 %10615
  %v10617 = vsel %vm1002, %v10583, 0.0
  %10618 = vadd.xlane.f32.xlu0 %v10617
  %v10619 = vpop.xlane.xlu0 %10618
  %v10620 = vsel %vm1002, %v10584, 0.0
  %10621 = vadd.xlane.f32.xlu0 %v10620
  %v10622 = vpop.xlane.xlu0 %10621
  %v10623 = vsel %vm1002, %v10585, 0.0
  %10624 = vadd.xlane.f32.xlu0 %v10623
  %v10625 = vpop.xlane.xlu0 %10624
  %v10626 = vsel %vm1002, %v10586, 0.0
  %10627 = vadd.xlane.f32.xlu0 %v10626
  %v10628 = vpop.xlane.xlu0 %10627
  %v10629 = vsel %vm1002, %v10587, 0.0
  %10630 = vadd.xlane.f32.xlu0 %v10629
  %v10631 = vpop.xlane.xlu0 %10630
  %v10632 = vsel %vm1002, %v10588, 0.0
  %10633 = vadd.xlane.f32.xlu0 %v10632
  %v10634 = vpop.xlane.xlu0 %10633
  %v10635 = vsel %vm1002, %v10589, 0.0
  %10636 = vadd.xlane.f32.xlu0 %v10635
  %v10637 = vpop.xlane.xlu0 %10636
  %v10638 = vsel %vm1002, %v10590, 0.0
  %10639 = vadd.xlane.f32.xlu0 %v10638
  %v10640 = vpop.xlane.xlu0 %10639
  %v10641 = vsel %vm1002, %v10591, 0.0
  %10642 = vadd.xlane.f32.xlu0 %v10641
  %v10643 = vpop.xlane.xlu0 %10642
  %v10644 = vsel %vm1002, %v10592, 0.0
  %10645 = vadd.xlane.f32.xlu0 %v10644
  %v10646 = vpop.xlane.xlu0 %10645
  %v10647 = vsel %vm1002, %v10593, 0.0
  %10648 = vadd.xlane.f32.xlu0 %v10647
  %v10649 = vpop.xlane.xlu0 %10648
  %v10650 = vsel %vm1002, %v10594, 0.0
  %10651 = vadd.xlane.f32.xlu0 %v10650
  %v10652 = vpop.xlane.xlu0 %10651
  %v10653 = vsel %vm1002, %v10595, 0.0
  %10654 = vadd.xlane.f32.xlu0 %v10653
  %v10655 = vpop.xlane.xlu0 %10654
  %v10656 = vsel %vm1002, %v10596, 0.0
  %10657 = vadd.xlane.f32.xlu0 %v10656
  %v10658 = vpop.xlane.xlu0 %10657
  %v10659 = vsel %vm1002, %v10597, 0.0
  %10660 = vadd.xlane.f32.xlu0 %v10659
  %v10661 = vpop.xlane.xlu0 %10660
  %v10662 = vsel %vm1002, %v10598, 0.0
  %10663 = vadd.xlane.f32.xlu0 %v10662
  %v10664 = vpop.xlane.xlu0 %10663
  %v10665 = vsel %vm1002, %v10599, 0.0
  %10666 = vadd.xlane.f32.xlu0 %v10665
  %v10667 = vpop.xlane.xlu0 %10666
  %v10668 = vsel %vm1002, %v10600, 0.0
  %10669 = vadd.xlane.f32.xlu0 %v10668
  %v10670 = vpop.xlane.xlu0 %10669
  %v10671 = vsel %vm1002, %v10601, 0.0
  %10672 = vadd.xlane.f32.xlu0 %v10671
  %v10673 = vpop.xlane.xlu0 %10672
  %v10674 = vsel %vm1002, %v10602, 0.0
  %10675 = vadd.xlane.f32.xlu0 %v10674
  %v10676 = vpop.xlane.xlu0 %10675
  %v10677 = vsel %vm1002, %v10603, 0.0
  %10678 = vadd.xlane.f32.xlu0 %v10677
  %v10679 = vpop.xlane.xlu0 %10678
  %v10680 = vsel %vm1002, %v10604, 0.0
  %10681 = vadd.xlane.f32.xlu0 %v10680
  %v10682 = vpop.xlane.xlu0 %10681
  %v10683 = vsel %vm1002, %v10605, 0.0
  %10684 = vadd.xlane.f32.xlu0 %v10683
  %v10685 = vpop.xlane.xlu0 %10684
  %v10686 = vsel %vm1002, %v10606, 0.0
  %10687 = vadd.xlane.f32.xlu0 %v10686
  %v10688 = vpop.xlane.xlu0 %10687
  %v10689 = vsel %vm1002, %v10607, 0.0
  %10690 = vadd.xlane.f32.xlu0 %v10689
  %v10691 = vpop.xlane.xlu0 %10690
  %s10692 = scalar_lea.vmem %s11, 12
  %v10693 = vld [vmem:[%s10692] sm:$0x7]
  %10698 = vrot.lane.b32.xlu0 %v10341, 96
  %v10699 = vpop.permute.xlu0 %10698
  %10700 = vrot.lane.b32.xlu0 %v10346, 96
  %v10701 = vpop.permute.xlu0 %10700
  %10702 = vrot.lane.b32.xlu0 %v10351, 96
  %v10703 = vpop.permute.xlu0 %10702
  %10704 = vrot.lane.b32.xlu0 %v10356, 96
  %v10705 = vpop.permute.xlu0 %10704
  %v10707 = vrot.slane %v10693, 1
  %10708 = vrot.lane.b32.xlu0 %v10707, 64
  %v10709 = vpop.permute.xlu0 %10708
  %v10710 = vlaneseq
  %v10711 = vshrl.u32 %v10710, 7
  %v10712 = vsub.s32 0, %v10711
  %v10713 = vrot.slane %v10693, %v10712
  %v10714 = vmul.f32 %v10610, %v10713
  %v10715 = vmul.f32 %v10613, %v10713
  %v10716 = vmul.f32 %v10616, %v10713
  %v10717 = vmul.f32 %v10619, %v10713
  %v10718 = vmul.f32 %v10622, %v10713
  %v10719 = vmul.f32 %v10625, %v10713
  %v10720 = vmul.f32 %v10628, %v10713
  %v10721 = vmul.f32 %v10631, %v10713
  %v10722 = vmul.f32 %v10634, %v10713
  %v10723 = vmul.f32 %v10637, %v10713
  %v10724 = vmul.f32 %v10640, %v10713
  %v10725 = vmul.f32 %v10643, %v10713
  %v10726 = vmul.f32 %v10646, %v10713
  %v10727 = vmul.f32 %v10649, %v10713
  %v10728 = vmul.f32 %v10652, %v10713
  %v10729 = vmul.f32 %v10655, %v10713
  %v10730 = vmul.f32 %v10658, %v10713
  %v10731 = vmul.f32 %v10661, %v10713
  %v10732 = vmul.f32 %v10664, %v10713
  %v10733 = vmul.f32 %v10667, %v10713
  %v10734 = vmul.f32 %v10670, %v10713
  %v10735 = vmul.f32 %v10673, %v10713
  %v10736 = vmul.f32 %v10676, %v10713
  %v10737 = vmul.f32 %v10679, %v10713
  %v10738 = vmul.f32 %v10682, %v10713
  %v10739 = vmul.f32 %v10685, %v10713
  %v10740 = vmul.f32 %v10688, %v10713
  %v10741 = vmul.f32 %v10691, %v10713
  %10742 = vrot.lane.b32.xlu0 %v10341, 64
  %v10743 = vpop.permute.xlu0 %10742
  %10744 = vrot.lane.b32.xlu0 %v10346, 64
  %v10745 = vpop.permute.xlu0 %10744
  %10746 = vrot.lane.b32.xlu0 %v10351, 64
  %v10747 = vpop.permute.xlu0 %10746
  %10748 = vrot.lane.b32.xlu0 %v10356, 64
  %v10749 = vpop.permute.xlu0 %10748
  %10750 = vrot.lane.b32.xlu0 %v10699, 64
  %v10751 = vpop.permute.xlu0 %10750
  %10752 = vrot.lane.b32.xlu0 %v10701, 64
  %v10753 = vpop.permute.xlu0 %10752
  %10754 = vrot.lane.b32.xlu0 %v10703, 64
  %v10755 = vpop.permute.xlu0 %10754
  %10756 = vrot.lane.b32.xlu0 %v10705, 64
  %v10757 = vpop.permute.xlu0 %10756
  %10758 = vrot.lane.b32.xlu0 %v10709, 64
  %v10759 = vpop.permute.xlu0 %10758
  %v10768 = vsel %vm1247, %v10759, 0
  %10770 = vmatprep.subr.mxu0 0.0
  %10771 = vmatpush1.msra.mxu0 %v10743
  %10772 = vmatprep.subr.mxu0 0.0
  %10773 = vmatpush1.msra.mxu0 %v10745
  %10774 = vmatprep.subr.mxu0 0.0
  %10775 = vmatpush1.msra.mxu0 %v10747
  %10776 = vmatprep.subr.mxu0 0.0
  %10777 = vmatpush1.msra.mxu0 %v10749
  %10778 = vmatprep.subr.mxu0 0.0
  %10779 = vmatpush1.msra.mxu0 %v10751
  %10780 = vmatprep.subr.mxu0 0.0
  %10781 = vmatpush1.msra.mxu0 %v10753
  %10782 = vmatprep.subr.mxu0 0.0
  %10783 = vmatpush1.msra.mxu0 %v10755
  %10784 = vmatprep.subr.mxu0 0.0
  %10785 = vmatpush1.msra.mxu0 %v10757
  %10786 = vmatprep.subr.mxu0 0.0
  %10787 = vmatpush1.msra.mxu0 %v10768
  %10788 = vmatprep.subr.mxu0 0.0
  %10789 = vmatpush1.msra.mxu0 0.0
  %10790 = vmatprep.subr.mxu0 0.0
  %10791 = vmatpush1.msra.mxu0 0.0
  %10792 = vmatprep.subr.mxu0 0.0
  %10793 = vmatpush1.msra.mxu0 0.0
  %10794 = vmatprep.subr.mxu0 0.0
  %10795 = vmatpush1.msra.mxu0 0.0
  %10796 = vmatprep.subr.mxu0 0.0
  %10797 = vmatpush1.msra.mxu0 0.0
  %10798 = vmatprep.subr.mxu0 0.0
  %10799 = vmatpush1.msra.mxu0 0.0
  %10800 = vmatprep.subr.mxu0 0.0
  %10801 = vmatpush1.msra.mxu0 0.0
  %10802 = vmatprep.subr.mxu0 0.0
  %10803 = vmatpush1.msra.mxu0 0.0
  %10804 = vmatprep.subr.mxu0 0.0
  %10805 = vmatpush1.msra.mxu0 0.0
  %10806 = vmatprep.subr.mxu0 0.0
  %10807 = vmatpush1.msra.mxu0 0.0
  %10808 = vmatprep.subr.mxu0 0.0
  %10809 = vmatpush1.msra.mxu0 0.0
  %10810 = vmatprep.subr.mxu0 0.0
  %10811 = vmatpush1.msra.mxu0 0.0
  %10812 = vmatprep.subr.mxu0 0.0
  %10813 = vmatpush1.msra.mxu0 0.0
  %10814 = vmatprep.subr.mxu0 0.0
  %10815 = vmatpush1.msra.mxu0 0.0
  %10816 = vmatprep.subr.mxu0 0.0
  %10817 = vmatpush1.msra.mxu0 0.0
  %10818 = vmatprep.subr.mxu0 0.0
  %10819 = vmatpush1.msra.mxu0 0.0
  %10820 = vmatprep.subr.mxu0 0.0
  %10821 = vmatpush1.msra.mxu0 0.0
  %10822 = vmatprep.subr.mxu0 0.0
  %10823 = vmatpush1.msra.mxu0 0.0
  %10824 = vmatprep.subr.mxu0 0.0
  %10825 = vmatpush1.msra.mxu0 0.0
  %10826 = vmatprep.subr.mxu0 0.0
  %10827 = vmatpush1.msra.mxu0 0.0
  %10828 = vmatprep.subr.mxu0 0.0
  %10829 = vmatpush1.msra.mxu0 0.0
  %10830 = vmatprep.subr.mxu0 0.0
  %10831 = vmatpush1.msra.mxu0 0.0
  %10832 = vmatprep.subr.mxu0 0.0
  %10833 = vmatpush1.msra.mxu0 0.0
  %10834 = vmatprep.mubr.f32.mxu0 0.0
  %10835 = vmatmul.mubr.f32.gmra.mrb[0].mxu0 %v1164
  %v10836 = vpop.f32.mrb[0].mxu0
  %v10837 = vadd.f32 %v10714, %v10836
  %v10838 = vpop.f32.mrb[0].mxu0
  %10839 = vmatprep.mubr.f32.mxu0 0.0
  %10840 = vmatmul.mubr.f32.gmra.mrb[0].mxu0 %v1167
  %v10841 = vpop.f32.mrb[0].mxu0
  %v10842 = vadd.f32 %v10715, %v10841
  %v10843 = vpop.f32.mrb[0].mxu0
  %10844 = vmatprep.mubr.f32.mxu0 0.0
  %10845 = vmatmul.mubr.f32.gmra.mrb[0].mxu0 %v1170
  %v10846 = vpop.f32.mrb[0].mxu0
  %v10847 = vadd.f32 %v10716, %v10846
  %v10848 = vpop.f32.mrb[0].mxu0
  %10849 = vmatprep.mubr.f32.mxu0 0.0
  %10850 = vmatmul.mubr.f32.gmra.mrb[0].mxu0 %v1173
  %v10851 = vpop.f32.mrb[0].mxu0
  %v10852 = vadd.f32 %v10717, %v10851
  %v10853 = vpop.f32.mrb[0].mxu0
  %10854 = vmatprep.mubr.f32.mxu0 0.0
  %10855 = vmatmul.mubr.f32.gmra.mrb[0].mxu0 %v1176
  %v10856 = vpop.f32.mrb[0].mxu0
  %v10857 = vadd.f32 %v10718, %v10856
  %v10858 = vpop.f32.mrb[0].mxu0
  %10859 = vmatprep.mubr.f32.mxu0 0.0
  %10860 = vmatmul.mubr.f32.gmra.mrb[0].mxu0 %v1179
  %v10861 = vpop.f32.mrb[0].mxu0
  %v10862 = vadd.f32 %v10719, %v10861
  %v10863 = vpop.f32.mrb[0].mxu0
  %10864 = vmatprep.mubr.f32.mxu0 0.0
  %10865 = vmatmul.mubr.f32.gmra.mrb[0].mxu0 %v1182
  %v10866 = vpop.f32.mrb[0].mxu0
  %v10867 = vadd.f32 %v10720, %v10866
  %v10868 = vpop.f32.mrb[0].mxu0
  %10869 = vmatprep.mubr.f32.mxu0 0.0
  %10870 = vmatmul.mubr.f32.gmra.mrb[0].mxu0 %v1185
  %v10871 = vpop.f32.mrb[0].mxu0
  %v10872 = vadd.f32 %v10721, %v10871
  %v10873 = vpop.f32.mrb[0].mxu0
  %10874 = vmatprep.mubr.f32.mxu0 0.0
  %10875 = vmatmul.mubr.f32.gmra.mrb[0].mxu0 %v1188
  %v10876 = vpop.f32.mrb[0].mxu0
  %v10877 = vadd.f32 %v10722, %v10876
  %v10878 = vpop.f32.mrb[0].mxu0
  %10879 = vmatprep.mubr.f32.mxu0 0.0
  %10880 = vmatmul.mubr.f32.gmra.mrb[0].mxu0 %v1191
  %v10881 = vpop.f32.mrb[0].mxu0
  %v10882 = vadd.f32 %v10723, %v10881
  %v10883 = vpop.f32.mrb[0].mxu0
  %10884 = vmatprep.mubr.f32.mxu0 0.0
  %10885 = vmatmul.mubr.f32.gmra.mrb[0].mxu0 %v1194
  %v10886 = vpop.f32.mrb[0].mxu0
  %v10887 = vadd.f32 %v10724, %v10886
  %v10888 = vpop.f32.mrb[0].mxu0
  %10889 = vmatprep.mubr.f32.mxu0 0.0
  %10890 = vmatmul.mubr.f32.gmra.mrb[0].mxu0 %v1197
  %v10891 = vpop.f32.mrb[0].mxu0
  %v10892 = vadd.f32 %v10725, %v10891
  %v10893 = vpop.f32.mrb[0].mxu0
  %10894 = vmatprep.mubr.f32.mxu0 0.0
  %10895 = vmatmul.mubr.f32.gmra.mrb[0].mxu0 %v1200
  %v10896 = vpop.f32.mrb[0].mxu0
  %v10897 = vadd.f32 %v10726, %v10896
  %v10898 = vpop.f32.mrb[0].mxu0
  %10899 = vmatprep.mubr.f32.mxu0 0.0
  %10900 = vmatmul.mubr.f32.gmra.mrb[0].mxu0 %v1203
  %v10901 = vpop.f32.mrb[0].mxu0
  %v10902 = vadd.f32 %v10727, %v10901
  %v10903 = vpop.f32.mrb[0].mxu0
  %10904 = vmatprep.mubr.f32.mxu0 0.0
  %10905 = vmatmul.mubr.f32.gmra.mrb[0].mxu0 %v1206
  %v10906 = vpop.f32.mrb[0].mxu0
  %v10907 = vadd.f32 %v10728, %v10906
  %v10908 = vpop.f32.mrb[0].mxu0
  %10909 = vmatprep.mubr.f32.mxu0 0.0
  %10910 = vmatmul.mubr.f32.gmra.mrb[0].mxu0 %v1209
  %v10911 = vpop.f32.mrb[0].mxu0
  %v10912 = vadd.f32 %v10729, %v10911
  %v10913 = vpop.f32.mrb[0].mxu0
  %10914 = vmatprep.mubr.f32.mxu0 0.0
  %10915 = vmatmul.mubr.f32.gmra.mrb[0].mxu0 %v1212
  %v10916 = vpop.f32.mrb[0].mxu0
  %v10917 = vadd.f32 %v10730, %v10916
  %v10918 = vpop.f32.mrb[0].mxu0
  %10919 = vmatprep.mubr.f32.mxu0 0.0
  %10920 = vmatmul.mubr.f32.gmra.mrb[0].mxu0 %v1215
  %v10921 = vpop.f32.mrb[0].mxu0
  %v10922 = vadd.f32 %v10731, %v10921
  %v10923 = vpop.f32.mrb[0].mxu0
  %10924 = vmatprep.mubr.f32.mxu0 0.0
  %10925 = vmatmul.mubr.f32.gmra.mrb[0].mxu0 %v1218
  %v10926 = vpop.f32.mrb[0].mxu0
  %v10927 = vadd.f32 %v10732, %v10926
  %v10928 = vpop.f32.mrb[0].mxu0
  %10929 = vmatprep.mubr.f32.mxu0 0.0
  %10930 = vmatmul.mubr.f32.gmra.mrb[0].mxu0 %v1221
  %v10931 = vpop.f32.mrb[0].mxu0
  %v10932 = vadd.f32 %v10733, %v10931
  %v10933 = vpop.f32.mrb[0].mxu0
  %10934 = vmatprep.mubr.f32.mxu0 0.0
  %10935 = vmatmul.mubr.f32.gmra.mrb[0].mxu0 %v1224
  %v10936 = vpop.f32.mrb[0].mxu0
  %v10937 = vadd.f32 %v10734, %v10936
  %v10938 = vpop.f32.mrb[0].mxu0
  %10939 = vmatprep.mubr.f32.mxu0 0.0
  %10940 = vmatmul.mubr.f32.gmra.mrb[0].mxu0 %v1227
  %v10941 = vpop.f32.mrb[0].mxu0
  %v10942 = vadd.f32 %v10735, %v10941
  %v10943 = vpop.f32.mrb[0].mxu0
  %10944 = vmatprep.mubr.f32.mxu0 0.0
  %10945 = vmatmul.mubr.f32.gmra.mrb[0].mxu0 %v1230
  %v10946 = vpop.f32.mrb[0].mxu0
  %v10947 = vadd.f32 %v10736, %v10946
  %v10948 = vpop.f32.mrb[0].mxu0
  %10949 = vmatprep.mubr.f32.mxu0 0.0
  %10950 = vmatmul.mubr.f32.gmra.mrb[0].mxu0 %v1233
  %v10951 = vpop.f32.mrb[0].mxu0
  %v10952 = vadd.f32 %v10737, %v10951
  %v10953 = vpop.f32.mrb[0].mxu0
  %10954 = vmatprep.mubr.f32.mxu0 0.0
  %10955 = vmatmul.mubr.f32.gmra.mrb[0].mxu0 %v1236
  %v10956 = vpop.f32.mrb[0].mxu0
  %v10957 = vadd.f32 %v10738, %v10956
  %v10958 = vpop.f32.mrb[0].mxu0
  %10959 = vmatprep.mubr.f32.mxu0 0.0
  %10960 = vmatmul.mubr.f32.gmra.mrb[0].mxu0 %v1239
  %v10961 = vpop.f32.mrb[0].mxu0
  %v10962 = vadd.f32 %v10739, %v10961
  %v10963 = vpop.f32.mrb[0].mxu0
  %10964 = vmatprep.mubr.f32.mxu0 0.0
  %10965 = vmatmul.mubr.f32.gmra.mrb[0].mxu0 %v1242
  %v10966 = vpop.f32.mrb[0].mxu0
  %v10967 = vadd.f32 %v10740, %v10966
  %v10968 = vpop.f32.mrb[0].mxu0
  %10969 = vmatprep.mubr.f32.mxu0 0.0
  %10970 = vmatmul.mubr.f32.gmra.mrb[0].mxu0 %v1245
  %v10971 = vpop.f32.mrb[0].mxu0
  %v10972 = vadd.f32 %v10741, %v10971
  %v10973 = vpop.f32.mrb[0].mxu0
  %10974 = vdwg.mxu0
  %v10975 = vxor.u32 %v10837, 2147483648
  %v10976 = vxor.u32 %v10842, 2147483648
  %v10977 = vxor.u32 %v10847, 2147483648
  %v10978 = vxor.u32 %v10852, 2147483648
  %v10979 = vxor.u32 %v10857, 2147483648
  %v10980 = vxor.u32 %v10862, 2147483648
  %v10981 = vxor.u32 %v10867, 2147483648
  %v10982 = vxor.u32 %v10872, 2147483648
  %v10983 = vxor.u32 %v10877, 2147483648
  %v10984 = vxor.u32 %v10882, 2147483648
  %v10985 = vxor.u32 %v10887, 2147483648
  %v10986 = vxor.u32 %v10892, 2147483648
  %v10987 = vxor.u32 %v10897, 2147483648
  %v10988 = vxor.u32 %v10902, 2147483648
  %v10989 = vxor.u32 %v10907, 2147483648
  %v10990 = vxor.u32 %v10912, 2147483648
  %v10991 = vxor.u32 %v10917, 2147483648
  %v10992 = vxor.u32 %v10922, 2147483648
  %v10993 = vxor.u32 %v10927, 2147483648
  %v10994 = vxor.u32 %v10932, 2147483648
  %v10995 = vxor.u32 %v10937, 2147483648
  %v10996 = vxor.u32 %v10942, 2147483648
  %v10997 = vxor.u32 %v10947, 2147483648
  %v10998 = vxor.u32 %v10952, 2147483648
  %v10999 = vxor.u32 %v10957, 2147483648
  %v11000 = vxor.u32 %v10962, 2147483648
  %v11001 = vxor.u32 %v10967, 2147483648
  %v11002 = vxor.u32 %v10972, 2147483648
  %v11003 = vmul.f32 %v10975, 1.442695
  %v11004 = vpow.pop %v11003
  %v11005 = vmul.f32 %v10976, 1.442695
  %v11006 = vpow.pop %v11005
  %v11007 = vmul.f32 %v10977, 1.442695
  %v11008 = vpow.pop %v11007
  %v11009 = vmul.f32 %v10978, 1.442695
  %v11010 = vpow.pop %v11009
  %v11011 = vmul.f32 %v10979, 1.442695
  %v11012 = vpow.pop %v11011
  %v11013 = vmul.f32 %v10980, 1.442695
  %v11014 = vpow.pop %v11013
  %v11015 = vmul.f32 %v10981, 1.442695
  %v11016 = vpow.pop %v11015
  %v11017 = vmul.f32 %v10982, 1.442695
  %v11018 = vpow.pop %v11017
  %v11019 = vmul.f32 %v10983, 1.442695
  %v11020 = vpow.pop %v11019
  %v11021 = vmul.f32 %v10984, 1.442695
  %v11022 = vpow.pop %v11021
  %v11023 = vmul.f32 %v10985, 1.442695
  %v11024 = vpow.pop %v11023
  %v11025 = vmul.f32 %v10986, 1.442695
  %v11026 = vpow.pop %v11025
  %v11027 = vmul.f32 %v10987, 1.442695
  %v11028 = vpow.pop %v11027
  %v11029 = vmul.f32 %v10988, 1.442695
  %v11030 = vpow.pop %v11029
  %v11031 = vmul.f32 %v10989, 1.442695
  %v11032 = vpow.pop %v11031
  %v11033 = vmul.f32 %v10990, 1.442695
  %v11034 = vpow.pop %v11033
  %v11035 = vmul.f32 %v10991, 1.442695
  %v11036 = vpow.pop %v11035
  %v11037 = vmul.f32 %v10992, 1.442695
  %v11038 = vpow.pop %v11037
  %v11039 = vmul.f32 %v10993, 1.442695
  %v11040 = vpow.pop %v11039
  %v11041 = vmul.f32 %v10994, 1.442695
  %v11042 = vpow.pop %v11041
  %v11043 = vmul.f32 %v10995, 1.442695
  %v11044 = vpow.pop %v11043
  %v11045 = vmul.f32 %v10996, 1.442695
  %v11046 = vpow.pop %v11045
  %v11047 = vmul.f32 %v10997, 1.442695
  %v11048 = vpow.pop %v11047
  %v11049 = vmul.f32 %v10998, 1.442695
  %v11050 = vpow.pop %v11049
  %v11051 = vmul.f32 %v10999, 1.442695
  %v11052 = vpow.pop %v11051
  %v11053 = vmul.f32 %v11000, 1.442695
  %v11054 = vpow.pop %v11053
  %v11055 = vmul.f32 %v11001, 1.442695
  %v11056 = vpow.pop %v11055
  %v11057 = vmul.f32 %v11002, 1.442695
  %v11058 = vpow.pop %v11057
  %v11059 = vadd.f32 %v11004, 1.0
  %v11060 = vadd.f32 %v11006, 1.0
  %v11061 = vadd.f32 %v11008, 1.0
  %v11062 = vadd.f32 %v11010, 1.0
  %v11063 = vadd.f32 %v11012, 1.0
  %v11064 = vadd.f32 %v11014, 1.0
  %v11065 = vadd.f32 %v11016, 1.0
  %v11066 = vadd.f32 %v11018, 1.0
  %v11067 = vadd.f32 %v11020, 1.0
  %v11068 = vadd.f32 %v11022, 1.0
  %v11069 = vadd.f32 %v11024, 1.0
  %v11070 = vadd.f32 %v11026, 1.0
  %v11071 = vadd.f32 %v11028, 1.0
  %v11072 = vadd.f32 %v11030, 1.0
  %v11073 = vadd.f32 %v11032, 1.0
  %v11074 = vadd.f32 %v11034, 1.0
  %v11075 = vadd.f32 %v11036, 1.0
  %v11076 = vadd.f32 %v11038, 1.0
  %v11077 = vadd.f32 %v11040, 1.0
  %v11078 = vadd.f32 %v11042, 1.0
  %v11079 = vadd.f32 %v11044, 1.0
  %v11080 = vadd.f32 %v11046, 1.0
  %v11081 = vadd.f32 %v11048, 1.0
  %v11082 = vadd.f32 %v11050, 1.0
  %v11083 = vadd.f32 %v11052, 1.0
  %v11084 = vadd.f32 %v11054, 1.0
  %v11085 = vadd.f32 %v11056, 1.0
  %v11086 = vadd.f32 %v11058, 1.0
  %v11087 = vrcp.pop %v11059
  %v11088 = vmul.f32 1.0, %v11087
  %v11089 = vrcp.pop %v11060
  %v11090 = vmul.f32 1.0, %v11089
  %v11091 = vrcp.pop %v11061
  %v11092 = vmul.f32 1.0, %v11091
  %v11093 = vrcp.pop %v11062
  %v11094 = vmul.f32 1.0, %v11093
  %v11095 = vrcp.pop %v11063
  %v11096 = vmul.f32 1.0, %v11095
  %v11097 = vrcp.pop %v11064
  %v11098 = vmul.f32 1.0, %v11097
  %v11099 = vrcp.pop %v11065
  %v11100 = vmul.f32 1.0, %v11099
  %v11101 = vrcp.pop %v11066
  %v11102 = vmul.f32 1.0, %v11101
  %v11103 = vrcp.pop %v11067
  %v11104 = vmul.f32 1.0, %v11103
  %v11105 = vrcp.pop %v11068
  %v11106 = vmul.f32 1.0, %v11105
  %v11107 = vrcp.pop %v11069
  %v11108 = vmul.f32 1.0, %v11107
  %v11109 = vrcp.pop %v11070
  %v11110 = vmul.f32 1.0, %v11109
  %v11111 = vrcp.pop %v11071
  %v11112 = vmul.f32 1.0, %v11111
  %v11113 = vrcp.pop %v11072
  %v11114 = vmul.f32 1.0, %v11113
  %v11115 = vrcp.pop %v11073
  %v11116 = vmul.f32 1.0, %v11115
  %v11117 = vrcp.pop %v11074
  %v11118 = vmul.f32 1.0, %v11117
  %v11119 = vrcp.pop %v11075
  %v11120 = vmul.f32 1.0, %v11119
  %v11121 = vrcp.pop %v11076
  %v11122 = vmul.f32 1.0, %v11121
  %v11123 = vrcp.pop %v11077
  %v11124 = vmul.f32 1.0, %v11123
  %v11125 = vrcp.pop %v11078
  %v11126 = vmul.f32 1.0, %v11125
  %v11127 = vrcp.pop %v11079
  %v11128 = vmul.f32 1.0, %v11127
  %v11129 = vrcp.pop %v11080
  %v11130 = vmul.f32 1.0, %v11129
  %v11131 = vrcp.pop %v11081
  %v11132 = vmul.f32 1.0, %v11131
  %v11133 = vrcp.pop %v11082
  %v11134 = vmul.f32 1.0, %v11133
  %v11135 = vrcp.pop %v11083
  %v11136 = vmul.f32 1.0, %v11135
  %v11137 = vrcp.pop %v11084
  %v11138 = vmul.f32 1.0, %v11137
  %v11139 = vrcp.pop %v11085
  %v11140 = vmul.f32 1.0, %v11139
  %v11141 = vrcp.pop %v11086
  %v11142 = vmul.f32 1.0, %v11141
  %v11143 = vmul.f32 %v10837, %v11088
  %v11144 = vmul.f32 %v10842, %v11090
  %v11145 = vmul.f32 %v10847, %v11092
  %v11146 = vmul.f32 %v10852, %v11094
  %v11147 = vmul.f32 %v10857, %v11096
  %v11148 = vmul.f32 %v10862, %v11098
  %v11149 = vmul.f32 %v10867, %v11100
  %v11150 = vmul.f32 %v10872, %v11102
  %v11151 = vmul.f32 %v10877, %v11104
  %v11152 = vmul.f32 %v10882, %v11106
  %v11153 = vmul.f32 %v10887, %v11108
  %v11154 = vmul.f32 %v10892, %v11110
  %v11155 = vmul.f32 %v10897, %v11112
  %v11156 = vmul.f32 %v10902, %v11114
  %v11157 = vmul.f32 %v10907, %v11116
  %v11158 = vmul.f32 %v10912, %v11118
  %v11159 = vmul.f32 %v10917, %v11120
  %v11160 = vmul.f32 %v10922, %v11122
  %v11161 = vmul.f32 %v10927, %v11124
  %v11162 = vmul.f32 %v10932, %v11126
  %v11163 = vmul.f32 %v10937, %v11128
  %v11164 = vmul.f32 %v10942, %v11130
  %v11165 = vmul.f32 %v10947, %v11132
  %v11166 = vmul.f32 %v10952, %v11134
  %v11167 = vmul.f32 %v10957, %v11136
  %v11168 = vmul.f32 %v10962, %v11138
  %v11169 = vmul.f32 %v10967, %v11140
  %v11170 = vmul.f32 %v10972, %v11142
  %s11171 = scalar_lea.vmem %s12, 96
  %v11172 = vld [vmem:[%s11171] sm:$0xff]
  %v11173 = vld [vmem:[%s11171 + $0x8] sm:$0xff]
  %v11174 = vld [vmem:[%s11171 + $0x10] sm:$0xff]
  %v11175 = vld [vmem:[%s11171 + $0x18] sm:$0xff]
  %s11176 = scalar_lea.vmem %s13, 3
  %v11177 = vld [vmem:[%s11176] sm:$0x1]
  %v11179 = vlaneseq
  %v11180 = vshrl.u32 %v11179, 7
  %v11181 = vsub.s32 0, %v11180
  %v11182 = vrot.slane %v11177, %v11181
  %v11185 = vsel %vm284, %v11143, 0
  %v11188 = vsel %vm284, %v11144, 0
  %v11191 = vsel %vm284, %v11145, 0
  %v11194 = vsel %vm284, %v11146, 0
  %v11197 = vsel %vm284, %v11147, 0
  %v11200 = vsel %vm284, %v11148, 0
  %v11203 = vsel %vm284, %v11149, 0
  %v11206 = vsel %vm284, %v11150, 0
  %v11209 = vsel %vm284, %v11151, 0
  %v11212 = vsel %vm284, %v11152, 0
  %v11215 = vsel %vm284, %v11153, 0
  %v11218 = vsel %vm284, %v11154, 0
  %v11221 = vsel %vm284, %v11155, 0
  %v11224 = vsel %vm284, %v11156, 0
  %v11227 = vsel %vm284, %v11157, 0
  %v11230 = vsel %vm284, %v11158, 0
  %v11233 = vsel %vm284, %v11159, 0
  %v11236 = vsel %vm284, %v11160, 0
  %v11239 = vsel %vm284, %v11161, 0
  %v11242 = vsel %vm284, %v11162, 0
  %v11245 = vsel %vm284, %v11163, 0
  %v11248 = vsel %vm284, %v11164, 0
  %v11251 = vsel %vm284, %v11165, 0
  %v11254 = vsel %vm284, %v11166, 0
  %v11257 = vsel %vm284, %v11167, 0
  %v11260 = vsel %vm284, %v11168, 0
  %v11263 = vsel %vm284, %v11169, 0
  %v11266 = vsel %vm284, %v11170, 0
  %11268 = vmatprep.subr.mxu0 0.0
  %11269 = vmatpush1.msra.mxu0 %v11172
  %11270 = vmatprep.subr.mxu0 0.0
  %11271 = vmatpush1.msra.mxu0 %v11173
  %11272 = vmatprep.subr.mxu0 0.0
  %11273 = vmatpush1.msra.mxu0 %v11174
  %11274 = vmatprep.subr.mxu0 0.0
  %11275 = vmatpush1.msra.mxu0 %v11175
  %11276 = vmatprep.subr.mxu0 0.0
  %11277 = vmatpush1.msra.mxu0 0.0
  %11278 = vmatprep.subr.mxu0 0.0
  %11279 = vmatpush1.msra.mxu0 0.0
  %11280 = vmatprep.subr.mxu0 0.0
  %11281 = vmatpush1.msra.mxu0 0.0
  %11282 = vmatprep.subr.mxu0 0.0
  %11283 = vmatpush1.msra.mxu0 0.0
  %11284 = vmatprep.subr.mxu0 0.0
  %11285 = vmatpush1.msra.mxu0 0.0
  %11286 = vmatprep.subr.mxu0 0.0
  %11287 = vmatpush1.msra.mxu0 0.0
  %11288 = vmatprep.subr.mxu0 0.0
  %11289 = vmatpush1.msra.mxu0 0.0
  %11290 = vmatprep.subr.mxu0 0.0
  %11291 = vmatpush1.msra.mxu0 0.0
  %11292 = vmatprep.subr.mxu0 0.0
  %11293 = vmatpush1.msra.mxu0 0.0
  %11294 = vmatprep.subr.mxu0 0.0
  %11295 = vmatpush1.msra.mxu0 0.0
  %11296 = vmatprep.subr.mxu0 0.0
  %11297 = vmatpush1.msra.mxu0 0.0
  %11298 = vmatprep.subr.mxu0 0.0
  %11299 = vmatpush1.msra.mxu0 0.0
  %11300 = vmatprep.subr.mxu0 0.0
  %11301 = vmatpush1.msra.mxu0 0.0
  %11302 = vmatprep.subr.mxu0 0.0
  %11303 = vmatpush1.msra.mxu0 0.0
  %11304 = vmatprep.subr.mxu0 0.0
  %11305 = vmatpush1.msra.mxu0 0.0
  %11306 = vmatprep.subr.mxu0 0.0
  %11307 = vmatpush1.msra.mxu0 0.0
  %11308 = vmatprep.subr.mxu0 0.0
  %11309 = vmatpush1.msra.mxu0 0.0
  %11310 = vmatprep.subr.mxu0 0.0
  %11311 = vmatpush1.msra.mxu0 0.0
  %11312 = vmatprep.subr.mxu0 0.0
  %11313 = vmatpush1.msra.mxu0 0.0
  %11314 = vmatprep.subr.mxu0 0.0
  %11315 = vmatpush1.msra.mxu0 0.0
  %11316 = vmatprep.subr.mxu0 0.0
  %11317 = vmatpush1.msra.mxu0 0.0
  %11318 = vmatprep.subr.mxu0 0.0
  %11319 = vmatpush1.msra.mxu0 0.0
  %11320 = vmatprep.subr.mxu0 0.0
  %11321 = vmatpush1.msra.mxu0 0.0
  %11322 = vmatprep.subr.mxu0 0.0
  %11323 = vmatpush1.msra.mxu0 0.0
  %11324 = vmatprep.subr.mxu0 0.0
  %11325 = vmatpush1.msra.mxu0 0.0
  %11326 = vmatprep.subr.mxu0 0.0
  %11327 = vmatpush1.msra.mxu0 0.0
  %11328 = vmatprep.subr.mxu0 0.0
  %11329 = vmatpush1.msra.mxu0 0.0
  %11330 = vmatprep.subr.mxu0 0.0
  %11331 = vmatpush1.msra.mxu0 0.0
  %11332 = vmatprep.mubr.f32.mxu0 0.0
  %11333 = vmatmul.mubr.f32.gmra.mrb[0].mxu0 %v11185
  %v11334 = vpop.f32.mrb[0].mxu0
  %v11335 = vadd.f32 %v11182, %v11334
  %v11336 = vpop.f32.mrb[0].mxu0
  %11337 = vmatprep.mubr.f32.mxu0 0.0
  %11338 = vmatmul.mubr.f32.gmra.mrb[0].mxu0 %v11188
  %v11339 = vpop.f32.mrb[0].mxu0
  %v11340 = vadd.f32 %v11182, %v11339
  %v11341 = vpop.f32.mrb[0].mxu0
  %11342 = vmatprep.mubr.f32.mxu0 0.0
  %11343 = vmatmul.mubr.f32.gmra.mrb[0].mxu0 %v11191
  %v11344 = vpop.f32.mrb[0].mxu0
  %v11345 = vadd.f32 %v11182, %v11344
  %v11346 = vpop.f32.mrb[0].mxu0
  %11347 = vmatprep.mubr.f32.mxu0 0.0
  %11348 = vmatmul.mubr.f32.gmra.mrb[0].mxu0 %v11194
  %v11349 = vpop.f32.mrb[0].mxu0
  %v11350 = vadd.f32 %v11182, %v11349
  %v11351 = vpop.f32.mrb[0].mxu0
  %11352 = vmatprep.mubr.f32.mxu0 0.0
  %11353 = vmatmul.mubr.f32.gmra.mrb[0].mxu0 %v11197
  %v11354 = vpop.f32.mrb[0].mxu0
  %v11355 = vadd.f32 %v11182, %v11354
  %v11356 = vpop.f32.mrb[0].mxu0
  %11357 = vmatprep.mubr.f32.mxu0 0.0
  %11358 = vmatmul.mubr.f32.gmra.mrb[0].mxu0 %v11200
  %v11359 = vpop.f32.mrb[0].mxu0
  %v11360 = vadd.f32 %v11182, %v11359
  %v11361 = vpop.f32.mrb[0].mxu0
  %11362 = vmatprep.mubr.f32.mxu0 0.0
  %11363 = vmatmul.mubr.f32.gmra.mrb[0].mxu0 %v11203
  %v11364 = vpop.f32.mrb[0].mxu0
  %v11365 = vadd.f32 %v11182, %v11364
  %v11366 = vpop.f32.mrb[0].mxu0
  %11367 = vmatprep.mubr.f32.mxu0 0.0
  %11368 = vmatmul.mubr.f32.gmra.mrb[0].mxu0 %v11206
  %v11369 = vpop.f32.mrb[0].mxu0
  %v11370 = vadd.f32 %v11182, %v11369
  %v11371 = vpop.f32.mrb[0].mxu0
  %11372 = vmatprep.mubr.f32.mxu0 0.0
  %11373 = vmatmul.mubr.f32.gmra.mrb[0].mxu0 %v11209
  %v11374 = vpop.f32.mrb[0].mxu0
  %v11375 = vadd.f32 %v11182, %v11374
  %v11376 = vpop.f32.mrb[0].mxu0
  %11377 = vmatprep.mubr.f32.mxu0 0.0
  %11378 = vmatmul.mubr.f32.gmra.mrb[0].mxu0 %v11212
  %v11379 = vpop.f32.mrb[0].mxu0
  %v11380 = vadd.f32 %v11182, %v11379
  %v11381 = vpop.f32.mrb[0].mxu0
  %11382 = vmatprep.mubr.f32.mxu0 0.0
  %11383 = vmatmul.mubr.f32.gmra.mrb[0].mxu0 %v11215
  %v11384 = vpop.f32.mrb[0].mxu0
  %v11385 = vadd.f32 %v11182, %v11384
  %v11386 = vpop.f32.mrb[0].mxu0
  %11387 = vmatprep.mubr.f32.mxu0 0.0
  %11388 = vmatmul.mubr.f32.gmra.mrb[0].mxu0 %v11218
  %v11389 = vpop.f32.mrb[0].mxu0
  %v11390 = vadd.f32 %v11182, %v11389
  %v11391 = vpop.f32.mrb[0].mxu0
  %11392 = vmatprep.mubr.f32.mxu0 0.0
  %11393 = vmatmul.mubr.f32.gmra.mrb[0].mxu0 %v11221
  %v11394 = vpop.f32.mrb[0].mxu0
  %v11395 = vadd.f32 %v11182, %v11394
  %v11396 = vpop.f32.mrb[0].mxu0
  %11397 = vmatprep.mubr.f32.mxu0 0.0
  %11398 = vmatmul.mubr.f32.gmra.mrb[0].mxu0 %v11224
  %v11399 = vpop.f32.mrb[0].mxu0
  %v11400 = vadd.f32 %v11182, %v11399
  %v11401 = vpop.f32.mrb[0].mxu0
  %11402 = vmatprep.mubr.f32.mxu0 0.0
  %11403 = vmatmul.mubr.f32.gmra.mrb[0].mxu0 %v11227
  %v11404 = vpop.f32.mrb[0].mxu0
  %v11405 = vadd.f32 %v11182, %v11404
  %v11406 = vpop.f32.mrb[0].mxu0
  %11407 = vmatprep.mubr.f32.mxu0 0.0
  %11408 = vmatmul.mubr.f32.gmra.mrb[0].mxu0 %v11230
  %v11409 = vpop.f32.mrb[0].mxu0
  %v11410 = vadd.f32 %v11182, %v11409
  %v11411 = vpop.f32.mrb[0].mxu0
  %11412 = vmatprep.mubr.f32.mxu0 0.0
  %11413 = vmatmul.mubr.f32.gmra.mrb[0].mxu0 %v11233
  %v11414 = vpop.f32.mrb[0].mxu0
  %v11415 = vadd.f32 %v11182, %v11414
  %v11416 = vpop.f32.mrb[0].mxu0
  %11417 = vmatprep.mubr.f32.mxu0 0.0
  %11418 = vmatmul.mubr.f32.gmra.mrb[0].mxu0 %v11236
  %v11419 = vpop.f32.mrb[0].mxu0
  %v11420 = vadd.f32 %v11182, %v11419
  %v11421 = vpop.f32.mrb[0].mxu0
  %11422 = vmatprep.mubr.f32.mxu0 0.0
  %11423 = vmatmul.mubr.f32.gmra.mrb[0].mxu0 %v11239
  %v11424 = vpop.f32.mrb[0].mxu0
  %v11425 = vadd.f32 %v11182, %v11424
  %v11426 = vpop.f32.mrb[0].mxu0
  %11427 = vmatprep.mubr.f32.mxu0 0.0
  %11428 = vmatmul.mubr.f32.gmra.mrb[0].mxu0 %v11242
  %v11429 = vpop.f32.mrb[0].mxu0
  %v11430 = vadd.f32 %v11182, %v11429
  %v11431 = vpop.f32.mrb[0].mxu0
  %11432 = vmatprep.mubr.f32.mxu0 0.0
  %11433 = vmatmul.mubr.f32.gmra.mrb[0].mxu0 %v11245
  %v11434 = vpop.f32.mrb[0].mxu0
  %v11435 = vadd.f32 %v11182, %v11434
  %v11436 = vpop.f32.mrb[0].mxu0
  %11437 = vmatprep.mubr.f32.mxu0 0.0
  %11438 = vmatmul.mubr.f32.gmra.mrb[0].mxu0 %v11248
  %v11439 = vpop.f32.mrb[0].mxu0
  %v11440 = vadd.f32 %v11182, %v11439
  %v11441 = vpop.f32.mrb[0].mxu0
  %11442 = vmatprep.mubr.f32.mxu0 0.0
  %11443 = vmatmul.mubr.f32.gmra.mrb[0].mxu0 %v11251
  %v11444 = vpop.f32.mrb[0].mxu0
  %v11445 = vadd.f32 %v11182, %v11444
  %v11446 = vpop.f32.mrb[0].mxu0
  %11447 = vmatprep.mubr.f32.mxu0 0.0
  %11448 = vmatmul.mubr.f32.gmra.mrb[0].mxu0 %v11254
  %v11449 = vpop.f32.mrb[0].mxu0
  %v11450 = vadd.f32 %v11182, %v11449
  %v11451 = vpop.f32.mrb[0].mxu0
  %11452 = vmatprep.mubr.f32.mxu0 0.0
  %11453 = vmatmul.mubr.f32.gmra.mrb[0].mxu0 %v11257
  %v11454 = vpop.f32.mrb[0].mxu0
  %v11455 = vadd.f32 %v11182, %v11454
  %v11456 = vpop.f32.mrb[0].mxu0
  %11457 = vmatprep.mubr.f32.mxu0 0.0
  %11458 = vmatmul.mubr.f32.gmra.mrb[0].mxu0 %v11260
  %v11459 = vpop.f32.mrb[0].mxu0
  %v11460 = vadd.f32 %v11182, %v11459
  %v11461 = vpop.f32.mrb[0].mxu0
  %11462 = vmatprep.mubr.f32.mxu0 0.0
  %11463 = vmatmul.mubr.f32.gmra.mrb[0].mxu0 %v11263
  %v11464 = vpop.f32.mrb[0].mxu0
  %v11465 = vadd.f32 %v11182, %v11464
  %v11466 = vpop.f32.mrb[0].mxu0
  %11467 = vmatprep.mubr.f32.mxu0 0.0
  %11468 = vmatmul.mubr.f32.gmra.mrb[0].mxu0 %v11266
  %v11469 = vpop.f32.mrb[0].mxu0
  %v11470 = vadd.f32 %v11182, %v11469
  %v11471 = vpop.f32.mrb[0].mxu0
  %11472 = vdwg.mxu0
  %v11473 = vxor.u32 %v11335, 2147483648
  %v11474 = vxor.u32 %v11340, 2147483648
  %v11475 = vxor.u32 %v11345, 2147483648
  %v11476 = vxor.u32 %v11350, 2147483648
  %v11477 = vxor.u32 %v11355, 2147483648
  %v11478 = vxor.u32 %v11360, 2147483648
  %v11479 = vxor.u32 %v11365, 2147483648
  %v11480 = vxor.u32 %v11370, 2147483648
  %v11481 = vxor.u32 %v11375, 2147483648
  %v11482 = vxor.u32 %v11380, 2147483648
  %v11483 = vxor.u32 %v11385, 2147483648
  %v11484 = vxor.u32 %v11390, 2147483648
  %v11485 = vxor.u32 %v11395, 2147483648
  %v11486 = vxor.u32 %v11400, 2147483648
  %v11487 = vxor.u32 %v11405, 2147483648
  %v11488 = vxor.u32 %v11410, 2147483648
  %v11489 = vxor.u32 %v11415, 2147483648
  %v11490 = vxor.u32 %v11420, 2147483648
  %v11491 = vxor.u32 %v11425, 2147483648
  %v11492 = vxor.u32 %v11430, 2147483648
  %v11493 = vxor.u32 %v11435, 2147483648
  %v11494 = vxor.u32 %v11440, 2147483648
  %v11495 = vxor.u32 %v11445, 2147483648
  %v11496 = vxor.u32 %v11450, 2147483648
  %v11497 = vxor.u32 %v11455, 2147483648
  %v11498 = vxor.u32 %v11460, 2147483648
  %v11499 = vxor.u32 %v11465, 2147483648
  %v11500 = vxor.u32 %v11470, 2147483648
  %v11501 = vmul.f32 %v11473, 1.442695
  %v11502 = vpow.pop %v11501
  %v11503 = vmul.f32 %v11474, 1.442695
  %v11504 = vpow.pop %v11503
  %v11505 = vmul.f32 %v11475, 1.442695
  %v11506 = vpow.pop %v11505
  %v11507 = vmul.f32 %v11476, 1.442695
  %v11508 = vpow.pop %v11507
  %v11509 = vmul.f32 %v11477, 1.442695
  %v11510 = vpow.pop %v11509
  %v11511 = vmul.f32 %v11478, 1.442695
  %v11512 = vpow.pop %v11511
  %v11513 = vmul.f32 %v11479, 1.442695
  %v11514 = vpow.pop %v11513
  %v11515 = vmul.f32 %v11480, 1.442695
  %v11516 = vpow.pop %v11515
  %v11517 = vmul.f32 %v11481, 1.442695
  %v11518 = vpow.pop %v11517
  %v11519 = vmul.f32 %v11482, 1.442695
  %v11520 = vpow.pop %v11519
  %v11521 = vmul.f32 %v11483, 1.442695
  %v11522 = vpow.pop %v11521
  %v11523 = vmul.f32 %v11484, 1.442695
  %v11524 = vpow.pop %v11523
  %v11525 = vmul.f32 %v11485, 1.442695
  %v11526 = vpow.pop %v11525
  %v11527 = vmul.f32 %v11486, 1.442695
  %v11528 = vpow.pop %v11527
  %v11529 = vmul.f32 %v11487, 1.442695
  %v11530 = vpow.pop %v11529
  %v11531 = vmul.f32 %v11488, 1.442695
  %v11532 = vpow.pop %v11531
  %v11533 = vmul.f32 %v11489, 1.442695
  %v11534 = vpow.pop %v11533
  %v11535 = vmul.f32 %v11490, 1.442695
  %v11536 = vpow.pop %v11535
  %v11537 = vmul.f32 %v11491, 1.442695
  %v11538 = vpow.pop %v11537
  %v11539 = vmul.f32 %v11492, 1.442695
  %v11540 = vpow.pop %v11539
  %v11541 = vmul.f32 %v11493, 1.442695
  %v11542 = vpow.pop %v11541
  %v11543 = vmul.f32 %v11494, 1.442695
  %v11544 = vpow.pop %v11543
  %v11545 = vmul.f32 %v11495, 1.442695
  %v11546 = vpow.pop %v11545
  %v11547 = vmul.f32 %v11496, 1.442695
  %v11548 = vpow.pop %v11547
  %v11549 = vmul.f32 %v11497, 1.442695
  %v11550 = vpow.pop %v11549
  %v11551 = vmul.f32 %v11498, 1.442695
  %v11552 = vpow.pop %v11551
  %v11553 = vmul.f32 %v11499, 1.442695
  %v11554 = vpow.pop %v11553
  %v11555 = vmul.f32 %v11500, 1.442695
  %v11556 = vpow.pop %v11555
  %v11557 = vadd.f32 %v11502, 1.0
  %v11558 = vadd.f32 %v11504, 1.0
  %v11559 = vadd.f32 %v11506, 1.0
  %v11560 = vadd.f32 %v11508, 1.0
  %v11561 = vadd.f32 %v11510, 1.0
  %v11562 = vadd.f32 %v11512, 1.0
  %v11563 = vadd.f32 %v11514, 1.0
  %v11564 = vadd.f32 %v11516, 1.0
  %v11565 = vadd.f32 %v11518, 1.0
  %v11566 = vadd.f32 %v11520, 1.0
  %v11567 = vadd.f32 %v11522, 1.0
  %v11568 = vadd.f32 %v11524, 1.0
  %v11569 = vadd.f32 %v11526, 1.0
  %v11570 = vadd.f32 %v11528, 1.0
  %v11571 = vadd.f32 %v11530, 1.0
  %v11572 = vadd.f32 %v11532, 1.0
  %v11573 = vadd.f32 %v11534, 1.0
  %v11574 = vadd.f32 %v11536, 1.0
  %v11575 = vadd.f32 %v11538, 1.0
  %v11576 = vadd.f32 %v11540, 1.0
  %v11577 = vadd.f32 %v11542, 1.0
  %v11578 = vadd.f32 %v11544, 1.0
  %v11579 = vadd.f32 %v11546, 1.0
  %v11580 = vadd.f32 %v11548, 1.0
  %v11581 = vadd.f32 %v11550, 1.0
  %v11582 = vadd.f32 %v11552, 1.0
  %v11583 = vadd.f32 %v11554, 1.0
  %v11584 = vadd.f32 %v11556, 1.0
  %v11585 = vrcp.pop %v11557
  %v11586 = vmul.f32 1.0, %v11585
  %v11587 = vrcp.pop %v11558
  %v11588 = vmul.f32 1.0, %v11587
  %v11589 = vrcp.pop %v11559
  %v11590 = vmul.f32 1.0, %v11589
  %v11591 = vrcp.pop %v11560
  %v11592 = vmul.f32 1.0, %v11591
  %v11593 = vrcp.pop %v11561
  %v11594 = vmul.f32 1.0, %v11593
  %v11595 = vrcp.pop %v11562
  %v11596 = vmul.f32 1.0, %v11595
  %v11597 = vrcp.pop %v11563
  %v11598 = vmul.f32 1.0, %v11597
  %v11599 = vrcp.pop %v11564
  %v11600 = vmul.f32 1.0, %v11599
  %v11601 = vrcp.pop %v11565
  %v11602 = vmul.f32 1.0, %v11601
  %v11603 = vrcp.pop %v11566
  %v11604 = vmul.f32 1.0, %v11603
  %v11605 = vrcp.pop %v11567
  %v11606 = vmul.f32 1.0, %v11605
  %v11607 = vrcp.pop %v11568
  %v11608 = vmul.f32 1.0, %v11607
  %v11609 = vrcp.pop %v11569
  %v11610 = vmul.f32 1.0, %v11609
  %v11611 = vrcp.pop %v11570
  %v11612 = vmul.f32 1.0, %v11611
  %v11613 = vrcp.pop %v11571
  %v11614 = vmul.f32 1.0, %v11613
  %v11615 = vrcp.pop %v11572
  %v11616 = vmul.f32 1.0, %v11615
  %v11617 = vrcp.pop %v11573
  %v11618 = vmul.f32 1.0, %v11617
  %v11619 = vrcp.pop %v11574
  %v11620 = vmul.f32 1.0, %v11619
  %v11621 = vrcp.pop %v11575
  %v11622 = vmul.f32 1.0, %v11621
  %v11623 = vrcp.pop %v11576
  %v11624 = vmul.f32 1.0, %v11623
  %v11625 = vrcp.pop %v11577
  %v11626 = vmul.f32 1.0, %v11625
  %v11627 = vrcp.pop %v11578
  %v11628 = vmul.f32 1.0, %v11627
  %v11629 = vrcp.pop %v11579
  %v11630 = vmul.f32 1.0, %v11629
  %v11631 = vrcp.pop %v11580
  %v11632 = vmul.f32 1.0, %v11631
  %v11633 = vrcp.pop %v11581
  %v11634 = vmul.f32 1.0, %v11633
  %v11635 = vrcp.pop %v11582
  %v11636 = vmul.f32 1.0, %v11635
  %v11637 = vrcp.pop %v11583
  %v11638 = vmul.f32 1.0, %v11637
  %v11639 = vrcp.pop %v11584
  %v11640 = vmul.f32 1.0, %v11639
  %v11641 = vmul.f32 %v11335, %v11586
  %v11642 = vmul.f32 %v11340, %v11588
  %v11643 = vmul.f32 %v11345, %v11590
  %v11644 = vmul.f32 %v11350, %v11592
  %v11645 = vmul.f32 %v11355, %v11594
  %v11646 = vmul.f32 %v11360, %v11596
  %v11647 = vmul.f32 %v11365, %v11598
  %v11648 = vmul.f32 %v11370, %v11600
  %v11649 = vmul.f32 %v11375, %v11602
  %v11650 = vmul.f32 %v11380, %v11604
  %v11651 = vmul.f32 %v11385, %v11606
  %v11652 = vmul.f32 %v11390, %v11608
  %v11653 = vmul.f32 %v11395, %v11610
  %v11654 = vmul.f32 %v11400, %v11612
  %v11655 = vmul.f32 %v11405, %v11614
  %v11656 = vmul.f32 %v11410, %v11616
  %v11657 = vmul.f32 %v11415, %v11618
  %v11658 = vmul.f32 %v11420, %v11620
  %v11659 = vmul.f32 %v11425, %v11622
  %v11660 = vmul.f32 %v11430, %v11624
  %v11661 = vmul.f32 %v11435, %v11626
  %v11662 = vmul.f32 %v11440, %v11628
  %v11663 = vmul.f32 %v11445, %v11630
  %v11664 = vmul.f32 %v11450, %v11632
  %v11665 = vmul.f32 %v11455, %v11634
  %v11666 = vmul.f32 %v11460, %v11636
  %v11667 = vmul.f32 %v11465, %v11638
  %v11668 = vmul.f32 %v11470, %v11640
  %11673 = vrot.lane.b32.xlu0 %v11172, 96
  %v11674 = vpop.permute.xlu0 %11673
  %11675 = vrot.lane.b32.xlu0 %v11173, 96
  %v11676 = vpop.permute.xlu0 %11675
  %11677 = vrot.lane.b32.xlu0 %v11174, 96
  %v11678 = vpop.permute.xlu0 %11677
  %11679 = vrot.lane.b32.xlu0 %v11175, 96
  %v11680 = vpop.permute.xlu0 %11679
  %v11686 = vsel %vm284, %v11641, 0
  %v11689 = vsel %vm284, %v11642, 0
  %v11692 = vsel %vm284, %v11643, 0
  %v11695 = vsel %vm284, %v11644, 0
  %v11698 = vsel %vm284, %v11645, 0
  %v11701 = vsel %vm284, %v11646, 0
  %v11704 = vsel %vm284, %v11647, 0
  %v11707 = vsel %vm284, %v11648, 0
  %v11710 = vsel %vm284, %v11649, 0
  %v11713 = vsel %vm284, %v11650, 0
  %v11716 = vsel %vm284, %v11651, 0
  %v11719 = vsel %vm284, %v11652, 0
  %v11722 = vsel %vm284, %v11653, 0
  %v11725 = vsel %vm284, %v11654, 0
  %v11728 = vsel %vm284, %v11655, 0
  %v11731 = vsel %vm284, %v11656, 0
  %v11734 = vsel %vm284, %v11657, 0
  %v11737 = vsel %vm284, %v11658, 0
  %v11740 = vsel %vm284, %v11659, 0
  %v11743 = vsel %vm284, %v11660, 0
  %v11746 = vsel %vm284, %v11661, 0
  %v11749 = vsel %vm284, %v11662, 0
  %v11752 = vsel %vm284, %v11663, 0
  %v11755 = vsel %vm284, %v11664, 0
  %v11758 = vsel %vm284, %v11665, 0
  %v11761 = vsel %vm284, %v11666, 0
  %v11764 = vsel %vm284, %v11667, 0
  %v11767 = vsel %vm284, %v11668, 0
  %11769 = vmatprep.subr.mxu0 0.0
  %11770 = vmatpush1.msra.mxu0 %v11674
  %11771 = vmatprep.subr.mxu0 0.0
  %11772 = vmatpush1.msra.mxu0 %v11676
  %11773 = vmatprep.subr.mxu0 0.0
  %11774 = vmatpush1.msra.mxu0 %v11678
  %11775 = vmatprep.subr.mxu0 0.0
  %11776 = vmatpush1.msra.mxu0 %v11680
  %11777 = vmatprep.subr.mxu0 0.0
  %11778 = vmatpush1.msra.mxu0 0.0
  %11779 = vmatprep.subr.mxu0 0.0
  %11780 = vmatpush1.msra.mxu0 0.0
  %11781 = vmatprep.subr.mxu0 0.0
  %11782 = vmatpush1.msra.mxu0 0.0
  %11783 = vmatprep.subr.mxu0 0.0
  %11784 = vmatpush1.msra.mxu0 0.0
  %11785 = vmatprep.subr.mxu0 0.0
  %11786 = vmatpush1.msra.mxu0 0.0
  %11787 = vmatprep.subr.mxu0 0.0
  %11788 = vmatpush1.msra.mxu0 0.0
  %11789 = vmatprep.subr.mxu0 0.0
  %11790 = vmatpush1.msra.mxu0 0.0
  %11791 = vmatprep.subr.mxu0 0.0
  %11792 = vmatpush1.msra.mxu0 0.0
  %11793 = vmatprep.subr.mxu0 0.0
  %11794 = vmatpush1.msra.mxu0 0.0
  %11795 = vmatprep.subr.mxu0 0.0
  %11796 = vmatpush1.msra.mxu0 0.0
  %11797 = vmatprep.subr.mxu0 0.0
  %11798 = vmatpush1.msra.mxu0 0.0
  %11799 = vmatprep.subr.mxu0 0.0
  %11800 = vmatpush1.msra.mxu0 0.0
  %11801 = vmatprep.subr.mxu0 0.0
  %11802 = vmatpush1.msra.mxu0 0.0
  %11803 = vmatprep.subr.mxu0 0.0
  %11804 = vmatpush1.msra.mxu0 0.0
  %11805 = vmatprep.subr.mxu0 0.0
  %11806 = vmatpush1.msra.mxu0 0.0
  %11807 = vmatprep.subr.mxu0 0.0
  %11808 = vmatpush1.msra.mxu0 0.0
  %11809 = vmatprep.subr.mxu0 0.0
  %11810 = vmatpush1.msra.mxu0 0.0
  %11811 = vmatprep.subr.mxu0 0.0
  %11812 = vmatpush1.msra.mxu0 0.0
  %11813 = vmatprep.subr.mxu0 0.0
  %11814 = vmatpush1.msra.mxu0 0.0
  %11815 = vmatprep.subr.mxu0 0.0
  %11816 = vmatpush1.msra.mxu0 0.0
  %11817 = vmatprep.subr.mxu0 0.0
  %11818 = vmatpush1.msra.mxu0 0.0
  %11819 = vmatprep.subr.mxu0 0.0
  %11820 = vmatpush1.msra.mxu0 0.0
  %11821 = vmatprep.subr.mxu0 0.0
  %11822 = vmatpush1.msra.mxu0 0.0
  %11823 = vmatprep.subr.mxu0 0.0
  %11824 = vmatpush1.msra.mxu0 0.0
  %11825 = vmatprep.subr.mxu0 0.0
  %11826 = vmatpush1.msra.mxu0 0.0
  %11827 = vmatprep.subr.mxu0 0.0
  %11828 = vmatpush1.msra.mxu0 0.0
  %11829 = vmatprep.subr.mxu0 0.0
  %11830 = vmatpush1.msra.mxu0 0.0
  %11831 = vmatprep.subr.mxu0 0.0
  %11832 = vmatpush1.msra.mxu0 0.0
  %11833 = vmatprep.mubr.f32.mxu0 0.0
  %11834 = vmatmul.mubr.f32.gmra.mrb[0].mxu0 %v11686
  %v11835 = vpop.f32.mrb[0].mxu0
  %v11836 = vadd.f32 0.0, %v11835
  %v11837 = vpop.f32.mrb[0].mxu0
  %11838 = vmatprep.mubr.f32.mxu0 0.0
  %11839 = vmatmul.mubr.f32.gmra.mrb[0].mxu0 %v11689
  %v11840 = vpop.f32.mrb[0].mxu0
  %v11841 = vadd.f32 0.0, %v11840
  %v11842 = vpop.f32.mrb[0].mxu0
  %11843 = vmatprep.mubr.f32.mxu0 0.0
  %11844 = vmatmul.mubr.f32.gmra.mrb[0].mxu0 %v11692
  %v11845 = vpop.f32.mrb[0].mxu0
  %v11846 = vadd.f32 0.0, %v11845
  %v11847 = vpop.f32.mrb[0].mxu0
  %11848 = vmatprep.mubr.f32.mxu0 0.0
  %11849 = vmatmul.mubr.f32.gmra.mrb[0].mxu0 %v11695
  %v11850 = vpop.f32.mrb[0].mxu0
  %v11851 = vadd.f32 0.0, %v11850
  %v11852 = vpop.f32.mrb[0].mxu0
  %11853 = vmatprep.mubr.f32.mxu0 0.0
  %11854 = vmatmul.mubr.f32.gmra.mrb[0].mxu0 %v11698
  %v11855 = vpop.f32.mrb[0].mxu0
  %v11856 = vadd.f32 0.0, %v11855
  %v11857 = vpop.f32.mrb[0].mxu0
  %11858 = vmatprep.mubr.f32.mxu0 0.0
  %11859 = vmatmul.mubr.f32.gmra.mrb[0].mxu0 %v11701
  %v11860 = vpop.f32.mrb[0].mxu0
  %v11861 = vadd.f32 0.0, %v11860
  %v11862 = vpop.f32.mrb[0].mxu0
  %11863 = vmatprep.mubr.f32.mxu0 0.0
  %11864 = vmatmul.mubr.f32.gmra.mrb[0].mxu0 %v11704
  %v11865 = vpop.f32.mrb[0].mxu0
  %v11866 = vadd.f32 0.0, %v11865
  %v11867 = vpop.f32.mrb[0].mxu0
  %11868 = vmatprep.mubr.f32.mxu0 0.0
  %11869 = vmatmul.mubr.f32.gmra.mrb[0].mxu0 %v11707
  %v11870 = vpop.f32.mrb[0].mxu0
  %v11871 = vadd.f32 0.0, %v11870
  %v11872 = vpop.f32.mrb[0].mxu0
  %11873 = vmatprep.mubr.f32.mxu0 0.0
  %11874 = vmatmul.mubr.f32.gmra.mrb[0].mxu0 %v11710
  %v11875 = vpop.f32.mrb[0].mxu0
  %v11876 = vadd.f32 0.0, %v11875
  %v11877 = vpop.f32.mrb[0].mxu0
  %11878 = vmatprep.mubr.f32.mxu0 0.0
  %11879 = vmatmul.mubr.f32.gmra.mrb[0].mxu0 %v11713
  %v11880 = vpop.f32.mrb[0].mxu0
  %v11881 = vadd.f32 0.0, %v11880
  %v11882 = vpop.f32.mrb[0].mxu0
  %11883 = vmatprep.mubr.f32.mxu0 0.0
  %11884 = vmatmul.mubr.f32.gmra.mrb[0].mxu0 %v11716
  %v11885 = vpop.f32.mrb[0].mxu0
  %v11886 = vadd.f32 0.0, %v11885
  %v11887 = vpop.f32.mrb[0].mxu0
  %11888 = vmatprep.mubr.f32.mxu0 0.0
  %11889 = vmatmul.mubr.f32.gmra.mrb[0].mxu0 %v11719
  %v11890 = vpop.f32.mrb[0].mxu0
  %v11891 = vadd.f32 0.0, %v11890
  %v11892 = vpop.f32.mrb[0].mxu0
  %11893 = vmatprep.mubr.f32.mxu0 0.0
  %11894 = vmatmul.mubr.f32.gmra.mrb[0].mxu0 %v11722
  %v11895 = vpop.f32.mrb[0].mxu0
  %v11896 = vadd.f32 0.0, %v11895
  %v11897 = vpop.f32.mrb[0].mxu0
  %11898 = vmatprep.mubr.f32.mxu0 0.0
  %11899 = vmatmul.mubr.f32.gmra.mrb[0].mxu0 %v11725
  %v11900 = vpop.f32.mrb[0].mxu0
  %v11901 = vadd.f32 0.0, %v11900
  %v11902 = vpop.f32.mrb[0].mxu0
  %11903 = vmatprep.mubr.f32.mxu0 0.0
  %11904 = vmatmul.mubr.f32.gmra.mrb[0].mxu0 %v11728
  %v11905 = vpop.f32.mrb[0].mxu0
  %v11906 = vadd.f32 0.0, %v11905
  %v11907 = vpop.f32.mrb[0].mxu0
  %11908 = vmatprep.mubr.f32.mxu0 0.0
  %11909 = vmatmul.mubr.f32.gmra.mrb[0].mxu0 %v11731
  %v11910 = vpop.f32.mrb[0].mxu0
  %v11911 = vadd.f32 0.0, %v11910
  %v11912 = vpop.f32.mrb[0].mxu0
  %11913 = vmatprep.mubr.f32.mxu0 0.0
  %11914 = vmatmul.mubr.f32.gmra.mrb[0].mxu0 %v11734
  %v11915 = vpop.f32.mrb[0].mxu0
  %v11916 = vadd.f32 0.0, %v11915
  %v11917 = vpop.f32.mrb[0].mxu0
  %11918 = vmatprep.mubr.f32.mxu0 0.0
  %11919 = vmatmul.mubr.f32.gmra.mrb[0].mxu0 %v11737
  %v11920 = vpop.f32.mrb[0].mxu0
  %v11921 = vadd.f32 0.0, %v11920
  %v11922 = vpop.f32.mrb[0].mxu0
  %11923 = vmatprep.mubr.f32.mxu0 0.0
  %11924 = vmatmul.mubr.f32.gmra.mrb[0].mxu0 %v11740
  %v11925 = vpop.f32.mrb[0].mxu0
  %v11926 = vadd.f32 0.0, %v11925
  %v11927 = vpop.f32.mrb[0].mxu0
  %11928 = vmatprep.mubr.f32.mxu0 0.0
  %11929 = vmatmul.mubr.f32.gmra.mrb[0].mxu0 %v11743
  %v11930 = vpop.f32.mrb[0].mxu0
  %v11931 = vadd.f32 0.0, %v11930
  %v11932 = vpop.f32.mrb[0].mxu0
  %11933 = vmatprep.mubr.f32.mxu0 0.0
  %11934 = vmatmul.mubr.f32.gmra.mrb[0].mxu0 %v11746
  %v11935 = vpop.f32.mrb[0].mxu0
  %v11936 = vadd.f32 0.0, %v11935
  %v11937 = vpop.f32.mrb[0].mxu0
  %11938 = vmatprep.mubr.f32.mxu0 0.0
  %11939 = vmatmul.mubr.f32.gmra.mrb[0].mxu0 %v11749
  %v11940 = vpop.f32.mrb[0].mxu0
  %v11941 = vadd.f32 0.0, %v11940
  %v11942 = vpop.f32.mrb[0].mxu0
  %11943 = vmatprep.mubr.f32.mxu0 0.0
  %11944 = vmatmul.mubr.f32.gmra.mrb[0].mxu0 %v11752
  %v11945 = vpop.f32.mrb[0].mxu0
  %v11946 = vadd.f32 0.0, %v11945
  %v11947 = vpop.f32.mrb[0].mxu0
  %11948 = vmatprep.mubr.f32.mxu0 0.0
  %11949 = vmatmul.mubr.f32.gmra.mrb[0].mxu0 %v11755
  %v11950 = vpop.f32.mrb[0].mxu0
  %v11951 = vadd.f32 0.0, %v11950
  %v11952 = vpop.f32.mrb[0].mxu0
  %11953 = vmatprep.mubr.f32.mxu0 0.0
  %11954 = vmatmul.mubr.f32.gmra.mrb[0].mxu0 %v11758
  %v11955 = vpop.f32.mrb[0].mxu0
  %v11956 = vadd.f32 0.0, %v11955
  %v11957 = vpop.f32.mrb[0].mxu0
  %11958 = vmatprep.mubr.f32.mxu0 0.0
  %11959 = vmatmul.mubr.f32.gmra.mrb[0].mxu0 %v11761
  %v11960 = vpop.f32.mrb[0].mxu0
  %v11961 = vadd.f32 0.0, %v11960
  %v11962 = vpop.f32.mrb[0].mxu0
  %11963 = vmatprep.mubr.f32.mxu0 0.0
  %11964 = vmatmul.mubr.f32.gmra.mrb[0].mxu0 %v11764
  %v11965 = vpop.f32.mrb[0].mxu0
  %v11966 = vadd.f32 0.0, %v11965
  %v11967 = vpop.f32.mrb[0].mxu0
  %11968 = vmatprep.mubr.f32.mxu0 0.0
  %11969 = vmatmul.mubr.f32.gmra.mrb[0].mxu0 %v11767
  %v11970 = vpop.f32.mrb[0].mxu0
  %v11971 = vadd.f32 0.0, %v11970
  %v11972 = vpop.f32.mrb[0].mxu0
  %11973 = vdwg.mxu0
  %11974 = vrot.lane.b32.xlu0 %v11182, 96
  %v11975 = vpop.permute.xlu0 %11974
  %v11977 = vadd.f32 %v11836, %v11975
  %v11978 = vadd.f32 %v11841, %v11975
  %v11979 = vadd.f32 %v11846, %v11975
  %v11980 = vadd.f32 %v11851, %v11975
  %v11981 = vadd.f32 %v11856, %v11975
  %v11982 = vadd.f32 %v11861, %v11975
  %v11983 = vadd.f32 %v11866, %v11975
  %v11984 = vadd.f32 %v11871, %v11975
  %v11985 = vadd.f32 %v11876, %v11975
  %v11986 = vadd.f32 %v11881, %v11975
  %v11987 = vadd.f32 %v11886, %v11975
  %v11988 = vadd.f32 %v11891, %v11975
  %v11989 = vadd.f32 %v11896, %v11975
  %v11990 = vadd.f32 %v11901, %v11975
  %v11991 = vadd.f32 %v11906, %v11975
  %v11992 = vadd.f32 %v11911, %v11975
  %v11993 = vadd.f32 %v11916, %v11975
  %v11994 = vadd.f32 %v11921, %v11975
  %v11995 = vadd.f32 %v11926, %v11975
  %v11996 = vadd.f32 %v11931, %v11975
  %v11997 = vadd.f32 %v11936, %v11975
  %v11998 = vadd.f32 %v11941, %v11975
  %v11999 = vadd.f32 %v11946, %v11975
  %v12000 = vadd.f32 %v11951, %v11975
  %v12001 = vadd.f32 %v11956, %v11975
  %v12002 = vadd.f32 %v11961, %v11975
  %v12003 = vadd.f32 %v11966, %v11975
  %v12004 = vadd.f32 %v11971, %v11975
  %v12005 = vxor.u32 %v11977, 2147483648
  %v12006 = vxor.u32 %v11978, 2147483648
  %v12007 = vxor.u32 %v11979, 2147483648
  %v12008 = vxor.u32 %v11980, 2147483648
  %v12009 = vxor.u32 %v11981, 2147483648
  %v12010 = vxor.u32 %v11982, 2147483648
  %v12011 = vxor.u32 %v11983, 2147483648
  %v12012 = vxor.u32 %v11984, 2147483648
  %v12013 = vxor.u32 %v11985, 2147483648
  %v12014 = vxor.u32 %v11986, 2147483648
  %v12015 = vxor.u32 %v11987, 2147483648
  %v12016 = vxor.u32 %v11988, 2147483648
  %v12017 = vxor.u32 %v11989, 2147483648
  %v12018 = vxor.u32 %v11990, 2147483648
  %v12019 = vxor.u32 %v11991, 2147483648
  %v12020 = vxor.u32 %v11992, 2147483648
  %v12021 = vxor.u32 %v11993, 2147483648
  %v12022 = vxor.u32 %v11994, 2147483648
  %v12023 = vxor.u32 %v11995, 2147483648
  %v12024 = vxor.u32 %v11996, 2147483648
  %v12025 = vxor.u32 %v11997, 2147483648
  %v12026 = vxor.u32 %v11998, 2147483648
  %v12027 = vxor.u32 %v11999, 2147483648
  %v12028 = vxor.u32 %v12000, 2147483648
  %v12029 = vxor.u32 %v12001, 2147483648
  %v12030 = vxor.u32 %v12002, 2147483648
  %v12031 = vxor.u32 %v12003, 2147483648
  %v12032 = vxor.u32 %v12004, 2147483648
  %v12033 = vmul.f32 %v12005, 1.442695
  %v12034 = vpow.pop %v12033
  %v12035 = vmul.f32 %v12006, 1.442695
  %v12036 = vpow.pop %v12035
  %v12037 = vmul.f32 %v12007, 1.442695
  %v12038 = vpow.pop %v12037
  %v12039 = vmul.f32 %v12008, 1.442695
  %v12040 = vpow.pop %v12039
  %v12041 = vmul.f32 %v12009, 1.442695
  %v12042 = vpow.pop %v12041
  %v12043 = vmul.f32 %v12010, 1.442695
  %v12044 = vpow.pop %v12043
  %v12045 = vmul.f32 %v12011, 1.442695
  %v12046 = vpow.pop %v12045
  %v12047 = vmul.f32 %v12012, 1.442695
  %v12048 = vpow.pop %v12047
  %v12049 = vmul.f32 %v12013, 1.442695
  %v12050 = vpow.pop %v12049
  %v12051 = vmul.f32 %v12014, 1.442695
  %v12052 = vpow.pop %v12051
  %v12053 = vmul.f32 %v12015, 1.442695
  %v12054 = vpow.pop %v12053
  %v12055 = vmul.f32 %v12016, 1.442695
  %v12056 = vpow.pop %v12055
  %v12057 = vmul.f32 %v12017, 1.442695
  %v12058 = vpow.pop %v12057
  %v12059 = vmul.f32 %v12018, 1.442695
  %v12060 = vpow.pop %v12059
  %v12061 = vmul.f32 %v12019, 1.442695
  %v12062 = vpow.pop %v12061
  %v12063 = vmul.f32 %v12020, 1.442695
  %v12064 = vpow.pop %v12063
  %v12065 = vmul.f32 %v12021, 1.442695
  %v12066 = vpow.pop %v12065
  %v12067 = vmul.f32 %v12022, 1.442695
  %v12068 = vpow.pop %v12067
  %v12069 = vmul.f32 %v12023, 1.442695
  %v12070 = vpow.pop %v12069
  %v12071 = vmul.f32 %v12024, 1.442695
  %v12072 = vpow.pop %v12071
  %v12073 = vmul.f32 %v12025, 1.442695
  %v12074 = vpow.pop %v12073
  %v12075 = vmul.f32 %v12026, 1.442695
  %v12076 = vpow.pop %v12075
  %v12077 = vmul.f32 %v12027, 1.442695
  %v12078 = vpow.pop %v12077
  %v12079 = vmul.f32 %v12028, 1.442695
  %v12080 = vpow.pop %v12079
  %v12081 = vmul.f32 %v12029, 1.442695
  %v12082 = vpow.pop %v12081
  %v12083 = vmul.f32 %v12030, 1.442695
  %v12084 = vpow.pop %v12083
  %v12085 = vmul.f32 %v12031, 1.442695
  %v12086 = vpow.pop %v12085
  %v12087 = vmul.f32 %v12032, 1.442695
  %v12088 = vpow.pop %v12087
  %v12089 = vadd.f32 %v12034, 1.0
  %v12090 = vadd.f32 %v12036, 1.0
  %v12091 = vadd.f32 %v12038, 1.0
  %v12092 = vadd.f32 %v12040, 1.0
  %v12093 = vadd.f32 %v12042, 1.0
  %v12094 = vadd.f32 %v12044, 1.0
  %v12095 = vadd.f32 %v12046, 1.0
  %v12096 = vadd.f32 %v12048, 1.0
  %v12097 = vadd.f32 %v12050, 1.0
  %v12098 = vadd.f32 %v12052, 1.0
  %v12099 = vadd.f32 %v12054, 1.0
  %v12100 = vadd.f32 %v12056, 1.0
  %v12101 = vadd.f32 %v12058, 1.0
  %v12102 = vadd.f32 %v12060, 1.0
  %v12103 = vadd.f32 %v12062, 1.0
  %v12104 = vadd.f32 %v12064, 1.0
  %v12105 = vadd.f32 %v12066, 1.0
  %v12106 = vadd.f32 %v12068, 1.0
  %v12107 = vadd.f32 %v12070, 1.0
  %v12108 = vadd.f32 %v12072, 1.0
  %v12109 = vadd.f32 %v12074, 1.0
  %v12110 = vadd.f32 %v12076, 1.0
  %v12111 = vadd.f32 %v12078, 1.0
  %v12112 = vadd.f32 %v12080, 1.0
  %v12113 = vadd.f32 %v12082, 1.0
  %v12114 = vadd.f32 %v12084, 1.0
  %v12115 = vadd.f32 %v12086, 1.0
  %v12116 = vadd.f32 %v12088, 1.0
  %v12117 = vrcp.pop %v12089
  %v12118 = vmul.f32 1.0, %v12117
  %v12119 = vrcp.pop %v12090
  %v12120 = vmul.f32 1.0, %v12119
  %v12121 = vrcp.pop %v12091
  %v12122 = vmul.f32 1.0, %v12121
  %v12123 = vrcp.pop %v12092
  %v12124 = vmul.f32 1.0, %v12123
  %v12125 = vrcp.pop %v12093
  %v12126 = vmul.f32 1.0, %v12125
  %v12127 = vrcp.pop %v12094
  %v12128 = vmul.f32 1.0, %v12127
  %v12129 = vrcp.pop %v12095
  %v12130 = vmul.f32 1.0, %v12129
  %v12131 = vrcp.pop %v12096
  %v12132 = vmul.f32 1.0, %v12131
  %v12133 = vrcp.pop %v12097
  %v12134 = vmul.f32 1.0, %v12133
  %v12135 = vrcp.pop %v12098
  %v12136 = vmul.f32 1.0, %v12135
  %v12137 = vrcp.pop %v12099
  %v12138 = vmul.f32 1.0, %v12137
  %v12139 = vrcp.pop %v12100
  %v12140 = vmul.f32 1.0, %v12139
  %v12141 = vrcp.pop %v12101
  %v12142 = vmul.f32 1.0, %v12141
  %v12143 = vrcp.pop %v12102
  %v12144 = vmul.f32 1.0, %v12143
  %v12145 = vrcp.pop %v12103
  %v12146 = vmul.f32 1.0, %v12145
  %v12147 = vrcp.pop %v12104
  %v12148 = vmul.f32 1.0, %v12147
  %v12149 = vrcp.pop %v12105
  %v12150 = vmul.f32 1.0, %v12149
  %v12151 = vrcp.pop %v12106
  %v12152 = vmul.f32 1.0, %v12151
  %v12153 = vrcp.pop %v12107
  %v12154 = vmul.f32 1.0, %v12153
  %v12155 = vrcp.pop %v12108
  %v12156 = vmul.f32 1.0, %v12155
  %v12157 = vrcp.pop %v12109
  %v12158 = vmul.f32 1.0, %v12157
  %v12159 = vrcp.pop %v12110
  %v12160 = vmul.f32 1.0, %v12159
  %v12161 = vrcp.pop %v12111
  %v12162 = vmul.f32 1.0, %v12161
  %v12163 = vrcp.pop %v12112
  %v12164 = vmul.f32 1.0, %v12163
  %v12165 = vrcp.pop %v12113
  %v12166 = vmul.f32 1.0, %v12165
  %v12167 = vrcp.pop %v12114
  %v12168 = vmul.f32 1.0, %v12167
  %v12169 = vrcp.pop %v12115
  %v12170 = vmul.f32 1.0, %v12169
  %v12171 = vrcp.pop %v12116
  %v12172 = vmul.f32 1.0, %v12171
  %v12173 = vmul.f32 %v11977, %v12118
  %v12174 = vmul.f32 %v11978, %v12120
  %v12175 = vmul.f32 %v11979, %v12122
  %v12176 = vmul.f32 %v11980, %v12124
  %v12177 = vmul.f32 %v11981, %v12126
  %v12178 = vmul.f32 %v11982, %v12128
  %v12179 = vmul.f32 %v11983, %v12130
  %v12180 = vmul.f32 %v11984, %v12132
  %v12181 = vmul.f32 %v11985, %v12134
  %v12182 = vmul.f32 %v11986, %v12136
  %v12183 = vmul.f32 %v11987, %v12138
  %v12184 = vmul.f32 %v11988, %v12140
  %v12185 = vmul.f32 %v11989, %v12142
  %v12186 = vmul.f32 %v11990, %v12144
  %v12187 = vmul.f32 %v11991, %v12146
  %v12188 = vmul.f32 %v11992, %v12148
  %v12189 = vmul.f32 %v11993, %v12150
  %v12190 = vmul.f32 %v11994, %v12152
  %v12191 = vmul.f32 %v11995, %v12154
  %v12192 = vmul.f32 %v11996, %v12156
  %v12193 = vmul.f32 %v11997, %v12158
  %v12194 = vmul.f32 %v11998, %v12160
  %v12195 = vmul.f32 %v11999, %v12162
  %v12196 = vmul.f32 %v12000, %v12164
  %v12197 = vmul.f32 %v12001, %v12166
  %v12198 = vmul.f32 %v12002, %v12168
  %v12199 = vmul.f32 %v12003, %v12170
  %v12200 = vmul.f32 %v12004, %v12172
  %s12201 = scalar_lea.vmem %s14, 96
  %v12202 = vld [vmem:[%s12201] sm:$0xff]
  %v12203 = vld [vmem:[%s12201 + $0x8] sm:$0xff]
  %v12204 = vld [vmem:[%s12201 + $0x10] sm:$0xff]
  %v12205 = vld [vmem:[%s12201 + $0x18] sm:$0xff]
  %12210 = vrot.lane.b32.xlu0 %v12202, 96
  %v12211 = vpop.permute.xlu0 %12210
  %12212 = vrot.lane.b32.xlu0 %v12203, 96
  %v12213 = vpop.permute.xlu0 %12212
  %12214 = vrot.lane.b32.xlu0 %v12204, 96
  %v12215 = vpop.permute.xlu0 %12214
  %12216 = vrot.lane.b32.xlu0 %v12205, 96
  %v12217 = vpop.permute.xlu0 %12216
  %v12223 = vsel %vm284, %v12173, 0
  %v12226 = vsel %vm284, %v12174, 0
  %v12229 = vsel %vm284, %v12175, 0
  %v12232 = vsel %vm284, %v12176, 0
  %v12235 = vsel %vm284, %v12177, 0
  %v12238 = vsel %vm284, %v12178, 0
  %v12241 = vsel %vm284, %v12179, 0
  %v12244 = vsel %vm284, %v12180, 0
  %v12247 = vsel %vm284, %v12181, 0
  %v12250 = vsel %vm284, %v12182, 0
  %v12253 = vsel %vm284, %v12183, 0
  %v12256 = vsel %vm284, %v12184, 0
  %v12259 = vsel %vm284, %v12185, 0
  %v12262 = vsel %vm284, %v12186, 0
  %v12265 = vsel %vm284, %v12187, 0
  %v12268 = vsel %vm284, %v12188, 0
  %v12271 = vsel %vm284, %v12189, 0
  %v12274 = vsel %vm284, %v12190, 0
  %v12277 = vsel %vm284, %v12191, 0
  %v12280 = vsel %vm284, %v12192, 0
  %v12283 = vsel %vm284, %v12193, 0
  %v12286 = vsel %vm284, %v12194, 0
  %v12289 = vsel %vm284, %v12195, 0
  %v12292 = vsel %vm284, %v12196, 0
  %v12295 = vsel %vm284, %v12197, 0
  %v12298 = vsel %vm284, %v12198, 0
  %v12301 = vsel %vm284, %v12199, 0
  %v12304 = vsel %vm284, %v12200, 0
  %12306 = vmatprep.subr.mxu0 0.0
  %12307 = vmatpush1.msra.mxu0 %v12211
  %12308 = vmatprep.subr.mxu0 0.0
  %12309 = vmatpush1.msra.mxu0 %v12213
  %12310 = vmatprep.subr.mxu0 0.0
  %12311 = vmatpush1.msra.mxu0 %v12215
  %12312 = vmatprep.subr.mxu0 0.0
  %12313 = vmatpush1.msra.mxu0 %v12217
  %12314 = vmatprep.subr.mxu0 0.0
  %12315 = vmatpush1.msra.mxu0 0.0
  %12316 = vmatprep.subr.mxu0 0.0
  %12317 = vmatpush1.msra.mxu0 0.0
  %12318 = vmatprep.subr.mxu0 0.0
  %12319 = vmatpush1.msra.mxu0 0.0
  %12320 = vmatprep.subr.mxu0 0.0
  %12321 = vmatpush1.msra.mxu0 0.0
  %12322 = vmatprep.subr.mxu0 0.0
  %12323 = vmatpush1.msra.mxu0 0.0
  %12324 = vmatprep.subr.mxu0 0.0
  %12325 = vmatpush1.msra.mxu0 0.0
  %12326 = vmatprep.subr.mxu0 0.0
  %12327 = vmatpush1.msra.mxu0 0.0
  %12328 = vmatprep.subr.mxu0 0.0
  %12329 = vmatpush1.msra.mxu0 0.0
  %12330 = vmatprep.subr.mxu0 0.0
  %12331 = vmatpush1.msra.mxu0 0.0
  %12332 = vmatprep.subr.mxu0 0.0
  %12333 = vmatpush1.msra.mxu0 0.0
  %12334 = vmatprep.subr.mxu0 0.0
  %12335 = vmatpush1.msra.mxu0 0.0
  %12336 = vmatprep.subr.mxu0 0.0
  %12337 = vmatpush1.msra.mxu0 0.0
  %12338 = vmatprep.subr.mxu0 0.0
  %12339 = vmatpush1.msra.mxu0 0.0
  %12340 = vmatprep.subr.mxu0 0.0
  %12341 = vmatpush1.msra.mxu0 0.0
  %12342 = vmatprep.subr.mxu0 0.0
  %12343 = vmatpush1.msra.mxu0 0.0
  %12344 = vmatprep.subr.mxu0 0.0
  %12345 = vmatpush1.msra.mxu0 0.0
  %12346 = vmatprep.subr.mxu0 0.0
  %12347 = vmatpush1.msra.mxu0 0.0
  %12348 = vmatprep.subr.mxu0 0.0
  %12349 = vmatpush1.msra.mxu0 0.0
  %12350 = vmatprep.subr.mxu0 0.0
  %12351 = vmatpush1.msra.mxu0 0.0
  %12352 = vmatprep.subr.mxu0 0.0
  %12353 = vmatpush1.msra.mxu0 0.0
  %12354 = vmatprep.subr.mxu0 0.0
  %12355 = vmatpush1.msra.mxu0 0.0
  %12356 = vmatprep.subr.mxu0 0.0
  %12357 = vmatpush1.msra.mxu0 0.0
  %12358 = vmatprep.subr.mxu0 0.0
  %12359 = vmatpush1.msra.mxu0 0.0
  %12360 = vmatprep.subr.mxu0 0.0
  %12361 = vmatpush1.msra.mxu0 0.0
  %12362 = vmatprep.subr.mxu0 0.0
  %12363 = vmatpush1.msra.mxu0 0.0
  %12364 = vmatprep.subr.mxu0 0.0
  %12365 = vmatpush1.msra.mxu0 0.0
  %12366 = vmatprep.subr.mxu0 0.0
  %12367 = vmatpush1.msra.mxu0 0.0
  %12368 = vmatprep.subr.mxu0 0.0
  %12369 = vmatpush1.msra.mxu0 0.0
  %12370 = vmatprep.mubr.f32.mxu0 0.0
  %12371 = vmatmul.mubr.f32.gmra.mrb[0].mxu0 %v12223
  %v12372 = vpop.f32.mrb[0].mxu0
  %v12373 = vadd.f32 0.0, %v12372
  %v12374 = vpop.f32.mrb[0].mxu0
  %12375 = vmatprep.mubr.f32.mxu0 0.0
  %12376 = vmatmul.mubr.f32.gmra.mrb[0].mxu0 %v12226
  %v12377 = vpop.f32.mrb[0].mxu0
  %v12378 = vadd.f32 0.0, %v12377
  %v12379 = vpop.f32.mrb[0].mxu0
  %12380 = vmatprep.mubr.f32.mxu0 0.0
  %12381 = vmatmul.mubr.f32.gmra.mrb[0].mxu0 %v12229
  %v12382 = vpop.f32.mrb[0].mxu0
  %v12383 = vadd.f32 0.0, %v12382
  %v12384 = vpop.f32.mrb[0].mxu0
  %12385 = vmatprep.mubr.f32.mxu0 0.0
  %12386 = vmatmul.mubr.f32.gmra.mrb[0].mxu0 %v12232
  %v12387 = vpop.f32.mrb[0].mxu0
  %v12388 = vadd.f32 0.0, %v12387
  %v12389 = vpop.f32.mrb[0].mxu0
  %12390 = vmatprep.mubr.f32.mxu0 0.0
  %12391 = vmatmul.mubr.f32.gmra.mrb[0].mxu0 %v12235
  %v12392 = vpop.f32.mrb[0].mxu0
  %v12393 = vadd.f32 0.0, %v12392
  %v12394 = vpop.f32.mrb[0].mxu0
  %12395 = vmatprep.mubr.f32.mxu0 0.0
  %12396 = vmatmul.mubr.f32.gmra.mrb[0].mxu0 %v12238
  %v12397 = vpop.f32.mrb[0].mxu0
  %v12398 = vadd.f32 0.0, %v12397
  %v12399 = vpop.f32.mrb[0].mxu0
  %12400 = vmatprep.mubr.f32.mxu0 0.0
  %12401 = vmatmul.mubr.f32.gmra.mrb[0].mxu0 %v12241
  %v12402 = vpop.f32.mrb[0].mxu0
  %v12403 = vadd.f32 0.0, %v12402
  %v12404 = vpop.f32.mrb[0].mxu0
  %12405 = vmatprep.mubr.f32.mxu0 0.0
  %12406 = vmatmul.mubr.f32.gmra.mrb[0].mxu0 %v12244
  %v12407 = vpop.f32.mrb[0].mxu0
  %v12408 = vadd.f32 0.0, %v12407
  %v12409 = vpop.f32.mrb[0].mxu0
  %12410 = vmatprep.mubr.f32.mxu0 0.0
  %12411 = vmatmul.mubr.f32.gmra.mrb[0].mxu0 %v12247
  %v12412 = vpop.f32.mrb[0].mxu0
  %v12413 = vadd.f32 0.0, %v12412
  %v12414 = vpop.f32.mrb[0].mxu0
  %12415 = vmatprep.mubr.f32.mxu0 0.0
  %12416 = vmatmul.mubr.f32.gmra.mrb[0].mxu0 %v12250
  %v12417 = vpop.f32.mrb[0].mxu0
  %v12418 = vadd.f32 0.0, %v12417
  %v12419 = vpop.f32.mrb[0].mxu0
  %12420 = vmatprep.mubr.f32.mxu0 0.0
  %12421 = vmatmul.mubr.f32.gmra.mrb[0].mxu0 %v12253
  %v12422 = vpop.f32.mrb[0].mxu0
  %v12423 = vadd.f32 0.0, %v12422
  %v12424 = vpop.f32.mrb[0].mxu0
  %12425 = vmatprep.mubr.f32.mxu0 0.0
  %12426 = vmatmul.mubr.f32.gmra.mrb[0].mxu0 %v12256
  %v12427 = vpop.f32.mrb[0].mxu0
  %v12428 = vadd.f32 0.0, %v12427
  %v12429 = vpop.f32.mrb[0].mxu0
  %12430 = vmatprep.mubr.f32.mxu0 0.0
  %12431 = vmatmul.mubr.f32.gmra.mrb[0].mxu0 %v12259
  %v12432 = vpop.f32.mrb[0].mxu0
  %v12433 = vadd.f32 0.0, %v12432
  %v12434 = vpop.f32.mrb[0].mxu0
  %12435 = vmatprep.mubr.f32.mxu0 0.0
  %12436 = vmatmul.mubr.f32.gmra.mrb[0].mxu0 %v12262
  %v12437 = vpop.f32.mrb[0].mxu0
  %v12438 = vadd.f32 0.0, %v12437
  %v12439 = vpop.f32.mrb[0].mxu0
  %12440 = vmatprep.mubr.f32.mxu0 0.0
  %12441 = vmatmul.mubr.f32.gmra.mrb[0].mxu0 %v12265
  %v12442 = vpop.f32.mrb[0].mxu0
  %v12443 = vadd.f32 0.0, %v12442
  %v12444 = vpop.f32.mrb[0].mxu0
  %12445 = vmatprep.mubr.f32.mxu0 0.0
  %12446 = vmatmul.mubr.f32.gmra.mrb[0].mxu0 %v12268
  %v12447 = vpop.f32.mrb[0].mxu0
  %v12448 = vadd.f32 0.0, %v12447
  %v12449 = vpop.f32.mrb[0].mxu0
  %12450 = vmatprep.mubr.f32.mxu0 0.0
  %12451 = vmatmul.mubr.f32.gmra.mrb[0].mxu0 %v12271
  %v12452 = vpop.f32.mrb[0].mxu0
  %v12453 = vadd.f32 0.0, %v12452
  %v12454 = vpop.f32.mrb[0].mxu0
  %12455 = vmatprep.mubr.f32.mxu0 0.0
  %12456 = vmatmul.mubr.f32.gmra.mrb[0].mxu0 %v12274
  %v12457 = vpop.f32.mrb[0].mxu0
  %v12458 = vadd.f32 0.0, %v12457
  %v12459 = vpop.f32.mrb[0].mxu0
  %12460 = vmatprep.mubr.f32.mxu0 0.0
  %12461 = vmatmul.mubr.f32.gmra.mrb[0].mxu0 %v12277
  %v12462 = vpop.f32.mrb[0].mxu0
  %v12463 = vadd.f32 0.0, %v12462
  %v12464 = vpop.f32.mrb[0].mxu0
  %12465 = vmatprep.mubr.f32.mxu0 0.0
  %12466 = vmatmul.mubr.f32.gmra.mrb[0].mxu0 %v12280
  %v12467 = vpop.f32.mrb[0].mxu0
  %v12468 = vadd.f32 0.0, %v12467
  %v12469 = vpop.f32.mrb[0].mxu0
  %12470 = vmatprep.mubr.f32.mxu0 0.0
  %12471 = vmatmul.mubr.f32.gmra.mrb[0].mxu0 %v12283
  %v12472 = vpop.f32.mrb[0].mxu0
  %v12473 = vadd.f32 0.0, %v12472
  %v12474 = vpop.f32.mrb[0].mxu0
  %12475 = vmatprep.mubr.f32.mxu0 0.0
  %12476 = vmatmul.mubr.f32.gmra.mrb[0].mxu0 %v12286
  %v12477 = vpop.f32.mrb[0].mxu0
  %v12478 = vadd.f32 0.0, %v12477
  %v12479 = vpop.f32.mrb[0].mxu0
  %12480 = vmatprep.mubr.f32.mxu0 0.0
  %12481 = vmatmul.mubr.f32.gmra.mrb[0].mxu0 %v12289
  %v12482 = vpop.f32.mrb[0].mxu0
  %v12483 = vadd.f32 0.0, %v12482
  %v12484 = vpop.f32.mrb[0].mxu0
  %12485 = vmatprep.mubr.f32.mxu0 0.0
  %12486 = vmatmul.mubr.f32.gmra.mrb[0].mxu0 %v12292
  %v12487 = vpop.f32.mrb[0].mxu0
  %v12488 = vadd.f32 0.0, %v12487
  %v12489 = vpop.f32.mrb[0].mxu0
  %12490 = vmatprep.mubr.f32.mxu0 0.0
  %12491 = vmatmul.mubr.f32.gmra.mrb[0].mxu0 %v12295
  %v12492 = vpop.f32.mrb[0].mxu0
  %v12493 = vadd.f32 0.0, %v12492
  %v12494 = vpop.f32.mrb[0].mxu0
  %12495 = vmatprep.mubr.f32.mxu0 0.0
  %12496 = vmatmul.mubr.f32.gmra.mrb[0].mxu0 %v12298
  %v12497 = vpop.f32.mrb[0].mxu0
  %v12498 = vadd.f32 0.0, %v12497
  %v12499 = vpop.f32.mrb[0].mxu0
  %12500 = vmatprep.mubr.f32.mxu0 0.0
  %12501 = vmatmul.mubr.f32.gmra.mrb[0].mxu0 %v12301
  %v12502 = vpop.f32.mrb[0].mxu0
  %v12503 = vadd.f32 0.0, %v12502
  %v12504 = vpop.f32.mrb[0].mxu0
  %12505 = vmatprep.mubr.f32.mxu0 0.0
  %12506 = vmatmul.mubr.f32.gmra.mrb[0].mxu0 %v12304
  %v12507 = vpop.f32.mrb[0].mxu0
  %v12508 = vadd.f32 0.0, %v12507
  %v12509 = vpop.f32.mrb[0].mxu0
  %12510 = vdwg.mxu0
  %12512 = vset.pattern.permute.xlu0 0
  %12513 = vperm.xlu0 %12512, %v12373
  %v12514 = vpop.permute.xlu0 %12513
  %12517 = vset.pattern.permute.xlu0 0
  %12518 = vperm.xlu0 %12517, %v12378
  %v12519 = vpop.permute.xlu0 %12518
  %12522 = vset.pattern.permute.xlu0 0
  %12523 = vperm.xlu0 %12522, %v12383
  %v12524 = vpop.permute.xlu0 %12523
  %12527 = vset.pattern.permute.xlu0 0
  %12528 = vperm.xlu0 %12527, %v12388
  %v12529 = vpop.permute.xlu0 %12528
  %12532 = vset.pattern.permute.xlu0 0
  %12533 = vperm.xlu0 %12532, %v12393
  %v12534 = vpop.permute.xlu0 %12533
  %12537 = vset.pattern.permute.xlu0 0
  %12538 = vperm.xlu0 %12537, %v12398
  %v12539 = vpop.permute.xlu0 %12538
  %12542 = vset.pattern.permute.xlu0 0
  %12543 = vperm.xlu0 %12542, %v12403
  %v12544 = vpop.permute.xlu0 %12543
  %12547 = vset.pattern.permute.xlu0 0
  %12548 = vperm.xlu0 %12547, %v12408
  %v12549 = vpop.permute.xlu0 %12548
  %12552 = vset.pattern.permute.xlu0 0
  %12553 = vperm.xlu0 %12552, %v12413
  %v12554 = vpop.permute.xlu0 %12553
  %12557 = vset.pattern.permute.xlu0 0
  %12558 = vperm.xlu0 %12557, %v12418
  %v12559 = vpop.permute.xlu0 %12558
  %12562 = vset.pattern.permute.xlu0 0
  %12563 = vperm.xlu0 %12562, %v12423
  %v12564 = vpop.permute.xlu0 %12563
  %12567 = vset.pattern.permute.xlu0 0
  %12568 = vperm.xlu0 %12567, %v12428
  %v12569 = vpop.permute.xlu0 %12568
  %12572 = vset.pattern.permute.xlu0 0
  %12573 = vperm.xlu0 %12572, %v12433
  %v12574 = vpop.permute.xlu0 %12573
  %12577 = vset.pattern.permute.xlu0 0
  %12578 = vperm.xlu0 %12577, %v12438
  %v12579 = vpop.permute.xlu0 %12578
  %12582 = vset.pattern.permute.xlu0 0
  %12583 = vperm.xlu0 %12582, %v12443
  %v12584 = vpop.permute.xlu0 %12583
  %12587 = vset.pattern.permute.xlu0 0
  %12588 = vperm.xlu0 %12587, %v12448
  %v12589 = vpop.permute.xlu0 %12588
  %12592 = vset.pattern.permute.xlu0 0
  %12593 = vperm.xlu0 %12592, %v12453
  %v12594 = vpop.permute.xlu0 %12593
  %12597 = vset.pattern.permute.xlu0 0
  %12598 = vperm.xlu0 %12597, %v12458
  %v12599 = vpop.permute.xlu0 %12598
  %12602 = vset.pattern.permute.xlu0 0
  %12603 = vperm.xlu0 %12602, %v12463
  %v12604 = vpop.permute.xlu0 %12603
  %12607 = vset.pattern.permute.xlu0 0
  %12608 = vperm.xlu0 %12607, %v12468
  %v12609 = vpop.permute.xlu0 %12608
  %12612 = vset.pattern.permute.xlu0 0
  %12613 = vperm.xlu0 %12612, %v12473
  %v12614 = vpop.permute.xlu0 %12613
  %12617 = vset.pattern.permute.xlu0 0
  %12618 = vperm.xlu0 %12617, %v12478
  %v12619 = vpop.permute.xlu0 %12618
  %12622 = vset.pattern.permute.xlu0 0
  %12623 = vperm.xlu0 %12622, %v12483
  %v12624 = vpop.permute.xlu0 %12623
  %12627 = vset.pattern.permute.xlu0 0
  %12628 = vperm.xlu0 %12627, %v12488
  %v12629 = vpop.permute.xlu0 %12628
  %12632 = vset.pattern.permute.xlu0 0
  %12633 = vperm.xlu0 %12632, %v12493
  %v12634 = vpop.permute.xlu0 %12633
  %12637 = vset.pattern.permute.xlu0 0
  %12638 = vperm.xlu0 %12637, %v12498
  %v12639 = vpop.permute.xlu0 %12638
  %12642 = vset.pattern.permute.xlu0 0
  %12643 = vperm.xlu0 %12642, %v12503
  %v12644 = vpop.permute.xlu0 %12643
  %12647 = vset.pattern.permute.xlu0 0
  %12648 = vperm.xlu0 %12647, %v12508
  %v12649 = vpop.permute.xlu0 %12648
  %v12651 = vmul.f32 %v10442, %v12514
  %v12652 = vmul.f32 %v10447, %v12519
  %v12653 = vmul.f32 %v10452, %v12524
  %v12654 = vmul.f32 %v10457, %v12529
  %v12655 = vmul.f32 %v10462, %v12534
  %v12656 = vmul.f32 %v10467, %v12539
  %v12657 = vmul.f32 %v10472, %v12544
  %v12658 = vmul.f32 %v10477, %v12549
  %v12659 = vmul.f32 %v10482, %v12554
  %v12660 = vmul.f32 %v10487, %v12559
  %v12661 = vmul.f32 %v10492, %v12564
  %v12662 = vmul.f32 %v10497, %v12569
  %v12663 = vmul.f32 %v10502, %v12574
  %v12664 = vmul.f32 %v10507, %v12579
  %v12665 = vmul.f32 %v10512, %v12584
  %v12666 = vmul.f32 %v10517, %v12589
  %v12667 = vmul.f32 %v10522, %v12594
  %v12668 = vmul.f32 %v10527, %v12599
  %v12669 = vmul.f32 %v10532, %v12604
  %v12670 = vmul.f32 %v10537, %v12609
  %v12671 = vmul.f32 %v10542, %v12614
  %v12672 = vmul.f32 %v10547, %v12619
  %v12673 = vmul.f32 %v10552, %v12624
  %v12674 = vmul.f32 %v10557, %v12629
  %v12675 = vmul.f32 %v10562, %v12634
  %v12676 = vmul.f32 %v10567, %v12639
  %v12677 = vmul.f32 %v10572, %v12644
  %v12678 = vmul.f32 %v10577, %v12649
  %12707 = vrot.lane.b32.xlu0 %v11836, 96
  %v12708 = vpop.permute.xlu0 %12707
  %12709 = vrot.lane.b32.xlu0 %v11841, 96
  %v12710 = vpop.permute.xlu0 %12709
  %12711 = vrot.lane.b32.xlu0 %v11846, 96
  %v12712 = vpop.permute.xlu0 %12711
  %12713 = vrot.lane.b32.xlu0 %v11851, 96
  %v12714 = vpop.permute.xlu0 %12713
  %12715 = vrot.lane.b32.xlu0 %v11856, 96
  %v12716 = vpop.permute.xlu0 %12715
  %12717 = vrot.lane.b32.xlu0 %v11861, 96
  %v12718 = vpop.permute.xlu0 %12717
  %12719 = vrot.lane.b32.xlu0 %v11866, 96
  %v12720 = vpop.permute.xlu0 %12719
  %12721 = vrot.lane.b32.xlu0 %v11871, 96
  %v12722 = vpop.permute.xlu0 %12721
  %12723 = vrot.lane.b32.xlu0 %v11876, 96
  %v12724 = vpop.permute.xlu0 %12723
  %12725 = vrot.lane.b32.xlu0 %v11881, 96
  %v12726 = vpop.permute.xlu0 %12725
  %12727 = vrot.lane.b32.xlu0 %v11886, 96
  %v12728 = vpop.permute.xlu0 %12727
  %12729 = vrot.lane.b32.xlu0 %v11891, 96
  %v12730 = vpop.permute.xlu0 %12729
  %12731 = vrot.lane.b32.xlu0 %v11896, 96
  %v12732 = vpop.permute.xlu0 %12731
  %12733 = vrot.lane.b32.xlu0 %v11901, 96
  %v12734 = vpop.permute.xlu0 %12733
  %12735 = vrot.lane.b32.xlu0 %v11906, 96
  %v12736 = vpop.permute.xlu0 %12735
  %12737 = vrot.lane.b32.xlu0 %v11911, 96
  %v12738 = vpop.permute.xlu0 %12737
  %12739 = vrot.lane.b32.xlu0 %v11916, 96
  %v12740 = vpop.permute.xlu0 %12739
  %12741 = vrot.lane.b32.xlu0 %v11921, 96
  %v12742 = vpop.permute.xlu0 %12741
  %12743 = vrot.lane.b32.xlu0 %v11926, 96
  %v12744 = vpop.permute.xlu0 %12743
  %12745 = vrot.lane.b32.xlu0 %v11931, 96
  %v12746 = vpop.permute.xlu0 %12745
  %12747 = vrot.lane.b32.xlu0 %v11936, 96
  %v12748 = vpop.permute.xlu0 %12747
  %12749 = vrot.lane.b32.xlu0 %v11941, 96
  %v12750 = vpop.permute.xlu0 %12749
  %12751 = vrot.lane.b32.xlu0 %v11946, 96
  %v12752 = vpop.permute.xlu0 %12751
  %12753 = vrot.lane.b32.xlu0 %v11951, 96
  %v12754 = vpop.permute.xlu0 %12753
  %12755 = vrot.lane.b32.xlu0 %v11956, 96
  %v12756 = vpop.permute.xlu0 %12755
  %12757 = vrot.lane.b32.xlu0 %v11961, 96
  %v12758 = vpop.permute.xlu0 %12757
  %12759 = vrot.lane.b32.xlu0 %v11966, 96
  %v12760 = vpop.permute.xlu0 %12759
  %12761 = vrot.lane.b32.xlu0 %v11971, 96
  %v12762 = vpop.permute.xlu0 %12761
  %12819 = vrot.lane.b32.xlu0 %v12651, 32
  %v12820 = vpop.permute.xlu0 %12819
  %12821 = vrot.lane.b32.xlu0 %v12652, 32
  %v12822 = vpop.permute.xlu0 %12821
  %12823 = vrot.lane.b32.xlu0 %v12653, 32
  %v12824 = vpop.permute.xlu0 %12823
  %12825 = vrot.lane.b32.xlu0 %v12654, 32
  %v12826 = vpop.permute.xlu0 %12825
  %12827 = vrot.lane.b32.xlu0 %v12655, 32
  %v12828 = vpop.permute.xlu0 %12827
  %12829 = vrot.lane.b32.xlu0 %v12656, 32
  %v12830 = vpop.permute.xlu0 %12829
  %12831 = vrot.lane.b32.xlu0 %v12657, 32
  %v12832 = vpop.permute.xlu0 %12831
  %12833 = vrot.lane.b32.xlu0 %v12658, 32
  %v12834 = vpop.permute.xlu0 %12833
  %12835 = vrot.lane.b32.xlu0 %v12659, 32
  %v12836 = vpop.permute.xlu0 %12835
  %12837 = vrot.lane.b32.xlu0 %v12660, 32
  %v12838 = vpop.permute.xlu0 %12837
  %12839 = vrot.lane.b32.xlu0 %v12661, 32
  %v12840 = vpop.permute.xlu0 %12839
  %12841 = vrot.lane.b32.xlu0 %v12662, 32
  %v12842 = vpop.permute.xlu0 %12841
  %12843 = vrot.lane.b32.xlu0 %v12663, 32
  %v12844 = vpop.permute.xlu0 %12843
  %12845 = vrot.lane.b32.xlu0 %v12664, 32
  %v12846 = vpop.permute.xlu0 %12845
  %12847 = vrot.lane.b32.xlu0 %v12665, 32
  %v12848 = vpop.permute.xlu0 %12847
  %12849 = vrot.lane.b32.xlu0 %v12666, 32
  %v12850 = vpop.permute.xlu0 %12849
  %12851 = vrot.lane.b32.xlu0 %v12667, 32
  %v12852 = vpop.permute.xlu0 %12851
  %12853 = vrot.lane.b32.xlu0 %v12668, 32
  %v12854 = vpop.permute.xlu0 %12853
  %12855 = vrot.lane.b32.xlu0 %v12669, 32
  %v12856 = vpop.permute.xlu0 %12855
  %12857 = vrot.lane.b32.xlu0 %v12670, 32
  %v12858 = vpop.permute.xlu0 %12857
  %12859 = vrot.lane.b32.xlu0 %v12671, 32
  %v12860 = vpop.permute.xlu0 %12859
  %12861 = vrot.lane.b32.xlu0 %v12672, 32
  %v12862 = vpop.permute.xlu0 %12861
  %12863 = vrot.lane.b32.xlu0 %v12673, 32
  %v12864 = vpop.permute.xlu0 %12863
  %12865 = vrot.lane.b32.xlu0 %v12674, 32
  %v12866 = vpop.permute.xlu0 %12865
  %12867 = vrot.lane.b32.xlu0 %v12675, 32
  %v12868 = vpop.permute.xlu0 %12867
  %12869 = vrot.lane.b32.xlu0 %v12676, 32
  %v12870 = vpop.permute.xlu0 %12869
  %12871 = vrot.lane.b32.xlu0 %v12677, 32
  %v12872 = vpop.permute.xlu0 %12871
  %12873 = vrot.lane.b32.xlu0 %v12678, 32
  %v12874 = vpop.permute.xlu0 %12873
  %v12903 = vsel %vm284, %v12708, %v12820
  %v12904 = vsel %vm284, %v12710, %v12822
  %v12905 = vsel %vm284, %v12712, %v12824
  %v12906 = vsel %vm284, %v12714, %v12826
  %v12907 = vsel %vm284, %v12716, %v12828
  %v12908 = vsel %vm284, %v12718, %v12830
  %v12909 = vsel %vm284, %v12720, %v12832
  %v12910 = vsel %vm284, %v12722, %v12834
  %v12911 = vsel %vm284, %v12724, %v12836
  %v12912 = vsel %vm284, %v12726, %v12838
  %v12913 = vsel %vm284, %v12728, %v12840
  %v12914 = vsel %vm284, %v12730, %v12842
  %v12915 = vsel %vm284, %v12732, %v12844
  %v12916 = vsel %vm284, %v12734, %v12846
  %v12917 = vsel %vm284, %v12736, %v12848
  %v12918 = vsel %vm284, %v12738, %v12850
  %v12919 = vsel %vm284, %v12740, %v12852
  %v12920 = vsel %vm284, %v12742, %v12854
  %v12921 = vsel %vm284, %v12744, %v12856
  %v12922 = vsel %vm284, %v12746, %v12858
  %v12923 = vsel %vm284, %v12748, %v12860
  %v12924 = vsel %vm284, %v12750, %v12862
  %v12925 = vsel %vm284, %v12752, %v12864
  %v12926 = vsel %vm284, %v12754, %v12866
  %v12927 = vsel %vm284, %v12756, %v12868
  %v12928 = vsel %vm284, %v12758, %v12870
  %v12929 = vsel %vm284, %v12760, %v12872
  %v12930 = vsel %vm284, %v12762, %v12874
  %12931 = vmatprep.subr.mxu0 0.0
  %12932 = vmatpush1.msra.mxu0 %v12903
  %12933 = vmatprep.subr.mxu0 0.0
  %12934 = vmatpush1.msra.mxu0 %v12904
  %12935 = vmatprep.subr.mxu0 0.0
  %12936 = vmatpush1.msra.mxu0 %v12905
  %12937 = vmatprep.subr.mxu0 0.0
  %12938 = vmatpush1.msra.mxu0 %v12906
  %12939 = vmatprep.subr.mxu0 0.0
  %12940 = vmatpush1.msra.mxu0 %v12907
  %12941 = vmatprep.subr.mxu0 0.0
  %12942 = vmatpush1.msra.mxu0 %v12908
  %12943 = vmatprep.subr.mxu0 0.0
  %12944 = vmatpush1.msra.mxu0 %v12909
  %12945 = vmatprep.subr.mxu0 0.0
  %12946 = vmatpush1.msra.mxu0 %v12910
  %12947 = vmatprep.subr.mxu0 0.0
  %12948 = vmatpush1.msra.mxu0 %v12911
  %12949 = vmatprep.subr.mxu0 0.0
  %12950 = vmatpush1.msra.mxu0 %v12912
  %12951 = vmatprep.subr.mxu0 0.0
  %12952 = vmatpush1.msra.mxu0 %v12913
  %12953 = vmatprep.subr.mxu0 0.0
  %12954 = vmatpush1.msra.mxu0 %v12914
  %12955 = vmatprep.subr.mxu0 0.0
  %12956 = vmatpush1.msra.mxu0 %v12915
  %12957 = vmatprep.subr.mxu0 0.0
  %12958 = vmatpush1.msra.mxu0 %v12916
  %12959 = vmatprep.subr.mxu0 0.0
  %12960 = vmatpush1.msra.mxu0 %v12917
  %12961 = vmatprep.subr.mxu0 0.0
  %12962 = vmatpush1.msra.mxu0 %v12918
  %12963 = vmatprep.subr.mxu0 0.0
  %12964 = vmatpush1.msra.mxu0 %v12919
  %12965 = vmatprep.subr.mxu0 0.0
  %12966 = vmatpush1.msra.mxu0 %v12920
  %12967 = vmatprep.subr.mxu0 0.0
  %12968 = vmatpush1.msra.mxu0 %v12921
  %12969 = vmatprep.subr.mxu0 0.0
  %12970 = vmatpush1.msra.mxu0 %v12922
  %12971 = vmatprep.subr.mxu0 0.0
  %12972 = vmatpush1.msra.mxu0 %v12923
  %12973 = vmatprep.subr.mxu0 0.0
  %12974 = vmatpush1.msra.mxu0 %v12924
  %12975 = vmatprep.subr.mxu0 0.0
  %12976 = vmatpush1.msra.mxu0 %v12925
  %12977 = vmatprep.subr.mxu0 0.0
  %12978 = vmatpush1.msra.mxu0 %v12926
  %12979 = vmatprep.subr.mxu0 0.0
  %12980 = vmatpush1.msra.mxu0 %v12927
  %12981 = vmatprep.subr.mxu0 0.0
  %12982 = vmatpush1.msra.mxu0 %v12928
  %12983 = vmatprep.subr.mxu0 0.0
  %12984 = vmatpush1.msra.mxu0 %v12929
  %12985 = vmatprep.subr.mxu0 0.0
  %12986 = vmatpush1.msra.mxu0 %v12930
  %12987 = vmatprep.subr.mxu0 0.0
  %12988 = vmatpush1.msra.mxu0 0.0
  %12989 = vmatprep.subr.mxu0 0.0
  %12990 = vmatpush1.msra.mxu0 0.0
  %12991 = vmatprep.subr.mxu0 0.0
  %12992 = vmatpush1.msra.mxu0 0.0
  %12993 = vmatprep.subr.mxu0 0.0
  %12994 = vmatpush1.msra.mxu0 0.0
  %12995 = vmatprep.mubr.f32.mxu0 %v3410
  %12996 = vmatmul.mubr.f32.gmra.mrb[0].mxu0 %v119
  %v12997 = vpop.f32.mrb[0].mxu0
  %v12998 = vadd.f32 0.0, %v12997
  %v12999 = vpop.f32.mrb[0].mxu0
  %13000 = vmatprep.mubr.f32.mxu0 %v3413
  %13001 = vmatmul.mubr.f32.gmra.mrb[0].mxu0 %v121
  %v13002 = vpop.f32.mrb[0].mxu0
  %v13003 = vadd.f32 0.0, %v13002
  %v13004 = vpop.f32.mrb[0].mxu0
  %13005 = vmatprep.mubr.f32.mxu0 %v3416
  %13006 = vmatmul.mubr.f32.gmra.mrb[0].mxu0 %v123
  %v13007 = vpop.f32.mrb[0].mxu0
  %v13008 = vadd.f32 0.0, %v13007
  %v13009 = vpop.f32.mrb[0].mxu0
  %13010 = vmatprep.mubr.f32.mxu0 %v3419
  %13011 = vmatmul.mubr.f32.gmra.mrb[0].mxu0 %v125
  %v13012 = vpop.f32.mrb[0].mxu0
  %v13013 = vadd.f32 0.0, %v13012
  %v13014 = vpop.f32.mrb[0].mxu0
  %13015 = vdwg.mxu0
  %v13016 = vmul.f32 %v12998, %v3509
  %v13017 = vmul.f32 %v13003, %v3514
  %v13018 = vmul.f32 %v13008, %v3519
  %v13019 = vmul.f32 %v13013, %v3524
  %v13020 = vxor.u32 %v10341, 2147483648
  %v13021 = vxor.u32 %v10346, 2147483648
  %v13022 = vxor.u32 %v10351, 2147483648
  %v13023 = vxor.u32 %v10356, 2147483648
  %v13024 = vmul.f32 %v13020, 1.442695
  %v13025 = vpow.pop %v13024
  %v13026 = vmul.f32 %v13021, 1.442695
  %v13027 = vpow.pop %v13026
  %v13028 = vmul.f32 %v13022, 1.442695
  %v13029 = vpow.pop %v13028
  %v13030 = vmul.f32 %v13023, 1.442695
  %v13031 = vpow.pop %v13030
  %v13032 = vadd.f32 %v13025, 1.0
  %v13033 = vadd.f32 %v13027, 1.0
  %v13034 = vadd.f32 %v13029, 1.0
  %v13035 = vadd.f32 %v13031, 1.0
  %v13036 = vrcp.pop %v13032
  %v13037 = vmul.f32 1.0, %v13036
  %v13038 = vrcp.pop %v13033
  %v13039 = vmul.f32 1.0, %v13038
  %v13040 = vrcp.pop %v13034
  %v13041 = vmul.f32 1.0, %v13040
  %v13042 = vrcp.pop %v13035
  %v13043 = vmul.f32 1.0, %v13042
  %v13044 = vmul.f32 %v10341, %v13037
  %v13045 = vmul.f32 %v10346, %v13039
  %v13046 = vmul.f32 %v10351, %v13041
  %v13047 = vmul.f32 %v10356, %v13043
  %s13048 = scalar_lea.vmem %s16, 192
  %v13049 = vld [vmem:[%s13048] sm:$0xff]
  %v13050 = vld [vmem:[%s13048 + $0x8] sm:$0xff]
  %v13051 = vld [vmem:[%s13048 + $0x10] sm:$0xff]
  %v13052 = vld [vmem:[%s13048 + $0x18] sm:$0xff]
  %v13053 = vld [vmem:[%s13048 + $0x20] sm:$0xff]
  %v13054 = vld [vmem:[%s13048 + $0x28] sm:$0xff]
  %v13055 = vld [vmem:[%s13048 + $0x30] sm:$0xff]
  %v13056 = vld [vmem:[%s13048 + $0x38] sm:$0xff]
  %s13057 = scalar_lea.vmem %s17, 3
  %v13058 = vld [vmem:[%s13057] sm:$0x1]
  %v13060 = vlaneseq
  %v13061 = vshrl.u32 %v13060, 7
  %v13062 = vsub.s32 0, %v13061
  %v13063 = vrot.slane %v13058, %v13062
  %v13066 = vsel %vm3573, %v13044, 0
  %v13069 = vsel %vm3573, %v13045, 0
  %v13072 = vsel %vm3573, %v13046, 0
  %v13075 = vsel %vm3573, %v13047, 0
  %13077 = vmatprep.subr.mxu0 0.0
  %13078 = vmatpush1.msra.mxu0 %v13049
  %13079 = vmatprep.subr.mxu0 0.0
  %13080 = vmatpush1.msra.mxu0 %v13050
  %13081 = vmatprep.subr.mxu0 0.0
  %13082 = vmatpush1.msra.mxu0 %v13051
  %13083 = vmatprep.subr.mxu0 0.0
  %13084 = vmatpush1.msra.mxu0 %v13052
  %13085 = vmatprep.subr.mxu0 0.0
  %13086 = vmatpush1.msra.mxu0 %v13053
  %13087 = vmatprep.subr.mxu0 0.0
  %13088 = vmatpush1.msra.mxu0 %v13054
  %13089 = vmatprep.subr.mxu0 0.0
  %13090 = vmatpush1.msra.mxu0 %v13055
  %13091 = vmatprep.subr.mxu0 0.0
  %13092 = vmatpush1.msra.mxu0 %v13056
  %13093 = vmatprep.subr.mxu0 0.0
  %13094 = vmatpush1.msra.mxu0 0.0
  %13095 = vmatprep.subr.mxu0 0.0
  %13096 = vmatpush1.msra.mxu0 0.0
  %13097 = vmatprep.subr.mxu0 0.0
  %13098 = vmatpush1.msra.mxu0 0.0
  %13099 = vmatprep.subr.mxu0 0.0
  %13100 = vmatpush1.msra.mxu0 0.0
  %13101 = vmatprep.subr.mxu0 0.0
  %13102 = vmatpush1.msra.mxu0 0.0
  %13103 = vmatprep.subr.mxu0 0.0
  %13104 = vmatpush1.msra.mxu0 0.0
  %13105 = vmatprep.subr.mxu0 0.0
  %13106 = vmatpush1.msra.mxu0 0.0
  %13107 = vmatprep.subr.mxu0 0.0
  %13108 = vmatpush1.msra.mxu0 0.0
  %13109 = vmatprep.subr.mxu0 0.0
  %13110 = vmatpush1.msra.mxu0 0.0
  %13111 = vmatprep.subr.mxu0 0.0
  %13112 = vmatpush1.msra.mxu0 0.0
  %13113 = vmatprep.subr.mxu0 0.0
  %13114 = vmatpush1.msra.mxu0 0.0
  %13115 = vmatprep.subr.mxu0 0.0
  %13116 = vmatpush1.msra.mxu0 0.0
  %13117 = vmatprep.subr.mxu0 0.0
  %13118 = vmatpush1.msra.mxu0 0.0
  %13119 = vmatprep.subr.mxu0 0.0
  %13120 = vmatpush1.msra.mxu0 0.0
  %13121 = vmatprep.subr.mxu0 0.0
  %13122 = vmatpush1.msra.mxu0 0.0
  %13123 = vmatprep.subr.mxu0 0.0
  %13124 = vmatpush1.msra.mxu0 0.0
  %13125 = vmatprep.subr.mxu0 0.0
  %13126 = vmatpush1.msra.mxu0 0.0
  %13127 = vmatprep.subr.mxu0 0.0
  %13128 = vmatpush1.msra.mxu0 0.0
  %13129 = vmatprep.subr.mxu0 0.0
  %13130 = vmatpush1.msra.mxu0 0.0
  %13131 = vmatprep.subr.mxu0 0.0
  %13132 = vmatpush1.msra.mxu0 0.0
  %13133 = vmatprep.subr.mxu0 0.0
  %13134 = vmatpush1.msra.mxu0 0.0
  %13135 = vmatprep.subr.mxu0 0.0
  %13136 = vmatpush1.msra.mxu0 0.0
  %13137 = vmatprep.subr.mxu0 0.0
  %13138 = vmatpush1.msra.mxu0 0.0
  %13139 = vmatprep.subr.mxu0 0.0
  %13140 = vmatpush1.msra.mxu0 0.0
  %13141 = vmatprep.mubr.f32.mxu0 0.0
  %13142 = vmatmul.mubr.f32.gmra.mrb[0].mxu0 %v13066
  %v13143 = vpop.f32.mrb[0].mxu0
  %v13144 = vadd.f32 %v13063, %v13143
  %v13145 = vpop.f32.mrb[0].mxu0
  %13146 = vmatprep.mubr.f32.mxu0 0.0
  %13147 = vmatmul.mubr.f32.gmra.mrb[0].mxu0 %v13069
  %v13148 = vpop.f32.mrb[0].mxu0
  %v13149 = vadd.f32 %v13063, %v13148
  %v13150 = vpop.f32.mrb[0].mxu0
  %13151 = vmatprep.mubr.f32.mxu0 0.0
  %13152 = vmatmul.mubr.f32.gmra.mrb[0].mxu0 %v13072
  %v13153 = vpop.f32.mrb[0].mxu0
  %v13154 = vadd.f32 %v13063, %v13153
  %v13155 = vpop.f32.mrb[0].mxu0
  %13156 = vmatprep.mubr.f32.mxu0 0.0
  %13157 = vmatmul.mubr.f32.gmra.mrb[0].mxu0 %v13075
  %v13158 = vpop.f32.mrb[0].mxu0
  %v13159 = vadd.f32 %v13063, %v13158
  %v13160 = vpop.f32.mrb[0].mxu0
  %13161 = vdwg.mxu0
  %13166 = vrot.lane.b32.xlu0 %v13016, 97
  %v13167 = vpop.permute.xlu0 %13166
  %13168 = vrot.lane.b32.xlu0 %v13017, 97
  %v13169 = vpop.permute.xlu0 %13168
  %13170 = vrot.lane.b32.xlu0 %v13018, 97
  %v13171 = vpop.permute.xlu0 %13170
  %13172 = vrot.lane.b32.xlu0 %v13019, 97
  %v13173 = vpop.permute.xlu0 %13172
  %v13178 = vadd.f32 %v10104, %v13167
  %v13179 = vadd.f32 %v10105, %v13169
  %v13180 = vadd.f32 %v10106, %v13171
  %v13181 = vadd.f32 %v10107, %v13173
  %13183 = vset.pattern.permute.xlu0 0
  %13184 = vperm.xlu0 %13183, %v13144
  %v13185 = vpop.permute.xlu0 %13184
  %13188 = vset.pattern.permute.xlu0 0
  %13189 = vperm.xlu0 %13188, %v13149
  %v13190 = vpop.permute.xlu0 %13189
  %13193 = vset.pattern.permute.xlu0 0
  %13194 = vperm.xlu0 %13193, %v13154
  %v13195 = vpop.permute.xlu0 %13194
  %13198 = vset.pattern.permute.xlu0 0
  %13199 = vperm.xlu0 %13198, %v13159
  %v13200 = vpop.permute.xlu0 %13199
  %v13202 = vmul.f32 %v13185, %v59
  %v13203 = vmul.f32 %v13190, %v60
  %v13204 = vmul.f32 %v13195, %v61
  %v13205 = vmul.f32 %v13200, %v62
  %13210 = vrot.lane.b32.xlu0 %v13202, 125
  %v13211 = vpop.permute.xlu0 %13210
  %13212 = vrot.lane.b32.xlu0 %v13203, 125
  %v13213 = vpop.permute.xlu0 %13212
  %13214 = vrot.lane.b32.xlu0 %v13204, 125
  %v13215 = vpop.permute.xlu0 %13214
  %13216 = vrot.lane.b32.xlu0 %v13205, 125
  %v13217 = vpop.permute.xlu0 %13216
  %v13222 = vadd.f32 %v13178, %v13211
  %v13223 = vadd.f32 %v13179, %v13213
  %v13224 = vadd.f32 %v13180, %v13215
  %v13225 = vadd.f32 %v13181, %v13217
  %13226 = vset.pattern.permute.xlu0 1
  %13227 = vperm.xlu0 %13226, %v13144
  %v13228 = vpop.permute.xlu0 %13227
  %13230 = vset.pattern.permute.xlu0 1
  %13231 = vperm.xlu0 %13230, %v13149
  %v13232 = vpop.permute.xlu0 %13231
  %13234 = vset.pattern.permute.xlu0 1
  %13235 = vperm.xlu0 %13234, %v13154
  %v13236 = vpop.permute.xlu0 %13235
  %13238 = vset.pattern.permute.xlu0 1
  %13239 = vperm.xlu0 %13238, %v13159
  %v13240 = vpop.permute.xlu0 %13239
  %v13242 = vmul.f32 %v13228, %v508
  %v13243 = vmul.f32 %v13232, %v513
  %v13244 = vmul.f32 %v13236, %v518
  %v13245 = vmul.f32 %v13240, %v523
  %13250 = vrot.lane.b32.xlu0 %v13242, 1
  %v13251 = vpop.permute.xlu0 %13250
  %13252 = vrot.lane.b32.xlu0 %v13243, 1
  %v13253 = vpop.permute.xlu0 %13252
  %13254 = vrot.lane.b32.xlu0 %v13244, 1
  %v13255 = vpop.permute.xlu0 %13254
  %13256 = vrot.lane.b32.xlu0 %v13245, 1
  %v13257 = vpop.permute.xlu0 %13256
  %v13262 = vadd.f32 %v13222, %v13251
  %v13263 = vadd.f32 %v13223, %v13253
  %v13264 = vadd.f32 %v13224, %v13255
  %v13265 = vadd.f32 %v13225, %v13257
  %13270 = vrot.lane.b32.xlu0 %v13262, 127
  %v13271 = vpop.permute.xlu0 %13270
  %13272 = vrot.lane.b32.xlu0 %v13263, 127
  %v13273 = vpop.permute.xlu0 %13272
  %13274 = vrot.lane.b32.xlu0 %v13264, 127
  %v13275 = vpop.permute.xlu0 %13274
  %13276 = vrot.lane.b32.xlu0 %v13265, 127
  %v13277 = vpop.permute.xlu0 %13276
  %13282 = vst.msk [vmem:[%s18] sm:$0xff] %vm1002, %v13271
  %13283 = vst.msk [vmem:[%s18 + $0x8] sm:$0xff] %vm1002, %v13273
  %13284 = vst.msk [vmem:[%s18 + $0x10] sm:$0xff] %vm1002, %v13275
  %13285 = vst.msk [vmem:[%s18 + $0x18] sm:$0xff] %vm1002, %v13277
  // Predicated region
  $region74: #{tpu_custom_call.1} parent=0 // pred_check
    _
  $region75: #{tpu_custom_call.1} parent=0 // pred_check_branch
    %13287 = sbr.rel (0) target = $region77
  $region76: #{tpu_custom_call.1} parent=0 // pred_region
    _
  $region77: #{tpu_custom_call.1} parent=0 // pred_fallthru
    _
  // Predicated region
  $region78: #{tpu_custom_call.1} parent=0 // pred_check
    _
  $region79: #{tpu_custom_call.1} parent=0 // pred_check_branch
    %13289 = sbr.rel (0) target = $region81
  $region80: #{tpu_custom_call.1} parent=0 // pred_region
    _
  $region81: #{tpu_custom_call.1} parent=0 // pred_fallthru
    _

</llo_original>
